<compile_context>
chip_gen: v5e
topology: v5e:2x2
jax: 0.10.0
libtpu: 0.0.40
codegen_flags: <defaults>
</compile_context>

<pallas_src>
import functools

import jax
import jax.numpy as jnp
from jax.experimental import pallas as pl
from jax.experimental.pallas import tpu as pltpu


CFG = [16, 16, 32, 32, 32, 32, 32, 64, 64, 64, 128, 128, 128]
DIL = [1, 1, 2, 2, 4, 4, 4, 8, 8, 8, 16, 16, 16]
STAGE_INDEX = (3, 6, 9, 12)

_ROW_TILE_CAP = 1024            # spatial rows per kernel invocation
_VMEM_LIMIT = 32 * 1024 * 1024  # explicit scoped-VMEM budget (safe on v5e/v6e/v7x)


def _row_tile(p, cap=_ROW_TILE_CAP):
    """Largest multiple-of-8 divisor of p that is <= cap (else p itself)."""
    if p <= cap:
        return p
    for t in range(cap - cap % 8, 7, -8):
        if p % t == 0:
            return t
    return p


# ---------------------------------------------------------------------------
# Pallas kernel: one fused Pang unit (both branches + sum) per (batch, tile).
# ---------------------------------------------------------------------------
def _pang_kernel(taps_ref, x1_ref, w0_ref, b0_ref, w1_ref, b1_ref, out_ref,
                 *, cin, phases):
    # taps_ref : (TP, 9*Cin)        bf16  channel-folded 3x3 taps (branch0 grid)
    # x1_ref   : (TP, phases*Cin)   bf16  branch1 input (phase-folded if phases==4)
    # w0_ref   : (9*Cin, Cout) bf16 ; b0_ref : (1, Cout) f32
    # w1_ref   : (Cin, Cout)   bf16 ; b1_ref : (1, Cout) f32
    # out_ref  : (TP, phases*Cout)  f32
    y0 = jnp.dot(taps_ref[...], w0_ref[...], preferred_element_type=jnp.float32)
    y0 = jnp.maximum(y0 + b0_ref[...], 0.0)          # branch0: conv3x3 + bias + ReLU

    x1 = x1_ref[...]
    w1 = w1_ref[...]
    b1 = b1_ref[...]
    parts = []
    for p in range(phases):                          # static unroll (1 or 4)
        lhs = x1 if phases == 1 else x1[:, p * cin:(p + 1) * cin]
        y1 = jnp.dot(lhs, w1, preferred_element_type=jnp.float32)
        y1 = jnp.maximum(y1 + b1, 0.0)               # branch1: conv1x1 + bias + ReLU
        parts.append(y0 + y1)                        # fused sum (phase-folded)
    out = parts[0] if phases == 1 else jnp.concatenate(parts, axis=-1)
    out_ref[...] = out.astype(out_ref.dtype)


def _pang_call(taps, x1, w0, b0, w1, b1, *, phases):
    """taps: (N, P, 9*Cin) bf16; x1: (N, P, phases*Cin) bf16 -> (N, P, phases*Cout) f32."""
    n, p_rows, k9 = taps.shape
    cin, cout = w1.shape
    tp = _row_tile(p_rows)
    grid = (n, p_rows // tp)
    kern = functools.partial(_pang_kernel, cin=cin, phases=phases)
    return pl.pallas_call(
        kern,
        out_shape=jax.ShapeDtypeStruct((n, p_rows, phases * cout), jnp.float32),
        grid=grid,
        in_specs=[
            pl.BlockSpec((None, tp, k9), lambda b, t: (b, t, 0)),
            pl.BlockSpec((None, tp, phases * cin), lambda b, t: (b, t, 0)),
            pl.BlockSpec((k9, cout), lambda b, t: (0, 0)),
            pl.BlockSpec((1, cout), lambda b, t: (0, 0)),
            pl.BlockSpec((cin, cout), lambda b, t: (0, 0)),
            pl.BlockSpec((1, cout), lambda b, t: (0, 0)),
        ],
        out_specs=pl.BlockSpec((None, tp, phases * cout), lambda b, t: (b, t, 0)),
        compiler_params=pltpu.CompilerParams(
            dimension_semantics=("parallel", "parallel"),
            vmem_limit_bytes=_VMEM_LIMIT,
        ),
    )(taps, x1, w0, b0, w1, b1)


# ---------------------------------------------------------------------------
# Layer glue (tap folding / phase folding) in plain JAX.
# ---------------------------------------------------------------------------
def _plain_layer(x, w0, b0, w1, b1):
    """Pang_unit (layers 0-1): 3x3 s1 p1 d1 conv+ReLU  +  1x1 conv+ReLU, summed."""
    n, h, w, c = x.shape
    xb = x.astype(jnp.bfloat16)
    xp = jnp.pad(xb, ((0, 0), (1, 1), (1, 1), (0, 0)))
    # channel-folded taps: column block (3*dy+dx)*c holds x_pad[h+dy, w+dx, :]
    taps = jnp.concatenate(
        [xp[:, dy:dy + h, dx:dx + w, :] for dy in range(3) for dx in range(3)],
        axis=-1,
    ).reshape(n, h * w, 9 * c)
    x1 = xb.reshape(n, h * w, c)
    cout = w1.shape[1]
    y = _pang_call(taps, x1, w0, b0, w1, b1, phases=1)
    return y.reshape(n, h, w, cout)


def _stride_layer(x, w0, b0, w1, b1, d):
    """Pang_unit_stride: 3x3 s2 p=d dilation=d conv+ReLU -> nearest x2 upsample,
    plus 1x1 conv+ReLU, summed.  Branch0 runs at quarter resolution; the
    upsample + sum is fused through a 4-phase output layout."""
    n, h, w, c = x.shape
    hq, wq = h // 2, w // 2
    xb = x.astype(jnp.bfloat16)
    xp = jnp.pad(xb, ((0, 0), (d, d), (d, d), (0, 0)))
    # quarter-resolution channel-folded taps of the stride-2 dilated conv:
    # taps[n, i*wq+j, (3*dy+dx)*c + cc] = x_pad[n, 2i + dy*d, 2j + dx*d, cc]
    taps = jnp.concatenate(
        [xp[:, dy * d:dy * d + h:2, dx * d:dx * d + w:2, :]
         for dy in range(3) for dx in range(3)],
        axis=-1,
    ).reshape(n, hq * wq, 9 * c)
    # phase-folded branch1 input: x_ph[n, i*wq+j, (2a+b)*c + cc] = x[n, 2i+a, 2j+b, cc]
    x_ph = jnp.transpose(
        xb.reshape(n, hq, 2, wq, 2, c), (0, 1, 3, 2, 4, 5)
    ).reshape(n, hq * wq, 4 * c)
    cout = w1.shape[1]
    y = _pang_call(taps, x_ph, w0, b0, w1, b1, phases=4)
    # un-fold the 4 output phases back to full resolution (nearest x2 upsample
    # of branch0 already applied via the shared y0 inside the kernel).
    out = jnp.transpose(
        y.reshape(n, hq, wq, 2, 2, cout), (0, 1, 3, 2, 4, 5)
    ).reshape(n, h, w, cout)
    return out


# ---------------------------------------------------------------------------
# Parameter construction (deterministic, kaiming-like).  Weights bf16, biases f32.
# ---------------------------------------------------------------------------
def init_params(key):
    params = []
    in_c = 3
    for i, out_c in enumerate(CFG):
        k = jax.random.fold_in(key, i)
        k0, k1, k2, k3 = jax.random.split(k, 4)
        std0 = (2.0 / (9 * in_c)) ** 0.5   # kaiming for 3x3 conv
        std1 = (2.0 / in_c) ** 0.5         # kaiming for 1x1 conv
        w0 = (jax.random.normal(k0, (9 * in_c, out_c), jnp.float32) * std0
              ).astype(jnp.bfloat16)       # folded: row (3*dy+dx)*Cin + cin
        w1 = (jax.random.normal(k1, (in_c, out_c), jnp.float32) * std1
              ).astype(jnp.bfloat16)
        b0 = jax.random.normal(k2, (1, out_c), jnp.float32) * 0.01
        b1 = jax.random.normal(k3, (1, out_c), jnp.float32) * 0.01
        params.append((w0, b0, w1, b1))
        in_c = out_c
    return params


# ---------------------------------------------------------------------------
# FatNet forward.
# ---------------------------------------------------------------------------
def fatnet_forward(x_nchw, params):
    x = jnp.transpose(x_nchw, (0, 2, 3, 1)).astype(jnp.float32)  # NCHW -> NHWC
    outputs = []
    for i, out_c in enumerate(CFG):
        w0, b0, w1, b1 = params[i]
        if i <= 1:
            x = _plain_layer(x, w0, b0, w1, b1)
        else:
            x = _stride_layer(x, w0, b0, w1, b1, DIL[i])
        if i in STAGE_INDEX:
            outputs.append(jnp.transpose(x, (0, 3, 1, 2)))        # back to NCHW
    return tuple(outputs)


if __name__ == "__main__":
    key = jax.random.PRNGKey(0)
    pkey, xkey = jax.random.split(key)
    params = init_params(pkey)

    # Small NCHW input (batch=2, in_channels=3 fixed by the backbone, 16x16).
    x = jax.random.normal(xkey, (2, 3, 16, 16), jnp.float32)

    fwd = jax.jit(functools.partial(fatnet_forward, params=params))
    outs = fwd(x)
    outs = jax.block_until_ready(outs)

    expected = [(2, 32, 16, 16), (2, 32, 16, 16), (2, 64, 16, 16), (2, 128, 16, 16)]
    assert len(outs) == len(expected)
    for o, s in zip(outs, expected):
        assert o.shape == s, (o.shape, s)
        assert bool(jnp.all(jnp.isfinite(o)))

    print("KERNEL_OK")
</pallas_src>

<mosaic_0001>
module attributes {stable_mosaic.version = 11 : i64} {
  func.func @_pang_kernel(%arg0: i32, %arg1: i32, %arg2: memref<1x256x27xbf16, #tpu.memory_space<vmem>>, %arg3: memref<1x256x3xbf16, #tpu.memory_space<vmem>>, %arg4: memref<27x16xbf16, #tpu.memory_space<vmem>>, %arg5: memref<1x16xf32, #tpu.memory_space<vmem>>, %arg6: memref<3x16xbf16, #tpu.memory_space<vmem>>, %arg7: memref<1x16xf32, #tpu.memory_space<vmem>>, %arg8: memref<1x256x16xf32, #tpu.memory_space<vmem>>) attributes {dimension_semantics = [#tpu.dimension_semantics<parallel>, #tpu.dimension_semantics<parallel>], iteration_bounds = array<i64: 2, 1>, scalar_prefetch = 0 : i64, scratch_operands = 0 : i64, tpu.core_type = #tpu.core_type<tc>, window_params = [{transform_indices = @transform_0, window_bounds = array<i64: 1, 256, 27>}, {transform_indices = @transform_1, window_bounds = array<i64: 1, 256, 3>}, {pipeline_mode = #tpu.pipeline_mode<synchronous>, transform_indices = @transform_2, window_bounds = array<i64: 27, 16>}, {pipeline_mode = #tpu.pipeline_mode<synchronous>, transform_indices = @transform_3, window_bounds = array<i64: 1, 16>}, {pipeline_mode = #tpu.pipeline_mode<synchronous>, transform_indices = @transform_4, window_bounds = array<i64: 3, 16>}, {pipeline_mode = #tpu.pipeline_mode<synchronous>, transform_indices = @transform_5, window_bounds = array<i64: 1, 16>}, {transform_indices = @transform_6, window_bounds = array<i64: 1, 256, 16>}]} {
    %c0 = arith.constant 0 : index
    %c0_0 = arith.constant 0 : index
    %c0_1 = arith.constant 0 : index
    %0 = vector.load %arg2[%c0, %c0_0, %c0_1] : memref<1x256x27xbf16, #tpu.memory_space<vmem>>, vector<1x256x27xbf16>
    %1 = vector.shape_cast %0 : vector<1x256x27xbf16> to vector<256x27xbf16>
    %c0_2 = arith.constant 0 : index
    %c0_3 = arith.constant 0 : index
    %2 = vector.load %arg4[%c0_2, %c0_3] : memref<27x16xbf16, #tpu.memory_space<vmem>>, vector<27x16xbf16>
    %cst = arith.constant dense<0.000000e+00> : vector<256x16xf32>
    %3 = tpu.matmul %1, %2, %cst {dimension_numbers = #tpu.dot_dimension_numbers<[1], [0], [0], [1], [0, 0, 1, 1], [], []>} : vector<256x27xbf16>, vector<27x16xbf16>, vector<256x16xf32> -> vector<256x16xf32>
    %c0_4 = arith.constant 0 : index
    %c0_5 = arith.constant 0 : index
    %4 = vector.load %arg5[%c0_4, %c0_5] : memref<1x16xf32, #tpu.memory_space<vmem>>, vector<1x16xf32>
    %5 = vector.broadcast %4 : vector<1x16xf32> to vector<256x16xf32>
    %6 = arith.addf %3, %5 : vector<256x16xf32>
    %cst_6 = arith.constant 0.000000e+00 : f32
    %7 = vector.broadcast %cst_6 : f32 to vector<256x16xf32>
    %8 = arith.maximumf %6, %7 : vector<256x16xf32>
    %c0_7 = arith.constant 0 : index
    %c0_8 = arith.constant 0 : index
    %c0_9 = arith.constant 0 : index
    %9 = vector.load %arg3[%c0_7, %c0_8, %c0_9] : memref<1x256x3xbf16, #tpu.memory_space<vmem>>, vector<1x256x3xbf16>
    %10 = vector.shape_cast %9 : vector<1x256x3xbf16> to vector<256x3xbf16>
    %c0_10 = arith.constant 0 : index
    %c0_11 = arith.constant 0 : index
    %11 = vector.load %arg6[%c0_10, %c0_11] : memref<3x16xbf16, #tpu.memory_space<vmem>>, vector<3x16xbf16>
    %c0_12 = arith.constant 0 : index
    %c0_13 = arith.constant 0 : index
    %12 = vector.load %arg7[%c0_12, %c0_13] : memref<1x16xf32, #tpu.memory_space<vmem>>, vector<1x16xf32>
    %cst_14 = arith.constant dense<0.000000e+00> : vector<256x16xf32>
    %13 = tpu.matmul %10, %11, %cst_14 {dimension_numbers = #tpu.dot_dimension_numbers<[1], [0], [0], [1], [0, 0, 1, 1], [], []>} : vector<256x3xbf16>, vector<3x16xbf16>, vector<256x16xf32> -> vector<256x16xf32>
    %14 = vector.broadcast %12 : vector<1x16xf32> to vector<256x16xf32>
    %15 = arith.addf %13, %14 : vector<256x16xf32>
    %cst_15 = arith.constant 0.000000e+00 : f32
    %16 = vector.broadcast %cst_15 : f32 to vector<256x16xf32>
    %17 = arith.maximumf %15, %16 : vector<256x16xf32>
    %18 = arith.addf %8, %17 : vector<256x16xf32>
    %c0_16 = arith.constant 0 : index
    %c0_17 = arith.constant 0 : index
    %c0_18 = arith.constant 0 : index
    %19 = vector.load %arg8[%c0_16, %c0_17, %c0_18] : memref<1x256x16xf32, #tpu.memory_space<vmem>>, vector<1x256x16xf32>
    %20 = vector.shape_cast %19 : vector<1x256x16xf32> to vector<256x16xf32>
    %21 = vector.shape_cast %18 : vector<256x16xf32> to vector<1x256x16xf32>
    tpu.vector_store %arg8[%c0_16, %c0_17, %c0_18], %21 {strides = array<i32>} : memref<1x256x16xf32, #tpu.memory_space<vmem>>, vector<1x256x16xf32>,
    return
  }
  func.func @transform_0(%arg0: i32, %arg1: i32) -> (i32, i32, i32) {
    %c0_i32 = arith.constant 0 : i32
    %c0_i32_0 = arith.constant 0 : i32
    return %arg0, %arg1, %c0_i32 : i32, i32, i32
  }
  func.func @transform_1(%arg0: i32, %arg1: i32) -> (i32, i32, i32) {
    %c0_i32 = arith.constant 0 : i32
    %c0_i32_0 = arith.constant 0 : i32
    return %arg0, %arg1, %c0_i32 : i32, i32, i32
  }
  func.func @transform_2(%arg0: i32, %arg1: i32) -> (i32, i32) {
    %c0_i32 = arith.constant 0 : i32
    %c0_i32_0 = arith.constant 0 : i32
    %c0_i32_1 = arith.constant 0 : i32
    return %c0_i32, %c0_i32_0 : i32, i32
  }
  func.func @transform_3(%arg0: i32, %arg1: i32) -> (i32, i32) {
    %c0_i32 = arith.constant 0 : i32
    %c0_i32_0 = arith.constant 0 : i32
    %c0_i32_1 = arith.constant 0 : i32
    return %c0_i32, %c0_i32_0 : i32, i32
  }
  func.func @transform_4(%arg0: i32, %arg1: i32) -> (i32, i32) {
    %c0_i32 = arith.constant 0 : i32
    %c0_i32_0 = arith.constant 0 : i32
    %c0_i32_1 = arith.constant 0 : i32
    return %c0_i32, %c0_i32_0 : i32, i32
  }
  func.func @transform_5(%arg0: i32, %arg1: i32) -> (i32, i32) {
    %c0_i32 = arith.constant 0 : i32
    %c0_i32_0 = arith.constant 0 : i32
    %c0_i32_1 = arith.constant 0 : i32
    return %c0_i32, %c0_i32_0 : i32, i32
  }
  func.func @transform_6(%arg0: i32, %arg1: i32) -> (i32, i32, i32) {
    %c0_i32 = arith.constant 0 : i32
    %c0_i32_0 = arith.constant 0 : i32
    return %arg0, %arg1, %c0_i32 : i32, i32, i32
  }
}

module attributes {stable_mosaic.version = 11 : i64} {
  func.func @_pang_kernel(%arg0: i32, %arg1: i32, %arg2: memref<1x256x144xbf16, #tpu.memory_space<vmem>>, %arg3: memref<1x256x16xbf16, #tpu.memory_space<vmem>>, %arg4: memref<144x16xbf16, #tpu.memory_space<vmem>>, %arg5: memref<1x16xf32, #tpu.memory_space<vmem>>, %arg6: memref<16x16xbf16, #tpu.memory_space<vmem>>, %arg7: memref<1x16xf32, #tpu.memory_space<vmem>>, %arg8: memref<1x256x16xf32, #tpu.memory_space<vmem>>) attributes {dimension_semantics = [#tpu.dimension_semantics<parallel>, #tpu.dimension_semantics<parallel>], iteration_bounds = array<i64: 2, 1>, scalar_prefetch = 0 : i64, scratch_operands = 0 : i64, tpu.core_type = #tpu.core_type<tc>, window_params = [{transform_indices = @transform_0, window_bounds = array<i64: 1, 256, 144>}, {transform_indices = @transform_1, window_bounds = array<i64: 1, 256, 16>}, {pipeline_mode = #tpu.pipeline_mode<synchronous>, transform_indices = @transform_2, window_bounds = array<i64: 144, 16>}, {pipeline_mode = #tpu.pipeline_mode<synchronous>, transform_indices = @transform_3, window_bounds = array<i64: 1, 16>}, {pipeline_mode = #tpu.pipeline_mode<synchronous>, transform_indices = @transform_4, window_bounds = array<i64: 16, 16>}, {pipeline_mode = #tpu.pipeline_mode<synchronous>, transform_indices = @transform_5, window_bounds = array<i64: 1, 16>}, {transform_indices = @transform_6, window_bounds = array<i64: 1, 256, 16>}]} {
    %c0 = arith.constant 0 : index
    %c0_0 = arith.constant 0 : index
    %c0_1 = arith.constant 0 : index
    %0 = vector.load %arg2[%c0, %c0_0, %c0_1] : memref<1x256x144xbf16, #tpu.memory_space<vmem>>, vector<1x256x144xbf16>
    %1 = vector.shape_cast %0 : vector<1x256x144xbf16> to vector<256x144xbf16>
    %c0_2 = arith.constant 0 : index
    %c0_3 = arith.constant 0 : index
    %2 = vector.load %arg4[%c0_2, %c0_3] : memref<144x16xbf16, #tpu.memory_space<vmem>>, vector<144x16xbf16>
    %cst = arith.constant dense<0.000000e+00> : vector<256x16xf32>
    %3 = tpu.matmul %1, %2, %cst {dimension_numbers = #tpu.dot_dimension_numbers<[1], [0], [0], [1], [0, 0, 1, 1], [], []>} : vector<256x144xbf16>, vector<144x16xbf16>, vector<256x16xf32> -> vector<256x16xf32>
    %c0_4 = arith.constant 0 : index
    %c0_5 = arith.constant 0 : index
    %4 = vector.load %arg5[%c0_4, %c0_5] : memref<1x16xf32, #tpu.memory_space<vmem>>, vector<1x16xf32>
    %5 = vector.broadcast %4 : vector<1x16xf32> to vector<256x16xf32>
    %6 = arith.addf %3, %5 : vector<256x16xf32>
    %cst_6 = arith.constant 0.000000e+00 : f32
    %7 = vector.broadcast %cst_6 : f32 to vector<256x16xf32>
    %8 = arith.maximumf %6, %7 : vector<256x16xf32>
    %c0_7 = arith.constant 0 : index
    %c0_8 = arith.constant 0 : index
    %c0_9 = arith.constant 0 : index
    %9 = vector.load %arg3[%c0_7, %c0_8, %c0_9] : memref<1x256x16xbf16, #tpu.memory_space<vmem>>, vector<1x256x16xbf16>
    %10 = vector.shape_cast %9 : vector<1x256x16xbf16> to vector<256x16xbf16>
    %c0_10 = arith.constant 0 : index
    %c0_11 = arith.constant 0 : index
    %11 = vector.load %arg6[%c0_10, %c0_11] : memref<16x16xbf16, #tpu.memory_space<vmem>>, vector<16x16xbf16>
    %c0_12 = arith.constant 0 : index
    %c0_13 = arith.constant 0 : index
    %12 = vector.load %arg7[%c0_12, %c0_13] : memref<1x16xf32, #tpu.memory_space<vmem>>, vector<1x16xf32>
    %cst_14 = arith.constant dense<0.000000e+00> : vector<256x16xf32>
    %13 = tpu.matmul %10, %11, %cst_14 {dimension_numbers = #tpu.dot_dimension_numbers<[1], [0], [0], [1], [0, 0, 1, 1], [], []>} : vector<256x16xbf16>, vector<16x16xbf16>, vector<256x16xf32> -> vector<256x16xf32>
    %14 = vector.broadcast %12 : vector<1x16xf32> to vector<256x16xf32>
    %15 = arith.addf %13, %14 : vector<256x16xf32>
    %cst_15 = arith.constant 0.000000e+00 : f32
    %16 = vector.broadcast %cst_15 : f32 to vector<256x16xf32>
    %17 = arith.maximumf %15, %16 : vector<256x16xf32>
    %18 = arith.addf %8, %17 : vector<256x16xf32>
    %c0_16 = arith.constant 0 : index
    %c0_17 = arith.constant 0 : index
    %c0_18 = arith.constant 0 : index
    %19 = vector.load %arg8[%c0_16, %c0_17, %c0_18] : memref<1x256x16xf32, #tpu.memory_space<vmem>>, vector<1x256x16xf32>
    %20 = vector.shape_cast %19 : vector<1x256x16xf32> to vector<256x16xf32>
    %21 = vector.shape_cast %18 : vector<256x16xf32> to vector<1x256x16xf32>
    tpu.vector_store %arg8[%c0_16, %c0_17, %c0_18], %21 {strides = array<i32>} : memref<1x256x16xf32, #tpu.memory_space<vmem>>, vector<1x256x16xf32>,
    return
  }
  func.func @transform_0(%arg0: i32, %arg1: i32) -> (i32, i32, i32) {
    %c0_i32 = arith.constant 0 : i32
    %c0_i32_0 = arith.constant 0 : i32
    return %arg0, %arg1, %c0_i32 : i32, i32, i32
  }
  func.func @transform_1(%arg0: i32, %arg1: i32) -> (i32, i32, i32) {
    %c0_i32 = arith.constant 0 : i32
    %c0_i32_0 = arith.constant 0 : i32
    return %arg0, %arg1, %c0_i32 : i32, i32, i32
  }
  func.func @transform_2(%arg0: i32, %arg1: i32) -> (i32, i32) {
    %c0_i32 = arith.constant 0 : i32
    %c0_i32_0 = arith.constant 0 : i32
    %c0_i32_1 = arith.constant 0 : i32
    return %c0_i32, %c0_i32_0 : i32, i32
  }
  func.func @transform_3(%arg0: i32, %arg1: i32) -> (i32, i32) {
    %c0_i32 = arith.constant 0 : i32
    %c0_i32_0 = arith.constant 0 : i32
    %c0_i32_1 = arith.constant 0 : i32
    return %c0_i32, %c0_i32_0 : i32, i32
  }
  func.func @transform_4(%arg0: i32, %arg1: i32) -> (i32, i32) {
    %c0_i32 = arith.constant 0 : i32
    %c0_i32_0 = arith.constant 0 : i32
    %c0_i32_1 = arith.constant 0 : i32
    return %c0_i32, %c0_i32_0 : i32, i32
  }
  func.func @transform_5(%arg0: i32, %arg1: i32) -> (i32, i32) {
    %c0_i32 = arith.constant 0 : i32
    %c0_i32_0 = arith.constant 0 : i32
    %c0_i32_1 = arith.constant 0 : i32
    return %c0_i32, %c0_i32_0 : i32, i32
  }
  func.func @transform_6(%arg0: i32, %arg1: i32) -> (i32, i32, i32) {
    %c0_i32 = arith.constant 0 : i32
    %c0_i32_0 = arith.constant 0 : i32
    return %arg0, %arg1, %c0_i32 : i32, i32, i32
  }
}

module attributes {stable_mosaic.version = 11 : i64} {
  func.func @_pang_kernel(%arg0: i32, %arg1: i32, %arg2: memref<1x64x144xbf16, #tpu.memory_space<vmem>>, %arg3: memref<1x64x64xbf16, #tpu.memory_space<vmem>>, %arg4: memref<144x32xbf16, #tpu.memory_space<vmem>>, %arg5: memref<1x32xf32, #tpu.memory_space<vmem>>, %arg6: memref<16x32xbf16, #tpu.memory_space<vmem>>, %arg7: memref<1x32xf32, #tpu.memory_space<vmem>>, %arg8: memref<1x64x128xf32, #tpu.memory_space<vmem>>) attributes {dimension_semantics = [#tpu.dimension_semantics<parallel>, #tpu.dimension_semantics<parallel>], iteration_bounds = array<i64: 2, 1>, scalar_prefetch = 0 : i64, scratch_operands = 0 : i64, tpu.core_type = #tpu.core_type<tc>, window_params = [{transform_indices = @transform_0, window_bounds = array<i64: 1, 64, 144>}, {transform_indices = @transform_1, window_bounds = array<i64: 1, 64, 64>}, {pipeline_mode = #tpu.pipeline_mode<synchronous>, transform_indices = @transform_2, window_bounds = array<i64: 144, 32>}, {pipeline_mode = #tpu.pipeline_mode<synchronous>, transform_indices = @transform_3, window_bounds = array<i64: 1, 32>}, {pipeline_mode = #tpu.pipeline_mode<synchronous>, transform_indices = @transform_4, window_bounds = array<i64: 16, 32>}, {pipeline_mode = #tpu.pipeline_mode<synchronous>, transform_indices = @transform_5, window_bounds = array<i64: 1, 32>}, {transform_indices = @transform_6, window_bounds = array<i64: 1, 64, 128>}]} {
    %c0 = arith.constant 0 : index
    %c0_0 = arith.constant 0 : index
    %c0_1 = arith.constant 0 : index
    %0 = vector.load %arg2[%c0, %c0_0, %c0_1] : memref<1x64x144xbf16, #tpu.memory_space<vmem>>, vector<1x64x144xbf16>
    %1 = vector.shape_cast %0 : vector<1x64x144xbf16> to vector<64x144xbf16>
    %c0_2 = arith.constant 0 : index
    %c0_3 = arith.constant 0 : index
    %2 = vector.load %arg4[%c0_2, %c0_3] : memref<144x32xbf16, #tpu.memory_space<vmem>>, vector<144x32xbf16>
    %cst = arith.constant dense<0.000000e+00> : vector<64x32xf32>
    %3 = tpu.matmul %1, %2, %cst {dimension_numbers = #tpu.dot_dimension_numbers<[1], [0], [0], [1], [0, 0, 1, 1], [], []>} : vector<64x144xbf16>, vector<144x32xbf16>, vector<64x32xf32> -> vector<64x32xf32>
    %c0_4 = arith.constant 0 : index
    %c0_5 = arith.constant 0 : index
    %4 = vector.load %arg5[%c0_4, %c0_5] : memref<1x32xf32, #tpu.memory_space<vmem>>, vector<1x32xf32>
    %5 = vector.broadcast %4 : vector<1x32xf32> to vector<64x32xf32>
    %6 = arith.addf %3, %5 : vector<64x32xf32>
    %cst_6 = arith.constant 0.000000e+00 : f32
    %7 = vector.broadcast %cst_6 : f32 to vector<64x32xf32>
    %8 = arith.maximumf %6, %7 : vector<64x32xf32>
    %c0_7 = arith.constant 0 : index
    %c0_8 = arith.constant 0 : index
    %c0_9 = arith.constant 0 : index
    %9 = vector.load %arg3[%c0_7, %c0_8, %c0_9] : memref<1x64x64xbf16, #tpu.memory_space<vmem>>, vector<1x64x64xbf16>
    %10 = vector.shape_cast %9 : vector<1x64x64xbf16> to vector<64x64xbf16>
    %c0_10 = arith.constant 0 : index
    %c0_11 = arith.constant 0 : index
    %11 = vector.load %arg6[%c0_10, %c0_11] : memref<16x32xbf16, #tpu.memory_space<vmem>>, vector<16x32xbf16>
    %c0_12 = arith.constant 0 : index
    %c0_13 = arith.constant 0 : index
    %12 = vector.load %arg7[%c0_12, %c0_13] : memref<1x32xf32, #tpu.memory_space<vmem>>, vector<1x32xf32>
    %13 = vector.extract_strided_slice %10 {offsets = [0, 0], sizes = [64, 16], strides = [1, 1]} : vector<64x64xbf16> to vector<64x16xbf16>
    %cst_14 = arith.constant dense<0.000000e+00> : vector<64x32xf32>
    %14 = tpu.matmul %13, %11, %cst_14 {dimension_numbers = #tpu.dot_dimension_numbers<[1], [0], [0], [1], [0, 0, 1, 1], [], []>} : vector<64x16xbf16>, vector<16x32xbf16>, vector<64x32xf32> -> vector<64x32xf32>
    %15 = vector.broadcast %12 : vector<1x32xf32> to vector<64x32xf32>
    %16 = arith.addf %14, %15 : vector<64x32xf32>
    %cst_15 = arith.constant 0.000000e+00 : f32
    %17 = vector.broadcast %cst_15 : f32 to vector<64x32xf32>
    %18 = arith.maximumf %16, %17 : vector<64x32xf32>
    %19 = arith.addf %8, %18 : vector<64x32xf32>
    %20 = vector.extract_strided_slice %10 {offsets = [0, 16], sizes = [64, 16], strides = [1, 1]} : vector<64x64xbf16> to vector<64x16xbf16>
    %cst_16 = arith.constant dense<0.000000e+00> : vector<64x32xf32>
    %21 = tpu.matmul %20, %11, %cst_16 {dimension_numbers = #tpu.dot_dimension_numbers<[1], [0], [0], [1], [0, 0, 1, 1], [], []>} : vector<64x16xbf16>, vector<16x32xbf16>, vector<64x32xf32> -> vector<64x32xf32>
    %22 = vector.broadcast %12 : vector<1x32xf32> to vector<64x32xf32>
    %23 = arith.addf %21, %22 : vector<64x32xf32>
    %cst_17 = arith.constant 0.000000e+00 : f32
    %24 = vector.broadcast %cst_17 : f32 to vector<64x32xf32>
    %25 = arith.maximumf %23, %24 : vector<64x32xf32>
    %26 = arith.addf %8, %25 : vector<64x32xf32>
    %27 = vector.extract_strided_slice %10 {offsets = [0, 32], sizes = [64, 16], strides = [1, 1]} : vector<64x64xbf16> to vector<64x16xbf16>
    %cst_18 = arith.constant dense<0.000000e+00> : vector<64x32xf32>
    %28 = tpu.matmul %27, %11, %cst_18 {dimension_numbers = #tpu.dot_dimension_numbers<[1], [0], [0], [1], [0, 0, 1, 1], [], []>} : vector<64x16xbf16>, vector<16x32xbf16>, vector<64x32xf32> -> vector<64x32xf32>
    %29 = vector.broadcast %12 : vector<1x32xf32> to vector<64x32xf32>
    %30 = arith.addf %28, %29 : vector<64x32xf32>
    %cst_19 = arith.constant 0.000000e+00 : f32
    %31 = vector.broadcast %cst_19 : f32 to vector<64x32xf32>
    %32 = arith.maximumf %30, %31 : vector<64x32xf32>
    %33 = arith.addf %8, %32 : vector<64x32xf32>
    %34 = vector.extract_strided_slice %10 {offsets = [0, 48], sizes = [64, 16], strides = [1, 1]} : vector<64x64xbf16> to vector<64x16xbf16>
    %cst_20 = arith.constant dense<0.000000e+00> : vector<64x32xf32>
    %35 = tpu.matmul %34, %11, %cst_20 {dimension_numbers = #tpu.dot_dimension_numbers<[1], [0], [0], [1], [0, 0, 1, 1], [], []>} : vector<64x16xbf16>, vector<16x32xbf16>, vector<64x32xf32> -> vector<64x32xf32>
    %36 = vector.broadcast %12 : vector<1x32xf32> to vector<64x32xf32>
    %37 = arith.addf %35, %36 : vector<64x32xf32>
    %cst_21 = arith.constant 0.000000e+00 : f32
    %38 = vector.broadcast %cst_21 : f32 to vector<64x32xf32>
    %39 = arith.maximumf %37, %38 : vector<64x32xf32>
    %40 = arith.addf %8, %39 : vector<64x32xf32>
    %41 = tpu.concatenate %19, %26, %33, %40 in 1 : vector<64x32xf32>, vector<64x32xf32>, vector<64x32xf32>, vector<64x32xf32> -> vector<64x128xf32>
    %c0_22 = arith.constant 0 : index
    %c0_23 = arith.constant 0 : index
    %c0_24 = arith.constant 0 : index
    %42 = vector.load %arg8[%c0_22, %c0_23, %c0_24] : memref<1x64x128xf32, #tpu.memory_space<vmem>>, vector<1x64x128xf32>
    %43 = vector.shape_cast %42 : vector<1x64x128xf32> to vector<64x128xf32>
    %44 = vector.shape_cast %41 : vector<64x128xf32> to vector<1x64x128xf32>
    tpu.vector_store %arg8[%c0_22, %c0_23, %c0_24], %44 {strides = array<i32>} : memref<1x64x128xf32, #tpu.memory_space<vmem>>, vector<1x64x128xf32>,
    return
  }
  func.func @transform_0(%arg0: i32, %arg1: i32) -> (i32, i32, i32) {
    %c0_i32 = arith.constant 0 : i32
    %c0_i32_0 = arith.constant 0 : i32
    return %arg0, %arg1, %c0_i32 : i32, i32, i32
  }
  func.func @transform_1(%arg0: i32, %arg1: i32) -> (i32, i32, i32) {
    %c0_i32 = arith.constant 0 : i32
    %c0_i32_0 = arith.constant 0 : i32
    return %arg0, %arg1, %c0_i32 : i32, i32, i32
  }
  func.func @transform_2(%arg0: i32, %arg1: i32) -> (i32, i32) {
    %c0_i32 = arith.constant 0 : i32
    %c0_i32_0 = arith.constant 0 : i32
    %c0_i32_1 = arith.constant 0 : i32
    return %c0_i32, %c0_i32_0 : i32, i32
  }
  func.func @transform_3(%arg0: i32, %arg1: i32) -> (i32, i32) {
    %c0_i32 = arith.constant 0 : i32
    %c0_i32_0 = arith.constant 0 : i32
    %c0_i32_1 = arith.constant 0 : i32
    return %c0_i32, %c0_i32_0 : i32, i32
  }
  func.func @transform_4(%arg0: i32, %arg1: i32) -> (i32, i32) {
    %c0_i32 = arith.constant 0 : i32
    %c0_i32_0 = arith.constant 0 : i32
    %c0_i32_1 = arith.constant 0 : i32
    return %c0_i32, %c0_i32_0 : i32, i32
  }
  func.func @transform_5(%arg0: i32, %arg1: i32) -> (i32, i32) {
    %c0_i32 = arith.constant 0 : i32
    %c0_i32_0 = arith.constant 0 : i32
    %c0_i32_1 = arith.constant 0 : i32
    return %c0_i32, %c0_i32_0 : i32, i32
  }
  func.func @transform_6(%arg0: i32, %arg1: i32) -> (i32, i32, i32) {
    %c0_i32 = arith.constant 0 : i32
    %c0_i32_0 = arith.constant 0 : i32
    return %arg0, %arg1, %c0_i32 : i32, i32, i32
  }
}

module attributes {stable_mosaic.version = 11 : i64} {
  func.func @_pang_kernel(%arg0: i32, %arg1: i32, %arg2: memref<1x64x288xbf16, #tpu.memory_space<vmem>>, %arg3: memref<1x64x128xbf16, #tpu.memory_space<vmem>>, %arg4: memref<288x32xbf16, #tpu.memory_space<vmem>>, %arg5: memref<1x32xf32, #tpu.memory_space<vmem>>, %arg6: memref<32x32xbf16, #tpu.memory_space<vmem>>, %arg7: memref<1x32xf32, #tpu.memory_space<vmem>>, %arg8: memref<1x64x128xf32, #tpu.memory_space<vmem>>) attributes {dimension_semantics = [#tpu.dimension_semantics<parallel>, #tpu.dimension_semantics<parallel>], iteration_bounds = array<i64: 2, 1>, scalar_prefetch = 0 : i64, scratch_operands = 0 : i64, tpu.core_type = #tpu.core_type<tc>, window_params = [{transform_indices = @transform_0, window_bounds = array<i64: 1, 64, 288>}, {transform_indices = @transform_1, window_bounds = array<i64: 1, 64, 128>}, {pipeline_mode = #tpu.pipeline_mode<synchronous>, transform_indices = @transform_2, window_bounds = array<i64: 288, 32>}, {pipeline_mode = #tpu.pipeline_mode<synchronous>, transform_indices = @transform_3, window_bounds = array<i64: 1, 32>}, {pipeline_mode = #tpu.pipeline_mode<synchronous>, transform_indices = @transform_4, window_bounds = array<i64: 32, 32>}, {pipeline_mode = #tpu.pipeline_mode<synchronous>, transform_indices = @transform_5, window_bounds = array<i64: 1, 32>}, {transform_indices = @transform_6, window_bounds = array<i64: 1, 64, 128>}]} {
    %c0 = arith.constant 0 : index
    %c0_0 = arith.constant 0 : index
    %c0_1 = arith.constant 0 : index
    %0 = vector.load %arg2[%c0, %c0_0, %c0_1] : memref<1x64x288xbf16, #tpu.memory_space<vmem>>, vector<1x64x288xbf16>
    %1 = vector.shape_cast %0 : vector<1x64x288xbf16> to vector<64x288xbf16>
    %c0_2 = arith.constant 0 : index
    %c0_3 = arith.constant 0 : index
    %2 = vector.load %arg4[%c0_2, %c0_3] : memref<288x32xbf16, #tpu.memory_space<vmem>>, vector<288x32xbf16>
    %cst = arith.constant dense<0.000000e+00> : vector<64x32xf32>
    %3 = tpu.matmul %1, %2, %cst {dimension_numbers = #tpu.dot_dimension_numbers<[1], [0], [0], [1], [0, 0, 1, 1], [], []>} : vector<64x288xbf16>, vector<288x32xbf16>, vector<64x32xf32> -> vector<64x32xf32>
    %c0_4 = arith.constant 0 : index
    %c0_5 = arith.constant 0 : index
    %4 = vector.load %arg5[%c0_4, %c0_5] : memref<1x32xf32, #tpu.memory_space<vmem>>, vector<1x32xf32>
    %5 = vector.broadcast %4 : vector<1x32xf32> to vector<64x32xf32>
    %6 = arith.addf %3, %5 : vector<64x32xf32>
    %cst_6 = arith.constant 0.000000e+00 : f32
    %7 = vector.broadcast %cst_6 : f32 to vector<64x32xf32>
    %8 = arith.maximumf %6, %7 : vector<64x32xf32>
    %c0_7 = arith.constant 0 : index
    %c0_8 = arith.constant 0 : index
    %c0_9 = arith.constant 0 : index
    %9 = vector.load %arg3[%c0_7, %c0_8, %c0_9] : memref<1x64x128xbf16, #tpu.memory_space<vmem>>, vector<1x64x128xbf16>
    %10 = vector.shape_cast %9 : vector<1x64x128xbf16> to vector<64x128xbf16>
    %c0_10 = arith.constant 0 : index
    %c0_11 = arith.constant 0 : index
    %11 = vector.load %arg6[%c0_10, %c0_11] : memref<32x32xbf16, #tpu.memory_space<vmem>>, vector<32x32xbf16>
    %c0_12 = arith.constant 0 : index
    %c0_13 = arith.constant 0 : index
    %12 = vector.load %arg7[%c0_12, %c0_13] : memref<1x32xf32, #tpu.memory_space<vmem>>, vector<1x32xf32>
    %13 = vector.extract_strided_slice %10 {offsets = [0, 0], sizes = [64, 32], strides = [1, 1]} : vector<64x128xbf16> to vector<64x32xbf16>
    %cst_14 = arith.constant dense<0.000000e+00> : vector<64x32xf32>
    %14 = tpu.matmul %13, %11, %cst_14 {dimension_numbers = #tpu.dot_dimension_numbers<[1], [0], [0], [1], [0, 0, 1, 1], [], []>} : vector<64x32xbf16>, vector<32x32xbf16>, vector<64x32xf32> -> vector<64x32xf32>
    %15 = vector.broadcast %12 : vector<1x32xf32> to vector<64x32xf32>
    %16 = arith.addf %14, %15 : vector<64x32xf32>
    %cst_15 = arith.constant 0.000000e+00 : f32
    %17 = vector.broadcast %cst_15 : f32 to vector<64x32xf32>
    %18 = arith.maximumf %16, %17 : vector<64x32xf32>
    %19 = arith.addf %8, %18 : vector<64x32xf32>
    %20 = vector.extract_strided_slice %10 {offsets = [0, 32], sizes = [64, 32], strides = [1, 1]} : vector<64x128xbf16> to vector<64x32xbf16>
    %cst_16 = arith.constant dense<0.000000e+00> : vector<64x32xf32>
    %21 = tpu.matmul %20, %11, %cst_16 {dimension_numbers = #tpu.dot_dimension_numbers<[1], [0], [0], [1], [0, 0, 1, 1], [], []>} : vector<64x32xbf16>, vector<32x32xbf16>, vector<64x32xf32> -> vector<64x32xf32>
    %22 = vector.broadcast %12 : vector<1x32xf32> to vector<64x32xf32>
    %23 = arith.addf %21, %22 : vector<64x32xf32>
    %cst_17 = arith.constant 0.000000e+00 : f32
    %24 = vector.broadcast %cst_17 : f32 to vector<64x32xf32>
    %25 = arith.maximumf %23, %24 : vector<64x32xf32>
    %26 = arith.addf %8, %25 : vector<64x32xf32>
    %27 = vector.extract_strided_slice %10 {offsets = [0, 64], sizes = [64, 32], strides = [1, 1]} : vector<64x128xbf16> to vector<64x32xbf16>
    %cst_18 = arith.constant dense<0.000000e+00> : vector<64x32xf32>
    %28 = tpu.matmul %27, %11, %cst_18 {dimension_numbers = #tpu.dot_dimension_numbers<[1], [0], [0], [1], [0, 0, 1, 1], [], []>} : vector<64x32xbf16>, vector<32x32xbf16>, vector<64x32xf32> -> vector<64x32xf32>
    %29 = vector.broadcast %12 : vector<1x32xf32> to vector<64x32xf32>
    %30 = arith.addf %28, %29 : vector<64x32xf32>
    %cst_19 = arith.constant 0.000000e+00 : f32
    %31 = vector.broadcast %cst_19 : f32 to vector<64x32xf32>
    %32 = arith.maximumf %30, %31 : vector<64x32xf32>
    %33 = arith.addf %8, %32 : vector<64x32xf32>
    %34 = vector.extract_strided_slice %10 {offsets = [0, 96], sizes = [64, 32], strides = [1, 1]} : vector<64x128xbf16> to vector<64x32xbf16>
    %cst_20 = arith.constant dense<0.000000e+00> : vector<64x32xf32>
    %35 = tpu.matmul %34, %11, %cst_20 {dimension_numbers = #tpu.dot_dimension_numbers<[1], [0], [0], [1], [0, 0, 1, 1], [], []>} : vector<64x32xbf16>, vector<32x32xbf16>, vector<64x32xf32> -> vector<64x32xf32>
    %36 = vector.broadcast %12 : vector<1x32xf32> to vector<64x32xf32>
    %37 = arith.addf %35, %36 : vector<64x32xf32>
    %cst_21 = arith.constant 0.000000e+00 : f32
    %38 = vector.broadcast %cst_21 : f32 to vector<64x32xf32>
    %39 = arith.maximumf %37, %38 : vector<64x32xf32>
    %40 = arith.addf %8, %39 : vector<64x32xf32>
    %41 = tpu.concatenate %19, %26, %33, %40 in 1 : vector<64x32xf32>, vector<64x32xf32>, vector<64x32xf32>, vector<64x32xf32> -> vector<64x128xf32>
    %c0_22 = arith.constant 0 : index
    %c0_23 = arith.constant 0 : index
    %c0_24 = arith.constant 0 : index
    %42 = vector.load %arg8[%c0_22, %c0_23, %c0_24] : memref<1x64x128xf32, #tpu.memory_space<vmem>>, vector<1x64x128xf32>
    %43 = vector.shape_cast %42 : vector<1x64x128xf32> to vector<64x128xf32>
    %44 = vector.shape_cast %41 : vector<64x128xf32> to vector<1x64x128xf32>
    tpu.vector_store %arg8[%c0_22, %c0_23, %c0_24], %44 {strides = array<i32>} : memref<1x64x128xf32, #tpu.memory_space<vmem>>, vector<1x64x128xf32>,
    return
  }
  func.func @transform_0(%arg0: i32, %arg1: i32) -> (i32, i32, i32) {
    %c0_i32 = arith.constant 0 : i32
    %c0_i32_0 = arith.constant 0 : i32
    return %arg0, %arg1, %c0_i32 : i32, i32, i32
  }
  func.func @transform_1(%arg0: i32, %arg1: i32) -> (i32, i32, i32) {
    %c0_i32 = arith.constant 0 : i32
    %c0_i32_0 = arith.constant 0 : i32
    return %arg0, %arg1, %c0_i32 : i32, i32, i32
  }
  func.func @transform_2(%arg0: i32, %arg1: i32) -> (i32, i32) {
    %c0_i32 = arith.constant 0 : i32
    %c0_i32_0 = arith.constant 0 : i32
    %c0_i32_1 = arith.constant 0 : i32
    return %c0_i32, %c0_i32_0 : i32, i32
  }
  func.func @transform_3(%arg0: i32, %arg1: i32) -> (i32, i32) {
    %c0_i32 = arith.constant 0 : i32
    %c0_i32_0 = arith.constant 0 : i32
    %c0_i32_1 = arith.constant 0 : i32
    return %c0_i32, %c0_i32_0 : i32, i32
  }
  func.func @transform_4(%arg0: i32, %arg1: i32) -> (i32, i32) {
    %c0_i32 = arith.constant 0 : i32
    %c0_i32_0 = arith.constant 0 : i32
    %c0_i32_1 = arith.constant 0 : i32
    return %c0_i32, %c0_i32_0 : i32, i32
  }
  func.func @transform_5(%arg0: i32, %arg1: i32) -> (i32, i32) {
    %c0_i32 = arith.constant 0 : i32
    %c0_i32_0 = arith.constant 0 : i32
    %c0_i32_1 = arith.constant 0 : i32
    return %c0_i32, %c0_i32_0 : i32, i32
  }
  func.func @transform_6(%arg0: i32, %arg1: i32) -> (i32, i32, i32) {
    %c0_i32 = arith.constant 0 : i32
    %c0_i32_0 = arith.constant 0 : i32
    return %arg0, %arg1, %c0_i32 : i32, i32, i32
  }
}

module attributes {stable_mosaic.version = 11 : i64} {
  func.func @_pang_kernel(%arg0: i32, %arg1: i32, %arg2: memref<1x64x288xbf16, #tpu.memory_space<vmem>>, %arg3: memref<1x64x128xbf16, #tpu.memory_space<vmem>>, %arg4: memref<288x64xbf16, #tpu.memory_space<vmem>>, %arg5: memref<1x64xf32, #tpu.memory_space<vmem>>, %arg6: memref<32x64xbf16, #tpu.memory_space<vmem>>, %arg7: memref<1x64xf32, #tpu.memory_space<vmem>>, %arg8: memref<1x64x256xf32, #tpu.memory_space<vmem>>) attributes {dimension_semantics = [#tpu.dimension_semantics<parallel>, #tpu.dimension_semantics<parallel>], iteration_bounds = array<i64: 2, 1>, scalar_prefetch = 0 : i64, scratch_operands = 0 : i64, tpu.core_type = #tpu.core_type<tc>, window_params = [{transform_indices = @transform_0, window_bounds = array<i64: 1, 64, 288>}, {transform_indices = @transform_1, window_bounds = array<i64: 1, 64, 128>}, {pipeline_mode = #tpu.pipeline_mode<synchronous>, transform_indices = @transform_2, window_bounds = array<i64: 288, 64>}, {pipeline_mode = #tpu.pipeline_mode<synchronous>, transform_indices = @transform_3, window_bounds = array<i64: 1, 64>}, {pipeline_mode = #tpu.pipeline_mode<synchronous>, transform_indices = @transform_4, window_bounds = array<i64: 32, 64>}, {pipeline_mode = #tpu.pipeline_mode<synchronous>, transform_indices = @transform_5, window_bounds = array<i64: 1, 64>}, {transform_indices = @transform_6, window_bounds = array<i64: 1, 64, 256>}]} {
    %c0 = arith.constant 0 : index
    %c0_0 = arith.constant 0 : index
    %c0_1 = arith.constant 0 : index
    %0 = vector.load %arg2[%c0, %c0_0, %c0_1] : memref<1x64x288xbf16, #tpu.memory_space<vmem>>, vector<1x64x288xbf16>
    %1 = vector.shape_cast %0 : vector<1x64x288xbf16> to vector<64x288xbf16>
    %c0_2 = arith.constant 0 : index
    %c0_3 = arith.constant 0 : index
    %2 = vector.load %arg4[%c0_2, %c0_3] : memref<288x64xbf16, #tpu.memory_space<vmem>>, vector<288x64xbf16>
    %cst = arith.constant dense<0.000000e+00> : vector<64x64xf32>
    %3 = tpu.matmul %1, %2, %cst {dimension_numbers = #tpu.dot_dimension_numbers<[1], [0], [0], [1], [0, 0, 1, 1], [], []>} : vector<64x288xbf16>, vector<288x64xbf16>, vector<64x64xf32> -> vector<64x64xf32>
    %c0_4 = arith.constant 0 : index
    %c0_5 = arith.constant 0 : index
    %4 = vector.load %arg5[%c0_4, %c0_5] : memref<1x64xf32, #tpu.memory_space<vmem>>, vector<1x64xf32>
    %5 = vector.broadcast %4 : vector<1x64xf32> to vector<64x64xf32>
    %6 = arith.addf %3, %5 : vector<64x64xf32>
    %cst_6 = arith.constant 0.000000e+00 : f32
    %7 = vector.broadcast %cst_6 : f32 to vector<64x64xf32>
    %8 = arith.maximumf %6, %7 : vector<64x64xf32>
    %c0_7 = arith.constant 0 : index
    %c0_8 = arith.constant 0 : index
    %c0_9 = arith.constant 0 : index
    %9 = vector.load %arg3[%c0_7, %c0_8, %c0_9] : memref<1x64x128xbf16, #tpu.memory_space<vmem>>, vector<1x64x128xbf16>
    %10 = vector.shape_cast %9 : vector<1x64x128xbf16> to vector<64x128xbf16>
    %c0_10 = arith.constant 0 : index
    %c0_11 = arith.constant 0 : index
    %11 = vector.load %arg6[%c0_10, %c0_11] : memref<32x64xbf16, #tpu.memory_space<vmem>>, vector<32x64xbf16>
    %c0_12 = arith.constant 0 : index
    %c0_13 = arith.constant 0 : index
    %12 = vector.load %arg7[%c0_12, %c0_13] : memref<1x64xf32, #tpu.memory_space<vmem>>, vector<1x64xf32>
    %13 = vector.extract_strided_slice %10 {offsets = [0, 0], sizes = [64, 32], strides = [1, 1]} : vector<64x128xbf16> to vector<64x32xbf16>
    %cst_14 = arith.constant dense<0.000000e+00> : vector<64x64xf32>
    %14 = tpu.matmul %13, %11, %cst_14 {dimension_numbers = #tpu.dot_dimension_numbers<[1], [0], [0], [1], [0, 0, 1, 1], [], []>} : vector<64x32xbf16>, vector<32x64xbf16>, vector<64x64xf32> -> vector<64x64xf32>
    %15 = vector.broadcast %12 : vector<1x64xf32> to vector<64x64xf32>
    %16 = arith.addf %14, %15 : vector<64x64xf32>
    %cst_15 = arith.constant 0.000000e+00 : f32
    %17 = vector.broadcast %cst_15 : f32 to vector<64x64xf32>
    %18 = arith.maximumf %16, %17 : vector<64x64xf32>
    %19 = arith.addf %8, %18 : vector<64x64xf32>
    %20 = vector.extract_strided_slice %10 {offsets = [0, 32], sizes = [64, 32], strides = [1, 1]} : vector<64x128xbf16> to vector<64x32xbf16>
    %cst_16 = arith.constant dense<0.000000e+00> : vector<64x64xf32>
    %21 = tpu.matmul %20, %11, %cst_16 {dimension_numbers = #tpu.dot_dimension_numbers<[1], [0], [0], [1], [0, 0, 1, 1], [], []>} : vector<64x32xbf16>, vector<32x64xbf16>, vector<64x64xf32> -> vector<64x64xf32>
    %22 = vector.broadcast %12 : vector<1x64xf32> to vector<64x64xf32>
    %23 = arith.addf %21, %22 : vector<64x64xf32>
    %cst_17 = arith.constant 0.000000e+00 : f32
    %24 = vector.broadcast %cst_17 : f32 to vector<64x64xf32>
    %25 = arith.maximumf %23, %24 : vector<64x64xf32>
    %26 = arith.addf %8, %25 : vector<64x64xf32>
    %27 = vector.extract_strided_slice %10 {offsets = [0, 64], sizes = [64, 32], strides = [1, 1]} : vector<64x128xbf16> to vector<64x32xbf16>
    %cst_18 = arith.constant dense<0.000000e+00> : vector<64x64xf32>
    %28 = tpu.matmul %27, %11, %cst_18 {dimension_numbers = #tpu.dot_dimension_numbers<[1], [0], [0], [1], [0, 0, 1, 1], [], []>} : vector<64x32xbf16>, vector<32x64xbf16>, vector<64x64xf32> -> vector<64x64xf32>
    %29 = vector.broadcast %12 : vector<1x64xf32> to vector<64x64xf32>
    %30 = arith.addf %28, %29 : vector<64x64xf32>
    %cst_19 = arith.constant 0.000000e+00 : f32
    %31 = vector.broadcast %cst_19 : f32 to vector<64x64xf32>
    %32 = arith.maximumf %30, %31 : vector<64x64xf32>
    %33 = arith.addf %8, %32 : vector<64x64xf32>
    %34 = vector.extract_strided_slice %10 {offsets = [0, 96], sizes = [64, 32], strides = [1, 1]} : vector<64x128xbf16> to vector<64x32xbf16>
    %cst_20 = arith.constant dense<0.000000e+00> : vector<64x64xf32>
    %35 = tpu.matmul %34, %11, %cst_20 {dimension_numbers = #tpu.dot_dimension_numbers<[1], [0], [0], [1], [0, 0, 1, 1], [], []>} : vector<64x32xbf16>, vector<32x64xbf16>, vector<64x64xf32> -> vector<64x64xf32>
    %36 = vector.broadcast %12 : vector<1x64xf32> to vector<64x64xf32>
    %37 = arith.addf %35, %36 : vector<64x64xf32>
    %cst_21 = arith.constant 0.000000e+00 : f32
    %38 = vector.broadcast %cst_21 : f32 to vector<64x64xf32>
    %39 = arith.maximumf %37, %38 : vector<64x64xf32>
    %40 = arith.addf %8, %39 : vector<64x64xf32>
    %41 = tpu.concatenate %19, %26, %33, %40 in 1 : vector<64x64xf32>, vector<64x64xf32>, vector<64x64xf32>, vector<64x64xf32> -> vector<64x256xf32>
    %c0_22 = arith.constant 0 : index
    %c0_23 = arith.constant 0 : index
    %c0_24 = arith.constant 0 : index
    %42 = vector.load %arg8[%c0_22, %c0_23, %c0_24] : memref<1x64x256xf32, #tpu.memory_space<vmem>>, vector<1x64x256xf32>
    %43 = vector.shape_cast %42 : vector<1x64x256xf32> to vector<64x256xf32>
    %44 = vector.shape_cast %41 : vector<64x256xf32> to vector<1x64x256xf32>
    tpu.vector_store %arg8[%c0_22, %c0_23, %c0_24], %44 {strides = array<i32>} : memref<1x64x256xf32, #tpu.memory_space<vmem>>, vector<1x64x256xf32>,
    return
  }
  func.func @transform_0(%arg0: i32, %arg1: i32) -> (i32, i32, i32) {
    %c0_i32 = arith.constant 0 : i32
    %c0_i32_0 = arith.constant 0 : i32
    return %arg0, %arg1, %c0_i32 : i32, i32, i32
  }
  func.func @transform_1(%arg0: i32, %arg1: i32) -> (i32, i32, i32) {
    %c0_i32 = arith.constant 0 : i32
    %c0_i32_0 = arith.constant 0 : i32
    return %arg0, %arg1, %c0_i32 : i32, i32, i32
  }
  func.func @transform_2(%arg0: i32, %arg1: i32) -> (i32, i32) {
    %c0_i32 = arith.constant 0 : i32
    %c0_i32_0 = arith.constant 0 : i32
    %c0_i32_1 = arith.constant 0 : i32
    return %c0_i32, %c0_i32_0 : i32, i32
  }
  func.func @transform_3(%arg0: i32, %arg1: i32) -> (i32, i32) {
    %c0_i32 = arith.constant 0 : i32
    %c0_i32_0 = arith.constant 0 : i32
    %c0_i32_1 = arith.constant 0 : i32
    return %c0_i32, %c0_i32_0 : i32, i32
  }
  func.func @transform_4(%arg0: i32, %arg1: i32) -> (i32, i32) {
    %c0_i32 = arith.constant 0 : i32
    %c0_i32_0 = arith.constant 0 : i32
    %c0_i32_1 = arith.constant 0 : i32
    return %c0_i32, %c0_i32_0 : i32, i32
  }
  func.func @transform_5(%arg0: i32, %arg1: i32) -> (i32, i32) {
    %c0_i32 = arith.constant 0 : i32
    %c0_i32_0 = arith.constant 0 : i32
    %c0_i32_1 = arith.constant 0 : i32
    return %c0_i32, %c0_i32_0 : i32, i32
  }
  func.func @transform_6(%arg0: i32, %arg1: i32) -> (i32, i32, i32) {
    %c0_i32 = arith.constant 0 : i32
    %c0_i32_0 = arith.constant 0 : i32
    return %arg0, %arg1, %c0_i32 : i32, i32, i32
  }
}

module attributes {stable_mosaic.version = 11 : i64} {
  func.func @_pang_kernel(%arg0: i32, %arg1: i32, %arg2: memref<1x64x576xbf16, #tpu.memory_space<vmem>>, %arg3: memref<1x64x256xbf16, #tpu.memory_space<vmem>>, %arg4: memref<576x64xbf16, #tpu.memory_space<vmem>>, %arg5: memref<1x64xf32, #tpu.memory_space<vmem>>, %arg6: memref<64x64xbf16, #tpu.memory_space<vmem>>, %arg7: memref<1x64xf32, #tpu.memory_space<vmem>>, %arg8: memref<1x64x256xf32, #tpu.memory_space<vmem>>) attributes {dimension_semantics = [#tpu.dimension_semantics<parallel>, #tpu.dimension_semantics<parallel>], iteration_bounds = array<i64: 2, 1>, scalar_prefetch = 0 : i64, scratch_operands = 0 : i64, tpu.core_type = #tpu.core_type<tc>, window_params = [{transform_indices = @transform_0, window_bounds = array<i64: 1, 64, 576>}, {transform_indices = @transform_1, window_bounds = array<i64: 1, 64, 256>}, {pipeline_mode = #tpu.pipeline_mode<synchronous>, transform_indices = @transform_2, window_bounds = array<i64: 576, 64>}, {pipeline_mode = #tpu.pipeline_mode<synchronous>, transform_indices = @transform_3, window_bounds = array<i64: 1, 64>}, {pipeline_mode = #tpu.pipeline_mode<synchronous>, transform_indices = @transform_4, window_bounds = array<i64: 64, 64>}, {pipeline_mode = #tpu.pipeline_mode<synchronous>, transform_indices = @transform_5, window_bounds = array<i64: 1, 64>}, {transform_indices = @transform_6, window_bounds = array<i64: 1, 64, 256>}]} {
    %c0 = arith.constant 0 : index
    %c0_0 = arith.constant 0 : index
    %c0_1 = arith.constant 0 : index
    %0 = vector.load %arg2[%c0, %c0_0, %c0_1] : memref<1x64x576xbf16, #tpu.memory_space<vmem>>, vector<1x64x576xbf16>
    %1 = vector.shape_cast %0 : vector<1x64x576xbf16> to vector<64x576xbf16>
    %c0_2 = arith.constant 0 : index
    %c0_3 = arith.constant 0 : index
    %2 = vector.load %arg4[%c0_2, %c0_3] : memref<576x64xbf16, #tpu.memory_space<vmem>>, vector<576x64xbf16>
    %cst = arith.constant dense<0.000000e+00> : vector<64x64xf32>
    %3 = tpu.matmul %1, %2, %cst {dimension_numbers = #tpu.dot_dimension_numbers<[1], [0], [0], [1], [0, 0, 1, 1], [], []>} : vector<64x576xbf16>, vector<576x64xbf16>, vector<64x64xf32> -> vector<64x64xf32>
    %c0_4 = arith.constant 0 : index
    %c0_5 = arith.constant 0 : index
    %4 = vector.load %arg5[%c0_4, %c0_5] : memref<1x64xf32, #tpu.memory_space<vmem>>, vector<1x64xf32>
    %5 = vector.broadcast %4 : vector<1x64xf32> to vector<64x64xf32>
    %6 = arith.addf %3, %5 : vector<64x64xf32>
    %cst_6 = arith.constant 0.000000e+00 : f32
    %7 = vector.broadcast %cst_6 : f32 to vector<64x64xf32>
    %8 = arith.maximumf %6, %7 : vector<64x64xf32>
    %c0_7 = arith.constant 0 : index
    %c0_8 = arith.constant 0 : index
    %c0_9 = arith.constant 0 : index
    %9 = vector.load %arg3[%c0_7, %c0_8, %c0_9] : memref<1x64x256xbf16, #tpu.memory_space<vmem>>, vector<1x64x256xbf16>
    %10 = vector.shape_cast %9 : vector<1x64x256xbf16> to vector<64x256xbf16>
    %c0_10 = arith.constant 0 : index
    %c0_11 = arith.constant 0 : index
    %11 = vector.load %arg6[%c0_10, %c0_11] : memref<64x64xbf16, #tpu.memory_space<vmem>>, vector<64x64xbf16>
    %c0_12 = arith.constant 0 : index
    %c0_13 = arith.constant 0 : index
    %12 = vector.load %arg7[%c0_12, %c0_13] : memref<1x64xf32, #tpu.memory_space<vmem>>, vector<1x64xf32>
    %13 = vector.extract_strided_slice %10 {offsets = [0, 0], sizes = [64, 64], strides = [1, 1]} : vector<64x256xbf16> to vector<64x64xbf16>
    %cst_14 = arith.constant dense<0.000000e+00> : vector<64x64xf32>
    %14 = tpu.matmul %13, %11, %cst_14 {dimension_numbers = #tpu.dot_dimension_numbers<[1], [0], [0], [1], [0, 0, 1, 1], [], []>} : vector<64x64xbf16>, vector<64x64xbf16>, vector<64x64xf32> -> vector<64x64xf32>
    %15 = vector.broadcast %12 : vector<1x64xf32> to vector<64x64xf32>
    %16 = arith.addf %14, %15 : vector<64x64xf32>
    %cst_15 = arith.constant 0.000000e+00 : f32
    %17 = vector.broadcast %cst_15 : f32 to vector<64x64xf32>
    %18 = arith.maximumf %16, %17 : vector<64x64xf32>
    %19 = arith.addf %8, %18 : vector<64x64xf32>
    %20 = vector.extract_strided_slice %10 {offsets = [0, 64], sizes = [64, 64], strides = [1, 1]} : vector<64x256xbf16> to vector<64x64xbf16>
    %cst_16 = arith.constant dense<0.000000e+00> : vector<64x64xf32>
    %21 = tpu.matmul %20, %11, %cst_16 {dimension_numbers = #tpu.dot_dimension_numbers<[1], [0], [0], [1], [0, 0, 1, 1], [], []>} : vector<64x64xbf16>, vector<64x64xbf16>, vector<64x64xf32> -> vector<64x64xf32>
    %22 = vector.broadcast %12 : vector<1x64xf32> to vector<64x64xf32>
    %23 = arith.addf %21, %22 : vector<64x64xf32>
    %cst_17 = arith.constant 0.000000e+00 : f32
    %24 = vector.broadcast %cst_17 : f32 to vector<64x64xf32>
    %25 = arith.maximumf %23, %24 : vector<64x64xf32>
    %26 = arith.addf %8, %25 : vector<64x64xf32>
    %27 = vector.extract_strided_slice %10 {offsets = [0, 128], sizes = [64, 64], strides = [1, 1]} : vector<64x256xbf16> to vector<64x64xbf16>
    %cst_18 = arith.constant dense<0.000000e+00> : vector<64x64xf32>
    %28 = tpu.matmul %27, %11, %cst_18 {dimension_numbers = #tpu.dot_dimension_numbers<[1], [0], [0], [1], [0, 0, 1, 1], [], []>} : vector<64x64xbf16>, vector<64x64xbf16>, vector<64x64xf32> -> vector<64x64xf32>
    %29 = vector.broadcast %12 : vector<1x64xf32> to vector<64x64xf32>
    %30 = arith.addf %28, %29 : vector<64x64xf32>
    %cst_19 = arith.constant 0.000000e+00 : f32
    %31 = vector.broadcast %cst_19 : f32 to vector<64x64xf32>
    %32 = arith.maximumf %30, %31 : vector<64x64xf32>
    %33 = arith.addf %8, %32 : vector<64x64xf32>
    %34 = vector.extract_strided_slice %10 {offsets = [0, 192], sizes = [64, 64], strides = [1, 1]} : vector<64x256xbf16> to vector<64x64xbf16>
    %cst_20 = arith.constant dense<0.000000e+00> : vector<64x64xf32>
    %35 = tpu.matmul %34, %11, %cst_20 {dimension_numbers = #tpu.dot_dimension_numbers<[1], [0], [0], [1], [0, 0, 1, 1], [], []>} : vector<64x64xbf16>, vector<64x64xbf16>, vector<64x64xf32> -> vector<64x64xf32>
    %36 = vector.broadcast %12 : vector<1x64xf32> to vector<64x64xf32>
    %37 = arith.addf %35, %36 : vector<64x64xf32>
    %cst_21 = arith.constant 0.000000e+00 : f32
    %38 = vector.broadcast %cst_21 : f32 to vector<64x64xf32>
    %39 = arith.maximumf %37, %38 : vector<64x64xf32>
    %40 = arith.addf %8, %39 : vector<64x64xf32>
    %41 = tpu.concatenate %19, %26, %33, %40 in 1 : vector<64x64xf32>, vector<64x64xf32>, vector<64x64xf32>, vector<64x64xf32> -> vector<64x256xf32>
    %c0_22 = arith.constant 0 : index
    %c0_23 = arith.constant 0 : index
    %c0_24 = arith.constant 0 : index
    %42 = vector.load %arg8[%c0_22, %c0_23, %c0_24] : memref<1x64x256xf32, #tpu.memory_space<vmem>>, vector<1x64x256xf32>
    %43 = vector.shape_cast %42 : vector<1x64x256xf32> to vector<64x256xf32>
    %44 = vector.shape_cast %41 : vector<64x256xf32> to vector<1x64x256xf32>
    tpu.vector_store %arg8[%c0_22, %c0_23, %c0_24], %44 {strides = array<i32>} : memref<1x64x256xf32, #tpu.memory_space<vmem>>, vector<1x64x256xf32>,
    return
  }
  func.func @transform_0(%arg0: i32, %arg1: i32) -> (i32, i32, i32) {
    %c0_i32 = arith.constant 0 : i32
    %c0_i32_0 = arith.constant 0 : i32
    return %arg0, %arg1, %c0_i32 : i32, i32, i32
  }
  func.func @transform_1(%arg0: i32, %arg1: i32) -> (i32, i32, i32) {
    %c0_i32 = arith.constant 0 : i32
    %c0_i32_0 = arith.constant 0 : i32
    return %arg0, %arg1, %c0_i32 : i32, i32, i32
  }
  func.func @transform_2(%arg0: i32, %arg1: i32) -> (i32, i32) {
    %c0_i32 = arith.constant 0 : i32
    %c0_i32_0 = arith.constant 0 : i32
    %c0_i32_1 = arith.constant 0 : i32
    return %c0_i32, %c0_i32_0 : i32, i32
  }
  func.func @transform_3(%arg0: i32, %arg1: i32) -> (i32, i32) {
    %c0_i32 = arith.constant 0 : i32
    %c0_i32_0 = arith.constant 0 : i32
    %c0_i32_1 = arith.constant 0 : i32
    return %c0_i32, %c0_i32_0 : i32, i32
  }
  func.func @transform_4(%arg0: i32, %arg1: i32) -> (i32, i32) {
    %c0_i32 = arith.constant 0 : i32
    %c0_i32_0 = arith.constant 0 : i32
    %c0_i32_1 = arith.constant 0 : i32
    return %c0_i32, %c0_i32_0 : i32, i32
  }
  func.func @transform_5(%arg0: i32, %arg1: i32) -> (i32, i32) {
    %c0_i32 = arith.constant 0 : i32
    %c0_i32_0 = arith.constant 0 : i32
    %c0_i32_1 = arith.constant 0 : i32
    return %c0_i32, %c0_i32_0 : i32, i32
  }
  func.func @transform_6(%arg0: i32, %arg1: i32) -> (i32, i32, i32) {
    %c0_i32 = arith.constant 0 : i32
    %c0_i32_0 = arith.constant 0 : i32
    return %arg0, %arg1, %c0_i32 : i32, i32, i32
  }
}

module attributes {stable_mosaic.version = 11 : i64} {
  func.func @_pang_kernel(%arg0: i32, %arg1: i32, %arg2: memref<1x64x576xbf16, #tpu.memory_space<vmem>>, %arg3: memref<1x64x256xbf16, #tpu.memory_space<vmem>>, %arg4: memref<576x128xbf16, #tpu.memory_space<vmem>>, %arg5: memref<1x128xf32, #tpu.memory_space<vmem>>, %arg6: memref<64x128xbf16, #tpu.memory_space<vmem>>, %arg7: memref<1x128xf32, #tpu.memory_space<vmem>>, %arg8: memref<1x64x512xf32, #tpu.memory_space<vmem>>) attributes {dimension_semantics = [#tpu.dimension_semantics<parallel>, #tpu.dimension_semantics<parallel>], iteration_bounds = array<i64: 2, 1>, scalar_prefetch = 0 : i64, scratch_operands = 0 : i64, tpu.core_type = #tpu.core_type<tc>, window_params = [{transform_indices = @transform_0, window_bounds = array<i64: 1, 64, 576>}, {transform_indices = @transform_1, window_bounds = array<i64: 1, 64, 256>}, {pipeline_mode = #tpu.pipeline_mode<synchronous>, transform_indices = @transform_2, window_bounds = array<i64: 576, 128>}, {pipeline_mode = #tpu.pipeline_mode<synchronous>, transform_indices = @transform_3, window_bounds = array<i64: 1, 128>}, {pipeline_mode = #tpu.pipeline_mode<synchronous>, transform_indices = @transform_4, window_bounds = array<i64: 64, 128>}, {pipeline_mode = #tpu.pipeline_mode<synchronous>, transform_indices = @transform_5, window_bounds = array<i64: 1, 128>}, {transform_indices = @transform_6, window_bounds = array<i64: 1, 64, 512>}]} {
    %c0 = arith.constant 0 : index
    %c0_0 = arith.constant 0 : index
    %c0_1 = arith.constant 0 : index
    %0 = vector.load %arg2[%c0, %c0_0, %c0_1] : memref<1x64x576xbf16, #tpu.memory_space<vmem>>, vector<1x64x576xbf16>
    %1 = vector.shape_cast %0 : vector<1x64x576xbf16> to vector<64x576xbf16>
    %c0_2 = arith.constant 0 : index
    %c0_3 = arith.constant 0 : index
    %2 = vector.load %arg4[%c0_2, %c0_3] : memref<576x128xbf16, #tpu.memory_space<vmem>>, vector<576x128xbf16>
    %cst = arith.constant dense<0.000000e+00> : vector<64x128xf32>
    %3 = tpu.matmul %1, %2, %cst {dimension_numbers = #tpu.dot_dimension_numbers<[1], [0], [0], [1], [0, 0, 1, 1], [], []>} : vector<64x576xbf16>, vector<576x128xbf16>, vector<64x128xf32> -> vector<64x128xf32>
    %c0_4 = arith.constant 0 : index
    %c0_5 = arith.constant 0 : index
    %4 = vector.load %arg5[%c0_4, %c0_5] : memref<1x128xf32, #tpu.memory_space<vmem>>, vector<1x128xf32>
    %5 = vector.broadcast %4 : vector<1x128xf32> to vector<64x128xf32>
    %6 = arith.addf %3, %5 : vector<64x128xf32>
    %cst_6 = arith.constant 0.000000e+00 : f32
    %7 = vector.broadcast %cst_6 : f32 to vector<64x128xf32>
    %8 = arith.maximumf %6, %7 : vector<64x128xf32>
    %c0_7 = arith.constant 0 : index
    %c0_8 = arith.constant 0 : index
    %c0_9 = arith.constant 0 : index
    %9 = vector.load %arg3[%c0_7, %c0_8, %c0_9] : memref<1x64x256xbf16, #tpu.memory_space<vmem>>, vector<1x64x256xbf16>
    %10 = vector.shape_cast %9 : vector<1x64x256xbf16> to vector<64x256xbf16>
    %c0_10 = arith.constant 0 : index
    %c0_11 = arith.constant 0 : index
    %11 = vector.load %arg6[%c0_10, %c0_11] : memref<64x128xbf16, #tpu.memory_space<vmem>>, vector<64x128xbf16>
    %c0_12 = arith.constant 0 : index
    %c0_13 = arith.constant 0 : index
    %12 = vector.load %arg7[%c0_12, %c0_13] : memref<1x128xf32, #tpu.memory_space<vmem>>, vector<1x128xf32>
    %13 = vector.extract_strided_slice %10 {offsets = [0, 0], sizes = [64, 64], strides = [1, 1]} : vector<64x256xbf16> to vector<64x64xbf16>
    %cst_14 = arith.constant dense<0.000000e+00> : vector<64x128xf32>
    %14 = tpu.matmul %13, %11, %cst_14 {dimension_numbers = #tpu.dot_dimension_numbers<[1], [0], [0], [1], [0, 0, 1, 1], [], []>} : vector<64x64xbf16>, vector<64x128xbf16>, vector<64x128xf32> -> vector<64x128xf32>
    %15 = vector.broadcast %12 : vector<1x128xf32> to vector<64x128xf32>
    %16 = arith.addf %14, %15 : vector<64x128xf32>
    %cst_15 = arith.constant 0.000000e+00 : f32
    %17 = vector.broadcast %cst_15 : f32 to vector<64x128xf32>
    %18 = arith.maximumf %16, %17 : vector<64x128xf32>
    %19 = arith.addf %8, %18 : vector<64x128xf32>
    %20 = vector.extract_strided_slice %10 {offsets = [0, 64], sizes = [64, 64], strides = [1, 1]} : vector<64x256xbf16> to vector<64x64xbf16>
    %cst_16 = arith.constant dense<0.000000e+00> : vector<64x128xf32>
    %21 = tpu.matmul %20, %11, %cst_16 {dimension_numbers = #tpu.dot_dimension_numbers<[1], [0], [0], [1], [0, 0, 1, 1], [], []>} : vector<64x64xbf16>, vector<64x128xbf16>, vector<64x128xf32> -> vector<64x128xf32>
    %22 = vector.broadcast %12 : vector<1x128xf32> to vector<64x128xf32>
    %23 = arith.addf %21, %22 : vector<64x128xf32>
    %cst_17 = arith.constant 0.000000e+00 : f32
    %24 = vector.broadcast %cst_17 : f32 to vector<64x128xf32>
    %25 = arith.maximumf %23, %24 : vector<64x128xf32>
    %26 = arith.addf %8, %25 : vector<64x128xf32>
    %27 = vector.extract_strided_slice %10 {offsets = [0, 128], sizes = [64, 64], strides = [1, 1]} : vector<64x256xbf16> to vector<64x64xbf16>
    %cst_18 = arith.constant dense<0.000000e+00> : vector<64x128xf32>
    %28 = tpu.matmul %27, %11, %cst_18 {dimension_numbers = #tpu.dot_dimension_numbers<[1], [0], [0], [1], [0, 0, 1, 1], [], []>} : vector<64x64xbf16>, vector<64x128xbf16>, vector<64x128xf32> -> vector<64x128xf32>
    %29 = vector.broadcast %12 : vector<1x128xf32> to vector<64x128xf32>
    %30 = arith.addf %28, %29 : vector<64x128xf32>
    %cst_19 = arith.constant 0.000000e+00 : f32
    %31 = vector.broadcast %cst_19 : f32 to vector<64x128xf32>
    %32 = arith.maximumf %30, %31 : vector<64x128xf32>
    %33 = arith.addf %8, %32 : vector<64x128xf32>
    %34 = vector.extract_strided_slice %10 {offsets = [0, 192], sizes = [64, 64], strides = [1, 1]} : vector<64x256xbf16> to vector<64x64xbf16>
    %cst_20 = arith.constant dense<0.000000e+00> : vector<64x128xf32>
    %35 = tpu.matmul %34, %11, %cst_20 {dimension_numbers = #tpu.dot_dimension_numbers<[1], [0], [0], [1], [0, 0, 1, 1], [], []>} : vector<64x64xbf16>, vector<64x128xbf16>, vector<64x128xf32> -> vector<64x128xf32>
    %36 = vector.broadcast %12 : vector<1x128xf32> to vector<64x128xf32>
    %37 = arith.addf %35, %36 : vector<64x128xf32>
    %cst_21 = arith.constant 0.000000e+00 : f32
    %38 = vector.broadcast %cst_21 : f32 to vector<64x128xf32>
    %39 = arith.maximumf %37, %38 : vector<64x128xf32>
    %40 = arith.addf %8, %39 : vector<64x128xf32>
    %41 = tpu.concatenate %19, %26, %33, %40 in 1 : vector<64x128xf32>, vector<64x128xf32>, vector<64x128xf32>, vector<64x128xf32> -> vector<64x512xf32>
    %c0_22 = arith.constant 0 : index
    %c0_23 = arith.constant 0 : index
    %c0_24 = arith.constant 0 : index
    %42 = vector.load %arg8[%c0_22, %c0_23, %c0_24] : memref<1x64x512xf32, #tpu.memory_space<vmem>>, vector<1x64x512xf32>
    %43 = vector.shape_cast %42 : vector<1x64x512xf32> to vector<64x512xf32>
    %44 = vector.shape_cast %41 : vector<64x512xf32> to vector<1x64x512xf32>
    tpu.vector_store %arg8[%c0_22, %c0_23, %c0_24], %44 {strides = array<i32>} : memref<1x64x512xf32, #tpu.memory_space<vmem>>, vector<1x64x512xf32>,
    return
  }
  func.func @transform_0(%arg0: i32, %arg1: i32) -> (i32, i32, i32) {
    %c0_i32 = arith.constant 0 : i32
    %c0_i32_0 = arith.constant 0 : i32
    return %arg0, %arg1, %c0_i32 : i32, i32, i32
  }
  func.func @transform_1(%arg0: i32, %arg1: i32) -> (i32, i32, i32) {
    %c0_i32 = arith.constant 0 : i32
    %c0_i32_0 = arith.constant 0 : i32
    return %arg0, %arg1, %c0_i32 : i32, i32, i32
  }
  func.func @transform_2(%arg0: i32, %arg1: i32) -> (i32, i32) {
    %c0_i32 = arith.constant 0 : i32
    %c0_i32_0 = arith.constant 0 : i32
    %c0_i32_1 = arith.constant 0 : i32
    return %c0_i32, %c0_i32_0 : i32, i32
  }
  func.func @transform_3(%arg0: i32, %arg1: i32) -> (i32, i32) {
    %c0_i32 = arith.constant 0 : i32
    %c0_i32_0 = arith.constant 0 : i32
    %c0_i32_1 = arith.constant 0 : i32
    return %c0_i32, %c0_i32_0 : i32, i32
  }
  func.func @transform_4(%arg0: i32, %arg1: i32) -> (i32, i32) {
    %c0_i32 = arith.constant 0 : i32
    %c0_i32_0 = arith.constant 0 : i32
    %c0_i32_1 = arith.constant 0 : i32
    return %c0_i32, %c0_i32_0 : i32, i32
  }
  func.func @transform_5(%arg0: i32, %arg1: i32) -> (i32, i32) {
    %c0_i32 = arith.constant 0 : i32
    %c0_i32_0 = arith.constant 0 : i32
    %c0_i32_1 = arith.constant 0 : i32
    return %c0_i32, %c0_i32_0 : i32, i32
  }
  func.func @transform_6(%arg0: i32, %arg1: i32) -> (i32, i32, i32) {
    %c0_i32 = arith.constant 0 : i32
    %c0_i32_0 = arith.constant 0 : i32
    return %arg0, %arg1, %c0_i32 : i32, i32, i32
  }
}

module attributes {stable_mosaic.version = 11 : i64} {
  func.func @_pang_kernel(%arg0: i32, %arg1: i32, %arg2: memref<1x64x1152xbf16, #tpu.memory_space<vmem>>, %arg3: memref<1x64x512xbf16, #tpu.memory_space<vmem>>, %arg4: memref<1152x128xbf16, #tpu.memory_space<vmem>>, %arg5: memref<1x128xf32, #tpu.memory_space<vmem>>, %arg6: memref<128x128xbf16, #tpu.memory_space<vmem>>, %arg7: memref<1x128xf32, #tpu.memory_space<vmem>>, %arg8: memref<1x64x512xf32, #tpu.memory_space<vmem>>) attributes {dimension_semantics = [#tpu.dimension_semantics<parallel>, #tpu.dimension_semantics<parallel>], iteration_bounds = array<i64: 2, 1>, scalar_prefetch = 0 : i64, scratch_operands = 0 : i64, tpu.core_type = #tpu.core_type<tc>, window_params = [{transform_indices = @transform_0, window_bounds = array<i64: 1, 64, 1152>}, {transform_indices = @transform_1, window_bounds = array<i64: 1, 64, 512>}, {pipeline_mode = #tpu.pipeline_mode<synchronous>, transform_indices = @transform_2, window_bounds = array<i64: 1152, 128>}, {pipeline_mode = #tpu.pipeline_mode<synchronous>, transform_indices = @transform_3, window_bounds = array<i64: 1, 128>}, {pipeline_mode = #tpu.pipeline_mode<synchronous>, transform_indices = @transform_4, window_bounds = array<i64: 128, 128>}, {pipeline_mode = #tpu.pipeline_mode<synchronous>, transform_indices = @transform_5, window_bounds = array<i64: 1, 128>}, {transform_indices = @transform_6, window_bounds = array<i64: 1, 64, 512>}]} {
    %c0 = arith.constant 0 : index
    %c0_0 = arith.constant 0 : index
    %c0_1 = arith.constant 0 : index
    %0 = vector.load %arg2[%c0, %c0_0, %c0_1] : memref<1x64x1152xbf16, #tpu.memory_space<vmem>>, vector<1x64x1152xbf16>
    %1 = vector.shape_cast %0 : vector<1x64x1152xbf16> to vector<64x1152xbf16>
    %c0_2 = arith.constant 0 : index
    %c0_3 = arith.constant 0 : index
    %2 = vector.load %arg4[%c0_2, %c0_3] : memref<1152x128xbf16, #tpu.memory_space<vmem>>, vector<1152x128xbf16>
    %cst = arith.constant dense<0.000000e+00> : vector<64x128xf32>
    %3 = tpu.matmul %1, %2, %cst {dimension_numbers = #tpu.dot_dimension_numbers<[1], [0], [0], [1], [0, 0, 1, 1], [], []>} : vector<64x1152xbf16>, vector<1152x128xbf16>, vector<64x128xf32> -> vector<64x128xf32>
    %c0_4 = arith.constant 0 : index
    %c0_5 = arith.constant 0 : index
    %4 = vector.load %arg5[%c0_4, %c0_5] : memref<1x128xf32, #tpu.memory_space<vmem>>, vector<1x128xf32>
    %5 = vector.broadcast %4 : vector<1x128xf32> to vector<64x128xf32>
    %6 = arith.addf %3, %5 : vector<64x128xf32>
    %cst_6 = arith.constant 0.000000e+00 : f32
    %7 = vector.broadcast %cst_6 : f32 to vector<64x128xf32>
    %8 = arith.maximumf %6, %7 : vector<64x128xf32>
    %c0_7 = arith.constant 0 : index
    %c0_8 = arith.constant 0 : index
    %c0_9 = arith.constant 0 : index
    %9 = vector.load %arg3[%c0_7, %c0_8, %c0_9] : memref<1x64x512xbf16, #tpu.memory_space<vmem>>, vector<1x64x512xbf16>
    %10 = vector.shape_cast %9 : vector<1x64x512xbf16> to vector<64x512xbf16>
    %c0_10 = arith.constant 0 : index
    %c0_11 = arith.constant 0 : index
    %11 = vector.load %arg6[%c0_10, %c0_11] : memref<128x128xbf16, #tpu.memory_space<vmem>>, vector<128x128xbf16>
    %c0_12 = arith.constant 0 : index
    %c0_13 = arith.constant 0 : index
    %12 = vector.load %arg7[%c0_12, %c0_13] : memref<1x128xf32, #tpu.memory_space<vmem>>, vector<1x128xf32>
    %13 = vector.extract_strided_slice %10 {offsets = [0, 0], sizes = [64, 128], strides = [1, 1]} : vector<64x512xbf16> to vector<64x128xbf16>
    %cst_14 = arith.constant dense<0.000000e+00> : vector<64x128xf32>
    %14 = tpu.matmul %13, %11, %cst_14 {dimension_numbers = #tpu.dot_dimension_numbers<[1], [0], [0], [1], [0, 0, 1, 1], [], []>} : vector<64x128xbf16>, vector<128x128xbf16>, vector<64x128xf32> -> vector<64x128xf32>
    %15 = vector.broadcast %12 : vector<1x128xf32> to vector<64x128xf32>
    %16 = arith.addf %14, %15 : vector<64x128xf32>
    %cst_15 = arith.constant 0.000000e+00 : f32
    %17 = vector.broadcast %cst_15 : f32 to vector<64x128xf32>
    %18 = arith.maximumf %16, %17 : vector<64x128xf32>
    %19 = arith.addf %8, %18 : vector<64x128xf32>
    %20 = vector.extract_strided_slice %10 {offsets = [0, 128], sizes = [64, 128], strides = [1, 1]} : vector<64x512xbf16> to vector<64x128xbf16>
    %cst_16 = arith.constant dense<0.000000e+00> : vector<64x128xf32>
    %21 = tpu.matmul %20, %11, %cst_16 {dimension_numbers = #tpu.dot_dimension_numbers<[1], [0], [0], [1], [0, 0, 1, 1], [], []>} : vector<64x128xbf16>, vector<128x128xbf16>, vector<64x128xf32> -> vector<64x128xf32>
    %22 = vector.broadcast %12 : vector<1x128xf32> to vector<64x128xf32>
    %23 = arith.addf %21, %22 : vector<64x128xf32>
    %cst_17 = arith.constant 0.000000e+00 : f32
    %24 = vector.broadcast %cst_17 : f32 to vector<64x128xf32>
    %25 = arith.maximumf %23, %24 : vector<64x128xf32>
    %26 = arith.addf %8, %25 : vector<64x128xf32>
    %27 = vector.extract_strided_slice %10 {offsets = [0, 256], sizes = [64, 128], strides = [1, 1]} : vector<64x512xbf16> to vector<64x128xbf16>
    %cst_18 = arith.constant dense<0.000000e+00> : vector<64x128xf32>
    %28 = tpu.matmul %27, %11, %cst_18 {dimension_numbers = #tpu.dot_dimension_numbers<[1], [0], [0], [1], [0, 0, 1, 1], [], []>} : vector<64x128xbf16>, vector<128x128xbf16>, vector<64x128xf32> -> vector<64x128xf32>
    %29 = vector.broadcast %12 : vector<1x128xf32> to vector<64x128xf32>
    %30 = arith.addf %28, %29 : vector<64x128xf32>
    %cst_19 = arith.constant 0.000000e+00 : f32
    %31 = vector.broadcast %cst_19 : f32 to vector<64x128xf32>
    %32 = arith.maximumf %30, %31 : vector<64x128xf32>
    %33 = arith.addf %8, %32 : vector<64x128xf32>
    %34 = vector.extract_strided_slice %10 {offsets = [0, 384], sizes = [64, 128], strides = [1, 1]} : vector<64x512xbf16> to vector<64x128xbf16>
    %cst_20 = arith.constant dense<0.000000e+00> : vector<64x128xf32>
    %35 = tpu.matmul %34, %11, %cst_20 {dimension_numbers = #tpu.dot_dimension_numbers<[1], [0], [0], [1], [0, 0, 1, 1], [], []>} : vector<64x128xbf16>, vector<128x128xbf16>, vector<64x128xf32> -> vector<64x128xf32>
    %36 = vector.broadcast %12 : vector<1x128xf32> to vector<64x128xf32>
    %37 = arith.addf %35, %36 : vector<64x128xf32>
    %cst_21 = arith.constant 0.000000e+00 : f32
    %38 = vector.broadcast %cst_21 : f32 to vector<64x128xf32>
    %39 = arith.maximumf %37, %38 : vector<64x128xf32>
    %40 = arith.addf %8, %39 : vector<64x128xf32>
    %41 = tpu.concatenate %19, %26, %33, %40 in 1 : vector<64x128xf32>, vector<64x128xf32>, vector<64x128xf32>, vector<64x128xf32> -> vector<64x512xf32>
    %c0_22 = arith.constant 0 : index
    %c0_23 = arith.constant 0 : index
    %c0_24 = arith.constant 0 : index
    %42 = vector.load %arg8[%c0_22, %c0_23, %c0_24] : memref<1x64x512xf32, #tpu.memory_space<vmem>>, vector<1x64x512xf32>
    %43 = vector.shape_cast %42 : vector<1x64x512xf32> to vector<64x512xf32>
    %44 = vector.shape_cast %41 : vector<64x512xf32> to vector<1x64x512xf32>
    tpu.vector_store %arg8[%c0_22, %c0_23, %c0_24], %44 {strides = array<i32>} : memref<1x64x512xf32, #tpu.memory_space<vmem>>, vector<1x64x512xf32>,
    return
  }
  func.func @transform_0(%arg0: i32, %arg1: i32) -> (i32, i32, i32) {
    %c0_i32 = arith.constant 0 : i32
    %c0_i32_0 = arith.constant 0 : i32
    return %arg0, %arg1, %c0_i32 : i32, i32, i32
  }
  func.func @transform_1(%arg0: i32, %arg1: i32) -> (i32, i32, i32) {
    %c0_i32 = arith.constant 0 : i32
    %c0_i32_0 = arith.constant 0 : i32
    return %arg0, %arg1, %c0_i32 : i32, i32, i32
  }
  func.func @transform_2(%arg0: i32, %arg1: i32) -> (i32, i32) {
    %c0_i32 = arith.constant 0 : i32
    %c0_i32_0 = arith.constant 0 : i32
    %c0_i32_1 = arith.constant 0 : i32
    return %c0_i32, %c0_i32_0 : i32, i32
  }
  func.func @transform_3(%arg0: i32, %arg1: i32) -> (i32, i32) {
    %c0_i32 = arith.constant 0 : i32
    %c0_i32_0 = arith.constant 0 : i32
    %c0_i32_1 = arith.constant 0 : i32
    return %c0_i32, %c0_i32_0 : i32, i32
  }
  func.func @transform_4(%arg0: i32, %arg1: i32) -> (i32, i32) {
    %c0_i32 = arith.constant 0 : i32
    %c0_i32_0 = arith.constant 0 : i32
    %c0_i32_1 = arith.constant 0 : i32
    return %c0_i32, %c0_i32_0 : i32, i32
  }
  func.func @transform_5(%arg0: i32, %arg1: i32) -> (i32, i32) {
    %c0_i32 = arith.constant 0 : i32
    %c0_i32_0 = arith.constant 0 : i32
    %c0_i32_1 = arith.constant 0 : i32
    return %c0_i32, %c0_i32_0 : i32, i32
  }
  func.func @transform_6(%arg0: i32, %arg1: i32) -> (i32, i32, i32) {
    %c0_i32 = arith.constant 0 : i32
    %c0_i32_0 = arith.constant 0 : i32
    return %arg0, %arg1, %c0_i32 : i32, i32, i32
  }
}

</mosaic_0001>

<llo_original>
// kernel: fatnet_forward.13
$region0: #{fatnet_forward.13}
  #allocation0 [shape = 'u32[]', space=smem, size = 0x4, offset = 0x4, fixed_abs, tag = 'smem constant byte address 0x4 - core index']
  #allocation1 [shape = 'u32[72,128]{1,0:T(1,128)}', space=vmem, size = 0x9000, scoped, tag = 'internal scratch']
  %s0 = inlined_call_operand.vmem [shape: bf16[2,256,27], index: 0, kind: input, shape index: {}]
  %s1 = inlined_call_operand.vmem [shape: bf16[2,256,3], index: 1, kind: input, shape index: {}]
  %s2 = inlined_call_operand.hbm [shape: bf16[27,16], index: 2, kind: input, shape index: {}]
  %s3 = inlined_call_operand.hbm [shape: f32[1,16], index: 3, kind: input, shape index: {}]
  %s4 = inlined_call_operand.hbm [shape: bf16[3,16], index: 4, kind: input, shape index: {}]
  %s5 = inlined_call_operand.hbm [shape: f32[1,16], index: 5, kind: input, shape index: {}]
  %s6 = inlined_call_operand.vmem [shape: f32[2,256,16], index: 6, kind: output, shape index: {}]
  %s7 = sld [smem:[#allocation0]]
  $region73: #{fatnet_forward.13} parent=0
    _
  %s9 = ssub.s32 1, %s7
  %s10 = scalar_select 0, %s9, %s7
  $region1: #{fatnet_forward.13} parent=0
    #allocation2 [shape = 'u8[8192]{0}', space=vmem, size = 0x2000, scoped, tag = 'input window, operand 2, single buffered']
    #allocation3 [shape = 's32[2]{0}', space=sflag, size = 0x8, scoped, tag = 'scoped memory for fatnet_forward.13']
    #allocation4 [shape = 'u8[512]{0}', space=vmem, size = 0x400, scoped, tag = 'input window, operand 3, single buffered']
    #allocation5 [shape = 's32[1]{0}', space=sflag, size = 0x4, scoped, tag = 'scoped memory for fatnet_forward.13']
    #allocation6 [shape = 'u8[1024]{0}', space=vmem, size = 0x400, scoped, tag = 'input window, operand 4, single buffered']
    #allocation7 [shape = 'u8[512]{0}', space=vmem, size = 0x400, scoped, tag = 'input window, operand 5, single buffered']
    #allocation8 [shape = 's32[1]{0}', space=sflag, size = 0x4, scoped, tag = 'scoped memory for fatnet_forward.13']
    %11 = vsyncpa [#allocation3], 0
    %12 = vsyncpa [#allocation5], 0
    %13 = vsyncpa [#allocation8], 0
    loop: start=0, step=1, limit=4
    $region2: #{fatnet_forward.13} parent=1 // loop_pre_header
      _
    $region3: #{fatnet_forward.13} parent=1 // loop_header
      %s15 = sphi 0, %s19
      %p16 = scmp.ge.s32.totalorder %s15, 4
      %s22 = sphi 0, %s34
      %s23 = sphi 0, %s30
      %s24 = sphi 0, %s22
      %s25 = sphi 0, %s23
      %s26 = sphi 0, %s24
      %s27 = sphi 0, %s25
      %s39 = sphi 0, %s41
      %s42 = sphi 0, %s39
      %s43 = sphi 0, %s42
      %s59 = sphi 0, %s43
      %s67 = sphi 0, %s69
      %s70 = sphi 0, %s67
      %s71 = sphi 0, %s70
      %s87 = sphi 0, %s71
      %s91 = sphi 0, %s91
      %s93 = sphi 0, %s91
      %s94 = sphi 0, %s93
      %s108 = sphi 0, %s94
      %s112 = sphi 0, %s112
      %s114 = sphi 0, %s112
      %s115 = sphi 0, %s114
      %s129 = sphi 0, %s115
      %s133 = sphi 0, %s133
      %s135 = sphi 0, %s133
      %s136 = sphi 0, %s135
      %s150 = sphi 0, %s136
      %s154 = sphi 0, %s154
      %s156 = sphi 0, %s154
      %s157 = sphi 0, %s156
      %s171 = sphi 0, %s157
      %s179 = sphi 0, %s181
      %s182 = sphi 0, %s179
      %s183 = sphi 0, %s182
      %s199 = sphi 0, %s183
    $region4: #{fatnet_forward.13} parent=1 // loop_header_branch
      %18 = sbr.rel (%p16) target = $region8
    $region5: #{fatnet_forward.13} parent=1 // loop_body
      %s20 = ssub.s32 %s15, 1
      %s21 = ssub.s32 %s15, 2
      %s28 = sadd.s32 1, %s23
      %p29 = scmp.ge.s32.totalorder %s28, 1
      %s30 = scalar_select %p29, 0, %s28
      %s31 = sadd.s32 1, %s22
      %s32 = scalar_select %p29, %s31, %s22
      %p33 = scmp.ge.s32.totalorder %s32, 2
      %s34 = scalar_select %p33, 0, %s32
      %s35 = ssub.s32 %s22, %s34
      %s36 = ssub.s32 %s23, %s30
      %s37 = sor.u32 %s35, %s36
      %p38 = scmp.eq.s32.totalorder %s37, 0
      %s40 = sadd.s32 %s39, 1
      %s41 = scalar_select %p38, %s39, %s40
      %p44 = pneg %p38
      %p45 = scmp.eq.s32.totalorder %s15, 1
      %p46 = por %p44, %p45
      %p47 = scmp.ne.s32.totalorder %s39, %s42
      %p48 = scmp.eq.s32.totalorder %s15, 0
      %p49 = por %p47, %p48
      %p50 = scmp.ne.s32.totalorder %s39, %s42
      %p51 = scmp.eq.s32.totalorder %s20, 1
      %p52 = por %p50, %p51
      %p53 = scmp.ne.s32.totalorder %s42, %s43
      %p54 = scmp.eq.s32.totalorder %s20, 0
      %p55 = por %p53, %p54
      %p56 = scmp.ne.s32.totalorder %s42, %s43
      %p57 = scmp.eq.s32.totalorder %s21, 1
      %p58 = por %p56, %p57
      %p60 = scmp.ne.s32.totalorder %s43, %s59
      %p61 = scmp.eq.s32.totalorder %s21, 0
      %p62 = por %p60, %p61
      %s63 = ssub.s32 %s22, %s34
      %s64 = ssub.s32 %s23, %s30
      %s65 = sor.u32 %s63, %s64
      %p66 = scmp.eq.s32.totalorder %s65, 0
      %s68 = sadd.s32 %s67, 1
      %s69 = scalar_select %p66, %s67, %s68
      %p72 = pneg %p66
      %p73 = scmp.eq.s32.totalorder %s15, 1
      %p74 = por %p72, %p73
      %p75 = scmp.ne.s32.totalorder %s67, %s70
      %p76 = scmp.eq.s32.totalorder %s15, 0
      %p77 = por %p75, %p76
      %p78 = scmp.ne.s32.totalorder %s67, %s70
      %p79 = scmp.eq.s32.totalorder %s20, 1
      %p80 = por %p78, %p79
      %p81 = scmp.ne.s32.totalorder %s70, %s71
      %p82 = scmp.eq.s32.totalorder %s20, 0
      %p83 = por %p81, %p82
      %p84 = scmp.ne.s32.totalorder %s70, %s71
      %p85 = scmp.eq.s32.totalorder %s21, 1
      %p86 = por %p84, %p85
      %p88 = scmp.ne.s32.totalorder %s71, %s87
      %p89 = scmp.eq.s32.totalorder %s21, 0
      %p90 = por %p88, %p89
      %s92 = sadd.s32 %s91, 1
      %p95 = scmp.eq.s32.totalorder %s15, 1
      %p96 = scmp.ne.s32.totalorder %s91, %s93
      %p97 = scmp.eq.s32.totalorder %s15, 0
      %p98 = por %p96, %p97
      %p99 = scmp.ne.s32.totalorder %s91, %s93
      %p100 = scmp.eq.s32.totalorder %s20, 1
      %p101 = por %p99, %p100
      %p102 = scmp.ne.s32.totalorder %s93, %s94
      %p103 = scmp.eq.s32.totalorder %s20, 0
      %p104 = por %p102, %p103
      %p105 = scmp.ne.s32.totalorder %s93, %s94
      %p106 = scmp.eq.s32.totalorder %s21, 1
      %p107 = por %p105, %p106
      %p109 = scmp.ne.s32.totalorder %s94, %s108
      %p110 = scmp.eq.s32.totalorder %s21, 0
      %p111 = por %p109, %p110
      %s113 = sadd.s32 %s112, 1
      %p116 = scmp.eq.s32.totalorder %s15, 1
      %p117 = scmp.ne.s32.totalorder %s112, %s114
      %p118 = scmp.eq.s32.totalorder %s15, 0
      %p119 = por %p117, %p118
      %p120 = scmp.ne.s32.totalorder %s112, %s114
      %p121 = scmp.eq.s32.totalorder %s20, 1
      %p122 = por %p120, %p121
      %p123 = scmp.ne.s32.totalorder %s114, %s115
      %p124 = scmp.eq.s32.totalorder %s20, 0
      %p125 = por %p123, %p124
      %p126 = scmp.ne.s32.totalorder %s114, %s115
      %p127 = scmp.eq.s32.totalorder %s21, 1
      %p128 = por %p126, %p127
      %p130 = scmp.ne.s32.totalorder %s115, %s129
      %p131 = scmp.eq.s32.totalorder %s21, 0
      %p132 = por %p130, %p131
      %s134 = sadd.s32 %s133, 1
      %p137 = scmp.eq.s32.totalorder %s15, 1
      %p138 = scmp.ne.s32.totalorder %s133, %s135
      %p139 = scmp.eq.s32.totalorder %s15, 0
      %p140 = por %p138, %p139
      %p141 = scmp.ne.s32.totalorder %s133, %s135
      %p142 = scmp.eq.s32.totalorder %s20, 1
      %p143 = por %p141, %p142
      %p144 = scmp.ne.s32.totalorder %s135, %s136
      %p145 = scmp.eq.s32.totalorder %s20, 0
      %p146 = por %p144, %p145
      %p147 = scmp.ne.s32.totalorder %s135, %s136
      %p148 = scmp.eq.s32.totalorder %s21, 1
      %p149 = por %p147, %p148
      %p151 = scmp.ne.s32.totalorder %s136, %s150
      %p152 = scmp.eq.s32.totalorder %s21, 0
      %p153 = por %p151, %p152
      %s155 = sadd.s32 %s154, 1
      %p158 = scmp.eq.s32.totalorder %s15, 1
      %p159 = scmp.ne.s32.totalorder %s154, %s156
      %p160 = scmp.eq.s32.totalorder %s15, 0
      %p161 = por %p159, %p160
      %p162 = scmp.ne.s32.totalorder %s154, %s156
      %p163 = scmp.eq.s32.totalorder %s20, 1
      %p164 = por %p162, %p163
      %p165 = scmp.ne.s32.totalorder %s156, %s157
      %p166 = scmp.eq.s32.totalorder %s20, 0
      %p167 = por %p165, %p166
      %p168 = scmp.ne.s32.totalorder %s156, %s157
      %p169 = scmp.eq.s32.totalorder %s21, 1
      %p170 = por %p168, %p169
      %p172 = scmp.ne.s32.totalorder %s157, %s171
      %p173 = scmp.eq.s32.totalorder %s21, 0
      %p174 = por %p172, %p173
      %s175 = ssub.s32 %s22, %s34
      %s176 = ssub.s32 %s23, %s30
      %s177 = sor.u32 %s175, %s176
      %p178 = scmp.eq.s32.totalorder %s177, 0
      %s180 = sadd.s32 %s179, 1
      %s181 = scalar_select %p178, %s179, %s180
      %p184 = pneg %p178
      %p185 = scmp.eq.s32.totalorder %s15, 1
      %p186 = por %p184, %p185
      %p187 = scmp.ne.s32.totalorder %s179, %s182
      %p188 = scmp.eq.s32.totalorder %s15, 0
      %p189 = por %p187, %p188
      %p190 = scmp.ne.s32.totalorder %s179, %s182
      %p191 = scmp.eq.s32.totalorder %s20, 1
      %p192 = por %p190, %p191
      %p193 = scmp.ne.s32.totalorder %s182, %s183
      %p194 = scmp.eq.s32.totalorder %s20, 0
      %p195 = por %p193, %p194
      %p196 = scmp.ne.s32.totalorder %s182, %s183
      %p197 = scmp.eq.s32.totalorder %s21, 1
      %p198 = por %p196, %p197
      %p200 = scmp.ne.s32.totalorder %s183, %s199
      %p201 = scmp.eq.s32.totalorder %s21, 0
      %p202 = por %p200, %p201
      %p203 = scmp.le.s32.totalorder 1, %s15
      %p204 = scmp.lt.s32.totalorder %s15, 3
      %p205 = pnand %p203, %p204
      %p206 = pneg %p205
      // Predicated region
      $region9: #{fatnet_forward.13} parent=5 // pred_check
        _
      $region10: #{fatnet_forward.13} parent=5 // pred_check_branch
        %208 = sbr.rel (%p205) target = $region12
      $region11: #{fatnet_forward.13} parent=5 // pred_region
        %s209 = ssub.s32 %s15, 1
        // Predicated region
        $region13: #{fatnet_forward.13} parent=11 // pred_check
          %p210 = pneg %p104
        $region14: #{fatnet_forward.13} parent=11 // pred_check_branch
          %212 = sbr.rel (%p210) target = $region16
        $region15: #{fatnet_forward.13} parent=11 // pred_region
          %214 = vsyncadd [#allocation3], 0
          %s215 = sshll.u32 %s2, 4
          %s216 = int_to_ptr.hbm [resolvable:$true] %s215
          %s217 = sshll.u32 [#allocation2], 4
          %s218 = int_to_ptr.vmem [resolvable:$true] %s217
          %223 = dma.hbm_to_vmem [thread:$0]  %s216, 256, %s218, [#allocation3], 64, 64, 4
        $region16: #{fatnet_forward.13} parent=11 // pred_fallthru
          _
        // Predicated region
        $region17: #{fatnet_forward.13} parent=11 // pred_check
          %p224 = pneg %p125
        $region18: #{fatnet_forward.13} parent=11 // pred_check_branch
          %226 = sbr.rel (%p224) target = $region20
        $region19: #{fatnet_forward.13} parent=11 // pred_region
          %228 = vsyncadd [#allocation5], 0
          %s230 = sshll.u32 %s3, 4
          %s231 = int_to_ptr.hbm [resolvable:$true] %s230
          %s232 = sshll.u32 [#allocation4], 4
          %s233 = int_to_ptr.vmem [resolvable:$true] %s232
          %235 = dma.hbm_to_vmem [thread:$0]  %s231, 16, %s233, [#allocation5]
        $region20: #{fatnet_forward.13} parent=11 // pred_fallthru
          _
        // Predicated region
        $region21: #{fatnet_forward.13} parent=11 // pred_check
          %p236 = pneg %p146
        $region22: #{fatnet_forward.13} parent=11 // pred_check_branch
          %238 = sbr.rel (%p236) target = $region24
        $region23: #{fatnet_forward.13} parent=11 // pred_region
          %240 = vsyncadd [#allocation5], 0
          %s242 = sshll.u32 %s4, 4
          %s243 = int_to_ptr.hbm [resolvable:$true] %s242
          %s244 = sshll.u32 [#allocation6], 4
          %s245 = int_to_ptr.vmem [resolvable:$true] %s244
          %247 = dma.hbm_to_vmem [thread:$0]  %s243, 32, %s245, [#allocation5]
        $region24: #{fatnet_forward.13} parent=11 // pred_fallthru
          _
        // Predicated region
        $region25: #{fatnet_forward.13} parent=11 // pred_check
          %p248 = pneg %p167
        $region26: #{fatnet_forward.13} parent=11 // pred_check_branch
          %250 = sbr.rel (%p248) target = $region28
        $region27: #{fatnet_forward.13} parent=11 // pred_region
          %252 = vsyncadd [#allocation8], 0
          %s254 = sshll.u32 %s5, 4
          %s255 = int_to_ptr.hbm [resolvable:$true] %s254
          %s256 = sshll.u32 [#allocation7], 4
          %s257 = int_to_ptr.vmem [resolvable:$true] %s256
          %259 = dma.hbm_to_vmem [thread:$0]  %s255, 16, %s257, [#allocation8]
        $region28: #{fatnet_forward.13} parent=11 // pred_fallthru
          _
      $region12: #{fatnet_forward.13} parent=5 // pred_fallthru
        _
      %p260 = scmp.lt.s32.totalorder %s15, 2
      // Predicated region
      $region29: #{fatnet_forward.13} parent=5 // pred_check
        %p261 = pneg %p260
      $region30: #{fatnet_forward.13} parent=5 // pred_check_branch
        %263 = sbr.rel (%p261) target = $region32
      $region31: #{fatnet_forward.13} parent=5 // pred_region
        // Predicated region
        $region33: #{fatnet_forward.13} parent=31 // pred_check
          %p264 = pneg %p49
        $region34: #{fatnet_forward.13} parent=31 // pred_check_branch
          %266 = sbr.rel (%p264) target = $region36
        $region35: #{fatnet_forward.13} parent=31 // pred_region
          %s267 = smul.u32 32, %s23
          %p268 = scmp.lt.s32.totalorder %s22, 1
          %s269 = scalar_select %p268, %s22, 1
          %p270 = scmp.lt.s32.totalorder %s267, 31
          %s271 = scalar_select %p270, %s267, 31
          %s272 = smul.addr %s269, 32
          %s273 = sadd.s32 %s271, %s272
          %s274 = smul.addr %s273, 4
          %s275 = scalar_lea.vmem %s0, %s274
          %s276 = smul.u32 32, %s23
        $region36: #{fatnet_forward.13} parent=31 // pred_fallthru
          _
        // Predicated region
        $region37: #{fatnet_forward.13} parent=31 // pred_check
          %p277 = pneg %p77
        $region38: #{fatnet_forward.13} parent=31 // pred_check_branch
          %279 = sbr.rel (%p277) target = $region40
        $region39: #{fatnet_forward.13} parent=31 // pred_region
          %s280 = smul.u32 32, %s23
          %p281 = scmp.lt.s32.totalorder %s22, 1
          %s282 = scalar_select %p281, %s22, 1
          %p283 = scmp.lt.s32.totalorder %s280, 31
          %s284 = scalar_select %p283, %s280, 31
          %s285 = smul.addr %s282, 32
          %s286 = sadd.s32 %s284, %s285
          %s287 = smul.addr %s286, 4
          %s288 = scalar_lea.vmem %s1, %s287
          %s289 = smul.u32 32, %s23
        $region40: #{fatnet_forward.13} parent=31 // pred_fallthru
          _
      $region32: #{fatnet_forward.13} parent=5 // pred_fallthru
        _
      %p290 = scmp.le.s32.totalorder 1, %s15
      %p291 = scmp.lt.s32.totalorder %s15, 3
      %p292 = pnand %p290, %p291
      %p293 = pneg %p292
      // Predicated region
      $region41: #{fatnet_forward.13} parent=5 // pred_check
        _
      $region42: #{fatnet_forward.13} parent=5 // pred_check_branch
        %295 = sbr.rel (%p292) target = $region44
      $region43: #{fatnet_forward.13} parent=5 // pred_region
        %s296 = ssub.s32 %s15, 1
        // Predicated region
        $region45: #{fatnet_forward.13} parent=43 // pred_check
          %p297 = pneg %p104
        $region46: #{fatnet_forward.13} parent=43 // pred_check_branch
          %299 = sbr.rel (%p297) target = $region48
        $region47: #{fatnet_forward.13} parent=43 // pred_region
          %301 = dma.done [#allocation3], 256
        $region48: #{fatnet_forward.13} parent=43 // pred_fallthru
          _
        // Predicated region
        $region49: #{fatnet_forward.13} parent=43 // pred_check
          %p302 = pneg %p125
        $region50: #{fatnet_forward.13} parent=43 // pred_check_branch
          %304 = sbr.rel (%p302) target = $region52
        $region51: #{fatnet_forward.13} parent=43 // pred_region
          %306 = dma.done [#allocation5], 16
        $region52: #{fatnet_forward.13} parent=43 // pred_fallthru
          _
        // Predicated region
        $region53: #{fatnet_forward.13} parent=43 // pred_check
          %p307 = pneg %p146
        $region54: #{fatnet_forward.13} parent=43 // pred_check_branch
          %309 = sbr.rel (%p307) target = $region56
        $region55: #{fatnet_forward.13} parent=43 // pred_region
          %311 = dma.done [#allocation5], 32
        $region56: #{fatnet_forward.13} parent=43 // pred_fallthru
          _
        // Predicated region
        $region57: #{fatnet_forward.13} parent=43 // pred_check
          %p312 = pneg %p167
        $region58: #{fatnet_forward.13} parent=43 // pred_check_branch
          %314 = sbr.rel (%p312) target = $region60
        $region59: #{fatnet_forward.13} parent=43 // pred_region
          %316 = dma.done [#allocation8], 16
        $region60: #{fatnet_forward.13} parent=43 // pred_fallthru
          _
        %s317 = smul.u32 32, %s25
        %p318 = scmp.lt.s32.totalorder %s24, 1
        %s319 = scalar_select %p318, %s24, 1
        %p320 = scmp.lt.s32.totalorder %s317, 31
        %s321 = scalar_select %p320, %s317, 31
        %s322 = smul.addr %s319, 32
        %s323 = sadd.s32 %s321, %s322
        %s324 = smul.addr %s323, 4
        %s325 = scalar_lea.vmem %s0, %s324
        %p326 = pneg %p55
        %p327 = pneg %p52
        %s328 = smul.u32 32, %s25
        %p329 = scmp.lt.s32.totalorder %s24, 1
        %s330 = scalar_select %p329, %s24, 1
        %p331 = scmp.lt.s32.totalorder %s328, 31
        %s332 = scalar_select %p331, %s328, 31
        %s333 = smul.addr %s330, 32
        %s334 = sadd.s32 %s332, %s333
        %s335 = smul.addr %s334, 4
        %s336 = scalar_lea.vmem %s1, %s335
        %p337 = pneg %p83
        %p338 = pneg %p80
        %p339 = pneg %p104
        %p340 = pneg %p101
        %p341 = pneg %p125
        %p342 = pneg %p122
        %p343 = pneg %p146
        %p344 = pneg %p143
        %p345 = pneg %p167
        %p346 = pneg %p164
        %p347 = pneg %p195
        %p348 = pneg %p192
        %s349 = smul.u32 32, %s25
        %p350 = scmp.lt.s32.totalorder %s24, 1
        %s351 = scalar_select %p350, %s24, 1
        %p352 = scmp.lt.s32.totalorder %s349, 31
        %s353 = scalar_select %p352, %s349, 31
        %s354 = smul.addr %s351, 32
        %s355 = sadd.s32 %s353, %s354
        %s356 = smul.addr %s355, 8
        %s357 = scalar_lea.vmem %s6, %s356
        %s358 = smul.u32 32, %s25
        %p359 = scmp.lt.s32.totalorder %s24, 1
        %s360 = scalar_select %p359, %s24, 1
        %p361 = scmp.lt.s32.totalorder %s358, 31
        %s362 = scalar_select %p361, %s358, 31
        %s363 = smul.addr %s360, 32
        %s364 = sadd.s32 %s362, %s363
        %s365 = smul.addr %s364, 4
        %s366 = scalar_lea.vmem %s0, %s365
        %s367 = smul.u32 32, %s25
        %s368 = smul.u32 32, %s25
        %p369 = scmp.lt.s32.totalorder %s24, 1
        %s370 = scalar_select %p369, %s24, 1
        %p371 = scmp.lt.s32.totalorder %s368, 31
        %s372 = scalar_select %p371, %s368, 31
        %s373 = smul.addr %s370, 32
        %s374 = sadd.s32 %s372, %s373
        %s375 = smul.addr %s374, 4
        %s376 = scalar_lea.vmem %s1, %s375
        %s377 = smul.u32 32, %s25
        %s378 = smul.u32 32, %s25
        %p379 = scmp.lt.s32.totalorder %s24, 1
        %s380 = scalar_select %p379, %s24, 1
        %p381 = scmp.lt.s32.totalorder %s378, 31
        %s382 = scalar_select %p381, %s378, 31
        %s383 = smul.addr %s380, 32
        %s384 = sadd.s32 %s382, %s383
        %s385 = smul.addr %s384, 8
        %s386 = scalar_lea.vmem %s6, %s385
        %s387 = smul.u32 32, %s25
        %v389 = vld [vmem:[%s366] sm:$0xf]
        %v390 = vld [vmem:[%s366 + $0x4] sm:$0xf]
        %v391 = vld [vmem:[%s366 + $0x8] sm:$0xf]
        %v392 = vld [vmem:[%s366 + $0xc] sm:$0xf]
        %v393 = vld [vmem:[%s366 + $0x10] sm:$0xf]
        %v394 = vld [vmem:[%s366 + $0x14] sm:$0xf]
        %v395 = vld [vmem:[%s366 + $0x18] sm:$0xf]
        %v396 = vld [vmem:[%s366 + $0x1c] sm:$0xf]
        %v397 = vld [vmem:[%s366 + $0x20] sm:$0xf]
        %v398 = vld [vmem:[%s366 + $0x24] sm:$0xf]
        %v399 = vld [vmem:[%s366 + $0x28] sm:$0xf]
        %v400 = vld [vmem:[%s366 + $0x2c] sm:$0xf]
        %v401 = vld [vmem:[%s366 + $0x30] sm:$0xf]
        %v402 = vld [vmem:[%s366 + $0x34] sm:$0xf]
        %v403 = vld [vmem:[%s366 + $0x38] sm:$0xf]
        %v404 = vld [vmem:[%s366 + $0x3c] sm:$0xf]
        %v405 = vld [vmem:[%s366 + $0x40] sm:$0xf]
        %v406 = vld [vmem:[%s366 + $0x44] sm:$0xf]
        %v407 = vld [vmem:[%s366 + $0x48] sm:$0xf]
        %v408 = vld [vmem:[%s366 + $0x4c] sm:$0xf]
        %v409 = vld [vmem:[%s366 + $0x50] sm:$0xf]
        %v410 = vld [vmem:[%s366 + $0x54] sm:$0xf]
        %v411 = vld [vmem:[%s366 + $0x58] sm:$0xf]
        %v412 = vld [vmem:[%s366 + $0x5c] sm:$0xf]
        %v413 = vld [vmem:[%s366 + $0x60] sm:$0xf]
        %v414 = vld [vmem:[%s366 + $0x64] sm:$0xf]
        %v415 = vld [vmem:[%s366 + $0x68] sm:$0xf]
        %v416 = vld [vmem:[%s366 + $0x6c] sm:$0xf]
        %v417 = vld [vmem:[%s366 + $0x70] sm:$0xf]
        %v418 = vld [vmem:[%s366 + $0x74] sm:$0xf]
        %v419 = vld [vmem:[%s366 + $0x78] sm:$0xf]
        %v420 = vld [vmem:[%s366 + $0x7c] sm:$0xf]
        %v421 = vld [vmem:[#allocation2] sm:$0xf]
        %v422 = vld [vmem:[#allocation2 + $0x4] sm:$0xf]
        %v423 = vld [vmem:[#allocation2 + $0x8] sm:$0xf]
        %v424 = vld [vmem:[#allocation2 + $0xc] sm:$0x3]
        %v425 = vld [vmem:[#allocation4] sm:$0x1]
        %v427 = vperm.slane %v425, 0
        %v461 = vunpack.c.l.b16 %v389
        %v462 = vunpack.c.l.b16 %v390
        %v463 = vunpack.c.l.b16 %v391
        %v464 = vunpack.c.l.b16 %v392
        %v465 = vunpack.c.l.b16 %v393
        %v466 = vunpack.c.l.b16 %v394
        %v467 = vunpack.c.l.b16 %v395
        %v468 = vunpack.c.l.b16 %v396
        %v469 = vunpack.c.l.b16 %v397
        %v470 = vunpack.c.l.b16 %v398
        %v471 = vunpack.c.l.b16 %v399
        %v472 = vunpack.c.l.b16 %v400
        %v473 = vunpack.c.l.b16 %v401
        %v474 = vunpack.c.l.b16 %v402
        %v475 = vunpack.c.l.b16 %v403
        %v476 = vunpack.c.l.b16 %v404
        %v477 = vunpack.c.l.b16 %v405
        %v478 = vunpack.c.l.b16 %v406
        %v479 = vunpack.c.l.b16 %v407
        %v480 = vunpack.c.l.b16 %v408
        %v481 = vunpack.c.l.b16 %v409
        %v482 = vunpack.c.l.b16 %v410
        %v483 = vunpack.c.l.b16 %v411
        %v484 = vunpack.c.l.b16 %v412
        %v485 = vunpack.c.l.b16 %v413
        %v486 = vunpack.c.l.b16 %v414
        %v487 = vunpack.c.l.b16 %v415
        %v488 = vunpack.c.l.b16 %v416
        %v489 = vunpack.c.l.b16 %v417
        %v490 = vunpack.c.l.b16 %v418
        %v491 = vunpack.c.l.b16 %v419
        %v492 = vunpack.c.l.b16 %v420
        %v493 = vpack.c.b16 %v462, %v461
        %v494 = vpack.c.b16 %v464, %v463
        %v495 = vpack.c.b16 %v466, %v465
        %v496 = vpack.c.b16 %v468, %v467
        %v497 = vpack.c.b16 %v470, %v469
        %v498 = vpack.c.b16 %v472, %v471
        %v499 = vpack.c.b16 %v474, %v473
        %v500 = vpack.c.b16 %v476, %v475
        %v501 = vpack.c.b16 %v478, %v477
        %v502 = vpack.c.b16 %v480, %v479
        %v503 = vpack.c.b16 %v482, %v481
        %v504 = vpack.c.b16 %v484, %v483
        %v505 = vpack.c.b16 %v486, %v485
        %v506 = vpack.c.b16 %v488, %v487
        %v507 = vpack.c.b16 %v490, %v489
        %v508 = vpack.c.b16 %v492, %v491
        %v513 = vunpack.c.l.b16 %v421
        %v514 = vunpack.c.l.b16 %v422
        %v515 = vunpack.c.l.b16 %v423
        %v516 = vunpack.c.l.b16 %v424
        %v517 = vpack.c.b16 %v514, %v513
        %v518 = vpack.c.b16 %v516, %v515
        %vm520 = vcmask 220160
        %v522 = vsel %vm520, %v493, 0
        %v525 = vsel %vm520, %v494, 0
        %v528 = vsel %vm520, %v495, 0
        %v531 = vsel %vm520, %v496, 0
        %v534 = vsel %vm520, %v497, 0
        %v537 = vsel %vm520, %v498, 0
        %v540 = vsel %vm520, %v499, 0
        %v543 = vsel %vm520, %v500, 0
        %v546 = vsel %vm520, %v501, 0
        %v549 = vsel %vm520, %v502, 0
        %v552 = vsel %vm520, %v503, 0
        %v555 = vsel %vm520, %v504, 0
        %v558 = vsel %vm520, %v505, 0
        %v561 = vsel %vm520, %v506, 0
        %v564 = vsel %vm520, %v507, 0
        %v567 = vsel %vm520, %v508, 0
        %vm569 = vcmask 1044480
        %vm570 = vcmask 1045504
        %v571 = vsel %vm569, 4294967295, 65535
        %v572 = vsel %vm570, %v571, 0
        %v574 = vand.u32 %v518, %v572
        %576 = vmatpush.bf16.msra.mxu0 0
        %577 = vmatpush.bf16.msra.mxu0 0
        %578 = vmatpush.bf16.msra.mxu0 0
        %579 = vmatpush.bf16.msra.mxu0 0
        %580 = vmatpush.bf16.msra.mxu0 0
        %581 = vmatpush.bf16.msra.mxu0 0
        %582 = vmatpush.bf16.msra.mxu0 %v574
        %583 = vmatpush.bf16.msra.mxu0 %v517
        %584 = vmatmul.bf16.gmra.mxu0 %v522
        %v585 = vpop.f32.mrf.mxu0
        %v586 = vadd.f32 %v427, %v585
        %v587 = vpop.f32.mrf.mxu0
        %v588 = vadd.f32 %v427, %v587
        %589 = vmatmul.bf16.gmra.mxu0 %v525
        %v590 = vpop.f32.mrf.mxu0
        %v591 = vadd.f32 %v427, %v590
        %v592 = vpop.f32.mrf.mxu0
        %v593 = vadd.f32 %v427, %v592
        %594 = vmatmul.bf16.gmra.mxu0 %v528
        %v595 = vpop.f32.mrf.mxu0
        %v596 = vadd.f32 %v427, %v595
        %v597 = vpop.f32.mrf.mxu0
        %v598 = vadd.f32 %v427, %v597
        %599 = vmatmul.bf16.gmra.mxu0 %v531
        %v600 = vpop.f32.mrf.mxu0
        %v601 = vadd.f32 %v427, %v600
        %v602 = vpop.f32.mrf.mxu0
        %v603 = vadd.f32 %v427, %v602
        %604 = vmatmul.bf16.gmra.mxu0 %v534
        %v605 = vpop.f32.mrf.mxu0
        %v606 = vadd.f32 %v427, %v605
        %v607 = vpop.f32.mrf.mxu0
        %v608 = vadd.f32 %v427, %v607
        %609 = vmatmul.bf16.gmra.mxu0 %v537
        %v610 = vpop.f32.mrf.mxu0
        %v611 = vadd.f32 %v427, %v610
        %v612 = vpop.f32.mrf.mxu0
        %v613 = vadd.f32 %v427, %v612
        %614 = vmatmul.bf16.gmra.mxu0 %v540
        %v615 = vpop.f32.mrf.mxu0
        %v616 = vadd.f32 %v427, %v615
        %v617 = vpop.f32.mrf.mxu0
        %v618 = vadd.f32 %v427, %v617
        %619 = vmatmul.bf16.gmra.mxu0 %v543
        %v620 = vpop.f32.mrf.mxu0
        %v621 = vadd.f32 %v427, %v620
        %v622 = vpop.f32.mrf.mxu0
        %v623 = vadd.f32 %v427, %v622
        %624 = vmatmul.bf16.gmra.mxu0 %v546
        %v625 = vpop.f32.mrf.mxu0
        %v626 = vadd.f32 %v427, %v625
        %v627 = vpop.f32.mrf.mxu0
        %v628 = vadd.f32 %v427, %v627
        %629 = vmatmul.bf16.gmra.mxu0 %v549
        %v630 = vpop.f32.mrf.mxu0
        %v631 = vadd.f32 %v427, %v630
        %v632 = vpop.f32.mrf.mxu0
        %v633 = vadd.f32 %v427, %v632
        %634 = vmatmul.bf16.gmra.mxu0 %v552
        %v635 = vpop.f32.mrf.mxu0
        %v636 = vadd.f32 %v427, %v635
        %v637 = vpop.f32.mrf.mxu0
        %v638 = vadd.f32 %v427, %v637
        %639 = vmatmul.bf16.gmra.mxu0 %v555
        %v640 = vpop.f32.mrf.mxu0
        %v641 = vadd.f32 %v427, %v640
        %v642 = vpop.f32.mrf.mxu0
        %v643 = vadd.f32 %v427, %v642
        %644 = vmatmul.bf16.gmra.mxu0 %v558
        %v645 = vpop.f32.mrf.mxu0
        %v646 = vadd.f32 %v427, %v645
        %v647 = vpop.f32.mrf.mxu0
        %v648 = vadd.f32 %v427, %v647
        %649 = vmatmul.bf16.gmra.mxu0 %v561
        %v650 = vpop.f32.mrf.mxu0
        %v651 = vadd.f32 %v427, %v650
        %v652 = vpop.f32.mrf.mxu0
        %v653 = vadd.f32 %v427, %v652
        %654 = vmatmul.bf16.gmra.mxu0 %v564
        %v655 = vpop.f32.mrf.mxu0
        %v656 = vadd.f32 %v427, %v655
        %v657 = vpop.f32.mrf.mxu0
        %v658 = vadd.f32 %v427, %v657
        %659 = vmatmul.bf16.gmra.mxu0 %v567
        %v660 = vpop.f32.mrf.mxu0
        %v661 = vadd.f32 %v427, %v660
        %v662 = vpop.f32.mrf.mxu0
        %v663 = vadd.f32 %v427, %v662
        %664 = vdwg.mxu0
        %v665 = vmax.f32 %v586, 0.0
        %v666 = vmax.f32 %v588, 0.0
        %v667 = vmax.f32 %v591, 0.0
        %v668 = vmax.f32 %v593, 0.0
        %v669 = vmax.f32 %v596, 0.0
        %v670 = vmax.f32 %v598, 0.0
        %v671 = vmax.f32 %v601, 0.0
        %v672 = vmax.f32 %v603, 0.0
        %v673 = vmax.f32 %v606, 0.0
        %v674 = vmax.f32 %v608, 0.0
        %v675 = vmax.f32 %v611, 0.0
        %v676 = vmax.f32 %v613, 0.0
        %v677 = vmax.f32 %v616, 0.0
        %v678 = vmax.f32 %v618, 0.0
        %v679 = vmax.f32 %v621, 0.0
        %v680 = vmax.f32 %v623, 0.0
        %v681 = vmax.f32 %v626, 0.0
        %v682 = vmax.f32 %v628, 0.0
        %v683 = vmax.f32 %v631, 0.0
        %v684 = vmax.f32 %v633, 0.0
        %v685 = vmax.f32 %v636, 0.0
        %v686 = vmax.f32 %v638, 0.0
        %v687 = vmax.f32 %v641, 0.0
        %v688 = vmax.f32 %v643, 0.0
        %v689 = vmax.f32 %v646, 0.0
        %v690 = vmax.f32 %v648, 0.0
        %v691 = vmax.f32 %v651, 0.0
        %v692 = vmax.f32 %v653, 0.0
        %v693 = vmax.f32 %v656, 0.0
        %v694 = vmax.f32 %v658, 0.0
        %v695 = vmax.f32 %v661, 0.0
        %v696 = vmax.f32 %v663, 0.0
        %v697 = vld [vmem:[%s376] sm:$0xf]
        %v698 = vld [vmem:[%s376 + $0x4] sm:$0xf]
        %v699 = vld [vmem:[%s376 + $0x8] sm:$0xf]
        %v700 = vld [vmem:[%s376 + $0xc] sm:$0xf]
        %v701 = vld [vmem:[%s376 + $0x10] sm:$0xf]
        %v702 = vld [vmem:[%s376 + $0x14] sm:$0xf]
        %v703 = vld [vmem:[%s376 + $0x18] sm:$0xf]
        %v704 = vld [vmem:[%s376 + $0x1c] sm:$0xf]
        %v705 = vld [vmem:[%s376 + $0x20] sm:$0xf]
        %v706 = vld [vmem:[%s376 + $0x24] sm:$0xf]
        %v707 = vld [vmem:[%s376 + $0x28] sm:$0xf]
        %v708 = vld [vmem:[%s376 + $0x2c] sm:$0xf]
        %v709 = vld [vmem:[%s376 + $0x30] sm:$0xf]
        %v710 = vld [vmem:[%s376 + $0x34] sm:$0xf]
        %v711 = vld [vmem:[%s376 + $0x38] sm:$0xf]
        %v712 = vld [vmem:[%s376 + $0x3c] sm:$0xf]
        %v713 = vld [vmem:[%s376 + $0x40] sm:$0xf]
        %v714 = vld [vmem:[%s376 + $0x44] sm:$0xf]
        %v715 = vld [vmem:[%s376 + $0x48] sm:$0xf]
        %v716 = vld [vmem:[%s376 + $0x4c] sm:$0xf]
        %v717 = vld [vmem:[%s376 + $0x50] sm:$0xf]
        %v718 = vld [vmem:[%s376 + $0x54] sm:$0xf]
        %v719 = vld [vmem:[%s376 + $0x58] sm:$0xf]
        %v720 = vld [vmem:[%s376 + $0x5c] sm:$0xf]
        %v721 = vld [vmem:[%s376 + $0x60] sm:$0xf]
        %v722 = vld [vmem:[%s376 + $0x64] sm:$0xf]
        %v723 = vld [vmem:[%s376 + $0x68] sm:$0xf]
        %v724 = vld [vmem:[%s376 + $0x6c] sm:$0xf]
        %v725 = vld [vmem:[%s376 + $0x70] sm:$0xf]
        %v726 = vld [vmem:[%s376 + $0x74] sm:$0xf]
        %v727 = vld [vmem:[%s376 + $0x78] sm:$0xf]
        %v728 = vld [vmem:[%s376 + $0x7c] sm:$0xf]
        %v729 = vld [vmem:[#allocation6] sm:$0x3]
        %v730 = vld [vmem:[#allocation7] sm:$0x1]
        %v732 = vperm.slane %v730, 0
        %v766 = vunpack.c.l.b16 %v697
        %v767 = vunpack.c.l.b16 %v698
        %v768 = vunpack.c.l.b16 %v699
        %v769 = vunpack.c.l.b16 %v700
        %v770 = vunpack.c.l.b16 %v701
        %v771 = vunpack.c.l.b16 %v702
        %v772 = vunpack.c.l.b16 %v703
        %v773 = vunpack.c.l.b16 %v704
        %v774 = vunpack.c.l.b16 %v705
        %v775 = vunpack.c.l.b16 %v706
        %v776 = vunpack.c.l.b16 %v707
        %v777 = vunpack.c.l.b16 %v708
        %v778 = vunpack.c.l.b16 %v709
        %v779 = vunpack.c.l.b16 %v710
        %v780 = vunpack.c.l.b16 %v711
        %v781 = vunpack.c.l.b16 %v712
        %v782 = vunpack.c.l.b16 %v713
        %v783 = vunpack.c.l.b16 %v714
        %v784 = vunpack.c.l.b16 %v715
        %v785 = vunpack.c.l.b16 %v716
        %v786 = vunpack.c.l.b16 %v717
        %v787 = vunpack.c.l.b16 %v718
        %v788 = vunpack.c.l.b16 %v719
        %v789 = vunpack.c.l.b16 %v720
        %v790 = vunpack.c.l.b16 %v721
        %v791 = vunpack.c.l.b16 %v722
        %v792 = vunpack.c.l.b16 %v723
        %v793 = vunpack.c.l.b16 %v724
        %v794 = vunpack.c.l.b16 %v725
        %v795 = vunpack.c.l.b16 %v726
        %v796 = vunpack.c.l.b16 %v727
        %v797 = vunpack.c.l.b16 %v728
        %v798 = vpack.c.b16 %v767, %v766
        %v799 = vpack.c.b16 %v769, %v768
        %v800 = vpack.c.b16 %v771, %v770
        %v801 = vpack.c.b16 %v773, %v772
        %v802 = vpack.c.b16 %v775, %v774
        %v803 = vpack.c.b16 %v777, %v776
        %v804 = vpack.c.b16 %v779, %v778
        %v805 = vpack.c.b16 %v781, %v780
        %v806 = vpack.c.b16 %v783, %v782
        %v807 = vpack.c.b16 %v785, %v784
        %v808 = vpack.c.b16 %v787, %v786
        %v809 = vpack.c.b16 %v789, %v788
        %v810 = vpack.c.b16 %v791, %v790
        %v811 = vpack.c.b16 %v793, %v792
        %v812 = vpack.c.b16 %v795, %v794
        %v813 = vpack.c.b16 %v797, %v796
        %vm814 = vcmask 23552
        %v816 = vsel %vm814, %v798, 0
        %v819 = vsel %vm814, %v799, 0
        %v822 = vsel %vm814, %v800, 0
        %v825 = vsel %vm814, %v801, 0
        %v828 = vsel %vm814, %v802, 0
        %v831 = vsel %vm814, %v803, 0
        %v834 = vsel %vm814, %v804, 0
        %v837 = vsel %vm814, %v805, 0
        %v840 = vsel %vm814, %v806, 0
        %v843 = vsel %vm814, %v807, 0
        %v846 = vsel %vm814, %v808, 0
        %v849 = vsel %vm814, %v809, 0
        %v852 = vsel %vm814, %v810, 0
        %v855 = vsel %vm814, %v811, 0
        %v858 = vsel %vm814, %v812, 0
        %v861 = vsel %vm814, %v813, 0
        %vm863 = vcmask 1040384
        %vm864 = vcmask 1041408
        %v865 = vsel %vm863, 4294967295, 65535
        %v866 = vsel %vm864, %v865, 0
        %v868 = vand.u32 %v729, %v866
        %870 = vmatpush.bf16.msra.mxu0 0
        %871 = vmatpush.bf16.msra.mxu0 0
        %872 = vmatpush.bf16.msra.mxu0 0
        %873 = vmatpush.bf16.msra.mxu0 0
        %874 = vmatpush.bf16.msra.mxu0 0
        %875 = vmatpush.bf16.msra.mxu0 0
        %876 = vmatpush.bf16.msra.mxu0 0
        %877 = vmatpush.bf16.msra.mxu0 %v868
        %878 = vmatmul.bf16.gmra.mxu0 %v816
        %v879 = vpop.f32.mrf.mxu0
        %v880 = vadd.f32 %v732, %v879
        %v881 = vpop.f32.mrf.mxu0
        %v882 = vadd.f32 %v732, %v881
        %883 = vmatmul.bf16.gmra.mxu0 %v819
        %v884 = vpop.f32.mrf.mxu0
        %v885 = vadd.f32 %v732, %v884
        %v886 = vpop.f32.mrf.mxu0
        %v887 = vadd.f32 %v732, %v886
        %888 = vmatmul.bf16.gmra.mxu0 %v822
        %v889 = vpop.f32.mrf.mxu0
        %v890 = vadd.f32 %v732, %v889
        %v891 = vpop.f32.mrf.mxu0
        %v892 = vadd.f32 %v732, %v891
        %893 = vmatmul.bf16.gmra.mxu0 %v825
        %v894 = vpop.f32.mrf.mxu0
        %v895 = vadd.f32 %v732, %v894
        %v896 = vpop.f32.mrf.mxu0
        %v897 = vadd.f32 %v732, %v896
        %898 = vmatmul.bf16.gmra.mxu0 %v828
        %v899 = vpop.f32.mrf.mxu0
        %v900 = vadd.f32 %v732, %v899
        %v901 = vpop.f32.mrf.mxu0
        %v902 = vadd.f32 %v732, %v901
        %903 = vmatmul.bf16.gmra.mxu0 %v831
        %v904 = vpop.f32.mrf.mxu0
        %v905 = vadd.f32 %v732, %v904
        %v906 = vpop.f32.mrf.mxu0
        %v907 = vadd.f32 %v732, %v906
        %908 = vmatmul.bf16.gmra.mxu0 %v834
        %v909 = vpop.f32.mrf.mxu0
        %v910 = vadd.f32 %v732, %v909
        %v911 = vpop.f32.mrf.mxu0
        %v912 = vadd.f32 %v732, %v911
        %913 = vmatmul.bf16.gmra.mxu0 %v837
        %v914 = vpop.f32.mrf.mxu0
        %v915 = vadd.f32 %v732, %v914
        %v916 = vpop.f32.mrf.mxu0
        %v917 = vadd.f32 %v732, %v916
        %918 = vmatmul.bf16.gmra.mxu0 %v840
        %v919 = vpop.f32.mrf.mxu0
        %v920 = vadd.f32 %v732, %v919
        %v921 = vpop.f32.mrf.mxu0
        %v922 = vadd.f32 %v732, %v921
        %923 = vmatmul.bf16.gmra.mxu0 %v843
        %v924 = vpop.f32.mrf.mxu0
        %v925 = vadd.f32 %v732, %v924
        %v926 = vpop.f32.mrf.mxu0
        %v927 = vadd.f32 %v732, %v926
        %928 = vmatmul.bf16.gmra.mxu0 %v846
        %v929 = vpop.f32.mrf.mxu0
        %v930 = vadd.f32 %v732, %v929
        %v931 = vpop.f32.mrf.mxu0
        %v932 = vadd.f32 %v732, %v931
        %933 = vmatmul.bf16.gmra.mxu0 %v849
        %v934 = vpop.f32.mrf.mxu0
        %v935 = vadd.f32 %v732, %v934
        %v936 = vpop.f32.mrf.mxu0
        %v937 = vadd.f32 %v732, %v936
        %938 = vmatmul.bf16.gmra.mxu0 %v852
        %v939 = vpop.f32.mrf.mxu0
        %v940 = vadd.f32 %v732, %v939
        %v941 = vpop.f32.mrf.mxu0
        %v942 = vadd.f32 %v732, %v941
        %943 = vmatmul.bf16.gmra.mxu0 %v855
        %v944 = vpop.f32.mrf.mxu0
        %v945 = vadd.f32 %v732, %v944
        %v946 = vpop.f32.mrf.mxu0
        %v947 = vadd.f32 %v732, %v946
        %948 = vmatmul.bf16.gmra.mxu0 %v858
        %v949 = vpop.f32.mrf.mxu0
        %v950 = vadd.f32 %v732, %v949
        %v951 = vpop.f32.mrf.mxu0
        %v952 = vadd.f32 %v732, %v951
        %953 = vmatmul.bf16.gmra.mxu0 %v861
        %v954 = vpop.f32.mrf.mxu0
        %v955 = vadd.f32 %v732, %v954
        %v956 = vpop.f32.mrf.mxu0
        %v957 = vadd.f32 %v732, %v956
        %958 = vdwg.mxu0
        %v959 = vmax.f32 %v880, 0.0
        %v960 = vmax.f32 %v882, 0.0
        %v961 = vmax.f32 %v885, 0.0
        %v962 = vmax.f32 %v887, 0.0
        %v963 = vmax.f32 %v890, 0.0
        %v964 = vmax.f32 %v892, 0.0
        %v965 = vmax.f32 %v895, 0.0
        %v966 = vmax.f32 %v897, 0.0
        %v967 = vmax.f32 %v900, 0.0
        %v968 = vmax.f32 %v902, 0.0
        %v969 = vmax.f32 %v905, 0.0
        %v970 = vmax.f32 %v907, 0.0
        %v971 = vmax.f32 %v910, 0.0
        %v972 = vmax.f32 %v912, 0.0
        %v973 = vmax.f32 %v915, 0.0
        %v974 = vmax.f32 %v917, 0.0
        %v975 = vmax.f32 %v920, 0.0
        %v976 = vmax.f32 %v922, 0.0
        %v977 = vmax.f32 %v925, 0.0
        %v978 = vmax.f32 %v927, 0.0
        %v979 = vmax.f32 %v930, 0.0
        %v980 = vmax.f32 %v932, 0.0
        %v981 = vmax.f32 %v935, 0.0
        %v982 = vmax.f32 %v937, 0.0
        %v983 = vmax.f32 %v940, 0.0
        %v984 = vmax.f32 %v942, 0.0
        %v985 = vmax.f32 %v945, 0.0
        %v986 = vmax.f32 %v947, 0.0
        %v987 = vmax.f32 %v950, 0.0
        %v988 = vmax.f32 %v952, 0.0
        %v989 = vmax.f32 %v955, 0.0
        %v990 = vmax.f32 %v957, 0.0
        %v991 = vadd.f32 %v665, %v959
        %v992 = vadd.f32 %v666, %v960
        %v993 = vadd.f32 %v667, %v961
        %v994 = vadd.f32 %v668, %v962
        %v995 = vadd.f32 %v669, %v963
        %v996 = vadd.f32 %v670, %v964
        %v997 = vadd.f32 %v671, %v965
        %v998 = vadd.f32 %v672, %v966
        %v999 = vadd.f32 %v673, %v967
        %v1000 = vadd.f32 %v674, %v968
        %v1001 = vadd.f32 %v675, %v969
        %v1002 = vadd.f32 %v676, %v970
        %v1003 = vadd.f32 %v677, %v971
        %v1004 = vadd.f32 %v678, %v972
        %v1005 = vadd.f32 %v679, %v973
        %v1006 = vadd.f32 %v680, %v974
        %v1007 = vadd.f32 %v681, %v975
        %v1008 = vadd.f32 %v682, %v976
        %v1009 = vadd.f32 %v683, %v977
        %v1010 = vadd.f32 %v684, %v978
        %v1011 = vadd.f32 %v685, %v979
        %v1012 = vadd.f32 %v686, %v980
        %v1013 = vadd.f32 %v687, %v981
        %v1014 = vadd.f32 %v688, %v982
        %v1015 = vadd.f32 %v689, %v983
        %v1016 = vadd.f32 %v690, %v984
        %v1017 = vadd.f32 %v691, %v985
        %v1018 = vadd.f32 %v692, %v986
        %v1019 = vadd.f32 %v693, %v987
        %v1020 = vadd.f32 %v694, %v988
        %v1021 = vadd.f32 %v695, %v989
        %v1022 = vadd.f32 %v696, %v990
        %vm1023 = vcmask 130048
        %1024 = vst.msk [vmem:[%s386] sm:$0xff] %vm1023, %v991
        %1025 = vst.msk [vmem:[%s386 + $0x8] sm:$0xff] %vm1023, %v992
        %1026 = vst.msk [vmem:[%s386 + $0x10] sm:$0xff] %vm1023, %v993
        %1027 = vst.msk [vmem:[%s386 + $0x18] sm:$0xff] %vm1023, %v994
        %1028 = vst.msk [vmem:[%s386 + $0x20] sm:$0xff] %vm1023, %v995
        %1029 = vst.msk [vmem:[%s386 + $0x28] sm:$0xff] %vm1023, %v996
        %1030 = vst.msk [vmem:[%s386 + $0x30] sm:$0xff] %vm1023, %v997
        %1031 = vst.msk [vmem:[%s386 + $0x38] sm:$0xff] %vm1023, %v998
        %1032 = vst.msk [vmem:[%s386 + $0x40] sm:$0xff] %vm1023, %v999
        %1033 = vst.msk [vmem:[%s386 + $0x48] sm:$0xff] %vm1023, %v1000
        %1034 = vst.msk [vmem:[%s386 + $0x50] sm:$0xff] %vm1023, %v1001
        %1035 = vst.msk [vmem:[%s386 + $0x58] sm:$0xff] %vm1023, %v1002
        %1036 = vst.msk [vmem:[%s386 + $0x60] sm:$0xff] %vm1023, %v1003
        %1037 = vst.msk [vmem:[%s386 + $0x68] sm:$0xff] %vm1023, %v1004
        %1038 = vst.msk [vmem:[%s386 + $0x70] sm:$0xff] %vm1023, %v1005
        %1039 = vst.msk [vmem:[%s386 + $0x78] sm:$0xff] %vm1023, %v1006
        %1040 = vst.msk [vmem:[%s386 + $0x80] sm:$0xff] %vm1023, %v1007
        %1041 = vst.msk [vmem:[%s386 + $0x88] sm:$0xff] %vm1023, %v1008
        %1042 = vst.msk [vmem:[%s386 + $0x90] sm:$0xff] %vm1023, %v1009
        %1043 = vst.msk [vmem:[%s386 + $0x98] sm:$0xff] %vm1023, %v1010
        %1044 = vst.msk [vmem:[%s386 + $0xa0] sm:$0xff] %vm1023, %v1011
        %1045 = vst.msk [vmem:[%s386 + $0xa8] sm:$0xff] %vm1023, %v1012
        %1046 = vst.msk [vmem:[%s386 + $0xb0] sm:$0xff] %vm1023, %v1013
        %1047 = vst.msk [vmem:[%s386 + $0xb8] sm:$0xff] %vm1023, %v1014
        %1048 = vst.msk [vmem:[%s386 + $0xc0] sm:$0xff] %vm1023, %v1015
        %1049 = vst.msk [vmem:[%s386 + $0xc8] sm:$0xff] %vm1023, %v1016
        %1050 = vst.msk [vmem:[%s386 + $0xd0] sm:$0xff] %vm1023, %v1017
        %1051 = vst.msk [vmem:[%s386 + $0xd8] sm:$0xff] %vm1023, %v1018
        %1052 = vst.msk [vmem:[%s386 + $0xe0] sm:$0xff] %vm1023, %v1019
        %1053 = vst.msk [vmem:[%s386 + $0xe8] sm:$0xff] %vm1023, %v1020
        %1054 = vst.msk [vmem:[%s386 + $0xf0] sm:$0xff] %vm1023, %v1021
        %1055 = vst.msk [vmem:[%s386 + $0xf8] sm:$0xff] %vm1023, %v1022
        %s1056 = smul.u32 32, %s25
        %p1057 = scmp.lt.s32.totalorder %s24, 1
        %s1058 = scalar_select %p1057, %s24, 1
        %p1059 = scmp.lt.s32.totalorder %s1056, 31
        %s1060 = scalar_select %p1059, %s1056, 31
        %s1061 = smul.addr %s1058, 32
        %s1062 = sadd.s32 %s1060, %s1061
        %s1063 = smul.addr %s1062, 8
        %s1064 = scalar_lea.vmem %s6, %s1063
        // Predicated region
        $region61: #{fatnet_forward.13} parent=43 // pred_check
          %p1065 = pneg %p192
        $region62: #{fatnet_forward.13} parent=43 // pred_check_branch
          %1067 = sbr.rel (%p1065) target = $region64
        $region63: #{fatnet_forward.13} parent=43 // pred_region
          %s1068 = smul.u32 32, %s25
        $region64: #{fatnet_forward.13} parent=43 // pred_fallthru
          _
      $region44: #{fatnet_forward.13} parent=5 // pred_fallthru
        _
      %p1069 = scmp.le.s32.totalorder 2, %s15
      // Predicated region
      $region65: #{fatnet_forward.13} parent=5 // pred_check
        %p1070 = pneg %p1069
      $region66: #{fatnet_forward.13} parent=5 // pred_check_branch
        %1072 = sbr.rel (%p1070) target = $region68
      $region67: #{fatnet_forward.13} parent=5 // pred_region
        %s1073 = ssub.s32 %s15, 2
        // Predicated region
        $region69: #{fatnet_forward.13} parent=67 // pred_check
          %p1074 = pneg %p198
        $region70: #{fatnet_forward.13} parent=67 // pred_check_branch
          %1076 = sbr.rel (%p1074) target = $region72
        $region71: #{fatnet_forward.13} parent=67 // pred_region
          %s1077 = smul.u32 32, %s27
          %p1078 = scmp.lt.s32.totalorder %s26, 1
          %s1079 = scalar_select %p1078, %s26, 1
          %p1080 = scmp.lt.s32.totalorder %s1077, 31
          %s1081 = scalar_select %p1080, %s1077, 31
          %s1082 = smul.addr %s1079, 32
          %s1083 = sadd.s32 %s1081, %s1082
          %s1084 = smul.addr %s1083, 8
          %s1085 = scalar_lea.vmem %s6, %s1084
        $region72: #{fatnet_forward.13} parent=67 // pred_fallthru
          _
      $region68: #{fatnet_forward.13} parent=5 // pred_fallthru
        _
    $region6: #{fatnet_forward.13} parent=1 // loop_footer
      %s19 = sadd.s32 1, %s15
    $region7: #{fatnet_forward.13} parent=1 // loop_footer_branch
      %14 = sbr.rel target = $region3
    $region8: #{fatnet_forward.13} parent=1 // loop_exit
      _
    %1086 = vsyncpa [#allocation3], 1
    %s1087 = scalar_lea.sflag [#allocation3], 1
    %1088 = vsyncpa %s1087, 1
    %1089 = vsyncpa [#allocation5], 1
    %1090 = vsyncpa [#allocation8], 1

// kernel: fatnet_forward.14
$region0: #{fatnet_forward.14}
  #allocation0 [shape = 'u32[]', space=smem, size = 0x4, offset = 0x4, fixed_abs, tag = 'smem constant byte address 0x4 - core index']
  #allocation1 [shape = 'u32[72,128]{1,0:T(1,128)}', space=vmem, size = 0x9000, scoped, tag = 'internal scratch']
  %s0 = inlined_call_operand.vmem [shape: bf16[2,256,144], index: 0, kind: input, shape index: {}]
  %s1 = inlined_call_operand.vmem [shape: bf16[2,256,16], index: 1, kind: input, shape index: {}]
  %s2 = inlined_call_operand.vmem [shape: bf16[144,16], index: 2, kind: input, shape index: {}]
  %s3 = inlined_call_operand.vmem [shape: f32[1,16], index: 3, kind: input, shape index: {}]
  %s4 = inlined_call_operand.vmem [shape: bf16[16,16], index: 4, kind: input, shape index: {}]
  %s5 = inlined_call_operand.vmem [shape: f32[1,16], index: 5, kind: input, shape index: {}]
  %s6 = inlined_call_operand.vmem [shape: f32[2,256,16], index: 6, kind: output, shape index: {}]
  %s7 = sld [smem:[#allocation0]]
  $region57: #{fatnet_forward.14} parent=0
    _
  %s9 = ssub.s32 1, %s7
  %s10 = scalar_select 0, %s9, %s7
  loop: start=0, step=1, limit=4
  $region2: #{fatnet_forward.14} parent=0 // loop_pre_header
    _
  $region3: #{fatnet_forward.14} parent=0 // loop_header
    %s12 = sphi 0, %s16
    %p13 = scmp.ge.s32.totalorder %s12, 4
    %s19 = sphi 0, %s31
    %s20 = sphi 0, %s27
    %s21 = sphi 0, %s19
    %s22 = sphi 0, %s20
    %s23 = sphi 0, %s21
    %s24 = sphi 0, %s22
    %s36 = sphi 0, %s38
    %s39 = sphi 0, %s36
    %s40 = sphi 0, %s39
    %s56 = sphi 0, %s40
    %s64 = sphi 0, %s66
    %s67 = sphi 0, %s64
    %s68 = sphi 0, %s67
    %s84 = sphi 0, %s68
    %s88 = sphi 0, %s88
    %s90 = sphi 0, %s88
    %s91 = sphi 0, %s90
    %s105 = sphi 0, %s91
    %s109 = sphi 0, %s109
    %s111 = sphi 0, %s109
    %s112 = sphi 0, %s111
    %s126 = sphi 0, %s112
    %s130 = sphi 0, %s130
    %s132 = sphi 0, %s130
    %s133 = sphi 0, %s132
    %s147 = sphi 0, %s133
    %s151 = sphi 0, %s151
    %s153 = sphi 0, %s151
    %s154 = sphi 0, %s153
    %s168 = sphi 0, %s154
    %s176 = sphi 0, %s178
    %s179 = sphi 0, %s176
    %s180 = sphi 0, %s179
    %s196 = sphi 0, %s180
  $region4: #{fatnet_forward.14} parent=0 // loop_header_branch
    %15 = sbr.rel (%p13) target = $region8
  $region5: #{fatnet_forward.14} parent=0 // loop_body
    %s17 = ssub.s32 %s12, 1
    %s18 = ssub.s32 %s12, 2
    %s25 = sadd.s32 1, %s20
    %p26 = scmp.ge.s32.totalorder %s25, 1
    %s27 = scalar_select %p26, 0, %s25
    %s28 = sadd.s32 1, %s19
    %s29 = scalar_select %p26, %s28, %s19
    %p30 = scmp.ge.s32.totalorder %s29, 2
    %s31 = scalar_select %p30, 0, %s29
    %s32 = ssub.s32 %s19, %s31
    %s33 = ssub.s32 %s20, %s27
    %s34 = sor.u32 %s32, %s33
    %p35 = scmp.eq.s32.totalorder %s34, 0
    %s37 = sadd.s32 %s36, 1
    %s38 = scalar_select %p35, %s36, %s37
    %p41 = pneg %p35
    %p42 = scmp.eq.s32.totalorder %s12, 1
    %p43 = por %p41, %p42
    %p44 = scmp.ne.s32.totalorder %s36, %s39
    %p45 = scmp.eq.s32.totalorder %s12, 0
    %p46 = por %p44, %p45
    %p47 = scmp.ne.s32.totalorder %s36, %s39
    %p48 = scmp.eq.s32.totalorder %s17, 1
    %p49 = por %p47, %p48
    %p50 = scmp.ne.s32.totalorder %s39, %s40
    %p51 = scmp.eq.s32.totalorder %s17, 0
    %p52 = por %p50, %p51
    %p53 = scmp.ne.s32.totalorder %s39, %s40
    %p54 = scmp.eq.s32.totalorder %s18, 1
    %p55 = por %p53, %p54
    %p57 = scmp.ne.s32.totalorder %s40, %s56
    %p58 = scmp.eq.s32.totalorder %s18, 0
    %p59 = por %p57, %p58
    %s60 = ssub.s32 %s19, %s31
    %s61 = ssub.s32 %s20, %s27
    %s62 = sor.u32 %s60, %s61
    %p63 = scmp.eq.s32.totalorder %s62, 0
    %s65 = sadd.s32 %s64, 1
    %s66 = scalar_select %p63, %s64, %s65
    %p69 = pneg %p63
    %p70 = scmp.eq.s32.totalorder %s12, 1
    %p71 = por %p69, %p70
    %p72 = scmp.ne.s32.totalorder %s64, %s67
    %p73 = scmp.eq.s32.totalorder %s12, 0
    %p74 = por %p72, %p73
    %p75 = scmp.ne.s32.totalorder %s64, %s67
    %p76 = scmp.eq.s32.totalorder %s17, 1
    %p77 = por %p75, %p76
    %p78 = scmp.ne.s32.totalorder %s67, %s68
    %p79 = scmp.eq.s32.totalorder %s17, 0
    %p80 = por %p78, %p79
    %p81 = scmp.ne.s32.totalorder %s67, %s68
    %p82 = scmp.eq.s32.totalorder %s18, 1
    %p83 = por %p81, %p82
    %p85 = scmp.ne.s32.totalorder %s68, %s84
    %p86 = scmp.eq.s32.totalorder %s18, 0
    %p87 = por %p85, %p86
    %s89 = sadd.s32 %s88, 1
    %p92 = scmp.eq.s32.totalorder %s12, 1
    %p93 = scmp.ne.s32.totalorder %s88, %s90
    %p94 = scmp.eq.s32.totalorder %s12, 0
    %p95 = por %p93, %p94
    %p96 = scmp.ne.s32.totalorder %s88, %s90
    %p97 = scmp.eq.s32.totalorder %s17, 1
    %p98 = por %p96, %p97
    %p99 = scmp.ne.s32.totalorder %s90, %s91
    %p100 = scmp.eq.s32.totalorder %s17, 0
    %p101 = por %p99, %p100
    %p102 = scmp.ne.s32.totalorder %s90, %s91
    %p103 = scmp.eq.s32.totalorder %s18, 1
    %p104 = por %p102, %p103
    %p106 = scmp.ne.s32.totalorder %s91, %s105
    %p107 = scmp.eq.s32.totalorder %s18, 0
    %p108 = por %p106, %p107
    %s110 = sadd.s32 %s109, 1
    %p113 = scmp.eq.s32.totalorder %s12, 1
    %p114 = scmp.ne.s32.totalorder %s109, %s111
    %p115 = scmp.eq.s32.totalorder %s12, 0
    %p116 = por %p114, %p115
    %p117 = scmp.ne.s32.totalorder %s109, %s111
    %p118 = scmp.eq.s32.totalorder %s17, 1
    %p119 = por %p117, %p118
    %p120 = scmp.ne.s32.totalorder %s111, %s112
    %p121 = scmp.eq.s32.totalorder %s17, 0
    %p122 = por %p120, %p121
    %p123 = scmp.ne.s32.totalorder %s111, %s112
    %p124 = scmp.eq.s32.totalorder %s18, 1
    %p125 = por %p123, %p124
    %p127 = scmp.ne.s32.totalorder %s112, %s126
    %p128 = scmp.eq.s32.totalorder %s18, 0
    %p129 = por %p127, %p128
    %s131 = sadd.s32 %s130, 1
    %p134 = scmp.eq.s32.totalorder %s12, 1
    %p135 = scmp.ne.s32.totalorder %s130, %s132
    %p136 = scmp.eq.s32.totalorder %s12, 0
    %p137 = por %p135, %p136
    %p138 = scmp.ne.s32.totalorder %s130, %s132
    %p139 = scmp.eq.s32.totalorder %s17, 1
    %p140 = por %p138, %p139
    %p141 = scmp.ne.s32.totalorder %s132, %s133
    %p142 = scmp.eq.s32.totalorder %s17, 0
    %p143 = por %p141, %p142
    %p144 = scmp.ne.s32.totalorder %s132, %s133
    %p145 = scmp.eq.s32.totalorder %s18, 1
    %p146 = por %p144, %p145
    %p148 = scmp.ne.s32.totalorder %s133, %s147
    %p149 = scmp.eq.s32.totalorder %s18, 0
    %p150 = por %p148, %p149
    %s152 = sadd.s32 %s151, 1
    %p155 = scmp.eq.s32.totalorder %s12, 1
    %p156 = scmp.ne.s32.totalorder %s151, %s153
    %p157 = scmp.eq.s32.totalorder %s12, 0
    %p158 = por %p156, %p157
    %p159 = scmp.ne.s32.totalorder %s151, %s153
    %p160 = scmp.eq.s32.totalorder %s17, 1
    %p161 = por %p159, %p160
    %p162 = scmp.ne.s32.totalorder %s153, %s154
    %p163 = scmp.eq.s32.totalorder %s17, 0
    %p164 = por %p162, %p163
    %p165 = scmp.ne.s32.totalorder %s153, %s154
    %p166 = scmp.eq.s32.totalorder %s18, 1
    %p167 = por %p165, %p166
    %p169 = scmp.ne.s32.totalorder %s154, %s168
    %p170 = scmp.eq.s32.totalorder %s18, 0
    %p171 = por %p169, %p170
    %s172 = ssub.s32 %s19, %s31
    %s173 = ssub.s32 %s20, %s27
    %s174 = sor.u32 %s172, %s173
    %p175 = scmp.eq.s32.totalorder %s174, 0
    %s177 = sadd.s32 %s176, 1
    %s178 = scalar_select %p175, %s176, %s177
    %p181 = pneg %p175
    %p182 = scmp.eq.s32.totalorder %s12, 1
    %p183 = por %p181, %p182
    %p184 = scmp.ne.s32.totalorder %s176, %s179
    %p185 = scmp.eq.s32.totalorder %s12, 0
    %p186 = por %p184, %p185
    %p187 = scmp.ne.s32.totalorder %s176, %s179
    %p188 = scmp.eq.s32.totalorder %s17, 1
    %p189 = por %p187, %p188
    %p190 = scmp.ne.s32.totalorder %s179, %s180
    %p191 = scmp.eq.s32.totalorder %s17, 0
    %p192 = por %p190, %p191
    %p193 = scmp.ne.s32.totalorder %s179, %s180
    %p194 = scmp.eq.s32.totalorder %s18, 1
    %p195 = por %p193, %p194
    %p197 = scmp.ne.s32.totalorder %s180, %s196
    %p198 = scmp.eq.s32.totalorder %s18, 0
    %p199 = por %p197, %p198
    %p200 = scmp.le.s32.totalorder 1, %s12
    %p201 = scmp.lt.s32.totalorder %s12, 3
    %p202 = pnand %p200, %p201
    %p203 = pneg %p202
    // Predicated region
    $region9: #{fatnet_forward.14} parent=5 // pred_check
      _
    $region10: #{fatnet_forward.14} parent=5 // pred_check_branch
      %205 = sbr.rel (%p202) target = $region12
    $region11: #{fatnet_forward.14} parent=5 // pred_region
      %s206 = ssub.s32 %s12, 1
      // Predicated region
      $region13: #{fatnet_forward.14} parent=11 // pred_check
        %p207 = pneg %p101
      $region14: #{fatnet_forward.14} parent=11 // pred_check_branch
        %209 = sbr.rel (%p207) target = $region16
      $region15: #{fatnet_forward.14} parent=11 // pred_region
        _
      $region16: #{fatnet_forward.14} parent=11 // pred_fallthru
        _
      // Predicated region
      $region17: #{fatnet_forward.14} parent=11 // pred_check
        %p210 = pneg %p122
      $region18: #{fatnet_forward.14} parent=11 // pred_check_branch
        %212 = sbr.rel (%p210) target = $region20
      $region19: #{fatnet_forward.14} parent=11 // pred_region
        _
      $region20: #{fatnet_forward.14} parent=11 // pred_fallthru
        _
      // Predicated region
      $region21: #{fatnet_forward.14} parent=11 // pred_check
        %p213 = pneg %p143
      $region22: #{fatnet_forward.14} parent=11 // pred_check_branch
        %215 = sbr.rel (%p213) target = $region24
      $region23: #{fatnet_forward.14} parent=11 // pred_region
        _
      $region24: #{fatnet_forward.14} parent=11 // pred_fallthru
        _
      // Predicated region
      $region25: #{fatnet_forward.14} parent=11 // pred_check
        %p216 = pneg %p164
      $region26: #{fatnet_forward.14} parent=11 // pred_check_branch
        %218 = sbr.rel (%p216) target = $region28
      $region27: #{fatnet_forward.14} parent=11 // pred_region
        _
      $region28: #{fatnet_forward.14} parent=11 // pred_fallthru
        _
    $region12: #{fatnet_forward.14} parent=5 // pred_fallthru
      _
    %p219 = scmp.lt.s32.totalorder %s12, 2
    // Predicated region
    $region29: #{fatnet_forward.14} parent=5 // pred_check
      %p220 = pneg %p219
    $region30: #{fatnet_forward.14} parent=5 // pred_check_branch
      %222 = sbr.rel (%p220) target = $region32
    $region31: #{fatnet_forward.14} parent=5 // pred_region
      // Predicated region
      $region33: #{fatnet_forward.14} parent=31 // pred_check
        %p223 = pneg %p46
      $region34: #{fatnet_forward.14} parent=31 // pred_check_branch
        %225 = sbr.rel (%p223) target = $region36
      $region35: #{fatnet_forward.14} parent=31 // pred_region
        %s226 = smul.u32 32, %s20
        %p227 = scmp.lt.s32.totalorder %s19, 1
        %s228 = scalar_select %p227, %s19, 1
        %p229 = scmp.lt.s32.totalorder %s226, 31
        %s230 = scalar_select %p229, %s226, 31
        %s231 = smul.addr %s230, 2
        %s232 = smul.addr %s228, 64
        %s233 = sadd.s32 %s231, %s232
        %s234 = smul.addr %s233, 4
        %s235 = scalar_lea.vmem %s0, %s234
        %s236 = smul.u32 32, %s20
      $region36: #{fatnet_forward.14} parent=31 // pred_fallthru
        _
      // Predicated region
      $region37: #{fatnet_forward.14} parent=31 // pred_check
        %p237 = pneg %p74
      $region38: #{fatnet_forward.14} parent=31 // pred_check_branch
        %239 = sbr.rel (%p237) target = $region40
      $region39: #{fatnet_forward.14} parent=31 // pred_region
        %s240 = smul.u32 32, %s20
        %p241 = scmp.lt.s32.totalorder %s19, 1
        %s242 = scalar_select %p241, %s19, 1
        %p243 = scmp.lt.s32.totalorder %s240, 31
        %s244 = scalar_select %p243, %s240, 31
        %s245 = smul.addr %s242, 32
        %s246 = sadd.s32 %s244, %s245
        %s247 = smul.addr %s246, 4
        %s248 = scalar_lea.vmem %s1, %s247
        %s249 = smul.u32 32, %s20
      $region40: #{fatnet_forward.14} parent=31 // pred_fallthru
        _
    $region32: #{fatnet_forward.14} parent=5 // pred_fallthru
      _
    %p250 = scmp.le.s32.totalorder 1, %s12
    %p251 = scmp.lt.s32.totalorder %s12, 3
    %p252 = pnand %p250, %p251
    %p253 = pneg %p252
    // Predicated region
    $region41: #{fatnet_forward.14} parent=5 // pred_check
      _
    $region42: #{fatnet_forward.14} parent=5 // pred_check_branch
      %255 = sbr.rel (%p252) target = $region44
    $region43: #{fatnet_forward.14} parent=5 // pred_region
      %s256 = ssub.s32 %s12, 1
      %s257 = smul.u32 32, %s22
      %p258 = scmp.lt.s32.totalorder %s21, 1
      %s259 = scalar_select %p258, %s21, 1
      %p260 = scmp.lt.s32.totalorder %s257, 31
      %s261 = scalar_select %p260, %s257, 31
      %s262 = smul.addr %s261, 2
      %s263 = smul.addr %s259, 64
      %s264 = sadd.s32 %s262, %s263
      %s265 = smul.addr %s264, 4
      %s266 = scalar_lea.vmem %s0, %s265
      %p267 = pneg %p52
      %p268 = pneg %p49
      %s269 = smul.u32 32, %s22
      %p270 = scmp.lt.s32.totalorder %s21, 1
      %s271 = scalar_select %p270, %s21, 1
      %p272 = scmp.lt.s32.totalorder %s269, 31
      %s273 = scalar_select %p272, %s269, 31
      %s274 = smul.addr %s271, 32
      %s275 = sadd.s32 %s273, %s274
      %s276 = smul.addr %s275, 4
      %s277 = scalar_lea.vmem %s1, %s276
      %p278 = pneg %p80
      %p279 = pneg %p77
      %p280 = pneg %p101
      %p281 = pneg %p98
      %p282 = pneg %p122
      %p283 = pneg %p119
      %p284 = pneg %p143
      %p285 = pneg %p140
      %p286 = pneg %p164
      %p287 = pneg %p161
      %p288 = pneg %p192
      %p289 = pneg %p189
      %s290 = smul.u32 32, %s22
      %p291 = scmp.lt.s32.totalorder %s21, 1
      %s292 = scalar_select %p291, %s21, 1
      %p293 = scmp.lt.s32.totalorder %s290, 31
      %s294 = scalar_select %p293, %s290, 31
      %s295 = smul.addr %s292, 32
      %s296 = sadd.s32 %s294, %s295
      %s297 = smul.addr %s296, 8
      %s298 = scalar_lea.vmem %s6, %s297
      %s299 = smul.u32 32, %s22
      %p300 = scmp.lt.s32.totalorder %s21, 1
      %s301 = scalar_select %p300, %s21, 1
      %p302 = scmp.lt.s32.totalorder %s299, 31
      %s303 = scalar_select %p302, %s299, 31
      %s304 = smul.addr %s303, 2
      %s305 = smul.addr %s301, 64
      %s306 = sadd.s32 %s304, %s305
      %s307 = smul.addr %s306, 4
      %s308 = scalar_lea.vmem %s0, %s307
      %s309 = smul.u32 32, %s22
      %s310 = smul.u32 32, %s22
      %p311 = scmp.lt.s32.totalorder %s21, 1
      %s312 = scalar_select %p311, %s21, 1
      %p313 = scmp.lt.s32.totalorder %s310, 31
      %s314 = scalar_select %p313, %s310, 31
      %s315 = smul.addr %s312, 32
      %s316 = sadd.s32 %s314, %s315
      %s317 = smul.addr %s316, 4
      %s318 = scalar_lea.vmem %s1, %s317
      %s319 = smul.u32 32, %s22
      %s320 = smul.u32 32, %s22
      %p321 = scmp.lt.s32.totalorder %s21, 1
      %s322 = scalar_select %p321, %s21, 1
      %p323 = scmp.lt.s32.totalorder %s320, 31
      %s324 = scalar_select %p323, %s320, 31
      %s325 = smul.addr %s322, 32
      %s326 = sadd.s32 %s324, %s325
      %s327 = smul.addr %s326, 8
      %s328 = scalar_lea.vmem %s6, %s327
      %s329 = smul.u32 32, %s22
      %v331 = vld [vmem:[%s308] sm:$0xff]
      %v332 = vld [vmem:[%s308 + $0x8] sm:$0xff]
      %v333 = vld [vmem:[%s308 + $0x10] sm:$0xff]
      %v334 = vld [vmem:[%s308 + $0x18] sm:$0xff]
      %v335 = vld [vmem:[%s308 + $0x20] sm:$0xff]
      %v336 = vld [vmem:[%s308 + $0x28] sm:$0xff]
      %v337 = vld [vmem:[%s308 + $0x30] sm:$0xff]
      %v338 = vld [vmem:[%s308 + $0x38] sm:$0xff]
      %v339 = vld [vmem:[%s308 + $0x40] sm:$0xff]
      %v340 = vld [vmem:[%s308 + $0x48] sm:$0xff]
      %v341 = vld [vmem:[%s308 + $0x50] sm:$0xff]
      %v342 = vld [vmem:[%s308 + $0x58] sm:$0xff]
      %v343 = vld [vmem:[%s308 + $0x60] sm:$0xff]
      %v344 = vld [vmem:[%s308 + $0x68] sm:$0xff]
      %v345 = vld [vmem:[%s308 + $0x70] sm:$0xff]
      %v346 = vld [vmem:[%s308 + $0x78] sm:$0xff]
      %v347 = vld [vmem:[%s308 + $0x80] sm:$0xff]
      %v348 = vld [vmem:[%s308 + $0x88] sm:$0xff]
      %v349 = vld [vmem:[%s308 + $0x90] sm:$0xff]
      %v350 = vld [vmem:[%s308 + $0x98] sm:$0xff]
      %v351 = vld [vmem:[%s308 + $0xa0] sm:$0xff]
      %v352 = vld [vmem:[%s308 + $0xa8] sm:$0xff]
      %v353 = vld [vmem:[%s308 + $0xb0] sm:$0xff]
      %v354 = vld [vmem:[%s308 + $0xb8] sm:$0xff]
      %v355 = vld [vmem:[%s308 + $0xc0] sm:$0xff]
      %v356 = vld [vmem:[%s308 + $0xc8] sm:$0xff]
      %v357 = vld [vmem:[%s308 + $0xd0] sm:$0xff]
      %v358 = vld [vmem:[%s308 + $0xd8] sm:$0xff]
      %v359 = vld [vmem:[%s308 + $0xe0] sm:$0xff]
      %v360 = vld [vmem:[%s308 + $0xe8] sm:$0xff]
      %v361 = vld [vmem:[%s308 + $0xf0] sm:$0xff]
      %v362 = vld [vmem:[%s308 + $0xf8] sm:$0xff]
      %v363 = vld [vmem:[%s2] sm:$0xf]
      %v364 = vld [vmem:[%s2 + $0x4] sm:$0xf]
      %v365 = vld [vmem:[%s2 + $0x8] sm:$0xf]
      %v366 = vld [vmem:[%s2 + $0xc] sm:$0xf]
      %v367 = vld [vmem:[%s2 + $0x10] sm:$0xf]
      %v368 = vld [vmem:[%s2 + $0x14] sm:$0xf]
      %v369 = vld [vmem:[%s2 + $0x18] sm:$0xf]
      %v370 = vld [vmem:[%s2 + $0x1c] sm:$0xf]
      %v371 = vld [vmem:[%s2 + $0x20] sm:$0xf]
      %v372 = vld [vmem:[%s2 + $0x24] sm:$0xf]
      %v373 = vld [vmem:[%s2 + $0x28] sm:$0xf]
      %v374 = vld [vmem:[%s2 + $0x2c] sm:$0xf]
      %v375 = vld [vmem:[%s2 + $0x30] sm:$0xf]
      %v376 = vld [vmem:[%s2 + $0x34] sm:$0xf]
      %v377 = vld [vmem:[%s2 + $0x38] sm:$0xf]
      %v378 = vld [vmem:[%s2 + $0x3c] sm:$0xf]
      %v379 = vld [vmem:[%s2 + $0x40] sm:$0xf]
      %v380 = vld [vmem:[%s2 + $0x44] sm:$0xf]
      %v381 = vld [vmem:[%s3] sm:$0x1]
      %v383 = vperm.slane %v381, 0
      %v417 = vunpack.c.l.b16 %v331
      %v418 = vunpack.c.h.b16 %v331
      %v419 = vunpack.c.l.b16 %v332
      %v420 = vunpack.c.h.b16 %v332
      %v421 = vunpack.c.l.b16 %v333
      %v422 = vunpack.c.h.b16 %v333
      %v423 = vunpack.c.l.b16 %v334
      %v424 = vunpack.c.h.b16 %v334
      %v425 = vunpack.c.l.b16 %v335
      %v426 = vunpack.c.h.b16 %v335
      %v427 = vunpack.c.l.b16 %v336
      %v428 = vunpack.c.h.b16 %v336
      %v429 = vunpack.c.l.b16 %v337
      %v430 = vunpack.c.h.b16 %v337
      %v431 = vunpack.c.l.b16 %v338
      %v432 = vunpack.c.h.b16 %v338
      %v433 = vunpack.c.l.b16 %v339
      %v434 = vunpack.c.h.b16 %v339
      %v435 = vunpack.c.l.b16 %v340
      %v436 = vunpack.c.h.b16 %v340
      %v437 = vunpack.c.l.b16 %v341
      %v438 = vunpack.c.h.b16 %v341
      %v439 = vunpack.c.l.b16 %v342
      %v440 = vunpack.c.h.b16 %v342
      %v441 = vunpack.c.l.b16 %v343
      %v442 = vunpack.c.h.b16 %v343
      %v443 = vunpack.c.l.b16 %v344
      %v444 = vunpack.c.h.b16 %v344
      %v445 = vunpack.c.l.b16 %v345
      %v446 = vunpack.c.h.b16 %v345
      %v447 = vunpack.c.l.b16 %v346
      %v448 = vunpack.c.h.b16 %v346
      %v449 = vunpack.c.l.b16 %v347
      %v450 = vunpack.c.h.b16 %v347
      %v451 = vunpack.c.l.b16 %v348
      %v452 = vunpack.c.h.b16 %v348
      %v453 = vunpack.c.l.b16 %v349
      %v454 = vunpack.c.h.b16 %v349
      %v455 = vunpack.c.l.b16 %v350
      %v456 = vunpack.c.h.b16 %v350
      %v457 = vunpack.c.l.b16 %v351
      %v458 = vunpack.c.h.b16 %v351
      %v459 = vunpack.c.l.b16 %v352
      %v460 = vunpack.c.h.b16 %v352
      %v461 = vunpack.c.l.b16 %v353
      %v462 = vunpack.c.h.b16 %v353
      %v463 = vunpack.c.l.b16 %v354
      %v464 = vunpack.c.h.b16 %v354
      %v465 = vunpack.c.l.b16 %v355
      %v466 = vunpack.c.h.b16 %v355
      %v467 = vunpack.c.l.b16 %v356
      %v468 = vunpack.c.h.b16 %v356
      %v469 = vunpack.c.l.b16 %v357
      %v470 = vunpack.c.h.b16 %v357
      %v471 = vunpack.c.l.b16 %v358
      %v472 = vunpack.c.h.b16 %v358
      %v473 = vunpack.c.l.b16 %v359
      %v474 = vunpack.c.h.b16 %v359
      %v475 = vunpack.c.l.b16 %v360
      %v476 = vunpack.c.h.b16 %v360
      %v477 = vunpack.c.l.b16 %v361
      %v478 = vunpack.c.h.b16 %v361
      %v479 = vunpack.c.l.b16 %v362
      %v480 = vunpack.c.h.b16 %v362
      %v481 = vpack.c.b16 %v419, %v417
      %v482 = vpack.c.b16 %v420, %v418
      %v483 = vpack.c.b16 %v423, %v421
      %v484 = vpack.c.b16 %v424, %v422
      %v485 = vpack.c.b16 %v427, %v425
      %v486 = vpack.c.b16 %v428, %v426
      %v487 = vpack.c.b16 %v431, %v429
      %v488 = vpack.c.b16 %v432, %v430
      %v489 = vpack.c.b16 %v435, %v433
      %v490 = vpack.c.b16 %v436, %v434
      %v491 = vpack.c.b16 %v439, %v437
      %v492 = vpack.c.b16 %v440, %v438
      %v493 = vpack.c.b16 %v443, %v441
      %v494 = vpack.c.b16 %v444, %v442
      %v495 = vpack.c.b16 %v447, %v445
      %v496 = vpack.c.b16 %v448, %v446
      %v497 = vpack.c.b16 %v451, %v449
      %v498 = vpack.c.b16 %v452, %v450
      %v499 = vpack.c.b16 %v455, %v453
      %v500 = vpack.c.b16 %v456, %v454
      %v501 = vpack.c.b16 %v459, %v457
      %v502 = vpack.c.b16 %v460, %v458
      %v503 = vpack.c.b16 %v463, %v461
      %v504 = vpack.c.b16 %v464, %v462
      %v505 = vpack.c.b16 %v467, %v465
      %v506 = vpack.c.b16 %v468, %v466
      %v507 = vpack.c.b16 %v471, %v469
      %v508 = vpack.c.b16 %v472, %v470
      %v509 = vpack.c.b16 %v475, %v473
      %v510 = vpack.c.b16 %v476, %v474
      %v511 = vpack.c.b16 %v479, %v477
      %v512 = vpack.c.b16 %v480, %v478
      %v547 = vunpack.c.l.b16 %v363
      %v548 = vunpack.c.l.b16 %v364
      %v549 = vunpack.c.l.b16 %v365
      %v550 = vunpack.c.l.b16 %v366
      %v551 = vunpack.c.l.b16 %v367
      %v552 = vunpack.c.l.b16 %v368
      %v553 = vunpack.c.l.b16 %v369
      %v554 = vunpack.c.l.b16 %v370
      %v555 = vunpack.c.l.b16 %v371
      %v556 = vunpack.c.l.b16 %v372
      %v557 = vunpack.c.l.b16 %v373
      %v558 = vunpack.c.l.b16 %v374
      %v559 = vunpack.c.l.b16 %v375
      %v560 = vunpack.c.l.b16 %v376
      %v561 = vunpack.c.l.b16 %v377
      %v562 = vunpack.c.l.b16 %v378
      %v563 = vunpack.c.l.b16 %v379
      %v564 = vunpack.c.l.b16 %v380
      %v565 = vpack.c.b16 %v548, %v547
      %v566 = vpack.c.b16 %v550, %v549
      %v567 = vpack.c.b16 %v552, %v551
      %v568 = vpack.c.b16 %v554, %v553
      %v569 = vpack.c.b16 %v556, %v555
      %v570 = vpack.c.b16 %v558, %v557
      %v571 = vpack.c.b16 %v560, %v559
      %v572 = vpack.c.b16 %v562, %v561
      %v573 = vpack.c.b16 %v564, %v563
      %vm583 = vcmask 130048
      %v585 = vsel %vm583, %v482, 0
      %v588 = vsel %vm583, %v484, 0
      %v591 = vsel %vm583, %v486, 0
      %v594 = vsel %vm583, %v488, 0
      %v597 = vsel %vm583, %v490, 0
      %v600 = vsel %vm583, %v492, 0
      %v603 = vsel %vm583, %v494, 0
      %v606 = vsel %vm583, %v496, 0
      %v609 = vsel %vm583, %v498, 0
      %v612 = vsel %vm583, %v500, 0
      %v615 = vsel %vm583, %v502, 0
      %v618 = vsel %vm583, %v504, 0
      %v621 = vsel %vm583, %v506, 0
      %v624 = vsel %vm583, %v508, 0
      %v627 = vsel %vm583, %v510, 0
      %v630 = vsel %vm583, %v512, 0
      %632 = vmatpush.bf16.msra.mxu0 %v572
      %633 = vmatpush.bf16.msra.mxu0 %v571
      %634 = vmatpush.bf16.msra.mxu0 %v570
      %635 = vmatpush.bf16.msra.mxu0 %v569
      %636 = vmatpush.bf16.msra.mxu0 %v568
      %637 = vmatpush.bf16.msra.mxu0 %v567
      %638 = vmatpush.bf16.msra.mxu0 %v566
      %639 = vmatpush.bf16.msra.mxu0 %v565
      %640 = vmatmul.bf16.gmra.mxu0 %v481
      %v641 = vpop.f32.mrf.mxu0
      %v642 = vadd.f32 %v383, %v641
      %v643 = vpop.f32.mrf.mxu0
      %v644 = vadd.f32 %v383, %v643
      %645 = vmatmul.bf16.gmra.mxu0 %v483
      %v646 = vpop.f32.mrf.mxu0
      %v647 = vadd.f32 %v383, %v646
      %v648 = vpop.f32.mrf.mxu0
      %v649 = vadd.f32 %v383, %v648
      %650 = vmatmul.bf16.gmra.mxu0 %v485
      %v651 = vpop.f32.mrf.mxu0
      %v652 = vadd.f32 %v383, %v651
      %v653 = vpop.f32.mrf.mxu0
      %v654 = vadd.f32 %v383, %v653
      %655 = vmatmul.bf16.gmra.mxu0 %v487
      %v656 = vpop.f32.mrf.mxu0
      %v657 = vadd.f32 %v383, %v656
      %v658 = vpop.f32.mrf.mxu0
      %v659 = vadd.f32 %v383, %v658
      %660 = vmatmul.bf16.gmra.mxu0 %v489
      %v661 = vpop.f32.mrf.mxu0
      %v662 = vadd.f32 %v383, %v661
      %v663 = vpop.f32.mrf.mxu0
      %v664 = vadd.f32 %v383, %v663
      %665 = vmatmul.bf16.gmra.mxu0 %v491
      %v666 = vpop.f32.mrf.mxu0
      %v667 = vadd.f32 %v383, %v666
      %v668 = vpop.f32.mrf.mxu0
      %v669 = vadd.f32 %v383, %v668
      %670 = vmatmul.bf16.gmra.mxu0 %v493
      %v671 = vpop.f32.mrf.mxu0
      %v672 = vadd.f32 %v383, %v671
      %v673 = vpop.f32.mrf.mxu0
      %v674 = vadd.f32 %v383, %v673
      %675 = vmatmul.bf16.gmra.mxu0 %v495
      %v676 = vpop.f32.mrf.mxu0
      %v677 = vadd.f32 %v383, %v676
      %v678 = vpop.f32.mrf.mxu0
      %v679 = vadd.f32 %v383, %v678
      %680 = vmatmul.bf16.gmra.mxu0 %v497
      %v681 = vpop.f32.mrf.mxu0
      %v682 = vadd.f32 %v383, %v681
      %v683 = vpop.f32.mrf.mxu0
      %v684 = vadd.f32 %v383, %v683
      %685 = vmatmul.bf16.gmra.mxu0 %v499
      %v686 = vpop.f32.mrf.mxu0
      %v687 = vadd.f32 %v383, %v686
      %v688 = vpop.f32.mrf.mxu0
      %v689 = vadd.f32 %v383, %v688
      %690 = vmatmul.bf16.gmra.mxu0 %v501
      %v691 = vpop.f32.mrf.mxu0
      %v692 = vadd.f32 %v383, %v691
      %v693 = vpop.f32.mrf.mxu0
      %v694 = vadd.f32 %v383, %v693
      %695 = vmatmul.bf16.gmra.mxu0 %v503
      %v696 = vpop.f32.mrf.mxu0
      %v697 = vadd.f32 %v383, %v696
      %v698 = vpop.f32.mrf.mxu0
      %v699 = vadd.f32 %v383, %v698
      %700 = vmatmul.bf16.gmra.mxu0 %v505
      %v701 = vpop.f32.mrf.mxu0
      %v702 = vadd.f32 %v383, %v701
      %v703 = vpop.f32.mrf.mxu0
      %v704 = vadd.f32 %v383, %v703
      %705 = vmatmul.bf16.gmra.mxu0 %v507
      %v706 = vpop.f32.mrf.mxu0
      %v707 = vadd.f32 %v383, %v706
      %v708 = vpop.f32.mrf.mxu0
      %v709 = vadd.f32 %v383, %v708
      %710 = vmatmul.bf16.gmra.mxu0 %v509
      %v711 = vpop.f32.mrf.mxu0
      %v712 = vadd.f32 %v383, %v711
      %v713 = vpop.f32.mrf.mxu0
      %v714 = vadd.f32 %v383, %v713
      %715 = vmatmul.bf16.gmra.mxu0 %v511
      %v716 = vpop.f32.mrf.mxu0
      %v717 = vadd.f32 %v383, %v716
      %v718 = vpop.f32.mrf.mxu0
      %v719 = vadd.f32 %v383, %v718
      %720 = vdwg.mxu0
      %721 = vmatpush.bf16.msra.mxu0 0
      %722 = vmatpush.bf16.msra.mxu0 0
      %723 = vmatpush.bf16.msra.mxu0 0
      %724 = vmatpush.bf16.msra.mxu0 0
      %725 = vmatpush.bf16.msra.mxu0 0
      %726 = vmatpush.bf16.msra.mxu0 0
      %727 = vmatpush.bf16.msra.mxu0 0
      %728 = vmatpush.bf16.msra.mxu0 %v573
      %729 = vmatmul.bf16.gmra.mxu0 %v585
      %v730 = vpop.f32.mrf.mxu0
      %v731 = vadd.f32 %v642, %v730
      %v732 = vpop.f32.mrf.mxu0
      %v733 = vadd.f32 %v644, %v732
      %734 = vmatmul.bf16.gmra.mxu0 %v588
      %v735 = vpop.f32.mrf.mxu0
      %v736 = vadd.f32 %v647, %v735
      %v737 = vpop.f32.mrf.mxu0
      %v738 = vadd.f32 %v649, %v737
      %739 = vmatmul.bf16.gmra.mxu0 %v591
      %v740 = vpop.f32.mrf.mxu0
      %v741 = vadd.f32 %v652, %v740
      %v742 = vpop.f32.mrf.mxu0
      %v743 = vadd.f32 %v654, %v742
      %744 = vmatmul.bf16.gmra.mxu0 %v594
      %v745 = vpop.f32.mrf.mxu0
      %v746 = vadd.f32 %v657, %v745
      %v747 = vpop.f32.mrf.mxu0
      %v748 = vadd.f32 %v659, %v747
      %749 = vmatmul.bf16.gmra.mxu0 %v597
      %v750 = vpop.f32.mrf.mxu0
      %v751 = vadd.f32 %v662, %v750
      %v752 = vpop.f32.mrf.mxu0
      %v753 = vadd.f32 %v664, %v752
      %754 = vmatmul.bf16.gmra.mxu0 %v600
      %v755 = vpop.f32.mrf.mxu0
      %v756 = vadd.f32 %v667, %v755
      %v757 = vpop.f32.mrf.mxu0
      %v758 = vadd.f32 %v669, %v757
      %759 = vmatmul.bf16.gmra.mxu0 %v603
      %v760 = vpop.f32.mrf.mxu0
      %v761 = vadd.f32 %v672, %v760
      %v762 = vpop.f32.mrf.mxu0
      %v763 = vadd.f32 %v674, %v762
      %764 = vmatmul.bf16.gmra.mxu0 %v606
      %v765 = vpop.f32.mrf.mxu0
      %v766 = vadd.f32 %v677, %v765
      %v767 = vpop.f32.mrf.mxu0
      %v768 = vadd.f32 %v679, %v767
      %769 = vmatmul.bf16.gmra.mxu0 %v609
      %v770 = vpop.f32.mrf.mxu0
      %v771 = vadd.f32 %v682, %v770
      %v772 = vpop.f32.mrf.mxu0
      %v773 = vadd.f32 %v684, %v772
      %774 = vmatmul.bf16.gmra.mxu0 %v612
      %v775 = vpop.f32.mrf.mxu0
      %v776 = vadd.f32 %v687, %v775
      %v777 = vpop.f32.mrf.mxu0
      %v778 = vadd.f32 %v689, %v777
      %779 = vmatmul.bf16.gmra.mxu0 %v615
      %v780 = vpop.f32.mrf.mxu0
      %v781 = vadd.f32 %v692, %v780
      %v782 = vpop.f32.mrf.mxu0
      %v783 = vadd.f32 %v694, %v782
      %784 = vmatmul.bf16.gmra.mxu0 %v618
      %v785 = vpop.f32.mrf.mxu0
      %v786 = vadd.f32 %v697, %v785
      %v787 = vpop.f32.mrf.mxu0
      %v788 = vadd.f32 %v699, %v787
      %789 = vmatmul.bf16.gmra.mxu0 %v621
      %v790 = vpop.f32.mrf.mxu0
      %v791 = vadd.f32 %v702, %v790
      %v792 = vpop.f32.mrf.mxu0
      %v793 = vadd.f32 %v704, %v792
      %794 = vmatmul.bf16.gmra.mxu0 %v624
      %v795 = vpop.f32.mrf.mxu0
      %v796 = vadd.f32 %v707, %v795
      %v797 = vpop.f32.mrf.mxu0
      %v798 = vadd.f32 %v709, %v797
      %799 = vmatmul.bf16.gmra.mxu0 %v627
      %v800 = vpop.f32.mrf.mxu0
      %v801 = vadd.f32 %v712, %v800
      %v802 = vpop.f32.mrf.mxu0
      %v803 = vadd.f32 %v714, %v802
      %804 = vmatmul.bf16.gmra.mxu0 %v630
      %v805 = vpop.f32.mrf.mxu0
      %v806 = vadd.f32 %v717, %v805
      %v807 = vpop.f32.mrf.mxu0
      %v808 = vadd.f32 %v719, %v807
      %809 = vdwg.mxu0
      %v810 = vmax.f32 %v731, 0.0
      %v811 = vmax.f32 %v733, 0.0
      %v812 = vmax.f32 %v736, 0.0
      %v813 = vmax.f32 %v738, 0.0
      %v814 = vmax.f32 %v741, 0.0
      %v815 = vmax.f32 %v743, 0.0
      %v816 = vmax.f32 %v746, 0.0
      %v817 = vmax.f32 %v748, 0.0
      %v818 = vmax.f32 %v751, 0.0
      %v819 = vmax.f32 %v753, 0.0
      %v820 = vmax.f32 %v756, 0.0
      %v821 = vmax.f32 %v758, 0.0
      %v822 = vmax.f32 %v761, 0.0
      %v823 = vmax.f32 %v763, 0.0
      %v824 = vmax.f32 %v766, 0.0
      %v825 = vmax.f32 %v768, 0.0
      %v826 = vmax.f32 %v771, 0.0
      %v827 = vmax.f32 %v773, 0.0
      %v828 = vmax.f32 %v776, 0.0
      %v829 = vmax.f32 %v778, 0.0
      %v830 = vmax.f32 %v781, 0.0
      %v831 = vmax.f32 %v783, 0.0
      %v832 = vmax.f32 %v786, 0.0
      %v833 = vmax.f32 %v788, 0.0
      %v834 = vmax.f32 %v791, 0.0
      %v835 = vmax.f32 %v793, 0.0
      %v836 = vmax.f32 %v796, 0.0
      %v837 = vmax.f32 %v798, 0.0
      %v838 = vmax.f32 %v801, 0.0
      %v839 = vmax.f32 %v803, 0.0
      %v840 = vmax.f32 %v806, 0.0
      %v841 = vmax.f32 %v808, 0.0
      %v842 = vld [vmem:[%s318] sm:$0xf]
      %v843 = vld [vmem:[%s318 + $0x4] sm:$0xf]
      %v844 = vld [vmem:[%s318 + $0x8] sm:$0xf]
      %v845 = vld [vmem:[%s318 + $0xc] sm:$0xf]
      %v846 = vld [vmem:[%s318 + $0x10] sm:$0xf]
      %v847 = vld [vmem:[%s318 + $0x14] sm:$0xf]
      %v848 = vld [vmem:[%s318 + $0x18] sm:$0xf]
      %v849 = vld [vmem:[%s318 + $0x1c] sm:$0xf]
      %v850 = vld [vmem:[%s318 + $0x20] sm:$0xf]
      %v851 = vld [vmem:[%s318 + $0x24] sm:$0xf]
      %v852 = vld [vmem:[%s318 + $0x28] sm:$0xf]
      %v853 = vld [vmem:[%s318 + $0x2c] sm:$0xf]
      %v854 = vld [vmem:[%s318 + $0x30] sm:$0xf]
      %v855 = vld [vmem:[%s318 + $0x34] sm:$0xf]
      %v856 = vld [vmem:[%s318 + $0x38] sm:$0xf]
      %v857 = vld [vmem:[%s318 + $0x3c] sm:$0xf]
      %v858 = vld [vmem:[%s318 + $0x40] sm:$0xf]
      %v859 = vld [vmem:[%s318 + $0x44] sm:$0xf]
      %v860 = vld [vmem:[%s318 + $0x48] sm:$0xf]
      %v861 = vld [vmem:[%s318 + $0x4c] sm:$0xf]
      %v862 = vld [vmem:[%s318 + $0x50] sm:$0xf]
      %v863 = vld [vmem:[%s318 + $0x54] sm:$0xf]
      %v864 = vld [vmem:[%s318 + $0x58] sm:$0xf]
      %v865 = vld [vmem:[%s318 + $0x5c] sm:$0xf]
      %v866 = vld [vmem:[%s318 + $0x60] sm:$0xf]
      %v867 = vld [vmem:[%s318 + $0x64] sm:$0xf]
      %v868 = vld [vmem:[%s318 + $0x68] sm:$0xf]
      %v869 = vld [vmem:[%s318 + $0x6c] sm:$0xf]
      %v870 = vld [vmem:[%s318 + $0x70] sm:$0xf]
      %v871 = vld [vmem:[%s318 + $0x74] sm:$0xf]
      %v872 = vld [vmem:[%s318 + $0x78] sm:$0xf]
      %v873 = vld [vmem:[%s318 + $0x7c] sm:$0xf]
      %v874 = vld [vmem:[%s4] sm:$0xf]
      %v875 = vld [vmem:[%s4 + $0x4] sm:$0xf]
      %v876 = vld [vmem:[%s5] sm:$0x1]
      %v878 = vperm.slane %v876, 0
      %v912 = vunpack.c.l.b16 %v842
      %v913 = vunpack.c.l.b16 %v843
      %v914 = vunpack.c.l.b16 %v844
      %v915 = vunpack.c.l.b16 %v845
      %v916 = vunpack.c.l.b16 %v846
      %v917 = vunpack.c.l.b16 %v847
      %v918 = vunpack.c.l.b16 %v848
      %v919 = vunpack.c.l.b16 %v849
      %v920 = vunpack.c.l.b16 %v850
      %v921 = vunpack.c.l.b16 %v851
      %v922 = vunpack.c.l.b16 %v852
      %v923 = vunpack.c.l.b16 %v853
      %v924 = vunpack.c.l.b16 %v854
      %v925 = vunpack.c.l.b16 %v855
      %v926 = vunpack.c.l.b16 %v856
      %v927 = vunpack.c.l.b16 %v857
      %v928 = vunpack.c.l.b16 %v858
      %v929 = vunpack.c.l.b16 %v859
      %v930 = vunpack.c.l.b16 %v860
      %v931 = vunpack.c.l.b16 %v861
      %v932 = vunpack.c.l.b16 %v862
      %v933 = vunpack.c.l.b16 %v863
      %v934 = vunpack.c.l.b16 %v864
      %v935 = vunpack.c.l.b16 %v865
      %v936 = vunpack.c.l.b16 %v866
      %v937 = vunpack.c.l.b16 %v867
      %v938 = vunpack.c.l.b16 %v868
      %v939 = vunpack.c.l.b16 %v869
      %v940 = vunpack.c.l.b16 %v870
      %v941 = vunpack.c.l.b16 %v871
      %v942 = vunpack.c.l.b16 %v872
      %v943 = vunpack.c.l.b16 %v873
      %v944 = vpack.c.b16 %v913, %v912
      %v945 = vpack.c.b16 %v915, %v914
      %v946 = vpack.c.b16 %v917, %v916
      %v947 = vpack.c.b16 %v919, %v918
      %v948 = vpack.c.b16 %v921, %v920
      %v949 = vpack.c.b16 %v923, %v922
      %v950 = vpack.c.b16 %v925, %v924
      %v951 = vpack.c.b16 %v927, %v926
      %v952 = vpack.c.b16 %v929, %v928
      %v953 = vpack.c.b16 %v931, %v930
      %v954 = vpack.c.b16 %v933, %v932
      %v955 = vpack.c.b16 %v935, %v934
      %v956 = vpack.c.b16 %v937, %v936
      %v957 = vpack.c.b16 %v939, %v938
      %v958 = vpack.c.b16 %v941, %v940
      %v959 = vpack.c.b16 %v943, %v942
      %v962 = vunpack.c.l.b16 %v874
      %v963 = vunpack.c.l.b16 %v875
      %v964 = vpack.c.b16 %v963, %v962
      %v967 = vsel %vm583, %v944, 0
      %v970 = vsel %vm583, %v945, 0
      %v973 = vsel %vm583, %v946, 0
      %v976 = vsel %vm583, %v947, 0
      %v979 = vsel %vm583, %v948, 0
      %v982 = vsel %vm583, %v949, 0
      %v985 = vsel %vm583, %v950, 0
      %v988 = vsel %vm583, %v951, 0
      %v991 = vsel %vm583, %v952, 0
      %v994 = vsel %vm583, %v953, 0
      %v997 = vsel %vm583, %v954, 0
      %v1000 = vsel %vm583, %v955, 0
      %v1003 = vsel %vm583, %v956, 0
      %v1006 = vsel %vm583, %v957, 0
      %v1009 = vsel %vm583, %v958, 0
      %v1012 = vsel %vm583, %v959, 0
      %1014 = vmatpush.bf16.msra.mxu0 0
      %1015 = vmatpush.bf16.msra.mxu0 0
      %1016 = vmatpush.bf16.msra.mxu0 0
      %1017 = vmatpush.bf16.msra.mxu0 0
      %1018 = vmatpush.bf16.msra.mxu0 0
      %1019 = vmatpush.bf16.msra.mxu0 0
      %1020 = vmatpush.bf16.msra.mxu0 0
      %1021 = vmatpush.bf16.msra.mxu0 %v964
      %1022 = vmatmul.bf16.gmra.mxu0 %v967
      %v1023 = vpop.f32.mrf.mxu0
      %v1024 = vadd.f32 %v878, %v1023
      %v1025 = vpop.f32.mrf.mxu0
      %v1026 = vadd.f32 %v878, %v1025
      %1027 = vmatmul.bf16.gmra.mxu0 %v970
      %v1028 = vpop.f32.mrf.mxu0
      %v1029 = vadd.f32 %v878, %v1028
      %v1030 = vpop.f32.mrf.mxu0
      %v1031 = vadd.f32 %v878, %v1030
      %1032 = vmatmul.bf16.gmra.mxu0 %v973
      %v1033 = vpop.f32.mrf.mxu0
      %v1034 = vadd.f32 %v878, %v1033
      %v1035 = vpop.f32.mrf.mxu0
      %v1036 = vadd.f32 %v878, %v1035
      %1037 = vmatmul.bf16.gmra.mxu0 %v976
      %v1038 = vpop.f32.mrf.mxu0
      %v1039 = vadd.f32 %v878, %v1038
      %v1040 = vpop.f32.mrf.mxu0
      %v1041 = vadd.f32 %v878, %v1040
      %1042 = vmatmul.bf16.gmra.mxu0 %v979
      %v1043 = vpop.f32.mrf.mxu0
      %v1044 = vadd.f32 %v878, %v1043
      %v1045 = vpop.f32.mrf.mxu0
      %v1046 = vadd.f32 %v878, %v1045
      %1047 = vmatmul.bf16.gmra.mxu0 %v982
      %v1048 = vpop.f32.mrf.mxu0
      %v1049 = vadd.f32 %v878, %v1048
      %v1050 = vpop.f32.mrf.mxu0
      %v1051 = vadd.f32 %v878, %v1050
      %1052 = vmatmul.bf16.gmra.mxu0 %v985
      %v1053 = vpop.f32.mrf.mxu0
      %v1054 = vadd.f32 %v878, %v1053
      %v1055 = vpop.f32.mrf.mxu0
      %v1056 = vadd.f32 %v878, %v1055
      %1057 = vmatmul.bf16.gmra.mxu0 %v988
      %v1058 = vpop.f32.mrf.mxu0
      %v1059 = vadd.f32 %v878, %v1058
      %v1060 = vpop.f32.mrf.mxu0
      %v1061 = vadd.f32 %v878, %v1060
      %1062 = vmatmul.bf16.gmra.mxu0 %v991
      %v1063 = vpop.f32.mrf.mxu0
      %v1064 = vadd.f32 %v878, %v1063
      %v1065 = vpop.f32.mrf.mxu0
      %v1066 = vadd.f32 %v878, %v1065
      %1067 = vmatmul.bf16.gmra.mxu0 %v994
      %v1068 = vpop.f32.mrf.mxu0
      %v1069 = vadd.f32 %v878, %v1068
      %v1070 = vpop.f32.mrf.mxu0
      %v1071 = vadd.f32 %v878, %v1070
      %1072 = vmatmul.bf16.gmra.mxu0 %v997
      %v1073 = vpop.f32.mrf.mxu0
      %v1074 = vadd.f32 %v878, %v1073
      %v1075 = vpop.f32.mrf.mxu0
      %v1076 = vadd.f32 %v878, %v1075
      %1077 = vmatmul.bf16.gmra.mxu0 %v1000
      %v1078 = vpop.f32.mrf.mxu0
      %v1079 = vadd.f32 %v878, %v1078
      %v1080 = vpop.f32.mrf.mxu0
      %v1081 = vadd.f32 %v878, %v1080
      %1082 = vmatmul.bf16.gmra.mxu0 %v1003
      %v1083 = vpop.f32.mrf.mxu0
      %v1084 = vadd.f32 %v878, %v1083
      %v1085 = vpop.f32.mrf.mxu0
      %v1086 = vadd.f32 %v878, %v1085
      %1087 = vmatmul.bf16.gmra.mxu0 %v1006
      %v1088 = vpop.f32.mrf.mxu0
      %v1089 = vadd.f32 %v878, %v1088
      %v1090 = vpop.f32.mrf.mxu0
      %v1091 = vadd.f32 %v878, %v1090
      %1092 = vmatmul.bf16.gmra.mxu0 %v1009
      %v1093 = vpop.f32.mrf.mxu0
      %v1094 = vadd.f32 %v878, %v1093
      %v1095 = vpop.f32.mrf.mxu0
      %v1096 = vadd.f32 %v878, %v1095
      %1097 = vmatmul.bf16.gmra.mxu0 %v1012
      %v1098 = vpop.f32.mrf.mxu0
      %v1099 = vadd.f32 %v878, %v1098
      %v1100 = vpop.f32.mrf.mxu0
      %v1101 = vadd.f32 %v878, %v1100
      %1102 = vdwg.mxu0
      %v1103 = vmax.f32 %v1024, 0.0
      %v1104 = vmax.f32 %v1026, 0.0
      %v1105 = vmax.f32 %v1029, 0.0
      %v1106 = vmax.f32 %v1031, 0.0
      %v1107 = vmax.f32 %v1034, 0.0
      %v1108 = vmax.f32 %v1036, 0.0
      %v1109 = vmax.f32 %v1039, 0.0
      %v1110 = vmax.f32 %v1041, 0.0
      %v1111 = vmax.f32 %v1044, 0.0
      %v1112 = vmax.f32 %v1046, 0.0
      %v1113 = vmax.f32 %v1049, 0.0
      %v1114 = vmax.f32 %v1051, 0.0
      %v1115 = vmax.f32 %v1054, 0.0
      %v1116 = vmax.f32 %v1056, 0.0
      %v1117 = vmax.f32 %v1059, 0.0
      %v1118 = vmax.f32 %v1061, 0.0
      %v1119 = vmax.f32 %v1064, 0.0
      %v1120 = vmax.f32 %v1066, 0.0
      %v1121 = vmax.f32 %v1069, 0.0
      %v1122 = vmax.f32 %v1071, 0.0
      %v1123 = vmax.f32 %v1074, 0.0
      %v1124 = vmax.f32 %v1076, 0.0
      %v1125 = vmax.f32 %v1079, 0.0
      %v1126 = vmax.f32 %v1081, 0.0
      %v1127 = vmax.f32 %v1084, 0.0
      %v1128 = vmax.f32 %v1086, 0.0
      %v1129 = vmax.f32 %v1089, 0.0
      %v1130 = vmax.f32 %v1091, 0.0
      %v1131 = vmax.f32 %v1094, 0.0
      %v1132 = vmax.f32 %v1096, 0.0
      %v1133 = vmax.f32 %v1099, 0.0
      %v1134 = vmax.f32 %v1101, 0.0
      %v1135 = vadd.f32 %v810, %v1103
      %v1136 = vadd.f32 %v811, %v1104
      %v1137 = vadd.f32 %v812, %v1105
      %v1138 = vadd.f32 %v813, %v1106
      %v1139 = vadd.f32 %v814, %v1107
      %v1140 = vadd.f32 %v815, %v1108
      %v1141 = vadd.f32 %v816, %v1109
      %v1142 = vadd.f32 %v817, %v1110
      %v1143 = vadd.f32 %v818, %v1111
      %v1144 = vadd.f32 %v819, %v1112
      %v1145 = vadd.f32 %v820, %v1113
      %v1146 = vadd.f32 %v821, %v1114
      %v1147 = vadd.f32 %v822, %v1115
      %v1148 = vadd.f32 %v823, %v1116
      %v1149 = vadd.f32 %v824, %v1117
      %v1150 = vadd.f32 %v825, %v1118
      %v1151 = vadd.f32 %v826, %v1119
      %v1152 = vadd.f32 %v827, %v1120
      %v1153 = vadd.f32 %v828, %v1121
      %v1154 = vadd.f32 %v829, %v1122
      %v1155 = vadd.f32 %v830, %v1123
      %v1156 = vadd.f32 %v831, %v1124
      %v1157 = vadd.f32 %v832, %v1125
      %v1158 = vadd.f32 %v833, %v1126
      %v1159 = vadd.f32 %v834, %v1127
      %v1160 = vadd.f32 %v835, %v1128
      %v1161 = vadd.f32 %v836, %v1129
      %v1162 = vadd.f32 %v837, %v1130
      %v1163 = vadd.f32 %v838, %v1131
      %v1164 = vadd.f32 %v839, %v1132
      %v1165 = vadd.f32 %v840, %v1133
      %v1166 = vadd.f32 %v841, %v1134
      %1167 = vst.msk [vmem:[%s328] sm:$0xff] %vm583, %v1135
      %1168 = vst.msk [vmem:[%s328 + $0x8] sm:$0xff] %vm583, %v1136
      %1169 = vst.msk [vmem:[%s328 + $0x10] sm:$0xff] %vm583, %v1137
      %1170 = vst.msk [vmem:[%s328 + $0x18] sm:$0xff] %vm583, %v1138
      %1171 = vst.msk [vmem:[%s328 + $0x20] sm:$0xff] %vm583, %v1139
      %1172 = vst.msk [vmem:[%s328 + $0x28] sm:$0xff] %vm583, %v1140
      %1173 = vst.msk [vmem:[%s328 + $0x30] sm:$0xff] %vm583, %v1141
      %1174 = vst.msk [vmem:[%s328 + $0x38] sm:$0xff] %vm583, %v1142
      %1175 = vst.msk [vmem:[%s328 + $0x40] sm:$0xff] %vm583, %v1143
      %1176 = vst.msk [vmem:[%s328 + $0x48] sm:$0xff] %vm583, %v1144
      %1177 = vst.msk [vmem:[%s328 + $0x50] sm:$0xff] %vm583, %v1145
      %1178 = vst.msk [vmem:[%s328 + $0x58] sm:$0xff] %vm583, %v1146
      %1179 = vst.msk [vmem:[%s328 + $0x60] sm:$0xff] %vm583, %v1147
      %1180 = vst.msk [vmem:[%s328 + $0x68] sm:$0xff] %vm583, %v1148
      %1181 = vst.msk [vmem:[%s328 + $0x70] sm:$0xff] %vm583, %v1149
      %1182 = vst.msk [vmem:[%s328 + $0x78] sm:$0xff] %vm583, %v1150
      %1183 = vst.msk [vmem:[%s328 + $0x80] sm:$0xff] %vm583, %v1151
      %1184 = vst.msk [vmem:[%s328 + $0x88] sm:$0xff] %vm583, %v1152
      %1185 = vst.msk [vmem:[%s328 + $0x90] sm:$0xff] %vm583, %v1153
      %1186 = vst.msk [vmem:[%s328 + $0x98] sm:$0xff] %vm583, %v1154
      %1187 = vst.msk [vmem:[%s328 + $0xa0] sm:$0xff] %vm583, %v1155
      %1188 = vst.msk [vmem:[%s328 + $0xa8] sm:$0xff] %vm583, %v1156
      %1189 = vst.msk [vmem:[%s328 + $0xb0] sm:$0xff] %vm583, %v1157
      %1190 = vst.msk [vmem:[%s328 + $0xb8] sm:$0xff] %vm583, %v1158
      %1191 = vst.msk [vmem:[%s328 + $0xc0] sm:$0xff] %vm583, %v1159
      %1192 = vst.msk [vmem:[%s328 + $0xc8] sm:$0xff] %vm583, %v1160
      %1193 = vst.msk [vmem:[%s328 + $0xd0] sm:$0xff] %vm583, %v1161
      %1194 = vst.msk [vmem:[%s328 + $0xd8] sm:$0xff] %vm583, %v1162
      %1195 = vst.msk [vmem:[%s328 + $0xe0] sm:$0xff] %vm583, %v1163
      %1196 = vst.msk [vmem:[%s328 + $0xe8] sm:$0xff] %vm583, %v1164
      %1197 = vst.msk [vmem:[%s328 + $0xf0] sm:$0xff] %vm583, %v1165
      %1198 = vst.msk [vmem:[%s328 + $0xf8] sm:$0xff] %vm583, %v1166
      %s1199 = smul.u32 32, %s22
      %p1200 = scmp.lt.s32.totalorder %s21, 1
      %s1201 = scalar_select %p1200, %s21, 1
      %p1202 = scmp.lt.s32.totalorder %s1199, 31
      %s1203 = scalar_select %p1202, %s1199, 31
      %s1204 = smul.addr %s1201, 32
      %s1205 = sadd.s32 %s1203, %s1204
      %s1206 = smul.addr %s1205, 8
      %s1207 = scalar_lea.vmem %s6, %s1206
      // Predicated region
      $region45: #{fatnet_forward.14} parent=43 // pred_check
        %p1208 = pneg %p189
      $region46: #{fatnet_forward.14} parent=43 // pred_check_branch
        %1210 = sbr.rel (%p1208) target = $region48
      $region47: #{fatnet_forward.14} parent=43 // pred_region
        %s1211 = smul.u32 32, %s22
      $region48: #{fatnet_forward.14} parent=43 // pred_fallthru
        _
    $region44: #{fatnet_forward.14} parent=5 // pred_fallthru
      _
    %p1212 = scmp.le.s32.totalorder 2, %s12
    // Predicated region
    $region49: #{fatnet_forward.14} parent=5 // pred_check
      %p1213 = pneg %p1212
    $region50: #{fatnet_forward.14} parent=5 // pred_check_branch
      %1215 = sbr.rel (%p1213) target = $region52
    $region51: #{fatnet_forward.14} parent=5 // pred_region
      %s1216 = ssub.s32 %s12, 2
      // Predicated region
      $region53: #{fatnet_forward.14} parent=51 // pred_check
        %p1217 = pneg %p195
      $region54: #{fatnet_forward.14} parent=51 // pred_check_branch
        %1219 = sbr.rel (%p1217) target = $region56
      $region55: #{fatnet_forward.14} parent=51 // pred_region
        %s1220 = smul.u32 32, %s24
        %p1221 = scmp.lt.s32.totalorder %s23, 1
        %s1222 = scalar_select %p1221, %s23, 1
        %p1223 = scmp.lt.s32.totalorder %s1220, 31
        %s1224 = scalar_select %p1223, %s1220, 31
        %s1225 = smul.addr %s1222, 32
        %s1226 = sadd.s32 %s1224, %s1225
        %s1227 = smul.addr %s1226, 8
        %s1228 = scalar_lea.vmem %s6, %s1227
      $region56: #{fatnet_forward.14} parent=51 // pred_fallthru
        _
    $region52: #{fatnet_forward.14} parent=5 // pred_fallthru
      _
  $region6: #{fatnet_forward.14} parent=0 // loop_footer
    %s16 = sadd.s32 1, %s12
  $region7: #{fatnet_forward.14} parent=0 // loop_footer_branch
    %11 = sbr.rel target = $region3
  $region8: #{fatnet_forward.14} parent=0 // loop_exit
    _

// kernel: fatnet_forward.15
$region0: #{fatnet_forward.15}
  #allocation0 [shape = 'u32[]', space=smem, size = 0x4, offset = 0x4, fixed_abs, tag = 'smem constant byte address 0x4 - core index']
  #allocation1 [shape = 'u32[72,128]{1,0:T(1,128)}', space=vmem, size = 0x9000, scoped, tag = 'internal scratch']
  %s0 = inlined_call_operand.vmem [shape: bf16[2,64,144], index: 0, kind: input, shape index: {}]
  %s1 = inlined_call_operand.vmem [shape: bf16[2,64,64], index: 1, kind: input, shape index: {}]
  %s2 = inlined_call_operand.vmem [shape: bf16[144,32], index: 2, kind: input, shape index: {}]
  %s3 = inlined_call_operand.vmem [shape: f32[1,32], index: 3, kind: input, shape index: {}]
  %s4 = inlined_call_operand.vmem [shape: bf16[16,32], index: 4, kind: input, shape index: {}]
  %s5 = inlined_call_operand.vmem [shape: f32[1,32], index: 5, kind: input, shape index: {}]
  %s6 = inlined_call_operand.vmem [shape: f32[2,64,128], index: 6, kind: output, shape index: {}]
  %s7 = sld [smem:[#allocation0]]
  $region57: #{fatnet_forward.15} parent=0
    _
  %s9 = ssub.s32 1, %s7
  %s10 = scalar_select 0, %s9, %s7
  loop: start=0, step=1, limit=4
  $region2: #{fatnet_forward.15} parent=0 // loop_pre_header
    _
  $region3: #{fatnet_forward.15} parent=0 // loop_header
    %s12 = sphi 0, %s16
    %p13 = scmp.ge.s32.totalorder %s12, 4
    %s19 = sphi 0, %s31
    %s20 = sphi 0, %s27
    %s21 = sphi 0, %s19
    %s22 = sphi 0, %s20
    %s23 = sphi 0, %s21
    %s24 = sphi 0, %s22
    %s36 = sphi 0, %s38
    %s39 = sphi 0, %s36
    %s40 = sphi 0, %s39
    %s56 = sphi 0, %s40
    %s64 = sphi 0, %s66
    %s67 = sphi 0, %s64
    %s68 = sphi 0, %s67
    %s84 = sphi 0, %s68
    %s88 = sphi 0, %s88
    %s90 = sphi 0, %s88
    %s91 = sphi 0, %s90
    %s105 = sphi 0, %s91
    %s109 = sphi 0, %s109
    %s111 = sphi 0, %s109
    %s112 = sphi 0, %s111
    %s126 = sphi 0, %s112
    %s130 = sphi 0, %s130
    %s132 = sphi 0, %s130
    %s133 = sphi 0, %s132
    %s147 = sphi 0, %s133
    %s151 = sphi 0, %s151
    %s153 = sphi 0, %s151
    %s154 = sphi 0, %s153
    %s168 = sphi 0, %s154
    %s176 = sphi 0, %s178
    %s179 = sphi 0, %s176
    %s180 = sphi 0, %s179
    %s196 = sphi 0, %s180
  $region4: #{fatnet_forward.15} parent=0 // loop_header_branch
    %15 = sbr.rel (%p13) target = $region8
  $region5: #{fatnet_forward.15} parent=0 // loop_body
    %s17 = ssub.s32 %s12, 1
    %s18 = ssub.s32 %s12, 2
    %s25 = sadd.s32 1, %s20
    %p26 = scmp.ge.s32.totalorder %s25, 1
    %s27 = scalar_select %p26, 0, %s25
    %s28 = sadd.s32 1, %s19
    %s29 = scalar_select %p26, %s28, %s19
    %p30 = scmp.ge.s32.totalorder %s29, 2
    %s31 = scalar_select %p30, 0, %s29
    %s32 = ssub.s32 %s19, %s31
    %s33 = ssub.s32 %s20, %s27
    %s34 = sor.u32 %s32, %s33
    %p35 = scmp.eq.s32.totalorder %s34, 0
    %s37 = sadd.s32 %s36, 1
    %s38 = scalar_select %p35, %s36, %s37
    %p41 = pneg %p35
    %p42 = scmp.eq.s32.totalorder %s12, 1
    %p43 = por %p41, %p42
    %p44 = scmp.ne.s32.totalorder %s36, %s39
    %p45 = scmp.eq.s32.totalorder %s12, 0
    %p46 = por %p44, %p45
    %p47 = scmp.ne.s32.totalorder %s36, %s39
    %p48 = scmp.eq.s32.totalorder %s17, 1
    %p49 = por %p47, %p48
    %p50 = scmp.ne.s32.totalorder %s39, %s40
    %p51 = scmp.eq.s32.totalorder %s17, 0
    %p52 = por %p50, %p51
    %p53 = scmp.ne.s32.totalorder %s39, %s40
    %p54 = scmp.eq.s32.totalorder %s18, 1
    %p55 = por %p53, %p54
    %p57 = scmp.ne.s32.totalorder %s40, %s56
    %p58 = scmp.eq.s32.totalorder %s18, 0
    %p59 = por %p57, %p58
    %s60 = ssub.s32 %s19, %s31
    %s61 = ssub.s32 %s20, %s27
    %s62 = sor.u32 %s60, %s61
    %p63 = scmp.eq.s32.totalorder %s62, 0
    %s65 = sadd.s32 %s64, 1
    %s66 = scalar_select %p63, %s64, %s65
    %p69 = pneg %p63
    %p70 = scmp.eq.s32.totalorder %s12, 1
    %p71 = por %p69, %p70
    %p72 = scmp.ne.s32.totalorder %s64, %s67
    %p73 = scmp.eq.s32.totalorder %s12, 0
    %p74 = por %p72, %p73
    %p75 = scmp.ne.s32.totalorder %s64, %s67
    %p76 = scmp.eq.s32.totalorder %s17, 1
    %p77 = por %p75, %p76
    %p78 = scmp.ne.s32.totalorder %s67, %s68
    %p79 = scmp.eq.s32.totalorder %s17, 0
    %p80 = por %p78, %p79
    %p81 = scmp.ne.s32.totalorder %s67, %s68
    %p82 = scmp.eq.s32.totalorder %s18, 1
    %p83 = por %p81, %p82
    %p85 = scmp.ne.s32.totalorder %s68, %s84
    %p86 = scmp.eq.s32.totalorder %s18, 0
    %p87 = por %p85, %p86
    %s89 = sadd.s32 %s88, 1
    %p92 = scmp.eq.s32.totalorder %s12, 1
    %p93 = scmp.ne.s32.totalorder %s88, %s90
    %p94 = scmp.eq.s32.totalorder %s12, 0
    %p95 = por %p93, %p94
    %p96 = scmp.ne.s32.totalorder %s88, %s90
    %p97 = scmp.eq.s32.totalorder %s17, 1
    %p98 = por %p96, %p97
    %p99 = scmp.ne.s32.totalorder %s90, %s91
    %p100 = scmp.eq.s32.totalorder %s17, 0
    %p101 = por %p99, %p100
    %p102 = scmp.ne.s32.totalorder %s90, %s91
    %p103 = scmp.eq.s32.totalorder %s18, 1
    %p104 = por %p102, %p103
    %p106 = scmp.ne.s32.totalorder %s91, %s105
    %p107 = scmp.eq.s32.totalorder %s18, 0
    %p108 = por %p106, %p107
    %s110 = sadd.s32 %s109, 1
    %p113 = scmp.eq.s32.totalorder %s12, 1
    %p114 = scmp.ne.s32.totalorder %s109, %s111
    %p115 = scmp.eq.s32.totalorder %s12, 0
    %p116 = por %p114, %p115
    %p117 = scmp.ne.s32.totalorder %s109, %s111
    %p118 = scmp.eq.s32.totalorder %s17, 1
    %p119 = por %p117, %p118
    %p120 = scmp.ne.s32.totalorder %s111, %s112
    %p121 = scmp.eq.s32.totalorder %s17, 0
    %p122 = por %p120, %p121
    %p123 = scmp.ne.s32.totalorder %s111, %s112
    %p124 = scmp.eq.s32.totalorder %s18, 1
    %p125 = por %p123, %p124
    %p127 = scmp.ne.s32.totalorder %s112, %s126
    %p128 = scmp.eq.s32.totalorder %s18, 0
    %p129 = por %p127, %p128
    %s131 = sadd.s32 %s130, 1
    %p134 = scmp.eq.s32.totalorder %s12, 1
    %p135 = scmp.ne.s32.totalorder %s130, %s132
    %p136 = scmp.eq.s32.totalorder %s12, 0
    %p137 = por %p135, %p136
    %p138 = scmp.ne.s32.totalorder %s130, %s132
    %p139 = scmp.eq.s32.totalorder %s17, 1
    %p140 = por %p138, %p139
    %p141 = scmp.ne.s32.totalorder %s132, %s133
    %p142 = scmp.eq.s32.totalorder %s17, 0
    %p143 = por %p141, %p142
    %p144 = scmp.ne.s32.totalorder %s132, %s133
    %p145 = scmp.eq.s32.totalorder %s18, 1
    %p146 = por %p144, %p145
    %p148 = scmp.ne.s32.totalorder %s133, %s147
    %p149 = scmp.eq.s32.totalorder %s18, 0
    %p150 = por %p148, %p149
    %s152 = sadd.s32 %s151, 1
    %p155 = scmp.eq.s32.totalorder %s12, 1
    %p156 = scmp.ne.s32.totalorder %s151, %s153
    %p157 = scmp.eq.s32.totalorder %s12, 0
    %p158 = por %p156, %p157
    %p159 = scmp.ne.s32.totalorder %s151, %s153
    %p160 = scmp.eq.s32.totalorder %s17, 1
    %p161 = por %p159, %p160
    %p162 = scmp.ne.s32.totalorder %s153, %s154
    %p163 = scmp.eq.s32.totalorder %s17, 0
    %p164 = por %p162, %p163
    %p165 = scmp.ne.s32.totalorder %s153, %s154
    %p166 = scmp.eq.s32.totalorder %s18, 1
    %p167 = por %p165, %p166
    %p169 = scmp.ne.s32.totalorder %s154, %s168
    %p170 = scmp.eq.s32.totalorder %s18, 0
    %p171 = por %p169, %p170
    %s172 = ssub.s32 %s19, %s31
    %s173 = ssub.s32 %s20, %s27
    %s174 = sor.u32 %s172, %s173
    %p175 = scmp.eq.s32.totalorder %s174, 0
    %s177 = sadd.s32 %s176, 1
    %s178 = scalar_select %p175, %s176, %s177
    %p181 = pneg %p175
    %p182 = scmp.eq.s32.totalorder %s12, 1
    %p183 = por %p181, %p182
    %p184 = scmp.ne.s32.totalorder %s176, %s179
    %p185 = scmp.eq.s32.totalorder %s12, 0
    %p186 = por %p184, %p185
    %p187 = scmp.ne.s32.totalorder %s176, %s179
    %p188 = scmp.eq.s32.totalorder %s17, 1
    %p189 = por %p187, %p188
    %p190 = scmp.ne.s32.totalorder %s179, %s180
    %p191 = scmp.eq.s32.totalorder %s17, 0
    %p192 = por %p190, %p191
    %p193 = scmp.ne.s32.totalorder %s179, %s180
    %p194 = scmp.eq.s32.totalorder %s18, 1
    %p195 = por %p193, %p194
    %p197 = scmp.ne.s32.totalorder %s180, %s196
    %p198 = scmp.eq.s32.totalorder %s18, 0
    %p199 = por %p197, %p198
    %p200 = scmp.le.s32.totalorder 1, %s12
    %p201 = scmp.lt.s32.totalorder %s12, 3
    %p202 = pnand %p200, %p201
    %p203 = pneg %p202
    // Predicated region
    $region9: #{fatnet_forward.15} parent=5 // pred_check
      _
    $region10: #{fatnet_forward.15} parent=5 // pred_check_branch
      %205 = sbr.rel (%p202) target = $region12
    $region11: #{fatnet_forward.15} parent=5 // pred_region
      %s206 = ssub.s32 %s12, 1
      // Predicated region
      $region13: #{fatnet_forward.15} parent=11 // pred_check
        %p207 = pneg %p101
      $region14: #{fatnet_forward.15} parent=11 // pred_check_branch
        %209 = sbr.rel (%p207) target = $region16
      $region15: #{fatnet_forward.15} parent=11 // pred_region
        _
      $region16: #{fatnet_forward.15} parent=11 // pred_fallthru
        _
      // Predicated region
      $region17: #{fatnet_forward.15} parent=11 // pred_check
        %p210 = pneg %p122
      $region18: #{fatnet_forward.15} parent=11 // pred_check_branch
        %212 = sbr.rel (%p210) target = $region20
      $region19: #{fatnet_forward.15} parent=11 // pred_region
        _
      $region20: #{fatnet_forward.15} parent=11 // pred_fallthru
        _
      // Predicated region
      $region21: #{fatnet_forward.15} parent=11 // pred_check
        %p213 = pneg %p143
      $region22: #{fatnet_forward.15} parent=11 // pred_check_branch
        %215 = sbr.rel (%p213) target = $region24
      $region23: #{fatnet_forward.15} parent=11 // pred_region
        _
      $region24: #{fatnet_forward.15} parent=11 // pred_fallthru
        _
      // Predicated region
      $region25: #{fatnet_forward.15} parent=11 // pred_check
        %p216 = pneg %p164
      $region26: #{fatnet_forward.15} parent=11 // pred_check_branch
        %218 = sbr.rel (%p216) target = $region28
      $region27: #{fatnet_forward.15} parent=11 // pred_region
        _
      $region28: #{fatnet_forward.15} parent=11 // pred_fallthru
        _
    $region12: #{fatnet_forward.15} parent=5 // pred_fallthru
      _
    %p219 = scmp.lt.s32.totalorder %s12, 2
    // Predicated region
    $region29: #{fatnet_forward.15} parent=5 // pred_check
      %p220 = pneg %p219
    $region30: #{fatnet_forward.15} parent=5 // pred_check_branch
      %222 = sbr.rel (%p220) target = $region32
    $region31: #{fatnet_forward.15} parent=5 // pred_region
      // Predicated region
      $region33: #{fatnet_forward.15} parent=31 // pred_check
        %p223 = pneg %p46
      $region34: #{fatnet_forward.15} parent=31 // pred_check_branch
        %225 = sbr.rel (%p223) target = $region36
      $region35: #{fatnet_forward.15} parent=31 // pred_region
        %s226 = smul.u32 8, %s20
        %p227 = scmp.lt.s32.totalorder %s19, 1
        %s228 = scalar_select %p227, %s19, 1
        %p229 = scmp.lt.s32.totalorder %s226, 7
        %s230 = scalar_select %p229, %s226, 7
        %s231 = smul.addr %s230, 2
        %s232 = smul.addr %s228, 16
        %s233 = sadd.s32 %s231, %s232
        %s234 = smul.addr %s233, 4
        %s235 = scalar_lea.vmem %s0, %s234
        %s236 = smul.u32 8, %s20
      $region36: #{fatnet_forward.15} parent=31 // pred_fallthru
        _
      // Predicated region
      $region37: #{fatnet_forward.15} parent=31 // pred_check
        %p237 = pneg %p74
      $region38: #{fatnet_forward.15} parent=31 // pred_check_branch
        %239 = sbr.rel (%p237) target = $region40
      $region39: #{fatnet_forward.15} parent=31 // pred_region
        %s240 = smul.u32 8, %s20
        %p241 = scmp.lt.s32.totalorder %s19, 1
        %s242 = scalar_select %p241, %s19, 1
        %p243 = scmp.lt.s32.totalorder %s240, 7
        %s244 = scalar_select %p243, %s240, 7
        %s245 = smul.addr %s242, 8
        %s246 = sadd.s32 %s244, %s245
        %s247 = smul.addr %s246, 4
        %s248 = scalar_lea.vmem %s1, %s247
        %s249 = smul.u32 8, %s20
      $region40: #{fatnet_forward.15} parent=31 // pred_fallthru
        _
    $region32: #{fatnet_forward.15} parent=5 // pred_fallthru
      _
    %p250 = scmp.le.s32.totalorder 1, %s12
    %p251 = scmp.lt.s32.totalorder %s12, 3
    %p252 = pnand %p250, %p251
    %p253 = pneg %p252
    // Predicated region
    $region41: #{fatnet_forward.15} parent=5 // pred_check
      _
    $region42: #{fatnet_forward.15} parent=5 // pred_check_branch
      %255 = sbr.rel (%p252) target = $region44
    $region43: #{fatnet_forward.15} parent=5 // pred_region
      %s256 = ssub.s32 %s12, 1
      %s257 = smul.u32 8, %s22
      %p258 = scmp.lt.s32.totalorder %s21, 1
      %s259 = scalar_select %p258, %s21, 1
      %p260 = scmp.lt.s32.totalorder %s257, 7
      %s261 = scalar_select %p260, %s257, 7
      %s262 = smul.addr %s261, 2
      %s263 = smul.addr %s259, 16
      %s264 = sadd.s32 %s262, %s263
      %s265 = smul.addr %s264, 4
      %s266 = scalar_lea.vmem %s0, %s265
      %p267 = pneg %p52
      %p268 = pneg %p49
      %s269 = smul.u32 8, %s22
      %p270 = scmp.lt.s32.totalorder %s21, 1
      %s271 = scalar_select %p270, %s21, 1
      %p272 = scmp.lt.s32.totalorder %s269, 7
      %s273 = scalar_select %p272, %s269, 7
      %s274 = smul.addr %s271, 8
      %s275 = sadd.s32 %s273, %s274
      %s276 = smul.addr %s275, 4
      %s277 = scalar_lea.vmem %s1, %s276
      %p278 = pneg %p80
      %p279 = pneg %p77
      %p280 = pneg %p101
      %p281 = pneg %p98
      %p282 = pneg %p122
      %p283 = pneg %p119
      %p284 = pneg %p143
      %p285 = pneg %p140
      %p286 = pneg %p164
      %p287 = pneg %p161
      %p288 = pneg %p192
      %p289 = pneg %p189
      %s290 = smul.u32 8, %s22
      %p291 = scmp.lt.s32.totalorder %s21, 1
      %s292 = scalar_select %p291, %s21, 1
      %p293 = scmp.lt.s32.totalorder %s290, 7
      %s294 = scalar_select %p293, %s290, 7
      %s295 = smul.addr %s292, 8
      %s296 = sadd.s32 %s294, %s295
      %s297 = smul.addr %s296, 8
      %s298 = scalar_lea.vmem %s6, %s297
      %s299 = smul.u32 8, %s22
      %p300 = scmp.lt.s32.totalorder %s21, 1
      %s301 = scalar_select %p300, %s21, 1
      %p302 = scmp.lt.s32.totalorder %s299, 7
      %s303 = scalar_select %p302, %s299, 7
      %s304 = smul.addr %s303, 2
      %s305 = smul.addr %s301, 16
      %s306 = sadd.s32 %s304, %s305
      %s307 = smul.addr %s306, 4
      %s308 = scalar_lea.vmem %s0, %s307
      %s309 = smul.u32 8, %s22
      %s310 = smul.u32 8, %s22
      %p311 = scmp.lt.s32.totalorder %s21, 1
      %s312 = scalar_select %p311, %s21, 1
      %p313 = scmp.lt.s32.totalorder %s310, 7
      %s314 = scalar_select %p313, %s310, 7
      %s315 = smul.addr %s312, 8
      %s316 = sadd.s32 %s314, %s315
      %s317 = smul.addr %s316, 4
      %s318 = scalar_lea.vmem %s1, %s317
      %s319 = smul.u32 8, %s22
      %s320 = smul.u32 8, %s22
      %p321 = scmp.lt.s32.totalorder %s21, 1
      %s322 = scalar_select %p321, %s21, 1
      %p323 = scmp.lt.s32.totalorder %s320, 7
      %s324 = scalar_select %p323, %s320, 7
      %s325 = smul.addr %s322, 8
      %s326 = sadd.s32 %s324, %s325
      %s327 = smul.addr %s326, 8
      %s328 = scalar_lea.vmem %s6, %s327
      %s329 = smul.u32 8, %s22
      %v331 = vld [vmem:[%s308] sm:$0xff]
      %v332 = vld [vmem:[%s308 + $0x8] sm:$0xff]
      %v333 = vld [vmem:[%s308 + $0x10] sm:$0xff]
      %v334 = vld [vmem:[%s308 + $0x18] sm:$0xff]
      %v335 = vld [vmem:[%s308 + $0x20] sm:$0xff]
      %v336 = vld [vmem:[%s308 + $0x28] sm:$0xff]
      %v337 = vld [vmem:[%s308 + $0x30] sm:$0xff]
      %v338 = vld [vmem:[%s308 + $0x38] sm:$0xff]
      %v339 = vld [vmem:[%s2] sm:$0xf]
      %v340 = vld [vmem:[%s2 + $0x4] sm:$0xf]
      %v341 = vld [vmem:[%s2 + $0x8] sm:$0xf]
      %v342 = vld [vmem:[%s2 + $0xc] sm:$0xf]
      %v343 = vld [vmem:[%s2 + $0x10] sm:$0xf]
      %v344 = vld [vmem:[%s2 + $0x14] sm:$0xf]
      %v345 = vld [vmem:[%s2 + $0x18] sm:$0xf]
      %v346 = vld [vmem:[%s2 + $0x1c] sm:$0xf]
      %v347 = vld [vmem:[%s2 + $0x20] sm:$0xf]
      %v348 = vld [vmem:[%s2 + $0x24] sm:$0xf]
      %v349 = vld [vmem:[%s2 + $0x28] sm:$0xf]
      %v350 = vld [vmem:[%s2 + $0x2c] sm:$0xf]
      %v351 = vld [vmem:[%s2 + $0x30] sm:$0xf]
      %v352 = vld [vmem:[%s2 + $0x34] sm:$0xf]
      %v353 = vld [vmem:[%s2 + $0x38] sm:$0xf]
      %v354 = vld [vmem:[%s2 + $0x3c] sm:$0xf]
      %v355 = vld [vmem:[%s2 + $0x40] sm:$0xf]
      %v356 = vld [vmem:[%s2 + $0x44] sm:$0xf]
      %v357 = vld [vmem:[%s3] sm:$0x1]
      %v359 = vperm.slane %v357, 0
      %v369 = vunpack.c.l.b16 %v331
      %v370 = vunpack.c.h.b16 %v331
      %v371 = vunpack.c.l.b16 %v332
      %v372 = vunpack.c.h.b16 %v332
      %v373 = vunpack.c.l.b16 %v333
      %v374 = vunpack.c.h.b16 %v333
      %v375 = vunpack.c.l.b16 %v334
      %v376 = vunpack.c.h.b16 %v334
      %v377 = vunpack.c.l.b16 %v335
      %v378 = vunpack.c.h.b16 %v335
      %v379 = vunpack.c.l.b16 %v336
      %v380 = vunpack.c.h.b16 %v336
      %v381 = vunpack.c.l.b16 %v337
      %v382 = vunpack.c.h.b16 %v337
      %v383 = vunpack.c.l.b16 %v338
      %v384 = vunpack.c.h.b16 %v338
      %v385 = vpack.c.b16 %v371, %v369
      %v386 = vpack.c.b16 %v372, %v370
      %v387 = vpack.c.b16 %v375, %v373
      %v388 = vpack.c.b16 %v376, %v374
      %v389 = vpack.c.b16 %v379, %v377
      %v390 = vpack.c.b16 %v380, %v378
      %v391 = vpack.c.b16 %v383, %v381
      %v392 = vpack.c.b16 %v384, %v382
      %v415 = vunpack.c.l.b16 %v339
      %v416 = vunpack.c.l.b16 %v340
      %v417 = vunpack.c.l.b16 %v341
      %v418 = vunpack.c.l.b16 %v342
      %v419 = vunpack.c.l.b16 %v343
      %v420 = vunpack.c.l.b16 %v344
      %v421 = vunpack.c.l.b16 %v345
      %v422 = vunpack.c.l.b16 %v346
      %v423 = vunpack.c.l.b16 %v347
      %v424 = vunpack.c.l.b16 %v348
      %v425 = vunpack.c.l.b16 %v349
      %v426 = vunpack.c.l.b16 %v350
      %v427 = vunpack.c.l.b16 %v351
      %v428 = vunpack.c.l.b16 %v352
      %v429 = vunpack.c.l.b16 %v353
      %v430 = vunpack.c.l.b16 %v354
      %v431 = vunpack.c.l.b16 %v355
      %v432 = vunpack.c.l.b16 %v356
      %v433 = vpack.c.b16 %v416, %v415
      %v434 = vpack.c.b16 %v418, %v417
      %v435 = vpack.c.b16 %v420, %v419
      %v436 = vpack.c.b16 %v422, %v421
      %v437 = vpack.c.b16 %v424, %v423
      %v438 = vpack.c.b16 %v426, %v425
      %v439 = vpack.c.b16 %v428, %v427
      %v440 = vpack.c.b16 %v430, %v429
      %v441 = vpack.c.b16 %v432, %v431
      %vm451 = vcmask 130048
      %v453 = vsel %vm451, %v386, 0
      %v456 = vsel %vm451, %v388, 0
      %v459 = vsel %vm451, %v390, 0
      %v462 = vsel %vm451, %v392, 0
      %464 = vmatpush.bf16.msra.mxu0 %v440
      %465 = vmatpush.bf16.msra.mxu0 %v439
      %466 = vmatpush.bf16.msra.mxu0 %v438
      %467 = vmatpush.bf16.msra.mxu0 %v437
      %468 = vmatpush.bf16.msra.mxu0 %v436
      %469 = vmatpush.bf16.msra.mxu0 %v435
      %470 = vmatpush.bf16.msra.mxu0 %v434
      %471 = vmatpush.bf16.msra.mxu0 %v433
      %472 = vmatmul.bf16.gmra.mxu0 %v385
      %v473 = vpop.f32.mrf.mxu0
      %v474 = vadd.f32 %v359, %v473
      %v475 = vpop.f32.mrf.mxu0
      %v476 = vadd.f32 %v359, %v475
      %477 = vmatmul.bf16.gmra.mxu0 %v387
      %v478 = vpop.f32.mrf.mxu0
      %v479 = vadd.f32 %v359, %v478
      %v480 = vpop.f32.mrf.mxu0
      %v481 = vadd.f32 %v359, %v480
      %482 = vmatmul.bf16.gmra.mxu0 %v389
      %v483 = vpop.f32.mrf.mxu0
      %v484 = vadd.f32 %v359, %v483
      %v485 = vpop.f32.mrf.mxu0
      %v486 = vadd.f32 %v359, %v485
      %487 = vmatmul.bf16.gmra.mxu0 %v391
      %v488 = vpop.f32.mrf.mxu0
      %v489 = vadd.f32 %v359, %v488
      %v490 = vpop.f32.mrf.mxu0
      %v491 = vadd.f32 %v359, %v490
      %492 = vdwg.mxu0
      %493 = vmatpush.bf16.msra.mxu0 0
      %494 = vmatpush.bf16.msra.mxu0 0
      %495 = vmatpush.bf16.msra.mxu0 0
      %496 = vmatpush.bf16.msra.mxu0 0
      %497 = vmatpush.bf16.msra.mxu0 0
      %498 = vmatpush.bf16.msra.mxu0 0
      %499 = vmatpush.bf16.msra.mxu0 0
      %500 = vmatpush.bf16.msra.mxu0 %v441
      %501 = vmatmul.bf16.gmra.mxu0 %v453
      %v502 = vpop.f32.mrf.mxu0
      %v503 = vadd.f32 %v474, %v502
      %v504 = vpop.f32.mrf.mxu0
      %v505 = vadd.f32 %v476, %v504
      %506 = vmatmul.bf16.gmra.mxu0 %v456
      %v507 = vpop.f32.mrf.mxu0
      %v508 = vadd.f32 %v479, %v507
      %v509 = vpop.f32.mrf.mxu0
      %v510 = vadd.f32 %v481, %v509
      %511 = vmatmul.bf16.gmra.mxu0 %v459
      %v512 = vpop.f32.mrf.mxu0
      %v513 = vadd.f32 %v484, %v512
      %v514 = vpop.f32.mrf.mxu0
      %v515 = vadd.f32 %v486, %v514
      %516 = vmatmul.bf16.gmra.mxu0 %v462
      %v517 = vpop.f32.mrf.mxu0
      %v518 = vadd.f32 %v489, %v517
      %v519 = vpop.f32.mrf.mxu0
      %v520 = vadd.f32 %v491, %v519
      %521 = vdwg.mxu0
      %v522 = vmax.f32 %v503, 0.0
      %v523 = vmax.f32 %v505, 0.0
      %v524 = vmax.f32 %v508, 0.0
      %v525 = vmax.f32 %v510, 0.0
      %v526 = vmax.f32 %v513, 0.0
      %v527 = vmax.f32 %v515, 0.0
      %v528 = vmax.f32 %v518, 0.0
      %v529 = vmax.f32 %v520, 0.0
      %v530 = vld [vmem:[%s318] sm:$0xf]
      %v531 = vld [vmem:[%s318 + $0x4] sm:$0xf]
      %v532 = vld [vmem:[%s318 + $0x8] sm:$0xf]
      %v533 = vld [vmem:[%s318 + $0xc] sm:$0xf]
      %v534 = vld [vmem:[%s318 + $0x10] sm:$0xf]
      %v535 = vld [vmem:[%s318 + $0x14] sm:$0xf]
      %v536 = vld [vmem:[%s318 + $0x18] sm:$0xf]
      %v537 = vld [vmem:[%s318 + $0x1c] sm:$0xf]
      %v538 = vld [vmem:[%s4] sm:$0xf]
      %v539 = vld [vmem:[%s4 + $0x4] sm:$0xf]
      %v540 = vld [vmem:[%s5] sm:$0x1]
      %v542 = vperm.slane %v540, 0
      %v552 = vunpack.c.l.b16 %v530
      %v553 = vunpack.c.l.b16 %v531
      %v554 = vunpack.c.l.b16 %v532
      %v555 = vunpack.c.l.b16 %v533
      %v556 = vunpack.c.l.b16 %v534
      %v557 = vunpack.c.l.b16 %v535
      %v558 = vunpack.c.l.b16 %v536
      %v559 = vunpack.c.l.b16 %v537
      %v560 = vpack.c.b16 %v553, %v552
      %v561 = vpack.c.b16 %v555, %v554
      %v562 = vpack.c.b16 %v557, %v556
      %v563 = vpack.c.b16 %v559, %v558
      %v566 = vunpack.c.l.b16 %v538
      %v567 = vunpack.c.l.b16 %v539
      %v568 = vpack.c.b16 %v567, %v566
      %v571 = vsel %vm451, %v560, 0
      %v574 = vsel %vm451, %v561, 0
      %v577 = vsel %vm451, %v562, 0
      %v580 = vsel %vm451, %v563, 0
      %582 = vmatpush.bf16.msra.mxu0 0
      %583 = vmatpush.bf16.msra.mxu0 0
      %584 = vmatpush.bf16.msra.mxu0 0
      %585 = vmatpush.bf16.msra.mxu0 0
      %586 = vmatpush.bf16.msra.mxu0 0
      %587 = vmatpush.bf16.msra.mxu0 0
      %588 = vmatpush.bf16.msra.mxu0 0
      %589 = vmatpush.bf16.msra.mxu0 %v568
      %590 = vmatmul.bf16.gmra.mxu0 %v571
      %v591 = vpop.f32.mrf.mxu0
      %v592 = vadd.f32 %v542, %v591
      %v593 = vpop.f32.mrf.mxu0
      %v594 = vadd.f32 %v542, %v593
      %595 = vmatmul.bf16.gmra.mxu0 %v574
      %v596 = vpop.f32.mrf.mxu0
      %v597 = vadd.f32 %v542, %v596
      %v598 = vpop.f32.mrf.mxu0
      %v599 = vadd.f32 %v542, %v598
      %600 = vmatmul.bf16.gmra.mxu0 %v577
      %v601 = vpop.f32.mrf.mxu0
      %v602 = vadd.f32 %v542, %v601
      %v603 = vpop.f32.mrf.mxu0
      %v604 = vadd.f32 %v542, %v603
      %605 = vmatmul.bf16.gmra.mxu0 %v580
      %v606 = vpop.f32.mrf.mxu0
      %v607 = vadd.f32 %v542, %v606
      %v608 = vpop.f32.mrf.mxu0
      %v609 = vadd.f32 %v542, %v608
      %610 = vdwg.mxu0
      %v611 = vmax.f32 %v592, 0.0
      %v612 = vmax.f32 %v594, 0.0
      %v613 = vmax.f32 %v597, 0.0
      %v614 = vmax.f32 %v599, 0.0
      %v615 = vmax.f32 %v602, 0.0
      %v616 = vmax.f32 %v604, 0.0
      %v617 = vmax.f32 %v607, 0.0
      %v618 = vmax.f32 %v609, 0.0
      %v619 = vadd.f32 %v522, %v611
      %v620 = vadd.f32 %v523, %v612
      %v621 = vadd.f32 %v524, %v613
      %v622 = vadd.f32 %v525, %v614
      %v623 = vadd.f32 %v526, %v615
      %v624 = vadd.f32 %v527, %v616
      %v625 = vadd.f32 %v528, %v617
      %v626 = vadd.f32 %v529, %v618
      %627 = vrot.lane.b32.xlu0 %v560, 112
      %v628 = vpop.permute.xlu0 %627
      %629 = vrot.lane.b32.xlu0 %v561, 112
      %v630 = vpop.permute.xlu0 %629
      %631 = vrot.lane.b32.xlu0 %v562, 112
      %v632 = vpop.permute.xlu0 %631
      %633 = vrot.lane.b32.xlu0 %v563, 112
      %v634 = vpop.permute.xlu0 %633
      %v636 = vsel %vm451, %v628, 0
      %v639 = vsel %vm451, %v630, 0
      %v642 = vsel %vm451, %v632, 0
      %v645 = vsel %vm451, %v634, 0
      %647 = vmatpush.bf16.msra.mxu0 0
      %648 = vmatpush.bf16.msra.mxu0 0
      %649 = vmatpush.bf16.msra.mxu0 0
      %650 = vmatpush.bf16.msra.mxu0 0
      %651 = vmatpush.bf16.msra.mxu0 0
      %652 = vmatpush.bf16.msra.mxu0 0
      %653 = vmatpush.bf16.msra.mxu0 0
      %654 = vmatpush.bf16.msra.mxu0 %v568
      %655 = vmatmul.bf16.gmra.mxu0 %v636
      %v656 = vpop.f32.mrf.mxu0
      %v657 = vadd.f32 %v542, %v656
      %v658 = vpop.f32.mrf.mxu0
      %v659 = vadd.f32 %v542, %v658
      %660 = vmatmul.bf16.gmra.mxu0 %v639
      %v661 = vpop.f32.mrf.mxu0
      %v662 = vadd.f32 %v542, %v661
      %v663 = vpop.f32.mrf.mxu0
      %v664 = vadd.f32 %v542, %v663
      %665 = vmatmul.bf16.gmra.mxu0 %v642
      %v666 = vpop.f32.mrf.mxu0
      %v667 = vadd.f32 %v542, %v666
      %v668 = vpop.f32.mrf.mxu0
      %v669 = vadd.f32 %v542, %v668
      %670 = vmatmul.bf16.gmra.mxu0 %v645
      %v671 = vpop.f32.mrf.mxu0
      %v672 = vadd.f32 %v542, %v671
      %v673 = vpop.f32.mrf.mxu0
      %v674 = vadd.f32 %v542, %v673
      %675 = vdwg.mxu0
      %v676 = vmax.f32 %v657, 0.0
      %v677 = vmax.f32 %v659, 0.0
      %v678 = vmax.f32 %v662, 0.0
      %v679 = vmax.f32 %v664, 0.0
      %v680 = vmax.f32 %v667, 0.0
      %v681 = vmax.f32 %v669, 0.0
      %v682 = vmax.f32 %v672, 0.0
      %v683 = vmax.f32 %v674, 0.0
      %v684 = vadd.f32 %v522, %v676
      %v685 = vadd.f32 %v523, %v677
      %v686 = vadd.f32 %v524, %v678
      %v687 = vadd.f32 %v525, %v679
      %v688 = vadd.f32 %v526, %v680
      %v689 = vadd.f32 %v527, %v681
      %v690 = vadd.f32 %v528, %v682
      %v691 = vadd.f32 %v529, %v683
      %692 = vrot.lane.b32.xlu0 %v560, 96
      %v693 = vpop.permute.xlu0 %692
      %694 = vrot.lane.b32.xlu0 %v561, 96
      %v695 = vpop.permute.xlu0 %694
      %696 = vrot.lane.b32.xlu0 %v562, 96
      %v697 = vpop.permute.xlu0 %696
      %698 = vrot.lane.b32.xlu0 %v563, 96
      %v699 = vpop.permute.xlu0 %698
      %v701 = vsel %vm451, %v693, 0
      %v704 = vsel %vm451, %v695, 0
      %v707 = vsel %vm451, %v697, 0
      %v710 = vsel %vm451, %v699, 0
      %712 = vmatpush.bf16.msra.mxu0 0
      %713 = vmatpush.bf16.msra.mxu0 0
      %714 = vmatpush.bf16.msra.mxu0 0
      %715 = vmatpush.bf16.msra.mxu0 0
      %716 = vmatpush.bf16.msra.mxu0 0
      %717 = vmatpush.bf16.msra.mxu0 0
      %718 = vmatpush.bf16.msra.mxu0 0
      %719 = vmatpush.bf16.msra.mxu0 %v568
      %720 = vmatmul.bf16.gmra.mxu0 %v701
      %v721 = vpop.f32.mrf.mxu0
      %v722 = vadd.f32 %v542, %v721
      %v723 = vpop.f32.mrf.mxu0
      %v724 = vadd.f32 %v542, %v723
      %725 = vmatmul.bf16.gmra.mxu0 %v704
      %v726 = vpop.f32.mrf.mxu0
      %v727 = vadd.f32 %v542, %v726
      %v728 = vpop.f32.mrf.mxu0
      %v729 = vadd.f32 %v542, %v728
      %730 = vmatmul.bf16.gmra.mxu0 %v707
      %v731 = vpop.f32.mrf.mxu0
      %v732 = vadd.f32 %v542, %v731
      %v733 = vpop.f32.mrf.mxu0
      %v734 = vadd.f32 %v542, %v733
      %735 = vmatmul.bf16.gmra.mxu0 %v710
      %v736 = vpop.f32.mrf.mxu0
      %v737 = vadd.f32 %v542, %v736
      %v738 = vpop.f32.mrf.mxu0
      %v739 = vadd.f32 %v542, %v738
      %740 = vdwg.mxu0
      %v741 = vmax.f32 %v722, 0.0
      %v742 = vmax.f32 %v724, 0.0
      %v743 = vmax.f32 %v727, 0.0
      %v744 = vmax.f32 %v729, 0.0
      %v745 = vmax.f32 %v732, 0.0
      %v746 = vmax.f32 %v734, 0.0
      %v747 = vmax.f32 %v737, 0.0
      %v748 = vmax.f32 %v739, 0.0
      %v749 = vadd.f32 %v522, %v741
      %v750 = vadd.f32 %v523, %v742
      %v751 = vadd.f32 %v524, %v743
      %v752 = vadd.f32 %v525, %v744
      %v753 = vadd.f32 %v526, %v745
      %v754 = vadd.f32 %v527, %v746
      %v755 = vadd.f32 %v528, %v747
      %v756 = vadd.f32 %v529, %v748
      %757 = vrot.lane.b32.xlu0 %v560, 80
      %v758 = vpop.permute.xlu0 %757
      %759 = vrot.lane.b32.xlu0 %v561, 80
      %v760 = vpop.permute.xlu0 %759
      %761 = vrot.lane.b32.xlu0 %v562, 80
      %v762 = vpop.permute.xlu0 %761
      %763 = vrot.lane.b32.xlu0 %v563, 80
      %v764 = vpop.permute.xlu0 %763
      %v766 = vsel %vm451, %v758, 0
      %v769 = vsel %vm451, %v760, 0
      %v772 = vsel %vm451, %v762, 0
      %v775 = vsel %vm451, %v764, 0
      %777 = vmatpush.bf16.msra.mxu0 0
      %778 = vmatpush.bf16.msra.mxu0 0
      %779 = vmatpush.bf16.msra.mxu0 0
      %780 = vmatpush.bf16.msra.mxu0 0
      %781 = vmatpush.bf16.msra.mxu0 0
      %782 = vmatpush.bf16.msra.mxu0 0
      %783 = vmatpush.bf16.msra.mxu0 0
      %784 = vmatpush.bf16.msra.mxu0 %v568
      %785 = vmatmul.bf16.gmra.mxu0 %v766
      %v786 = vpop.f32.mrf.mxu0
      %v787 = vadd.f32 %v542, %v786
      %v788 = vpop.f32.mrf.mxu0
      %v789 = vadd.f32 %v542, %v788
      %790 = vmatmul.bf16.gmra.mxu0 %v769
      %v791 = vpop.f32.mrf.mxu0
      %v792 = vadd.f32 %v542, %v791
      %v793 = vpop.f32.mrf.mxu0
      %v794 = vadd.f32 %v542, %v793
      %795 = vmatmul.bf16.gmra.mxu0 %v772
      %v796 = vpop.f32.mrf.mxu0
      %v797 = vadd.f32 %v542, %v796
      %v798 = vpop.f32.mrf.mxu0
      %v799 = vadd.f32 %v542, %v798
      %800 = vmatmul.bf16.gmra.mxu0 %v775
      %v801 = vpop.f32.mrf.mxu0
      %v802 = vadd.f32 %v542, %v801
      %v803 = vpop.f32.mrf.mxu0
      %v804 = vadd.f32 %v542, %v803
      %805 = vdwg.mxu0
      %v806 = vmax.f32 %v787, 0.0
      %v807 = vmax.f32 %v789, 0.0
      %v808 = vmax.f32 %v792, 0.0
      %v809 = vmax.f32 %v794, 0.0
      %v810 = vmax.f32 %v797, 0.0
      %v811 = vmax.f32 %v799, 0.0
      %v812 = vmax.f32 %v802, 0.0
      %v813 = vmax.f32 %v804, 0.0
      %v814 = vadd.f32 %v522, %v806
      %v815 = vadd.f32 %v523, %v807
      %v816 = vadd.f32 %v524, %v808
      %v817 = vadd.f32 %v525, %v809
      %v818 = vadd.f32 %v526, %v810
      %v819 = vadd.f32 %v527, %v811
      %v820 = vadd.f32 %v528, %v812
      %v821 = vadd.f32 %v529, %v813
      %830 = vrot.lane.b32.xlu0 %v684, 32
      %v831 = vpop.permute.xlu0 %830
      %832 = vrot.lane.b32.xlu0 %v685, 32
      %v833 = vpop.permute.xlu0 %832
      %834 = vrot.lane.b32.xlu0 %v686, 32
      %v835 = vpop.permute.xlu0 %834
      %836 = vrot.lane.b32.xlu0 %v687, 32
      %v837 = vpop.permute.xlu0 %836
      %838 = vrot.lane.b32.xlu0 %v688, 32
      %v839 = vpop.permute.xlu0 %838
      %840 = vrot.lane.b32.xlu0 %v689, 32
      %v841 = vpop.permute.xlu0 %840
      %842 = vrot.lane.b32.xlu0 %v690, 32
      %v843 = vpop.permute.xlu0 %842
      %844 = vrot.lane.b32.xlu0 %v691, 32
      %v845 = vpop.permute.xlu0 %844
      %862 = vrot.lane.b32.xlu0 %v749, 64
      %v863 = vpop.permute.xlu0 %862
      %864 = vrot.lane.b32.xlu0 %v750, 64
      %v865 = vpop.permute.xlu0 %864
      %866 = vrot.lane.b32.xlu0 %v751, 64
      %v867 = vpop.permute.xlu0 %866
      %868 = vrot.lane.b32.xlu0 %v752, 64
      %v869 = vpop.permute.xlu0 %868
      %870 = vrot.lane.b32.xlu0 %v753, 64
      %v871 = vpop.permute.xlu0 %870
      %872 = vrot.lane.b32.xlu0 %v754, 64
      %v873 = vpop.permute.xlu0 %872
      %874 = vrot.lane.b32.xlu0 %v755, 64
      %v875 = vpop.permute.xlu0 %874
      %876 = vrot.lane.b32.xlu0 %v756, 64
      %v877 = vpop.permute.xlu0 %876
      %894 = vrot.lane.b32.xlu0 %v814, 96
      %v895 = vpop.permute.xlu0 %894
      %896 = vrot.lane.b32.xlu0 %v815, 96
      %v897 = vpop.permute.xlu0 %896
      %898 = vrot.lane.b32.xlu0 %v816, 96
      %v899 = vpop.permute.xlu0 %898
      %900 = vrot.lane.b32.xlu0 %v817, 96
      %v901 = vpop.permute.xlu0 %900
      %902 = vrot.lane.b32.xlu0 %v818, 96
      %v903 = vpop.permute.xlu0 %902
      %904 = vrot.lane.b32.xlu0 %v819, 96
      %v905 = vpop.permute.xlu0 %904
      %906 = vrot.lane.b32.xlu0 %v820, 96
      %v907 = vpop.permute.xlu0 %906
      %908 = vrot.lane.b32.xlu0 %v821, 96
      %v909 = vpop.permute.xlu0 %908
      %vm918 = vcmask 261120
      %v919 = vsel %vm918, %v619, %v831
      %v920 = vsel %vm918, %v620, %v833
      %v921 = vsel %vm918, %v621, %v835
      %v922 = vsel %vm918, %v622, %v837
      %v923 = vsel %vm918, %v623, %v839
      %v924 = vsel %vm918, %v624, %v841
      %v925 = vsel %vm918, %v625, %v843
      %v926 = vsel %vm918, %v626, %v845
      %vm927 = vcmask 523264
      %v928 = vsel %vm927, %v919, %v863
      %v929 = vsel %vm927, %v920, %v865
      %v930 = vsel %vm927, %v921, %v867
      %v931 = vsel %vm927, %v922, %v869
      %v932 = vsel %vm927, %v923, %v871
      %v933 = vsel %vm927, %v924, %v873
      %v934 = vsel %vm927, %v925, %v875
      %v935 = vsel %vm927, %v926, %v877
      %vm936 = vcmask 785408
      %v937 = vsel %vm936, %v928, %v895
      %v938 = vsel %vm936, %v929, %v897
      %v939 = vsel %vm936, %v930, %v899
      %v940 = vsel %vm936, %v931, %v901
      %v941 = vsel %vm936, %v932, %v903
      %v942 = vsel %vm936, %v933, %v905
      %v943 = vsel %vm936, %v934, %v907
      %v944 = vsel %vm936, %v935, %v909
      %945 = vst [vmem:[%s328] sm:$0xff] %v937
      %946 = vst [vmem:[%s328 + $0x8] sm:$0xff] %v938
      %947 = vst [vmem:[%s328 + $0x10] sm:$0xff] %v939
      %948 = vst [vmem:[%s328 + $0x18] sm:$0xff] %v940
      %949 = vst [vmem:[%s328 + $0x20] sm:$0xff] %v941
      %950 = vst [vmem:[%s328 + $0x28] sm:$0xff] %v942
      %951 = vst [vmem:[%s328 + $0x30] sm:$0xff] %v943
      %952 = vst [vmem:[%s328 + $0x38] sm:$0xff] %v944
      %s953 = smul.u32 8, %s22
      %p954 = scmp.lt.s32.totalorder %s21, 1
      %s955 = scalar_select %p954, %s21, 1
      %p956 = scmp.lt.s32.totalorder %s953, 7
      %s957 = scalar_select %p956, %s953, 7
      %s958 = smul.addr %s955, 8
      %s959 = sadd.s32 %s957, %s958
      %s960 = smul.addr %s959, 8
      %s961 = scalar_lea.vmem %s6, %s960
      // Predicated region
      $region45: #{fatnet_forward.15} parent=43 // pred_check
        %p962 = pneg %p189
      $region46: #{fatnet_forward.15} parent=43 // pred_check_branch
        %964 = sbr.rel (%p962) target = $region48
      $region47: #{fatnet_forward.15} parent=43 // pred_region
        %s965 = smul.u32 8, %s22
      $region48: #{fatnet_forward.15} parent=43 // pred_fallthru
        _
    $region44: #{fatnet_forward.15} parent=5 // pred_fallthru
      _
    %p966 = scmp.le.s32.totalorder 2, %s12
    // Predicated region
    $region49: #{fatnet_forward.15} parent=5 // pred_check
      %p967 = pneg %p966
    $region50: #{fatnet_forward.15} parent=5 // pred_check_branch
      %969 = sbr.rel (%p967) target = $region52
    $region51: #{fatnet_forward.15} parent=5 // pred_region
      %s970 = ssub.s32 %s12, 2
      // Predicated region
      $region53: #{fatnet_forward.15} parent=51 // pred_check
        %p971 = pneg %p195
      $region54: #{fatnet_forward.15} parent=51 // pred_check_branch
        %973 = sbr.rel (%p971) target = $region56
      $region55: #{fatnet_forward.15} parent=51 // pred_region
        %s974 = smul.u32 8, %s24
        %p975 = scmp.lt.s32.totalorder %s23, 1
        %s976 = scalar_select %p975, %s23, 1
        %p977 = scmp.lt.s32.totalorder %s974, 7
        %s978 = scalar_select %p977, %s974, 7
        %s979 = smul.addr %s976, 8
        %s980 = sadd.s32 %s978, %s979
        %s981 = smul.addr %s980, 8
        %s982 = scalar_lea.vmem %s6, %s981
      $region56: #{fatnet_forward.15} parent=51 // pred_fallthru
        _
    $region52: #{fatnet_forward.15} parent=5 // pred_fallthru
      _
  $region6: #{fatnet_forward.15} parent=0 // loop_footer
    %s16 = sadd.s32 1, %s12
  $region7: #{fatnet_forward.15} parent=0 // loop_footer_branch
    %11 = sbr.rel target = $region3
  $region8: #{fatnet_forward.15} parent=0 // loop_exit
    _

// kernel: fatnet_forward.16
$region0: #{fatnet_forward.16}
  #allocation0 [shape = 'u32[]', space=smem, size = 0x4, offset = 0x4, fixed_abs, tag = 'smem constant byte address 0x4 - core index']
  #allocation1 [shape = 'u32[72,128]{1,0:T(1,128)}', space=vmem, size = 0x9000, scoped, tag = 'internal scratch']
  %s0 = inlined_call_operand.vmem [shape: bf16[2,64,288], index: 0, kind: input, shape index: {}]
  %s1 = inlined_call_operand.vmem [shape: bf16[2,64,128], index: 1, kind: input, shape index: {}]
  %s2 = inlined_call_operand.vmem [shape: bf16[288,32], index: 2, kind: input, shape index: {}]
  %s3 = inlined_call_operand.vmem [shape: f32[1,32], index: 3, kind: input, shape index: {}]
  %s4 = inlined_call_operand.vmem [shape: bf16[32,32], index: 4, kind: input, shape index: {}]
  %s5 = inlined_call_operand.vmem [shape: f32[1,32], index: 5, kind: input, shape index: {}]
  %s6 = inlined_call_operand.vmem [shape: f32[2,64,128], index: 6, kind: output, shape index: {}]
  %s7 = sld [smem:[#allocation0]]
  $region57: #{fatnet_forward.16} parent=0
    _
  %s9 = ssub.s32 1, %s7
  %s10 = scalar_select 0, %s9, %s7
  loop: start=0, step=1, limit=4
  $region2: #{fatnet_forward.16} parent=0 // loop_pre_header
    _
  $region3: #{fatnet_forward.16} parent=0 // loop_header
    %s12 = sphi 0, %s16
    %p13 = scmp.ge.s32.totalorder %s12, 4
    %s19 = sphi 0, %s31
    %s20 = sphi 0, %s27
    %s21 = sphi 0, %s19
    %s22 = sphi 0, %s20
    %s23 = sphi 0, %s21
    %s24 = sphi 0, %s22
    %s36 = sphi 0, %s38
    %s39 = sphi 0, %s36
    %s40 = sphi 0, %s39
    %s56 = sphi 0, %s40
    %s64 = sphi 0, %s66
    %s67 = sphi 0, %s64
    %s68 = sphi 0, %s67
    %s84 = sphi 0, %s68
    %s88 = sphi 0, %s88
    %s90 = sphi 0, %s88
    %s91 = sphi 0, %s90
    %s105 = sphi 0, %s91
    %s109 = sphi 0, %s109
    %s111 = sphi 0, %s109
    %s112 = sphi 0, %s111
    %s126 = sphi 0, %s112
    %s130 = sphi 0, %s130
    %s132 = sphi 0, %s130
    %s133 = sphi 0, %s132
    %s147 = sphi 0, %s133
    %s151 = sphi 0, %s151
    %s153 = sphi 0, %s151
    %s154 = sphi 0, %s153
    %s168 = sphi 0, %s154
    %s176 = sphi 0, %s178
    %s179 = sphi 0, %s176
    %s180 = sphi 0, %s179
    %s196 = sphi 0, %s180
  $region4: #{fatnet_forward.16} parent=0 // loop_header_branch
    %15 = sbr.rel (%p13) target = $region8
  $region5: #{fatnet_forward.16} parent=0 // loop_body
    %s17 = ssub.s32 %s12, 1
    %s18 = ssub.s32 %s12, 2
    %s25 = sadd.s32 1, %s20
    %p26 = scmp.ge.s32.totalorder %s25, 1
    %s27 = scalar_select %p26, 0, %s25
    %s28 = sadd.s32 1, %s19
    %s29 = scalar_select %p26, %s28, %s19
    %p30 = scmp.ge.s32.totalorder %s29, 2
    %s31 = scalar_select %p30, 0, %s29
    %s32 = ssub.s32 %s19, %s31
    %s33 = ssub.s32 %s20, %s27
    %s34 = sor.u32 %s32, %s33
    %p35 = scmp.eq.s32.totalorder %s34, 0
    %s37 = sadd.s32 %s36, 1
    %s38 = scalar_select %p35, %s36, %s37
    %p41 = pneg %p35
    %p42 = scmp.eq.s32.totalorder %s12, 1
    %p43 = por %p41, %p42
    %p44 = scmp.ne.s32.totalorder %s36, %s39
    %p45 = scmp.eq.s32.totalorder %s12, 0
    %p46 = por %p44, %p45
    %p47 = scmp.ne.s32.totalorder %s36, %s39
    %p48 = scmp.eq.s32.totalorder %s17, 1
    %p49 = por %p47, %p48
    %p50 = scmp.ne.s32.totalorder %s39, %s40
    %p51 = scmp.eq.s32.totalorder %s17, 0
    %p52 = por %p50, %p51
    %p53 = scmp.ne.s32.totalorder %s39, %s40
    %p54 = scmp.eq.s32.totalorder %s18, 1
    %p55 = por %p53, %p54
    %p57 = scmp.ne.s32.totalorder %s40, %s56
    %p58 = scmp.eq.s32.totalorder %s18, 0
    %p59 = por %p57, %p58
    %s60 = ssub.s32 %s19, %s31
    %s61 = ssub.s32 %s20, %s27
    %s62 = sor.u32 %s60, %s61
    %p63 = scmp.eq.s32.totalorder %s62, 0
    %s65 = sadd.s32 %s64, 1
    %s66 = scalar_select %p63, %s64, %s65
    %p69 = pneg %p63
    %p70 = scmp.eq.s32.totalorder %s12, 1
    %p71 = por %p69, %p70
    %p72 = scmp.ne.s32.totalorder %s64, %s67
    %p73 = scmp.eq.s32.totalorder %s12, 0
    %p74 = por %p72, %p73
    %p75 = scmp.ne.s32.totalorder %s64, %s67
    %p76 = scmp.eq.s32.totalorder %s17, 1
    %p77 = por %p75, %p76
    %p78 = scmp.ne.s32.totalorder %s67, %s68
    %p79 = scmp.eq.s32.totalorder %s17, 0
    %p80 = por %p78, %p79
    %p81 = scmp.ne.s32.totalorder %s67, %s68
    %p82 = scmp.eq.s32.totalorder %s18, 1
    %p83 = por %p81, %p82
    %p85 = scmp.ne.s32.totalorder %s68, %s84
    %p86 = scmp.eq.s32.totalorder %s18, 0
    %p87 = por %p85, %p86
    %s89 = sadd.s32 %s88, 1
    %p92 = scmp.eq.s32.totalorder %s12, 1
    %p93 = scmp.ne.s32.totalorder %s88, %s90
    %p94 = scmp.eq.s32.totalorder %s12, 0
    %p95 = por %p93, %p94
    %p96 = scmp.ne.s32.totalorder %s88, %s90
    %p97 = scmp.eq.s32.totalorder %s17, 1
    %p98 = por %p96, %p97
    %p99 = scmp.ne.s32.totalorder %s90, %s91
    %p100 = scmp.eq.s32.totalorder %s17, 0
    %p101 = por %p99, %p100
    %p102 = scmp.ne.s32.totalorder %s90, %s91
    %p103 = scmp.eq.s32.totalorder %s18, 1
    %p104 = por %p102, %p103
    %p106 = scmp.ne.s32.totalorder %s91, %s105
    %p107 = scmp.eq.s32.totalorder %s18, 0
    %p108 = por %p106, %p107
    %s110 = sadd.s32 %s109, 1
    %p113 = scmp.eq.s32.totalorder %s12, 1
    %p114 = scmp.ne.s32.totalorder %s109, %s111
    %p115 = scmp.eq.s32.totalorder %s12, 0
    %p116 = por %p114, %p115
    %p117 = scmp.ne.s32.totalorder %s109, %s111
    %p118 = scmp.eq.s32.totalorder %s17, 1
    %p119 = por %p117, %p118
    %p120 = scmp.ne.s32.totalorder %s111, %s112
    %p121 = scmp.eq.s32.totalorder %s17, 0
    %p122 = por %p120, %p121
    %p123 = scmp.ne.s32.totalorder %s111, %s112
    %p124 = scmp.eq.s32.totalorder %s18, 1
    %p125 = por %p123, %p124
    %p127 = scmp.ne.s32.totalorder %s112, %s126
    %p128 = scmp.eq.s32.totalorder %s18, 0
    %p129 = por %p127, %p128
    %s131 = sadd.s32 %s130, 1
    %p134 = scmp.eq.s32.totalorder %s12, 1
    %p135 = scmp.ne.s32.totalorder %s130, %s132
    %p136 = scmp.eq.s32.totalorder %s12, 0
    %p137 = por %p135, %p136
    %p138 = scmp.ne.s32.totalorder %s130, %s132
    %p139 = scmp.eq.s32.totalorder %s17, 1
    %p140 = por %p138, %p139
    %p141 = scmp.ne.s32.totalorder %s132, %s133
    %p142 = scmp.eq.s32.totalorder %s17, 0
    %p143 = por %p141, %p142
    %p144 = scmp.ne.s32.totalorder %s132, %s133
    %p145 = scmp.eq.s32.totalorder %s18, 1
    %p146 = por %p144, %p145
    %p148 = scmp.ne.s32.totalorder %s133, %s147
    %p149 = scmp.eq.s32.totalorder %s18, 0
    %p150 = por %p148, %p149
    %s152 = sadd.s32 %s151, 1
    %p155 = scmp.eq.s32.totalorder %s12, 1
    %p156 = scmp.ne.s32.totalorder %s151, %s153
    %p157 = scmp.eq.s32.totalorder %s12, 0
    %p158 = por %p156, %p157
    %p159 = scmp.ne.s32.totalorder %s151, %s153
    %p160 = scmp.eq.s32.totalorder %s17, 1
    %p161 = por %p159, %p160
    %p162 = scmp.ne.s32.totalorder %s153, %s154
    %p163 = scmp.eq.s32.totalorder %s17, 0
    %p164 = por %p162, %p163
    %p165 = scmp.ne.s32.totalorder %s153, %s154
    %p166 = scmp.eq.s32.totalorder %s18, 1
    %p167 = por %p165, %p166
    %p169 = scmp.ne.s32.totalorder %s154, %s168
    %p170 = scmp.eq.s32.totalorder %s18, 0
    %p171 = por %p169, %p170
    %s172 = ssub.s32 %s19, %s31
    %s173 = ssub.s32 %s20, %s27
    %s174 = sor.u32 %s172, %s173
    %p175 = scmp.eq.s32.totalorder %s174, 0
    %s177 = sadd.s32 %s176, 1
    %s178 = scalar_select %p175, %s176, %s177
    %p181 = pneg %p175
    %p182 = scmp.eq.s32.totalorder %s12, 1
    %p183 = por %p181, %p182
    %p184 = scmp.ne.s32.totalorder %s176, %s179
    %p185 = scmp.eq.s32.totalorder %s12, 0
    %p186 = por %p184, %p185
    %p187 = scmp.ne.s32.totalorder %s176, %s179
    %p188 = scmp.eq.s32.totalorder %s17, 1
    %p189 = por %p187, %p188
    %p190 = scmp.ne.s32.totalorder %s179, %s180
    %p191 = scmp.eq.s32.totalorder %s17, 0
    %p192 = por %p190, %p191
    %p193 = scmp.ne.s32.totalorder %s179, %s180
    %p194 = scmp.eq.s32.totalorder %s18, 1
    %p195 = por %p193, %p194
    %p197 = scmp.ne.s32.totalorder %s180, %s196
    %p198 = scmp.eq.s32.totalorder %s18, 0
    %p199 = por %p197, %p198
    %p200 = scmp.le.s32.totalorder 1, %s12
    %p201 = scmp.lt.s32.totalorder %s12, 3
    %p202 = pnand %p200, %p201
    %p203 = pneg %p202
    // Predicated region
    $region9: #{fatnet_forward.16} parent=5 // pred_check
      _
    $region10: #{fatnet_forward.16} parent=5 // pred_check_branch
      %205 = sbr.rel (%p202) target = $region12
    $region11: #{fatnet_forward.16} parent=5 // pred_region
      %s206 = ssub.s32 %s12, 1
      // Predicated region
      $region13: #{fatnet_forward.16} parent=11 // pred_check
        %p207 = pneg %p101
      $region14: #{fatnet_forward.16} parent=11 // pred_check_branch
        %209 = sbr.rel (%p207) target = $region16
      $region15: #{fatnet_forward.16} parent=11 // pred_region
        _
      $region16: #{fatnet_forward.16} parent=11 // pred_fallthru
        _
      // Predicated region
      $region17: #{fatnet_forward.16} parent=11 // pred_check
        %p210 = pneg %p122
      $region18: #{fatnet_forward.16} parent=11 // pred_check_branch
        %212 = sbr.rel (%p210) target = $region20
      $region19: #{fatnet_forward.16} parent=11 // pred_region
        _
      $region20: #{fatnet_forward.16} parent=11 // pred_fallthru
        _
      // Predicated region
      $region21: #{fatnet_forward.16} parent=11 // pred_check
        %p213 = pneg %p143
      $region22: #{fatnet_forward.16} parent=11 // pred_check_branch
        %215 = sbr.rel (%p213) target = $region24
      $region23: #{fatnet_forward.16} parent=11 // pred_region
        _
      $region24: #{fatnet_forward.16} parent=11 // pred_fallthru
        _
      // Predicated region
      $region25: #{fatnet_forward.16} parent=11 // pred_check
        %p216 = pneg %p164
      $region26: #{fatnet_forward.16} parent=11 // pred_check_branch
        %218 = sbr.rel (%p216) target = $region28
      $region27: #{fatnet_forward.16} parent=11 // pred_region
        _
      $region28: #{fatnet_forward.16} parent=11 // pred_fallthru
        _
    $region12: #{fatnet_forward.16} parent=5 // pred_fallthru
      _
    %p219 = scmp.lt.s32.totalorder %s12, 2
    // Predicated region
    $region29: #{fatnet_forward.16} parent=5 // pred_check
      %p220 = pneg %p219
    $region30: #{fatnet_forward.16} parent=5 // pred_check_branch
      %222 = sbr.rel (%p220) target = $region32
    $region31: #{fatnet_forward.16} parent=5 // pred_region
      // Predicated region
      $region33: #{fatnet_forward.16} parent=31 // pred_check
        %p223 = pneg %p46
      $region34: #{fatnet_forward.16} parent=31 // pred_check_branch
        %225 = sbr.rel (%p223) target = $region36
      $region35: #{fatnet_forward.16} parent=31 // pred_region
        %s226 = smul.u32 8, %s20
        %p227 = scmp.lt.s32.totalorder %s19, 1
        %s228 = scalar_select %p227, %s19, 1
        %p229 = scmp.lt.s32.totalorder %s226, 7
        %s230 = scalar_select %p229, %s226, 7
        %s231 = smul.addr %s230, 3
        %s232 = smul.addr %s228, 24
        %s233 = sadd.s32 %s231, %s232
        %s234 = smul.addr %s233, 4
        %s235 = scalar_lea.vmem %s0, %s234
        %s236 = smul.u32 8, %s20
      $region36: #{fatnet_forward.16} parent=31 // pred_fallthru
        _
      // Predicated region
      $region37: #{fatnet_forward.16} parent=31 // pred_check
        %p237 = pneg %p74
      $region38: #{fatnet_forward.16} parent=31 // pred_check_branch
        %239 = sbr.rel (%p237) target = $region40
      $region39: #{fatnet_forward.16} parent=31 // pred_region
        %s240 = smul.u32 8, %s20
        %p241 = scmp.lt.s32.totalorder %s19, 1
        %s242 = scalar_select %p241, %s19, 1
        %p243 = scmp.lt.s32.totalorder %s240, 7
        %s244 = scalar_select %p243, %s240, 7
        %s245 = smul.addr %s242, 8
        %s246 = sadd.s32 %s244, %s245
        %s247 = smul.addr %s246, 4
        %s248 = scalar_lea.vmem %s1, %s247
        %s249 = smul.u32 8, %s20
      $region40: #{fatnet_forward.16} parent=31 // pred_fallthru
        _
    $region32: #{fatnet_forward.16} parent=5 // pred_fallthru
      _
    %p250 = scmp.le.s32.totalorder 1, %s12
    %p251 = scmp.lt.s32.totalorder %s12, 3
    %p252 = pnand %p250, %p251
    %p253 = pneg %p252
    // Predicated region
    $region41: #{fatnet_forward.16} parent=5 // pred_check
      _
    $region42: #{fatnet_forward.16} parent=5 // pred_check_branch
      %255 = sbr.rel (%p252) target = $region44
    $region43: #{fatnet_forward.16} parent=5 // pred_region
      %s256 = ssub.s32 %s12, 1
      %s257 = smul.u32 8, %s22
      %p258 = scmp.lt.s32.totalorder %s21, 1
      %s259 = scalar_select %p258, %s21, 1
      %p260 = scmp.lt.s32.totalorder %s257, 7
      %s261 = scalar_select %p260, %s257, 7
      %s262 = smul.addr %s261, 3
      %s263 = smul.addr %s259, 24
      %s264 = sadd.s32 %s262, %s263
      %s265 = smul.addr %s264, 4
      %s266 = scalar_lea.vmem %s0, %s265
      %p267 = pneg %p52
      %p268 = pneg %p49
      %s269 = smul.u32 8, %s22
      %p270 = scmp.lt.s32.totalorder %s21, 1
      %s271 = scalar_select %p270, %s21, 1
      %p272 = scmp.lt.s32.totalorder %s269, 7
      %s273 = scalar_select %p272, %s269, 7
      %s274 = smul.addr %s271, 8
      %s275 = sadd.s32 %s273, %s274
      %s276 = smul.addr %s275, 4
      %s277 = scalar_lea.vmem %s1, %s276
      %p278 = pneg %p80
      %p279 = pneg %p77
      %p280 = pneg %p101
      %p281 = pneg %p98
      %p282 = pneg %p122
      %p283 = pneg %p119
      %p284 = pneg %p143
      %p285 = pneg %p140
      %p286 = pneg %p164
      %p287 = pneg %p161
      %p288 = pneg %p192
      %p289 = pneg %p189
      %s290 = smul.u32 8, %s22
      %p291 = scmp.lt.s32.totalorder %s21, 1
      %s292 = scalar_select %p291, %s21, 1
      %p293 = scmp.lt.s32.totalorder %s290, 7
      %s294 = scalar_select %p293, %s290, 7
      %s295 = smul.addr %s292, 8
      %s296 = sadd.s32 %s294, %s295
      %s297 = smul.addr %s296, 8
      %s298 = scalar_lea.vmem %s6, %s297
      %s299 = smul.u32 8, %s22
      %p300 = scmp.lt.s32.totalorder %s21, 1
      %s301 = scalar_select %p300, %s21, 1
      %p302 = scmp.lt.s32.totalorder %s299, 7
      %s303 = scalar_select %p302, %s299, 7
      %s304 = smul.addr %s303, 3
      %s305 = smul.addr %s301, 24
      %s306 = sadd.s32 %s304, %s305
      %s307 = smul.addr %s306, 4
      %s308 = scalar_lea.vmem %s0, %s307
      %s309 = smul.u32 8, %s22
      %s310 = smul.u32 8, %s22
      %p311 = scmp.lt.s32.totalorder %s21, 1
      %s312 = scalar_select %p311, %s21, 1
      %p313 = scmp.lt.s32.totalorder %s310, 7
      %s314 = scalar_select %p313, %s310, 7
      %s315 = smul.addr %s312, 8
      %s316 = sadd.s32 %s314, %s315
      %s317 = smul.addr %s316, 4
      %s318 = scalar_lea.vmem %s1, %s317
      %s319 = smul.u32 8, %s22
      %s320 = smul.u32 8, %s22
      %p321 = scmp.lt.s32.totalorder %s21, 1
      %s322 = scalar_select %p321, %s21, 1
      %p323 = scmp.lt.s32.totalorder %s320, 7
      %s324 = scalar_select %p323, %s320, 7
      %s325 = smul.addr %s322, 8
      %s326 = sadd.s32 %s324, %s325
      %s327 = smul.addr %s326, 8
      %s328 = scalar_lea.vmem %s6, %s327
      %s329 = smul.u32 8, %s22
      %v331 = vld [vmem:[%s308] sm:$0xff]
      %v332 = vld [vmem:[%s308 + $0x8] sm:$0xf]
      %v333 = vld [vmem:[%s308 + $0xc] sm:$0xff]
      %v334 = vld [vmem:[%s308 + $0x14] sm:$0xf]
      %v335 = vld [vmem:[%s308 + $0x18] sm:$0xff]
      %v336 = vld [vmem:[%s308 + $0x20] sm:$0xf]
      %v337 = vld [vmem:[%s308 + $0x24] sm:$0xff]
      %v338 = vld [vmem:[%s308 + $0x2c] sm:$0xf]
      %v339 = vld [vmem:[%s308 + $0x30] sm:$0xff]
      %v340 = vld [vmem:[%s308 + $0x38] sm:$0xf]
      %v341 = vld [vmem:[%s308 + $0x3c] sm:$0xff]
      %v342 = vld [vmem:[%s308 + $0x44] sm:$0xf]
      %v343 = vld [vmem:[%s308 + $0x48] sm:$0xff]
      %v344 = vld [vmem:[%s308 + $0x50] sm:$0xf]
      %v345 = vld [vmem:[%s308 + $0x54] sm:$0xff]
      %v346 = vld [vmem:[%s308 + $0x5c] sm:$0xf]
      %v347 = vld [vmem:[%s2] sm:$0xf]
      %v348 = vld [vmem:[%s2 + $0x4] sm:$0xf]
      %v349 = vld [vmem:[%s2 + $0x8] sm:$0xf]
      %v350 = vld [vmem:[%s2 + $0xc] sm:$0xf]
      %v351 = vld [vmem:[%s2 + $0x10] sm:$0xf]
      %v352 = vld [vmem:[%s2 + $0x14] sm:$0xf]
      %v353 = vld [vmem:[%s2 + $0x18] sm:$0xf]
      %v354 = vld [vmem:[%s2 + $0x1c] sm:$0xf]
      %v355 = vld [vmem:[%s2 + $0x20] sm:$0xf]
      %v356 = vld [vmem:[%s2 + $0x24] sm:$0xf]
      %v357 = vld [vmem:[%s2 + $0x28] sm:$0xf]
      %v358 = vld [vmem:[%s2 + $0x2c] sm:$0xf]
      %v359 = vld [vmem:[%s2 + $0x30] sm:$0xf]
      %v360 = vld [vmem:[%s2 + $0x34] sm:$0xf]
      %v361 = vld [vmem:[%s2 + $0x38] sm:$0xf]
      %v362 = vld [vmem:[%s2 + $0x3c] sm:$0xf]
      %v363 = vld [vmem:[%s2 + $0x40] sm:$0xf]
      %v364 = vld [vmem:[%s2 + $0x44] sm:$0xf]
      %v365 = vld [vmem:[%s2 + $0x48] sm:$0xf]
      %v366 = vld [vmem:[%s2 + $0x4c] sm:$0xf]
      %v367 = vld [vmem:[%s2 + $0x50] sm:$0xf]
      %v368 = vld [vmem:[%s2 + $0x54] sm:$0xf]
      %v369 = vld [vmem:[%s2 + $0x58] sm:$0xf]
      %v370 = vld [vmem:[%s2 + $0x5c] sm:$0xf]
      %v371 = vld [vmem:[%s2 + $0x60] sm:$0xf]
      %v372 = vld [vmem:[%s2 + $0x64] sm:$0xf]
      %v373 = vld [vmem:[%s2 + $0x68] sm:$0xf]
      %v374 = vld [vmem:[%s2 + $0x6c] sm:$0xf]
      %v375 = vld [vmem:[%s2 + $0x70] sm:$0xf]
      %v376 = vld [vmem:[%s2 + $0x74] sm:$0xf]
      %v377 = vld [vmem:[%s2 + $0x78] sm:$0xf]
      %v378 = vld [vmem:[%s2 + $0x7c] sm:$0xf]
      %v379 = vld [vmem:[%s2 + $0x80] sm:$0xf]
      %v380 = vld [vmem:[%s2 + $0x84] sm:$0xf]
      %v381 = vld [vmem:[%s2 + $0x88] sm:$0xf]
      %v382 = vld [vmem:[%s2 + $0x8c] sm:$0xf]
      %v383 = vld [vmem:[%s3] sm:$0x1]
      %v385 = vperm.slane %v383, 0
      %v403 = vunpack.c.l.b16 %v331
      %v404 = vunpack.c.h.b16 %v331
      %v405 = vunpack.c.l.b16 %v332
      %v406 = vunpack.c.l.b16 %v333
      %v407 = vunpack.c.h.b16 %v333
      %v408 = vunpack.c.l.b16 %v334
      %v409 = vunpack.c.l.b16 %v335
      %v410 = vunpack.c.h.b16 %v335
      %v411 = vunpack.c.l.b16 %v336
      %v412 = vunpack.c.l.b16 %v337
      %v413 = vunpack.c.h.b16 %v337
      %v414 = vunpack.c.l.b16 %v338
      %v415 = vunpack.c.l.b16 %v339
      %v416 = vunpack.c.h.b16 %v339
      %v417 = vunpack.c.l.b16 %v340
      %v418 = vunpack.c.l.b16 %v341
      %v419 = vunpack.c.h.b16 %v341
      %v420 = vunpack.c.l.b16 %v342
      %v421 = vunpack.c.l.b16 %v343
      %v422 = vunpack.c.h.b16 %v343
      %v423 = vunpack.c.l.b16 %v344
      %v424 = vunpack.c.l.b16 %v345
      %v425 = vunpack.c.h.b16 %v345
      %v426 = vunpack.c.l.b16 %v346
      %v427 = vpack.c.b16 %v406, %v403
      %v428 = vpack.c.b16 %v407, %v404
      %v429 = vpack.c.b16 %v408, %v405
      %v430 = vpack.c.b16 %v412, %v409
      %v431 = vpack.c.b16 %v413, %v410
      %v432 = vpack.c.b16 %v414, %v411
      %v433 = vpack.c.b16 %v418, %v415
      %v434 = vpack.c.b16 %v419, %v416
      %v435 = vpack.c.b16 %v420, %v417
      %v436 = vpack.c.b16 %v424, %v421
      %v437 = vpack.c.b16 %v425, %v422
      %v438 = vpack.c.b16 %v426, %v423
      %v483 = vunpack.c.l.b16 %v347
      %v484 = vunpack.c.l.b16 %v348
      %v485 = vunpack.c.l.b16 %v349
      %v486 = vunpack.c.l.b16 %v350
      %v487 = vunpack.c.l.b16 %v351
      %v488 = vunpack.c.l.b16 %v352
      %v489 = vunpack.c.l.b16 %v353
      %v490 = vunpack.c.l.b16 %v354
      %v491 = vunpack.c.l.b16 %v355
      %v492 = vunpack.c.l.b16 %v356
      %v493 = vunpack.c.l.b16 %v357
      %v494 = vunpack.c.l.b16 %v358
      %v495 = vunpack.c.l.b16 %v359
      %v496 = vunpack.c.l.b16 %v360
      %v497 = vunpack.c.l.b16 %v361
      %v498 = vunpack.c.l.b16 %v362
      %v499 = vunpack.c.l.b16 %v363
      %v500 = vunpack.c.l.b16 %v364
      %v501 = vunpack.c.l.b16 %v365
      %v502 = vunpack.c.l.b16 %v366
      %v503 = vunpack.c.l.b16 %v367
      %v504 = vunpack.c.l.b16 %v368
      %v505 = vunpack.c.l.b16 %v369
      %v506 = vunpack.c.l.b16 %v370
      %v507 = vunpack.c.l.b16 %v371
      %v508 = vunpack.c.l.b16 %v372
      %v509 = vunpack.c.l.b16 %v373
      %v510 = vunpack.c.l.b16 %v374
      %v511 = vunpack.c.l.b16 %v375
      %v512 = vunpack.c.l.b16 %v376
      %v513 = vunpack.c.l.b16 %v377
      %v514 = vunpack.c.l.b16 %v378
      %v515 = vunpack.c.l.b16 %v379
      %v516 = vunpack.c.l.b16 %v380
      %v517 = vunpack.c.l.b16 %v381
      %v518 = vunpack.c.l.b16 %v382
      %v519 = vpack.c.b16 %v484, %v483
      %v520 = vpack.c.b16 %v486, %v485
      %v521 = vpack.c.b16 %v488, %v487
      %v522 = vpack.c.b16 %v490, %v489
      %v523 = vpack.c.b16 %v492, %v491
      %v524 = vpack.c.b16 %v494, %v493
      %v525 = vpack.c.b16 %v496, %v495
      %v526 = vpack.c.b16 %v498, %v497
      %v527 = vpack.c.b16 %v500, %v499
      %v528 = vpack.c.b16 %v502, %v501
      %v529 = vpack.c.b16 %v504, %v503
      %v530 = vpack.c.b16 %v506, %v505
      %v531 = vpack.c.b16 %v508, %v507
      %v532 = vpack.c.b16 %v510, %v509
      %v533 = vpack.c.b16 %v512, %v511
      %v534 = vpack.c.b16 %v514, %v513
      %v535 = vpack.c.b16 %v516, %v515
      %v536 = vpack.c.b16 %v518, %v517
      %vm555 = vcmask 261120
      %v557 = vsel %vm555, %v429, 0
      %v560 = vsel %vm555, %v432, 0
      %v563 = vsel %vm555, %v435, 0
      %v566 = vsel %vm555, %v438, 0
      %568 = vmatpush.bf16.msra.mxu0 %v526
      %569 = vmatpush.bf16.msra.mxu0 %v525
      %570 = vmatpush.bf16.msra.mxu0 %v524
      %571 = vmatpush.bf16.msra.mxu0 %v523
      %572 = vmatpush.bf16.msra.mxu0 %v522
      %573 = vmatpush.bf16.msra.mxu0 %v521
      %574 = vmatpush.bf16.msra.mxu0 %v520
      %575 = vmatpush.bf16.msra.mxu0 %v519
      %576 = vmatmul.bf16.gmra.mxu0 %v427
      %v577 = vpop.f32.mrf.mxu0
      %v578 = vadd.f32 %v385, %v577
      %v579 = vpop.f32.mrf.mxu0
      %v580 = vadd.f32 %v385, %v579
      %581 = vmatmul.bf16.gmra.mxu0 %v430
      %v582 = vpop.f32.mrf.mxu0
      %v583 = vadd.f32 %v385, %v582
      %v584 = vpop.f32.mrf.mxu0
      %v585 = vadd.f32 %v385, %v584
      %586 = vmatmul.bf16.gmra.mxu0 %v433
      %v587 = vpop.f32.mrf.mxu0
      %v588 = vadd.f32 %v385, %v587
      %v589 = vpop.f32.mrf.mxu0
      %v590 = vadd.f32 %v385, %v589
      %591 = vmatmul.bf16.gmra.mxu0 %v436
      %v592 = vpop.f32.mrf.mxu0
      %v593 = vadd.f32 %v385, %v592
      %v594 = vpop.f32.mrf.mxu0
      %v595 = vadd.f32 %v385, %v594
      %596 = vdwg.mxu0
      %597 = vmatpush.bf16.msra.mxu0 %v534
      %598 = vmatpush.bf16.msra.mxu0 %v533
      %599 = vmatpush.bf16.msra.mxu0 %v532
      %600 = vmatpush.bf16.msra.mxu0 %v531
      %601 = vmatpush.bf16.msra.mxu0 %v530
      %602 = vmatpush.bf16.msra.mxu0 %v529
      %603 = vmatpush.bf16.msra.mxu0 %v528
      %604 = vmatpush.bf16.msra.mxu0 %v527
      %605 = vmatmul.bf16.gmra.mxu0 %v428
      %v606 = vpop.f32.mrf.mxu0
      %v607 = vadd.f32 %v578, %v606
      %v608 = vpop.f32.mrf.mxu0
      %v609 = vadd.f32 %v580, %v608
      %610 = vmatmul.bf16.gmra.mxu0 %v431
      %v611 = vpop.f32.mrf.mxu0
      %v612 = vadd.f32 %v583, %v611
      %v613 = vpop.f32.mrf.mxu0
      %v614 = vadd.f32 %v585, %v613
      %615 = vmatmul.bf16.gmra.mxu0 %v434
      %v616 = vpop.f32.mrf.mxu0
      %v617 = vadd.f32 %v588, %v616
      %v618 = vpop.f32.mrf.mxu0
      %v619 = vadd.f32 %v590, %v618
      %620 = vmatmul.bf16.gmra.mxu0 %v437
      %v621 = vpop.f32.mrf.mxu0
      %v622 = vadd.f32 %v593, %v621
      %v623 = vpop.f32.mrf.mxu0
      %v624 = vadd.f32 %v595, %v623
      %625 = vdwg.mxu0
      %626 = vmatpush.bf16.msra.mxu0 0
      %627 = vmatpush.bf16.msra.mxu0 0
      %628 = vmatpush.bf16.msra.mxu0 0
      %629 = vmatpush.bf16.msra.mxu0 0
      %630 = vmatpush.bf16.msra.mxu0 0
      %631 = vmatpush.bf16.msra.mxu0 0
      %632 = vmatpush.bf16.msra.mxu0 %v536
      %633 = vmatpush.bf16.msra.mxu0 %v535
      %634 = vmatmul.bf16.gmra.mxu0 %v557
      %v635 = vpop.f32.mrf.mxu0
      %v636 = vadd.f32 %v607, %v635
      %v637 = vpop.f32.mrf.mxu0
      %v638 = vadd.f32 %v609, %v637
      %639 = vmatmul.bf16.gmra.mxu0 %v560
      %v640 = vpop.f32.mrf.mxu0
      %v641 = vadd.f32 %v612, %v640
      %v642 = vpop.f32.mrf.mxu0
      %v643 = vadd.f32 %v614, %v642
      %644 = vmatmul.bf16.gmra.mxu0 %v563
      %v645 = vpop.f32.mrf.mxu0
      %v646 = vadd.f32 %v617, %v645
      %v647 = vpop.f32.mrf.mxu0
      %v648 = vadd.f32 %v619, %v647
      %649 = vmatmul.bf16.gmra.mxu0 %v566
      %v650 = vpop.f32.mrf.mxu0
      %v651 = vadd.f32 %v622, %v650
      %v652 = vpop.f32.mrf.mxu0
      %v653 = vadd.f32 %v624, %v652
      %654 = vdwg.mxu0
      %v655 = vmax.f32 %v636, 0.0
      %v656 = vmax.f32 %v638, 0.0
      %v657 = vmax.f32 %v641, 0.0
      %v658 = vmax.f32 %v643, 0.0
      %v659 = vmax.f32 %v646, 0.0
      %v660 = vmax.f32 %v648, 0.0
      %v661 = vmax.f32 %v651, 0.0
      %v662 = vmax.f32 %v653, 0.0
      %v663 = vld [vmem:[%s318] sm:$0xf]
      %v664 = vld [vmem:[%s318 + $0x4] sm:$0xf]
      %v665 = vld [vmem:[%s318 + $0x8] sm:$0xf]
      %v666 = vld [vmem:[%s318 + $0xc] sm:$0xf]
      %v667 = vld [vmem:[%s318 + $0x10] sm:$0xf]
      %v668 = vld [vmem:[%s318 + $0x14] sm:$0xf]
      %v669 = vld [vmem:[%s318 + $0x18] sm:$0xf]
      %v670 = vld [vmem:[%s318 + $0x1c] sm:$0xf]
      %v671 = vld [vmem:[%s4] sm:$0xf]
      %v672 = vld [vmem:[%s4 + $0x4] sm:$0xf]
      %v673 = vld [vmem:[%s4 + $0x8] sm:$0xf]
      %v674 = vld [vmem:[%s4 + $0xc] sm:$0xf]
      %v675 = vld [vmem:[%s5] sm:$0x1]
      %v677 = vperm.slane %v675, 0
      %v687 = vunpack.c.l.b16 %v663
      %v688 = vunpack.c.l.b16 %v664
      %v689 = vunpack.c.l.b16 %v665
      %v690 = vunpack.c.l.b16 %v666
      %v691 = vunpack.c.l.b16 %v667
      %v692 = vunpack.c.l.b16 %v668
      %v693 = vunpack.c.l.b16 %v669
      %v694 = vunpack.c.l.b16 %v670
      %v695 = vpack.c.b16 %v688, %v687
      %v696 = vpack.c.b16 %v690, %v689
      %v697 = vpack.c.b16 %v692, %v691
      %v698 = vpack.c.b16 %v694, %v693
      %v703 = vunpack.c.l.b16 %v671
      %v704 = vunpack.c.l.b16 %v672
      %v705 = vunpack.c.l.b16 %v673
      %v706 = vunpack.c.l.b16 %v674
      %v707 = vpack.c.b16 %v704, %v703
      %v708 = vpack.c.b16 %v706, %v705
      %v712 = vsel %vm555, %v695, 0
      %v715 = vsel %vm555, %v696, 0
      %v718 = vsel %vm555, %v697, 0
      %v721 = vsel %vm555, %v698, 0
      %723 = vmatpush.bf16.msra.mxu0 0
      %724 = vmatpush.bf16.msra.mxu0 0
      %725 = vmatpush.bf16.msra.mxu0 0
      %726 = vmatpush.bf16.msra.mxu0 0
      %727 = vmatpush.bf16.msra.mxu0 0
      %728 = vmatpush.bf16.msra.mxu0 0
      %729 = vmatpush.bf16.msra.mxu0 %v708
      %730 = vmatpush.bf16.msra.mxu0 %v707
      %731 = vmatmul.bf16.gmra.mxu0 %v712
      %v732 = vpop.f32.mrf.mxu0
      %v733 = vadd.f32 %v677, %v732
      %v734 = vpop.f32.mrf.mxu0
      %v735 = vadd.f32 %v677, %v734
      %736 = vmatmul.bf16.gmra.mxu0 %v715
      %v737 = vpop.f32.mrf.mxu0
      %v738 = vadd.f32 %v677, %v737
      %v739 = vpop.f32.mrf.mxu0
      %v740 = vadd.f32 %v677, %v739
      %741 = vmatmul.bf16.gmra.mxu0 %v718
      %v742 = vpop.f32.mrf.mxu0
      %v743 = vadd.f32 %v677, %v742
      %v744 = vpop.f32.mrf.mxu0
      %v745 = vadd.f32 %v677, %v744
      %746 = vmatmul.bf16.gmra.mxu0 %v721
      %v747 = vpop.f32.mrf.mxu0
      %v748 = vadd.f32 %v677, %v747
      %v749 = vpop.f32.mrf.mxu0
      %v750 = vadd.f32 %v677, %v749
      %751 = vdwg.mxu0
      %v752 = vmax.f32 %v733, 0.0
      %v753 = vmax.f32 %v735, 0.0
      %v754 = vmax.f32 %v738, 0.0
      %v755 = vmax.f32 %v740, 0.0
      %v756 = vmax.f32 %v743, 0.0
      %v757 = vmax.f32 %v745, 0.0
      %v758 = vmax.f32 %v748, 0.0
      %v759 = vmax.f32 %v750, 0.0
      %v760 = vadd.f32 %v655, %v752
      %v761 = vadd.f32 %v656, %v753
      %v762 = vadd.f32 %v657, %v754
      %v763 = vadd.f32 %v658, %v755
      %v764 = vadd.f32 %v659, %v756
      %v765 = vadd.f32 %v660, %v757
      %v766 = vadd.f32 %v661, %v758
      %v767 = vadd.f32 %v662, %v759
      %768 = vrot.lane.b32.xlu0 %v695, 96
      %v769 = vpop.permute.xlu0 %768
      %770 = vrot.lane.b32.xlu0 %v696, 96
      %v771 = vpop.permute.xlu0 %770
      %772 = vrot.lane.b32.xlu0 %v697, 96
      %v773 = vpop.permute.xlu0 %772
      %774 = vrot.lane.b32.xlu0 %v698, 96
      %v775 = vpop.permute.xlu0 %774
      %v777 = vsel %vm555, %v769, 0
      %v780 = vsel %vm555, %v771, 0
      %v783 = vsel %vm555, %v773, 0
      %v786 = vsel %vm555, %v775, 0
      %788 = vmatpush.bf16.msra.mxu0 0
      %789 = vmatpush.bf16.msra.mxu0 0
      %790 = vmatpush.bf16.msra.mxu0 0
      %791 = vmatpush.bf16.msra.mxu0 0
      %792 = vmatpush.bf16.msra.mxu0 0
      %793 = vmatpush.bf16.msra.mxu0 0
      %794 = vmatpush.bf16.msra.mxu0 %v708
      %795 = vmatpush.bf16.msra.mxu0 %v707
      %796 = vmatmul.bf16.gmra.mxu0 %v777
      %v797 = vpop.f32.mrf.mxu0
      %v798 = vadd.f32 %v677, %v797
      %v799 = vpop.f32.mrf.mxu0
      %v800 = vadd.f32 %v677, %v799
      %801 = vmatmul.bf16.gmra.mxu0 %v780
      %v802 = vpop.f32.mrf.mxu0
      %v803 = vadd.f32 %v677, %v802
      %v804 = vpop.f32.mrf.mxu0
      %v805 = vadd.f32 %v677, %v804
      %806 = vmatmul.bf16.gmra.mxu0 %v783
      %v807 = vpop.f32.mrf.mxu0
      %v808 = vadd.f32 %v677, %v807
      %v809 = vpop.f32.mrf.mxu0
      %v810 = vadd.f32 %v677, %v809
      %811 = vmatmul.bf16.gmra.mxu0 %v786
      %v812 = vpop.f32.mrf.mxu0
      %v813 = vadd.f32 %v677, %v812
      %v814 = vpop.f32.mrf.mxu0
      %v815 = vadd.f32 %v677, %v814
      %816 = vdwg.mxu0
      %v817 = vmax.f32 %v798, 0.0
      %v818 = vmax.f32 %v800, 0.0
      %v819 = vmax.f32 %v803, 0.0
      %v820 = vmax.f32 %v805, 0.0
      %v821 = vmax.f32 %v808, 0.0
      %v822 = vmax.f32 %v810, 0.0
      %v823 = vmax.f32 %v813, 0.0
      %v824 = vmax.f32 %v815, 0.0
      %v825 = vadd.f32 %v655, %v817
      %v826 = vadd.f32 %v656, %v818
      %v827 = vadd.f32 %v657, %v819
      %v828 = vadd.f32 %v658, %v820
      %v829 = vadd.f32 %v659, %v821
      %v830 = vadd.f32 %v660, %v822
      %v831 = vadd.f32 %v661, %v823
      %v832 = vadd.f32 %v662, %v824
      %833 = vrot.lane.b32.xlu0 %v695, 64
      %v834 = vpop.permute.xlu0 %833
      %835 = vrot.lane.b32.xlu0 %v696, 64
      %v836 = vpop.permute.xlu0 %835
      %837 = vrot.lane.b32.xlu0 %v697, 64
      %v838 = vpop.permute.xlu0 %837
      %839 = vrot.lane.b32.xlu0 %v698, 64
      %v840 = vpop.permute.xlu0 %839
      %v842 = vsel %vm555, %v834, 0
      %v845 = vsel %vm555, %v836, 0
      %v848 = vsel %vm555, %v838, 0
      %v851 = vsel %vm555, %v840, 0
      %853 = vmatpush.bf16.msra.mxu0 0
      %854 = vmatpush.bf16.msra.mxu0 0
      %855 = vmatpush.bf16.msra.mxu0 0
      %856 = vmatpush.bf16.msra.mxu0 0
      %857 = vmatpush.bf16.msra.mxu0 0
      %858 = vmatpush.bf16.msra.mxu0 0
      %859 = vmatpush.bf16.msra.mxu0 %v708
      %860 = vmatpush.bf16.msra.mxu0 %v707
      %861 = vmatmul.bf16.gmra.mxu0 %v842
      %v862 = vpop.f32.mrf.mxu0
      %v863 = vadd.f32 %v677, %v862
      %v864 = vpop.f32.mrf.mxu0
      %v865 = vadd.f32 %v677, %v864
      %866 = vmatmul.bf16.gmra.mxu0 %v845
      %v867 = vpop.f32.mrf.mxu0
      %v868 = vadd.f32 %v677, %v867
      %v869 = vpop.f32.mrf.mxu0
      %v870 = vadd.f32 %v677, %v869
      %871 = vmatmul.bf16.gmra.mxu0 %v848
      %v872 = vpop.f32.mrf.mxu0
      %v873 = vadd.f32 %v677, %v872
      %v874 = vpop.f32.mrf.mxu0
      %v875 = vadd.f32 %v677, %v874
      %876 = vmatmul.bf16.gmra.mxu0 %v851
      %v877 = vpop.f32.mrf.mxu0
      %v878 = vadd.f32 %v677, %v877
      %v879 = vpop.f32.mrf.mxu0
      %v880 = vadd.f32 %v677, %v879
      %881 = vdwg.mxu0
      %v882 = vmax.f32 %v863, 0.0
      %v883 = vmax.f32 %v865, 0.0
      %v884 = vmax.f32 %v868, 0.0
      %v885 = vmax.f32 %v870, 0.0
      %v886 = vmax.f32 %v873, 0.0
      %v887 = vmax.f32 %v875, 0.0
      %v888 = vmax.f32 %v878, 0.0
      %v889 = vmax.f32 %v880, 0.0
      %v890 = vadd.f32 %v655, %v882
      %v891 = vadd.f32 %v656, %v883
      %v892 = vadd.f32 %v657, %v884
      %v893 = vadd.f32 %v658, %v885
      %v894 = vadd.f32 %v659, %v886
      %v895 = vadd.f32 %v660, %v887
      %v896 = vadd.f32 %v661, %v888
      %v897 = vadd.f32 %v662, %v889
      %898 = vrot.lane.b32.xlu0 %v695, 32
      %v899 = vpop.permute.xlu0 %898
      %900 = vrot.lane.b32.xlu0 %v696, 32
      %v901 = vpop.permute.xlu0 %900
      %902 = vrot.lane.b32.xlu0 %v697, 32
      %v903 = vpop.permute.xlu0 %902
      %904 = vrot.lane.b32.xlu0 %v698, 32
      %v905 = vpop.permute.xlu0 %904
      %v907 = vsel %vm555, %v899, 0
      %v910 = vsel %vm555, %v901, 0
      %v913 = vsel %vm555, %v903, 0
      %v916 = vsel %vm555, %v905, 0
      %918 = vmatpush.bf16.msra.mxu0 0
      %919 = vmatpush.bf16.msra.mxu0 0
      %920 = vmatpush.bf16.msra.mxu0 0
      %921 = vmatpush.bf16.msra.mxu0 0
      %922 = vmatpush.bf16.msra.mxu0 0
      %923 = vmatpush.bf16.msra.mxu0 0
      %924 = vmatpush.bf16.msra.mxu0 %v708
      %925 = vmatpush.bf16.msra.mxu0 %v707
      %926 = vmatmul.bf16.gmra.mxu0 %v907
      %v927 = vpop.f32.mrf.mxu0
      %v928 = vadd.f32 %v677, %v927
      %v929 = vpop.f32.mrf.mxu0
      %v930 = vadd.f32 %v677, %v929
      %931 = vmatmul.bf16.gmra.mxu0 %v910
      %v932 = vpop.f32.mrf.mxu0
      %v933 = vadd.f32 %v677, %v932
      %v934 = vpop.f32.mrf.mxu0
      %v935 = vadd.f32 %v677, %v934
      %936 = vmatmul.bf16.gmra.mxu0 %v913
      %v937 = vpop.f32.mrf.mxu0
      %v938 = vadd.f32 %v677, %v937
      %v939 = vpop.f32.mrf.mxu0
      %v940 = vadd.f32 %v677, %v939
      %941 = vmatmul.bf16.gmra.mxu0 %v916
      %v942 = vpop.f32.mrf.mxu0
      %v943 = vadd.f32 %v677, %v942
      %v944 = vpop.f32.mrf.mxu0
      %v945 = vadd.f32 %v677, %v944
      %946 = vdwg.mxu0
      %v947 = vmax.f32 %v928, 0.0
      %v948 = vmax.f32 %v930, 0.0
      %v949 = vmax.f32 %v933, 0.0
      %v950 = vmax.f32 %v935, 0.0
      %v951 = vmax.f32 %v938, 0.0
      %v952 = vmax.f32 %v940, 0.0
      %v953 = vmax.f32 %v943, 0.0
      %v954 = vmax.f32 %v945, 0.0
      %v955 = vadd.f32 %v655, %v947
      %v956 = vadd.f32 %v656, %v948
      %v957 = vadd.f32 %v657, %v949
      %v958 = vadd.f32 %v658, %v950
      %v959 = vadd.f32 %v659, %v951
      %v960 = vadd.f32 %v660, %v952
      %v961 = vadd.f32 %v661, %v953
      %v962 = vadd.f32 %v662, %v954
      %971 = vrot.lane.b32.xlu0 %v825, 32
      %v972 = vpop.permute.xlu0 %971
      %973 = vrot.lane.b32.xlu0 %v826, 32
      %v974 = vpop.permute.xlu0 %973
      %975 = vrot.lane.b32.xlu0 %v827, 32
      %v976 = vpop.permute.xlu0 %975
      %977 = vrot.lane.b32.xlu0 %v828, 32
      %v978 = vpop.permute.xlu0 %977
      %979 = vrot.lane.b32.xlu0 %v829, 32
      %v980 = vpop.permute.xlu0 %979
      %981 = vrot.lane.b32.xlu0 %v830, 32
      %v982 = vpop.permute.xlu0 %981
      %983 = vrot.lane.b32.xlu0 %v831, 32
      %v984 = vpop.permute.xlu0 %983
      %985 = vrot.lane.b32.xlu0 %v832, 32
      %v986 = vpop.permute.xlu0 %985
      %1003 = vrot.lane.b32.xlu0 %v890, 64
      %v1004 = vpop.permute.xlu0 %1003
      %1005 = vrot.lane.b32.xlu0 %v891, 64
      %v1006 = vpop.permute.xlu0 %1005
      %1007 = vrot.lane.b32.xlu0 %v892, 64
      %v1008 = vpop.permute.xlu0 %1007
      %1009 = vrot.lane.b32.xlu0 %v893, 64
      %v1010 = vpop.permute.xlu0 %1009
      %1011 = vrot.lane.b32.xlu0 %v894, 64
      %v1012 = vpop.permute.xlu0 %1011
      %1013 = vrot.lane.b32.xlu0 %v895, 64
      %v1014 = vpop.permute.xlu0 %1013
      %1015 = vrot.lane.b32.xlu0 %v896, 64
      %v1016 = vpop.permute.xlu0 %1015
      %1017 = vrot.lane.b32.xlu0 %v897, 64
      %v1018 = vpop.permute.xlu0 %1017
      %1035 = vrot.lane.b32.xlu0 %v955, 96
      %v1036 = vpop.permute.xlu0 %1035
      %1037 = vrot.lane.b32.xlu0 %v956, 96
      %v1038 = vpop.permute.xlu0 %1037
      %1039 = vrot.lane.b32.xlu0 %v957, 96
      %v1040 = vpop.permute.xlu0 %1039
      %1041 = vrot.lane.b32.xlu0 %v958, 96
      %v1042 = vpop.permute.xlu0 %1041
      %1043 = vrot.lane.b32.xlu0 %v959, 96
      %v1044 = vpop.permute.xlu0 %1043
      %1045 = vrot.lane.b32.xlu0 %v960, 96
      %v1046 = vpop.permute.xlu0 %1045
      %1047 = vrot.lane.b32.xlu0 %v961, 96
      %v1048 = vpop.permute.xlu0 %1047
      %1049 = vrot.lane.b32.xlu0 %v962, 96
      %v1050 = vpop.permute.xlu0 %1049
      %v1059 = vsel %vm555, %v760, %v972
      %v1060 = vsel %vm555, %v761, %v974
      %v1061 = vsel %vm555, %v762, %v976
      %v1062 = vsel %vm555, %v763, %v978
      %v1063 = vsel %vm555, %v764, %v980
      %v1064 = vsel %vm555, %v765, %v982
      %v1065 = vsel %vm555, %v766, %v984
      %v1066 = vsel %vm555, %v767, %v986
      %vm1067 = vcmask 523264
      %v1068 = vsel %vm1067, %v1059, %v1004
      %v1069 = vsel %vm1067, %v1060, %v1006
      %v1070 = vsel %vm1067, %v1061, %v1008
      %v1071 = vsel %vm1067, %v1062, %v1010
      %v1072 = vsel %vm1067, %v1063, %v1012
      %v1073 = vsel %vm1067, %v1064, %v1014
      %v1074 = vsel %vm1067, %v1065, %v1016
      %v1075 = vsel %vm1067, %v1066, %v1018
      %vm1076 = vcmask 785408
      %v1077 = vsel %vm1076, %v1068, %v1036
      %v1078 = vsel %vm1076, %v1069, %v1038
      %v1079 = vsel %vm1076, %v1070, %v1040
      %v1080 = vsel %vm1076, %v1071, %v1042
      %v1081 = vsel %vm1076, %v1072, %v1044
      %v1082 = vsel %vm1076, %v1073, %v1046
      %v1083 = vsel %vm1076, %v1074, %v1048
      %v1084 = vsel %vm1076, %v1075, %v1050
      %1085 = vst [vmem:[%s328] sm:$0xff] %v1077
      %1086 = vst [vmem:[%s328 + $0x8] sm:$0xff] %v1078
      %1087 = vst [vmem:[%s328 + $0x10] sm:$0xff] %v1079
      %1088 = vst [vmem:[%s328 + $0x18] sm:$0xff] %v1080
      %1089 = vst [vmem:[%s328 + $0x20] sm:$0xff] %v1081
      %1090 = vst [vmem:[%s328 + $0x28] sm:$0xff] %v1082
      %1091 = vst [vmem:[%s328 + $0x30] sm:$0xff] %v1083
      %1092 = vst [vmem:[%s328 + $0x38] sm:$0xff] %v1084
      %s1093 = smul.u32 8, %s22
      %p1094 = scmp.lt.s32.totalorder %s21, 1
      %s1095 = scalar_select %p1094, %s21, 1
      %p1096 = scmp.lt.s32.totalorder %s1093, 7
      %s1097 = scalar_select %p1096, %s1093, 7
      %s1098 = smul.addr %s1095, 8
      %s1099 = sadd.s32 %s1097, %s1098
      %s1100 = smul.addr %s1099, 8
      %s1101 = scalar_lea.vmem %s6, %s1100
      // Predicated region
      $region45: #{fatnet_forward.16} parent=43 // pred_check
        %p1102 = pneg %p189
      $region46: #{fatnet_forward.16} parent=43 // pred_check_branch
        %1104 = sbr.rel (%p1102) target = $region48
      $region47: #{fatnet_forward.16} parent=43 // pred_region
        %s1105 = smul.u32 8, %s22
      $region48: #{fatnet_forward.16} parent=43 // pred_fallthru
        _
    $region44: #{fatnet_forward.16} parent=5 // pred_fallthru
      _
    %p1106 = scmp.le.s32.totalorder 2, %s12
    // Predicated region
    $region49: #{fatnet_forward.16} parent=5 // pred_check
      %p1107 = pneg %p1106
    $region50: #{fatnet_forward.16} parent=5 // pred_check_branch
      %1109 = sbr.rel (%p1107) target = $region52
    $region51: #{fatnet_forward.16} parent=5 // pred_region
      %s1110 = ssub.s32 %s12, 2
      // Predicated region
      $region53: #{fatnet_forward.16} parent=51 // pred_check
        %p1111 = pneg %p195
      $region54: #{fatnet_forward.16} parent=51 // pred_check_branch
        %1113 = sbr.rel (%p1111) target = $region56
      $region55: #{fatnet_forward.16} parent=51 // pred_region
        %s1114 = smul.u32 8, %s24
        %p1115 = scmp.lt.s32.totalorder %s23, 1
        %s1116 = scalar_select %p1115, %s23, 1
        %p1117 = scmp.lt.s32.totalorder %s1114, 7
        %s1118 = scalar_select %p1117, %s1114, 7
        %s1119 = smul.addr %s1116, 8
        %s1120 = sadd.s32 %s1118, %s1119
        %s1121 = smul.addr %s1120, 8
        %s1122 = scalar_lea.vmem %s6, %s1121
      $region56: #{fatnet_forward.16} parent=51 // pred_fallthru
        _
    $region52: #{fatnet_forward.16} parent=5 // pred_fallthru
      _
  $region6: #{fatnet_forward.16} parent=0 // loop_footer
    %s16 = sadd.s32 1, %s12
  $region7: #{fatnet_forward.16} parent=0 // loop_footer_branch
    %11 = sbr.rel target = $region3
  $region8: #{fatnet_forward.16} parent=0 // loop_exit
    _

// kernel: fatnet_forward.20
$region0: #{fatnet_forward.20}
  #allocation0 [shape = 'u32[]', space=smem, size = 0x4, offset = 0x4, fixed_abs, tag = 'smem constant byte address 0x4 - core index']
  #allocation1 [shape = 'u32[72,128]{1,0:T(1,128)}', space=vmem, size = 0x9000, scoped, tag = 'internal scratch']
  %s0 = inlined_call_operand.vmem [shape: bf16[2,64,288], index: 0, kind: input, shape index: {}]
  %s1 = inlined_call_operand.vmem [shape: bf16[2,64,128], index: 1, kind: input, shape index: {}]
  %s2 = inlined_call_operand.vmem [shape: bf16[288,64], index: 2, kind: input, shape index: {}]
  %s3 = inlined_call_operand.vmem [shape: f32[1,64], index: 3, kind: input, shape index: {}]
  %s4 = inlined_call_operand.vmem [shape: bf16[32,64], index: 4, kind: input, shape index: {}]
  %s5 = inlined_call_operand.vmem [shape: f32[1,64], index: 5, kind: input, shape index: {}]
  %s6 = inlined_call_operand.vmem [shape: f32[2,64,256], index: 6, kind: output, shape index: {}]
  %s7 = sld [smem:[#allocation0]]
  $region57: #{fatnet_forward.20} parent=0
    _
  %s9 = ssub.s32 1, %s7
  %s10 = scalar_select 0, %s9, %s7
  loop: start=0, step=1, limit=4
  $region2: #{fatnet_forward.20} parent=0 // loop_pre_header
    _
  $region3: #{fatnet_forward.20} parent=0 // loop_header
    %s12 = sphi 0, %s16
    %p13 = scmp.ge.s32.totalorder %s12, 4
    %s19 = sphi 0, %s31
    %s20 = sphi 0, %s27
    %s21 = sphi 0, %s19
    %s22 = sphi 0, %s20
    %s23 = sphi 0, %s21
    %s24 = sphi 0, %s22
    %s36 = sphi 0, %s38
    %s39 = sphi 0, %s36
    %s40 = sphi 0, %s39
    %s56 = sphi 0, %s40
    %s64 = sphi 0, %s66
    %s67 = sphi 0, %s64
    %s68 = sphi 0, %s67
    %s84 = sphi 0, %s68
    %s88 = sphi 0, %s88
    %s90 = sphi 0, %s88
    %s91 = sphi 0, %s90
    %s105 = sphi 0, %s91
    %s109 = sphi 0, %s109
    %s111 = sphi 0, %s109
    %s112 = sphi 0, %s111
    %s126 = sphi 0, %s112
    %s130 = sphi 0, %s130
    %s132 = sphi 0, %s130
    %s133 = sphi 0, %s132
    %s147 = sphi 0, %s133
    %s151 = sphi 0, %s151
    %s153 = sphi 0, %s151
    %s154 = sphi 0, %s153
    %s168 = sphi 0, %s154
    %s176 = sphi 0, %s178
    %s179 = sphi 0, %s176
    %s180 = sphi 0, %s179
    %s196 = sphi 0, %s180
  $region4: #{fatnet_forward.20} parent=0 // loop_header_branch
    %15 = sbr.rel (%p13) target = $region8
  $region5: #{fatnet_forward.20} parent=0 // loop_body
    %s17 = ssub.s32 %s12, 1
    %s18 = ssub.s32 %s12, 2
    %s25 = sadd.s32 1, %s20
    %p26 = scmp.ge.s32.totalorder %s25, 1
    %s27 = scalar_select %p26, 0, %s25
    %s28 = sadd.s32 1, %s19
    %s29 = scalar_select %p26, %s28, %s19
    %p30 = scmp.ge.s32.totalorder %s29, 2
    %s31 = scalar_select %p30, 0, %s29
    %s32 = ssub.s32 %s19, %s31
    %s33 = ssub.s32 %s20, %s27
    %s34 = sor.u32 %s32, %s33
    %p35 = scmp.eq.s32.totalorder %s34, 0
    %s37 = sadd.s32 %s36, 1
    %s38 = scalar_select %p35, %s36, %s37
    %p41 = pneg %p35
    %p42 = scmp.eq.s32.totalorder %s12, 1
    %p43 = por %p41, %p42
    %p44 = scmp.ne.s32.totalorder %s36, %s39
    %p45 = scmp.eq.s32.totalorder %s12, 0
    %p46 = por %p44, %p45
    %p47 = scmp.ne.s32.totalorder %s36, %s39
    %p48 = scmp.eq.s32.totalorder %s17, 1
    %p49 = por %p47, %p48
    %p50 = scmp.ne.s32.totalorder %s39, %s40
    %p51 = scmp.eq.s32.totalorder %s17, 0
    %p52 = por %p50, %p51
    %p53 = scmp.ne.s32.totalorder %s39, %s40
    %p54 = scmp.eq.s32.totalorder %s18, 1
    %p55 = por %p53, %p54
    %p57 = scmp.ne.s32.totalorder %s40, %s56
    %p58 = scmp.eq.s32.totalorder %s18, 0
    %p59 = por %p57, %p58
    %s60 = ssub.s32 %s19, %s31
    %s61 = ssub.s32 %s20, %s27
    %s62 = sor.u32 %s60, %s61
    %p63 = scmp.eq.s32.totalorder %s62, 0
    %s65 = sadd.s32 %s64, 1
    %s66 = scalar_select %p63, %s64, %s65
    %p69 = pneg %p63
    %p70 = scmp.eq.s32.totalorder %s12, 1
    %p71 = por %p69, %p70
    %p72 = scmp.ne.s32.totalorder %s64, %s67
    %p73 = scmp.eq.s32.totalorder %s12, 0
    %p74 = por %p72, %p73
    %p75 = scmp.ne.s32.totalorder %s64, %s67
    %p76 = scmp.eq.s32.totalorder %s17, 1
    %p77 = por %p75, %p76
    %p78 = scmp.ne.s32.totalorder %s67, %s68
    %p79 = scmp.eq.s32.totalorder %s17, 0
    %p80 = por %p78, %p79
    %p81 = scmp.ne.s32.totalorder %s67, %s68
    %p82 = scmp.eq.s32.totalorder %s18, 1
    %p83 = por %p81, %p82
    %p85 = scmp.ne.s32.totalorder %s68, %s84
    %p86 = scmp.eq.s32.totalorder %s18, 0
    %p87 = por %p85, %p86
    %s89 = sadd.s32 %s88, 1
    %p92 = scmp.eq.s32.totalorder %s12, 1
    %p93 = scmp.ne.s32.totalorder %s88, %s90
    %p94 = scmp.eq.s32.totalorder %s12, 0
    %p95 = por %p93, %p94
    %p96 = scmp.ne.s32.totalorder %s88, %s90
    %p97 = scmp.eq.s32.totalorder %s17, 1
    %p98 = por %p96, %p97
    %p99 = scmp.ne.s32.totalorder %s90, %s91
    %p100 = scmp.eq.s32.totalorder %s17, 0
    %p101 = por %p99, %p100
    %p102 = scmp.ne.s32.totalorder %s90, %s91
    %p103 = scmp.eq.s32.totalorder %s18, 1
    %p104 = por %p102, %p103
    %p106 = scmp.ne.s32.totalorder %s91, %s105
    %p107 = scmp.eq.s32.totalorder %s18, 0
    %p108 = por %p106, %p107
    %s110 = sadd.s32 %s109, 1
    %p113 = scmp.eq.s32.totalorder %s12, 1
    %p114 = scmp.ne.s32.totalorder %s109, %s111
    %p115 = scmp.eq.s32.totalorder %s12, 0
    %p116 = por %p114, %p115
    %p117 = scmp.ne.s32.totalorder %s109, %s111
    %p118 = scmp.eq.s32.totalorder %s17, 1
    %p119 = por %p117, %p118
    %p120 = scmp.ne.s32.totalorder %s111, %s112
    %p121 = scmp.eq.s32.totalorder %s17, 0
    %p122 = por %p120, %p121
    %p123 = scmp.ne.s32.totalorder %s111, %s112
    %p124 = scmp.eq.s32.totalorder %s18, 1
    %p125 = por %p123, %p124
    %p127 = scmp.ne.s32.totalorder %s112, %s126
    %p128 = scmp.eq.s32.totalorder %s18, 0
    %p129 = por %p127, %p128
    %s131 = sadd.s32 %s130, 1
    %p134 = scmp.eq.s32.totalorder %s12, 1
    %p135 = scmp.ne.s32.totalorder %s130, %s132
    %p136 = scmp.eq.s32.totalorder %s12, 0
    %p137 = por %p135, %p136
    %p138 = scmp.ne.s32.totalorder %s130, %s132
    %p139 = scmp.eq.s32.totalorder %s17, 1
    %p140 = por %p138, %p139
    %p141 = scmp.ne.s32.totalorder %s132, %s133
    %p142 = scmp.eq.s32.totalorder %s17, 0
    %p143 = por %p141, %p142
    %p144 = scmp.ne.s32.totalorder %s132, %s133
    %p145 = scmp.eq.s32.totalorder %s18, 1
    %p146 = por %p144, %p145
    %p148 = scmp.ne.s32.totalorder %s133, %s147
    %p149 = scmp.eq.s32.totalorder %s18, 0
    %p150 = por %p148, %p149
    %s152 = sadd.s32 %s151, 1
    %p155 = scmp.eq.s32.totalorder %s12, 1
    %p156 = scmp.ne.s32.totalorder %s151, %s153
    %p157 = scmp.eq.s32.totalorder %s12, 0
    %p158 = por %p156, %p157
    %p159 = scmp.ne.s32.totalorder %s151, %s153
    %p160 = scmp.eq.s32.totalorder %s17, 1
    %p161 = por %p159, %p160
    %p162 = scmp.ne.s32.totalorder %s153, %s154
    %p163 = scmp.eq.s32.totalorder %s17, 0
    %p164 = por %p162, %p163
    %p165 = scmp.ne.s32.totalorder %s153, %s154
    %p166 = scmp.eq.s32.totalorder %s18, 1
    %p167 = por %p165, %p166
    %p169 = scmp.ne.s32.totalorder %s154, %s168
    %p170 = scmp.eq.s32.totalorder %s18, 0
    %p171 = por %p169, %p170
    %s172 = ssub.s32 %s19, %s31
    %s173 = ssub.s32 %s20, %s27
    %s174 = sor.u32 %s172, %s173
    %p175 = scmp.eq.s32.totalorder %s174, 0
    %s177 = sadd.s32 %s176, 1
    %s178 = scalar_select %p175, %s176, %s177
    %p181 = pneg %p175
    %p182 = scmp.eq.s32.totalorder %s12, 1
    %p183 = por %p181, %p182
    %p184 = scmp.ne.s32.totalorder %s176, %s179
    %p185 = scmp.eq.s32.totalorder %s12, 0
    %p186 = por %p184, %p185
    %p187 = scmp.ne.s32.totalorder %s176, %s179
    %p188 = scmp.eq.s32.totalorder %s17, 1
    %p189 = por %p187, %p188
    %p190 = scmp.ne.s32.totalorder %s179, %s180
    %p191 = scmp.eq.s32.totalorder %s17, 0
    %p192 = por %p190, %p191
    %p193 = scmp.ne.s32.totalorder %s179, %s180
    %p194 = scmp.eq.s32.totalorder %s18, 1
    %p195 = por %p193, %p194
    %p197 = scmp.ne.s32.totalorder %s180, %s196
    %p198 = scmp.eq.s32.totalorder %s18, 0
    %p199 = por %p197, %p198
    %p200 = scmp.le.s32.totalorder 1, %s12
    %p201 = scmp.lt.s32.totalorder %s12, 3
    %p202 = pnand %p200, %p201
    %p203 = pneg %p202
    // Predicated region
    $region9: #{fatnet_forward.20} parent=5 // pred_check
      _
    $region10: #{fatnet_forward.20} parent=5 // pred_check_branch
      %205 = sbr.rel (%p202) target = $region12
    $region11: #{fatnet_forward.20} parent=5 // pred_region
      %s206 = ssub.s32 %s12, 1
      // Predicated region
      $region13: #{fatnet_forward.20} parent=11 // pred_check
        %p207 = pneg %p101
      $region14: #{fatnet_forward.20} parent=11 // pred_check_branch
        %209 = sbr.rel (%p207) target = $region16
      $region15: #{fatnet_forward.20} parent=11 // pred_region
        _
      $region16: #{fatnet_forward.20} parent=11 // pred_fallthru
        _
      // Predicated region
      $region17: #{fatnet_forward.20} parent=11 // pred_check
        %p210 = pneg %p122
      $region18: #{fatnet_forward.20} parent=11 // pred_check_branch
        %212 = sbr.rel (%p210) target = $region20
      $region19: #{fatnet_forward.20} parent=11 // pred_region
        _
      $region20: #{fatnet_forward.20} parent=11 // pred_fallthru
        _
      // Predicated region
      $region21: #{fatnet_forward.20} parent=11 // pred_check
        %p213 = pneg %p143
      $region22: #{fatnet_forward.20} parent=11 // pred_check_branch
        %215 = sbr.rel (%p213) target = $region24
      $region23: #{fatnet_forward.20} parent=11 // pred_region
        _
      $region24: #{fatnet_forward.20} parent=11 // pred_fallthru
        _
      // Predicated region
      $region25: #{fatnet_forward.20} parent=11 // pred_check
        %p216 = pneg %p164
      $region26: #{fatnet_forward.20} parent=11 // pred_check_branch
        %218 = sbr.rel (%p216) target = $region28
      $region27: #{fatnet_forward.20} parent=11 // pred_region
        _
      $region28: #{fatnet_forward.20} parent=11 // pred_fallthru
        _
    $region12: #{fatnet_forward.20} parent=5 // pred_fallthru
      _
    %p219 = scmp.lt.s32.totalorder %s12, 2
    // Predicated region
    $region29: #{fatnet_forward.20} parent=5 // pred_check
      %p220 = pneg %p219
    $region30: #{fatnet_forward.20} parent=5 // pred_check_branch
      %222 = sbr.rel (%p220) target = $region32
    $region31: #{fatnet_forward.20} parent=5 // pred_region
      // Predicated region
      $region33: #{fatnet_forward.20} parent=31 // pred_check
        %p223 = pneg %p46
      $region34: #{fatnet_forward.20} parent=31 // pred_check_branch
        %225 = sbr.rel (%p223) target = $region36
      $region35: #{fatnet_forward.20} parent=31 // pred_region
        %s226 = smul.u32 8, %s20
        %p227 = scmp.lt.s32.totalorder %s19, 1
        %s228 = scalar_select %p227, %s19, 1
        %p229 = scmp.lt.s32.totalorder %s226, 7
        %s230 = scalar_select %p229, %s226, 7
        %s231 = smul.addr %s230, 3
        %s232 = smul.addr %s228, 24
        %s233 = sadd.s32 %s231, %s232
        %s234 = smul.addr %s233, 4
        %s235 = scalar_lea.vmem %s0, %s234
        %s236 = smul.u32 8, %s20
      $region36: #{fatnet_forward.20} parent=31 // pred_fallthru
        _
      // Predicated region
      $region37: #{fatnet_forward.20} parent=31 // pred_check
        %p237 = pneg %p74
      $region38: #{fatnet_forward.20} parent=31 // pred_check_branch
        %239 = sbr.rel (%p237) target = $region40
      $region39: #{fatnet_forward.20} parent=31 // pred_region
        %s240 = smul.u32 8, %s20
        %p241 = scmp.lt.s32.totalorder %s19, 1
        %s242 = scalar_select %p241, %s19, 1
        %p243 = scmp.lt.s32.totalorder %s240, 7
        %s244 = scalar_select %p243, %s240, 7
        %s245 = smul.addr %s242, 8
        %s246 = sadd.s32 %s244, %s245
        %s247 = smul.addr %s246, 4
        %s248 = scalar_lea.vmem %s1, %s247
        %s249 = smul.u32 8, %s20
      $region40: #{fatnet_forward.20} parent=31 // pred_fallthru
        _
    $region32: #{fatnet_forward.20} parent=5 // pred_fallthru
      _
    %p250 = scmp.le.s32.totalorder 1, %s12
    %p251 = scmp.lt.s32.totalorder %s12, 3
    %p252 = pnand %p250, %p251
    %p253 = pneg %p252
    // Predicated region
    $region41: #{fatnet_forward.20} parent=5 // pred_check
      _
    $region42: #{fatnet_forward.20} parent=5 // pred_check_branch
      %255 = sbr.rel (%p252) target = $region44
    $region43: #{fatnet_forward.20} parent=5 // pred_region
      %s256 = ssub.s32 %s12, 1
      %s257 = smul.u32 8, %s22
      %p258 = scmp.lt.s32.totalorder %s21, 1
      %s259 = scalar_select %p258, %s21, 1
      %p260 = scmp.lt.s32.totalorder %s257, 7
      %s261 = scalar_select %p260, %s257, 7
      %s262 = smul.addr %s261, 3
      %s263 = smul.addr %s259, 24
      %s264 = sadd.s32 %s262, %s263
      %s265 = smul.addr %s264, 4
      %s266 = scalar_lea.vmem %s0, %s265
      %p267 = pneg %p52
      %p268 = pneg %p49
      %s269 = smul.u32 8, %s22
      %p270 = scmp.lt.s32.totalorder %s21, 1
      %s271 = scalar_select %p270, %s21, 1
      %p272 = scmp.lt.s32.totalorder %s269, 7
      %s273 = scalar_select %p272, %s269, 7
      %s274 = smul.addr %s271, 8
      %s275 = sadd.s32 %s273, %s274
      %s276 = smul.addr %s275, 4
      %s277 = scalar_lea.vmem %s1, %s276
      %p278 = pneg %p80
      %p279 = pneg %p77
      %p280 = pneg %p101
      %p281 = pneg %p98
      %p282 = pneg %p122
      %p283 = pneg %p119
      %p284 = pneg %p143
      %p285 = pneg %p140
      %p286 = pneg %p164
      %p287 = pneg %p161
      %p288 = pneg %p192
      %p289 = pneg %p189
      %s290 = smul.u32 8, %s22
      %p291 = scmp.lt.s32.totalorder %s21, 1
      %s292 = scalar_select %p291, %s21, 1
      %p293 = scmp.lt.s32.totalorder %s290, 7
      %s294 = scalar_select %p293, %s290, 7
      %s295 = smul.addr %s294, 2
      %s296 = smul.addr %s292, 16
      %s297 = sadd.s32 %s295, %s296
      %s298 = smul.addr %s297, 8
      %s299 = scalar_lea.vmem %s6, %s298
      %s300 = smul.u32 8, %s22
      %p301 = scmp.lt.s32.totalorder %s21, 1
      %s302 = scalar_select %p301, %s21, 1
      %p303 = scmp.lt.s32.totalorder %s300, 7
      %s304 = scalar_select %p303, %s300, 7
      %s305 = smul.addr %s304, 3
      %s306 = smul.addr %s302, 24
      %s307 = sadd.s32 %s305, %s306
      %s308 = smul.addr %s307, 4
      %s309 = scalar_lea.vmem %s0, %s308
      %s310 = smul.u32 8, %s22
      %s311 = smul.u32 8, %s22
      %p312 = scmp.lt.s32.totalorder %s21, 1
      %s313 = scalar_select %p312, %s21, 1
      %p314 = scmp.lt.s32.totalorder %s311, 7
      %s315 = scalar_select %p314, %s311, 7
      %s316 = smul.addr %s313, 8
      %s317 = sadd.s32 %s315, %s316
      %s318 = smul.addr %s317, 4
      %s319 = scalar_lea.vmem %s1, %s318
      %s320 = smul.u32 8, %s22
      %s321 = smul.u32 8, %s22
      %p322 = scmp.lt.s32.totalorder %s21, 1
      %s323 = scalar_select %p322, %s21, 1
      %p324 = scmp.lt.s32.totalorder %s321, 7
      %s325 = scalar_select %p324, %s321, 7
      %s326 = smul.addr %s325, 2
      %s327 = smul.addr %s323, 16
      %s328 = sadd.s32 %s326, %s327
      %s329 = smul.addr %s328, 8
      %s330 = scalar_lea.vmem %s6, %s329
      %s331 = smul.u32 8, %s22
      %v333 = vld [vmem:[%s309] sm:$0xff]
      %v334 = vld [vmem:[%s309 + $0x8] sm:$0xf]
      %v335 = vld [vmem:[%s309 + $0xc] sm:$0xff]
      %v336 = vld [vmem:[%s309 + $0x14] sm:$0xf]
      %v337 = vld [vmem:[%s309 + $0x18] sm:$0xff]
      %v338 = vld [vmem:[%s309 + $0x20] sm:$0xf]
      %v339 = vld [vmem:[%s309 + $0x24] sm:$0xff]
      %v340 = vld [vmem:[%s309 + $0x2c] sm:$0xf]
      %v341 = vld [vmem:[%s309 + $0x30] sm:$0xff]
      %v342 = vld [vmem:[%s309 + $0x38] sm:$0xf]
      %v343 = vld [vmem:[%s309 + $0x3c] sm:$0xff]
      %v344 = vld [vmem:[%s309 + $0x44] sm:$0xf]
      %v345 = vld [vmem:[%s309 + $0x48] sm:$0xff]
      %v346 = vld [vmem:[%s309 + $0x50] sm:$0xf]
      %v347 = vld [vmem:[%s309 + $0x54] sm:$0xff]
      %v348 = vld [vmem:[%s309 + $0x5c] sm:$0xf]
      %v349 = vld [vmem:[%s2] sm:$0xf]
      %v350 = vld [vmem:[%s2 + $0x4] sm:$0xf]
      %v351 = vld [vmem:[%s2 + $0x8] sm:$0xf]
      %v352 = vld [vmem:[%s2 + $0xc] sm:$0xf]
      %v353 = vld [vmem:[%s2 + $0x10] sm:$0xf]
      %v354 = vld [vmem:[%s2 + $0x14] sm:$0xf]
      %v355 = vld [vmem:[%s2 + $0x18] sm:$0xf]
      %v356 = vld [vmem:[%s2 + $0x1c] sm:$0xf]
      %v357 = vld [vmem:[%s2 + $0x20] sm:$0xf]
      %v358 = vld [vmem:[%s2 + $0x24] sm:$0xf]
      %v359 = vld [vmem:[%s2 + $0x28] sm:$0xf]
      %v360 = vld [vmem:[%s2 + $0x2c] sm:$0xf]
      %v361 = vld [vmem:[%s2 + $0x30] sm:$0xf]
      %v362 = vld [vmem:[%s2 + $0x34] sm:$0xf]
      %v363 = vld [vmem:[%s2 + $0x38] sm:$0xf]
      %v364 = vld [vmem:[%s2 + $0x3c] sm:$0xf]
      %v365 = vld [vmem:[%s2 + $0x40] sm:$0xf]
      %v366 = vld [vmem:[%s2 + $0x44] sm:$0xf]
      %v367 = vld [vmem:[%s2 + $0x48] sm:$0xf]
      %v368 = vld [vmem:[%s2 + $0x4c] sm:$0xf]
      %v369 = vld [vmem:[%s2 + $0x50] sm:$0xf]
      %v370 = vld [vmem:[%s2 + $0x54] sm:$0xf]
      %v371 = vld [vmem:[%s2 + $0x58] sm:$0xf]
      %v372 = vld [vmem:[%s2 + $0x5c] sm:$0xf]
      %v373 = vld [vmem:[%s2 + $0x60] sm:$0xf]
      %v374 = vld [vmem:[%s2 + $0x64] sm:$0xf]
      %v375 = vld [vmem:[%s2 + $0x68] sm:$0xf]
      %v376 = vld [vmem:[%s2 + $0x6c] sm:$0xf]
      %v377 = vld [vmem:[%s2 + $0x70] sm:$0xf]
      %v378 = vld [vmem:[%s2 + $0x74] sm:$0xf]
      %v379 = vld [vmem:[%s2 + $0x78] sm:$0xf]
      %v380 = vld [vmem:[%s2 + $0x7c] sm:$0xf]
      %v381 = vld [vmem:[%s2 + $0x80] sm:$0xf]
      %v382 = vld [vmem:[%s2 + $0x84] sm:$0xf]
      %v383 = vld [vmem:[%s2 + $0x88] sm:$0xf]
      %v384 = vld [vmem:[%s2 + $0x8c] sm:$0xf]
      %v385 = vld [vmem:[%s3] sm:$0x1]
      %v387 = vperm.slane %v385, 0
      %v405 = vunpack.c.l.b16 %v333
      %v406 = vunpack.c.h.b16 %v333
      %v407 = vunpack.c.l.b16 %v334
      %v408 = vunpack.c.l.b16 %v335
      %v409 = vunpack.c.h.b16 %v335
      %v410 = vunpack.c.l.b16 %v336
      %v411 = vunpack.c.l.b16 %v337
      %v412 = vunpack.c.h.b16 %v337
      %v413 = vunpack.c.l.b16 %v338
      %v414 = vunpack.c.l.b16 %v339
      %v415 = vunpack.c.h.b16 %v339
      %v416 = vunpack.c.l.b16 %v340
      %v417 = vunpack.c.l.b16 %v341
      %v418 = vunpack.c.h.b16 %v341
      %v419 = vunpack.c.l.b16 %v342
      %v420 = vunpack.c.l.b16 %v343
      %v421 = vunpack.c.h.b16 %v343
      %v422 = vunpack.c.l.b16 %v344
      %v423 = vunpack.c.l.b16 %v345
      %v424 = vunpack.c.h.b16 %v345
      %v425 = vunpack.c.l.b16 %v346
      %v426 = vunpack.c.l.b16 %v347
      %v427 = vunpack.c.h.b16 %v347
      %v428 = vunpack.c.l.b16 %v348
      %v429 = vpack.c.b16 %v408, %v405
      %v430 = vpack.c.b16 %v409, %v406
      %v431 = vpack.c.b16 %v410, %v407
      %v432 = vpack.c.b16 %v414, %v411
      %v433 = vpack.c.b16 %v415, %v412
      %v434 = vpack.c.b16 %v416, %v413
      %v435 = vpack.c.b16 %v420, %v417
      %v436 = vpack.c.b16 %v421, %v418
      %v437 = vpack.c.b16 %v422, %v419
      %v438 = vpack.c.b16 %v426, %v423
      %v439 = vpack.c.b16 %v427, %v424
      %v440 = vpack.c.b16 %v428, %v425
      %v485 = vunpack.c.l.b16 %v349
      %v486 = vunpack.c.l.b16 %v350
      %v487 = vunpack.c.l.b16 %v351
      %v488 = vunpack.c.l.b16 %v352
      %v489 = vunpack.c.l.b16 %v353
      %v490 = vunpack.c.l.b16 %v354
      %v491 = vunpack.c.l.b16 %v355
      %v492 = vunpack.c.l.b16 %v356
      %v493 = vunpack.c.l.b16 %v357
      %v494 = vunpack.c.l.b16 %v358
      %v495 = vunpack.c.l.b16 %v359
      %v496 = vunpack.c.l.b16 %v360
      %v497 = vunpack.c.l.b16 %v361
      %v498 = vunpack.c.l.b16 %v362
      %v499 = vunpack.c.l.b16 %v363
      %v500 = vunpack.c.l.b16 %v364
      %v501 = vunpack.c.l.b16 %v365
      %v502 = vunpack.c.l.b16 %v366
      %v503 = vunpack.c.l.b16 %v367
      %v504 = vunpack.c.l.b16 %v368
      %v505 = vunpack.c.l.b16 %v369
      %v506 = vunpack.c.l.b16 %v370
      %v507 = vunpack.c.l.b16 %v371
      %v508 = vunpack.c.l.b16 %v372
      %v509 = vunpack.c.l.b16 %v373
      %v510 = vunpack.c.l.b16 %v374
      %v511 = vunpack.c.l.b16 %v375
      %v512 = vunpack.c.l.b16 %v376
      %v513 = vunpack.c.l.b16 %v377
      %v514 = vunpack.c.l.b16 %v378
      %v515 = vunpack.c.l.b16 %v379
      %v516 = vunpack.c.l.b16 %v380
      %v517 = vunpack.c.l.b16 %v381
      %v518 = vunpack.c.l.b16 %v382
      %v519 = vunpack.c.l.b16 %v383
      %v520 = vunpack.c.l.b16 %v384
      %v521 = vpack.c.b16 %v486, %v485
      %v522 = vpack.c.b16 %v488, %v487
      %v523 = vpack.c.b16 %v490, %v489
      %v524 = vpack.c.b16 %v492, %v491
      %v525 = vpack.c.b16 %v494, %v493
      %v526 = vpack.c.b16 %v496, %v495
      %v527 = vpack.c.b16 %v498, %v497
      %v528 = vpack.c.b16 %v500, %v499
      %v529 = vpack.c.b16 %v502, %v501
      %v530 = vpack.c.b16 %v504, %v503
      %v531 = vpack.c.b16 %v506, %v505
      %v532 = vpack.c.b16 %v508, %v507
      %v533 = vpack.c.b16 %v510, %v509
      %v534 = vpack.c.b16 %v512, %v511
      %v535 = vpack.c.b16 %v514, %v513
      %v536 = vpack.c.b16 %v516, %v515
      %v537 = vpack.c.b16 %v518, %v517
      %v538 = vpack.c.b16 %v520, %v519
      %vm557 = vcmask 261120
      %v559 = vsel %vm557, %v431, 0
      %v562 = vsel %vm557, %v434, 0
      %v565 = vsel %vm557, %v437, 0
      %v568 = vsel %vm557, %v440, 0
      %570 = vmatpush.bf16.msra.mxu0 %v528
      %571 = vmatpush.bf16.msra.mxu0 %v527
      %572 = vmatpush.bf16.msra.mxu0 %v526
      %573 = vmatpush.bf16.msra.mxu0 %v525
      %574 = vmatpush.bf16.msra.mxu0 %v524
      %575 = vmatpush.bf16.msra.mxu0 %v523
      %576 = vmatpush.bf16.msra.mxu0 %v522
      %577 = vmatpush.bf16.msra.mxu0 %v521
      %578 = vmatmul.bf16.gmra.mxu0 %v429
      %v579 = vpop.f32.mrf.mxu0
      %v580 = vadd.f32 %v387, %v579
      %v581 = vpop.f32.mrf.mxu0
      %v582 = vadd.f32 %v387, %v581
      %583 = vmatmul.bf16.gmra.mxu0 %v432
      %v584 = vpop.f32.mrf.mxu0
      %v585 = vadd.f32 %v387, %v584
      %v586 = vpop.f32.mrf.mxu0
      %v587 = vadd.f32 %v387, %v586
      %588 = vmatmul.bf16.gmra.mxu0 %v435
      %v589 = vpop.f32.mrf.mxu0
      %v590 = vadd.f32 %v387, %v589
      %v591 = vpop.f32.mrf.mxu0
      %v592 = vadd.f32 %v387, %v591
      %593 = vmatmul.bf16.gmra.mxu0 %v438
      %v594 = vpop.f32.mrf.mxu0
      %v595 = vadd.f32 %v387, %v594
      %v596 = vpop.f32.mrf.mxu0
      %v597 = vadd.f32 %v387, %v596
      %598 = vdwg.mxu0
      %599 = vmatpush.bf16.msra.mxu0 %v536
      %600 = vmatpush.bf16.msra.mxu0 %v535
      %601 = vmatpush.bf16.msra.mxu0 %v534
      %602 = vmatpush.bf16.msra.mxu0 %v533
      %603 = vmatpush.bf16.msra.mxu0 %v532
      %604 = vmatpush.bf16.msra.mxu0 %v531
      %605 = vmatpush.bf16.msra.mxu0 %v530
      %606 = vmatpush.bf16.msra.mxu0 %v529
      %607 = vmatmul.bf16.gmra.mxu0 %v430
      %v608 = vpop.f32.mrf.mxu0
      %v609 = vadd.f32 %v580, %v608
      %v610 = vpop.f32.mrf.mxu0
      %v611 = vadd.f32 %v582, %v610
      %612 = vmatmul.bf16.gmra.mxu0 %v433
      %v613 = vpop.f32.mrf.mxu0
      %v614 = vadd.f32 %v585, %v613
      %v615 = vpop.f32.mrf.mxu0
      %v616 = vadd.f32 %v587, %v615
      %617 = vmatmul.bf16.gmra.mxu0 %v436
      %v618 = vpop.f32.mrf.mxu0
      %v619 = vadd.f32 %v590, %v618
      %v620 = vpop.f32.mrf.mxu0
      %v621 = vadd.f32 %v592, %v620
      %622 = vmatmul.bf16.gmra.mxu0 %v439
      %v623 = vpop.f32.mrf.mxu0
      %v624 = vadd.f32 %v595, %v623
      %v625 = vpop.f32.mrf.mxu0
      %v626 = vadd.f32 %v597, %v625
      %627 = vdwg.mxu0
      %628 = vmatpush.bf16.msra.mxu0 0
      %629 = vmatpush.bf16.msra.mxu0 0
      %630 = vmatpush.bf16.msra.mxu0 0
      %631 = vmatpush.bf16.msra.mxu0 0
      %632 = vmatpush.bf16.msra.mxu0 0
      %633 = vmatpush.bf16.msra.mxu0 0
      %634 = vmatpush.bf16.msra.mxu0 %v538
      %635 = vmatpush.bf16.msra.mxu0 %v537
      %636 = vmatmul.bf16.gmra.mxu0 %v559
      %v637 = vpop.f32.mrf.mxu0
      %v638 = vadd.f32 %v609, %v637
      %v639 = vpop.f32.mrf.mxu0
      %v640 = vadd.f32 %v611, %v639
      %641 = vmatmul.bf16.gmra.mxu0 %v562
      %v642 = vpop.f32.mrf.mxu0
      %v643 = vadd.f32 %v614, %v642
      %v644 = vpop.f32.mrf.mxu0
      %v645 = vadd.f32 %v616, %v644
      %646 = vmatmul.bf16.gmra.mxu0 %v565
      %v647 = vpop.f32.mrf.mxu0
      %v648 = vadd.f32 %v619, %v647
      %v649 = vpop.f32.mrf.mxu0
      %v650 = vadd.f32 %v621, %v649
      %651 = vmatmul.bf16.gmra.mxu0 %v568
      %v652 = vpop.f32.mrf.mxu0
      %v653 = vadd.f32 %v624, %v652
      %v654 = vpop.f32.mrf.mxu0
      %v655 = vadd.f32 %v626, %v654
      %656 = vdwg.mxu0
      %v657 = vmax.f32 %v638, 0.0
      %v658 = vmax.f32 %v640, 0.0
      %v659 = vmax.f32 %v643, 0.0
      %v660 = vmax.f32 %v645, 0.0
      %v661 = vmax.f32 %v648, 0.0
      %v662 = vmax.f32 %v650, 0.0
      %v663 = vmax.f32 %v653, 0.0
      %v664 = vmax.f32 %v655, 0.0
      %v665 = vld [vmem:[%s319] sm:$0xf]
      %v666 = vld [vmem:[%s319 + $0x4] sm:$0xf]
      %v667 = vld [vmem:[%s319 + $0x8] sm:$0xf]
      %v668 = vld [vmem:[%s319 + $0xc] sm:$0xf]
      %v669 = vld [vmem:[%s319 + $0x10] sm:$0xf]
      %v670 = vld [vmem:[%s319 + $0x14] sm:$0xf]
      %v671 = vld [vmem:[%s319 + $0x18] sm:$0xf]
      %v672 = vld [vmem:[%s319 + $0x1c] sm:$0xf]
      %v673 = vld [vmem:[%s4] sm:$0xf]
      %v674 = vld [vmem:[%s4 + $0x4] sm:$0xf]
      %v675 = vld [vmem:[%s4 + $0x8] sm:$0xf]
      %v676 = vld [vmem:[%s4 + $0xc] sm:$0xf]
      %v677 = vld [vmem:[%s5] sm:$0x1]
      %v679 = vperm.slane %v677, 0
      %v689 = vunpack.c.l.b16 %v665
      %v690 = vunpack.c.l.b16 %v666
      %v691 = vunpack.c.l.b16 %v667
      %v692 = vunpack.c.l.b16 %v668
      %v693 = vunpack.c.l.b16 %v669
      %v694 = vunpack.c.l.b16 %v670
      %v695 = vunpack.c.l.b16 %v671
      %v696 = vunpack.c.l.b16 %v672
      %v697 = vpack.c.b16 %v690, %v689
      %v698 = vpack.c.b16 %v692, %v691
      %v699 = vpack.c.b16 %v694, %v693
      %v700 = vpack.c.b16 %v696, %v695
      %v705 = vunpack.c.l.b16 %v673
      %v706 = vunpack.c.l.b16 %v674
      %v707 = vunpack.c.l.b16 %v675
      %v708 = vunpack.c.l.b16 %v676
      %v709 = vpack.c.b16 %v706, %v705
      %v710 = vpack.c.b16 %v708, %v707
      %v714 = vsel %vm557, %v697, 0
      %v717 = vsel %vm557, %v698, 0
      %v720 = vsel %vm557, %v699, 0
      %v723 = vsel %vm557, %v700, 0
      %725 = vmatpush.bf16.msra.mxu0 0
      %726 = vmatpush.bf16.msra.mxu0 0
      %727 = vmatpush.bf16.msra.mxu0 0
      %728 = vmatpush.bf16.msra.mxu0 0
      %729 = vmatpush.bf16.msra.mxu0 0
      %730 = vmatpush.bf16.msra.mxu0 0
      %731 = vmatpush.bf16.msra.mxu0 %v710
      %732 = vmatpush.bf16.msra.mxu0 %v709
      %733 = vmatmul.bf16.gmra.mxu0 %v714
      %v734 = vpop.f32.mrf.mxu0
      %v735 = vadd.f32 %v679, %v734
      %v736 = vpop.f32.mrf.mxu0
      %v737 = vadd.f32 %v679, %v736
      %738 = vmatmul.bf16.gmra.mxu0 %v717
      %v739 = vpop.f32.mrf.mxu0
      %v740 = vadd.f32 %v679, %v739
      %v741 = vpop.f32.mrf.mxu0
      %v742 = vadd.f32 %v679, %v741
      %743 = vmatmul.bf16.gmra.mxu0 %v720
      %v744 = vpop.f32.mrf.mxu0
      %v745 = vadd.f32 %v679, %v744
      %v746 = vpop.f32.mrf.mxu0
      %v747 = vadd.f32 %v679, %v746
      %748 = vmatmul.bf16.gmra.mxu0 %v723
      %v749 = vpop.f32.mrf.mxu0
      %v750 = vadd.f32 %v679, %v749
      %v751 = vpop.f32.mrf.mxu0
      %v752 = vadd.f32 %v679, %v751
      %753 = vdwg.mxu0
      %v754 = vmax.f32 %v735, 0.0
      %v755 = vmax.f32 %v737, 0.0
      %v756 = vmax.f32 %v740, 0.0
      %v757 = vmax.f32 %v742, 0.0
      %v758 = vmax.f32 %v745, 0.0
      %v759 = vmax.f32 %v747, 0.0
      %v760 = vmax.f32 %v750, 0.0
      %v761 = vmax.f32 %v752, 0.0
      %v762 = vadd.f32 %v657, %v754
      %v763 = vadd.f32 %v658, %v755
      %v764 = vadd.f32 %v659, %v756
      %v765 = vadd.f32 %v660, %v757
      %v766 = vadd.f32 %v661, %v758
      %v767 = vadd.f32 %v662, %v759
      %v768 = vadd.f32 %v663, %v760
      %v769 = vadd.f32 %v664, %v761
      %770 = vrot.lane.b32.xlu0 %v697, 96
      %v771 = vpop.permute.xlu0 %770
      %772 = vrot.lane.b32.xlu0 %v698, 96
      %v773 = vpop.permute.xlu0 %772
      %774 = vrot.lane.b32.xlu0 %v699, 96
      %v775 = vpop.permute.xlu0 %774
      %776 = vrot.lane.b32.xlu0 %v700, 96
      %v777 = vpop.permute.xlu0 %776
      %v779 = vsel %vm557, %v771, 0
      %v782 = vsel %vm557, %v773, 0
      %v785 = vsel %vm557, %v775, 0
      %v788 = vsel %vm557, %v777, 0
      %790 = vmatpush.bf16.msra.mxu0 0
      %791 = vmatpush.bf16.msra.mxu0 0
      %792 = vmatpush.bf16.msra.mxu0 0
      %793 = vmatpush.bf16.msra.mxu0 0
      %794 = vmatpush.bf16.msra.mxu0 0
      %795 = vmatpush.bf16.msra.mxu0 0
      %796 = vmatpush.bf16.msra.mxu0 %v710
      %797 = vmatpush.bf16.msra.mxu0 %v709
      %798 = vmatmul.bf16.gmra.mxu0 %v779
      %v799 = vpop.f32.mrf.mxu0
      %v800 = vadd.f32 %v679, %v799
      %v801 = vpop.f32.mrf.mxu0
      %v802 = vadd.f32 %v679, %v801
      %803 = vmatmul.bf16.gmra.mxu0 %v782
      %v804 = vpop.f32.mrf.mxu0
      %v805 = vadd.f32 %v679, %v804
      %v806 = vpop.f32.mrf.mxu0
      %v807 = vadd.f32 %v679, %v806
      %808 = vmatmul.bf16.gmra.mxu0 %v785
      %v809 = vpop.f32.mrf.mxu0
      %v810 = vadd.f32 %v679, %v809
      %v811 = vpop.f32.mrf.mxu0
      %v812 = vadd.f32 %v679, %v811
      %813 = vmatmul.bf16.gmra.mxu0 %v788
      %v814 = vpop.f32.mrf.mxu0
      %v815 = vadd.f32 %v679, %v814
      %v816 = vpop.f32.mrf.mxu0
      %v817 = vadd.f32 %v679, %v816
      %818 = vdwg.mxu0
      %v819 = vmax.f32 %v800, 0.0
      %v820 = vmax.f32 %v802, 0.0
      %v821 = vmax.f32 %v805, 0.0
      %v822 = vmax.f32 %v807, 0.0
      %v823 = vmax.f32 %v810, 0.0
      %v824 = vmax.f32 %v812, 0.0
      %v825 = vmax.f32 %v815, 0.0
      %v826 = vmax.f32 %v817, 0.0
      %v827 = vadd.f32 %v657, %v819
      %v828 = vadd.f32 %v658, %v820
      %v829 = vadd.f32 %v659, %v821
      %v830 = vadd.f32 %v660, %v822
      %v831 = vadd.f32 %v661, %v823
      %v832 = vadd.f32 %v662, %v824
      %v833 = vadd.f32 %v663, %v825
      %v834 = vadd.f32 %v664, %v826
      %835 = vrot.lane.b32.xlu0 %v697, 64
      %v836 = vpop.permute.xlu0 %835
      %837 = vrot.lane.b32.xlu0 %v698, 64
      %v838 = vpop.permute.xlu0 %837
      %839 = vrot.lane.b32.xlu0 %v699, 64
      %v840 = vpop.permute.xlu0 %839
      %841 = vrot.lane.b32.xlu0 %v700, 64
      %v842 = vpop.permute.xlu0 %841
      %v844 = vsel %vm557, %v836, 0
      %v847 = vsel %vm557, %v838, 0
      %v850 = vsel %vm557, %v840, 0
      %v853 = vsel %vm557, %v842, 0
      %855 = vmatpush.bf16.msra.mxu0 0
      %856 = vmatpush.bf16.msra.mxu0 0
      %857 = vmatpush.bf16.msra.mxu0 0
      %858 = vmatpush.bf16.msra.mxu0 0
      %859 = vmatpush.bf16.msra.mxu0 0
      %860 = vmatpush.bf16.msra.mxu0 0
      %861 = vmatpush.bf16.msra.mxu0 %v710
      %862 = vmatpush.bf16.msra.mxu0 %v709
      %863 = vmatmul.bf16.gmra.mxu0 %v844
      %v864 = vpop.f32.mrf.mxu0
      %v865 = vadd.f32 %v679, %v864
      %v866 = vpop.f32.mrf.mxu0
      %v867 = vadd.f32 %v679, %v866
      %868 = vmatmul.bf16.gmra.mxu0 %v847
      %v869 = vpop.f32.mrf.mxu0
      %v870 = vadd.f32 %v679, %v869
      %v871 = vpop.f32.mrf.mxu0
      %v872 = vadd.f32 %v679, %v871
      %873 = vmatmul.bf16.gmra.mxu0 %v850
      %v874 = vpop.f32.mrf.mxu0
      %v875 = vadd.f32 %v679, %v874
      %v876 = vpop.f32.mrf.mxu0
      %v877 = vadd.f32 %v679, %v876
      %878 = vmatmul.bf16.gmra.mxu0 %v853
      %v879 = vpop.f32.mrf.mxu0
      %v880 = vadd.f32 %v679, %v879
      %v881 = vpop.f32.mrf.mxu0
      %v882 = vadd.f32 %v679, %v881
      %883 = vdwg.mxu0
      %v884 = vmax.f32 %v865, 0.0
      %v885 = vmax.f32 %v867, 0.0
      %v886 = vmax.f32 %v870, 0.0
      %v887 = vmax.f32 %v872, 0.0
      %v888 = vmax.f32 %v875, 0.0
      %v889 = vmax.f32 %v877, 0.0
      %v890 = vmax.f32 %v880, 0.0
      %v891 = vmax.f32 %v882, 0.0
      %v892 = vadd.f32 %v657, %v884
      %v893 = vadd.f32 %v658, %v885
      %v894 = vadd.f32 %v659, %v886
      %v895 = vadd.f32 %v660, %v887
      %v896 = vadd.f32 %v661, %v888
      %v897 = vadd.f32 %v662, %v889
      %v898 = vadd.f32 %v663, %v890
      %v899 = vadd.f32 %v664, %v891
      %900 = vrot.lane.b32.xlu0 %v697, 32
      %v901 = vpop.permute.xlu0 %900
      %902 = vrot.lane.b32.xlu0 %v698, 32
      %v903 = vpop.permute.xlu0 %902
      %904 = vrot.lane.b32.xlu0 %v699, 32
      %v905 = vpop.permute.xlu0 %904
      %906 = vrot.lane.b32.xlu0 %v700, 32
      %v907 = vpop.permute.xlu0 %906
      %v909 = vsel %vm557, %v901, 0
      %v912 = vsel %vm557, %v903, 0
      %v915 = vsel %vm557, %v905, 0
      %v918 = vsel %vm557, %v907, 0
      %920 = vmatpush.bf16.msra.mxu0 0
      %921 = vmatpush.bf16.msra.mxu0 0
      %922 = vmatpush.bf16.msra.mxu0 0
      %923 = vmatpush.bf16.msra.mxu0 0
      %924 = vmatpush.bf16.msra.mxu0 0
      %925 = vmatpush.bf16.msra.mxu0 0
      %926 = vmatpush.bf16.msra.mxu0 %v710
      %927 = vmatpush.bf16.msra.mxu0 %v709
      %928 = vmatmul.bf16.gmra.mxu0 %v909
      %v929 = vpop.f32.mrf.mxu0
      %v930 = vadd.f32 %v679, %v929
      %v931 = vpop.f32.mrf.mxu0
      %v932 = vadd.f32 %v679, %v931
      %933 = vmatmul.bf16.gmra.mxu0 %v912
      %v934 = vpop.f32.mrf.mxu0
      %v935 = vadd.f32 %v679, %v934
      %v936 = vpop.f32.mrf.mxu0
      %v937 = vadd.f32 %v679, %v936
      %938 = vmatmul.bf16.gmra.mxu0 %v915
      %v939 = vpop.f32.mrf.mxu0
      %v940 = vadd.f32 %v679, %v939
      %v941 = vpop.f32.mrf.mxu0
      %v942 = vadd.f32 %v679, %v941
      %943 = vmatmul.bf16.gmra.mxu0 %v918
      %v944 = vpop.f32.mrf.mxu0
      %v945 = vadd.f32 %v679, %v944
      %v946 = vpop.f32.mrf.mxu0
      %v947 = vadd.f32 %v679, %v946
      %948 = vdwg.mxu0
      %v949 = vmax.f32 %v930, 0.0
      %v950 = vmax.f32 %v932, 0.0
      %v951 = vmax.f32 %v935, 0.0
      %v952 = vmax.f32 %v937, 0.0
      %v953 = vmax.f32 %v940, 0.0
      %v954 = vmax.f32 %v942, 0.0
      %v955 = vmax.f32 %v945, 0.0
      %v956 = vmax.f32 %v947, 0.0
      %v957 = vadd.f32 %v657, %v949
      %v958 = vadd.f32 %v658, %v950
      %v959 = vadd.f32 %v659, %v951
      %v960 = vadd.f32 %v660, %v952
      %v961 = vadd.f32 %v661, %v953
      %v962 = vadd.f32 %v662, %v954
      %v963 = vadd.f32 %v663, %v955
      %v964 = vadd.f32 %v664, %v956
      %973 = vrot.lane.b32.xlu0 %v827, 64
      %v974 = vpop.permute.xlu0 %973
      %975 = vrot.lane.b32.xlu0 %v828, 64
      %v976 = vpop.permute.xlu0 %975
      %977 = vrot.lane.b32.xlu0 %v829, 64
      %v978 = vpop.permute.xlu0 %977
      %979 = vrot.lane.b32.xlu0 %v830, 64
      %v980 = vpop.permute.xlu0 %979
      %981 = vrot.lane.b32.xlu0 %v831, 64
      %v982 = vpop.permute.xlu0 %981
      %983 = vrot.lane.b32.xlu0 %v832, 64
      %v984 = vpop.permute.xlu0 %983
      %985 = vrot.lane.b32.xlu0 %v833, 64
      %v986 = vpop.permute.xlu0 %985
      %987 = vrot.lane.b32.xlu0 %v834, 64
      %v988 = vpop.permute.xlu0 %987
      %1005 = vrot.lane.b32.xlu0 %v957, 64
      %v1006 = vpop.permute.xlu0 %1005
      %1007 = vrot.lane.b32.xlu0 %v958, 64
      %v1008 = vpop.permute.xlu0 %1007
      %1009 = vrot.lane.b32.xlu0 %v959, 64
      %v1010 = vpop.permute.xlu0 %1009
      %1011 = vrot.lane.b32.xlu0 %v960, 64
      %v1012 = vpop.permute.xlu0 %1011
      %1013 = vrot.lane.b32.xlu0 %v961, 64
      %v1014 = vpop.permute.xlu0 %1013
      %1015 = vrot.lane.b32.xlu0 %v962, 64
      %v1016 = vpop.permute.xlu0 %1015
      %1017 = vrot.lane.b32.xlu0 %v963, 64
      %v1018 = vpop.permute.xlu0 %1017
      %1019 = vrot.lane.b32.xlu0 %v964, 64
      %v1020 = vpop.permute.xlu0 %1019
      %vm1029 = vcmask 523264
      %v1030 = vsel %vm1029, %v762, %v974
      %v1031 = vsel %vm1029, %v763, %v976
      %v1032 = vsel %vm1029, %v764, %v978
      %v1033 = vsel %vm1029, %v765, %v980
      %v1034 = vsel %vm1029, %v766, %v982
      %v1035 = vsel %vm1029, %v767, %v984
      %v1036 = vsel %vm1029, %v768, %v986
      %v1037 = vsel %vm1029, %v769, %v988
      %v1038 = vsel %vm1029, %v892, %v1006
      %v1039 = vsel %vm1029, %v893, %v1008
      %v1040 = vsel %vm1029, %v894, %v1010
      %v1041 = vsel %vm1029, %v895, %v1012
      %v1042 = vsel %vm1029, %v896, %v1014
      %v1043 = vsel %vm1029, %v897, %v1016
      %v1044 = vsel %vm1029, %v898, %v1018
      %v1045 = vsel %vm1029, %v899, %v1020
      %1046 = vst [vmem:[%s330] sm:$0xff] %v1030
      %1047 = vst [vmem:[%s330 + $0x8] sm:$0xff] %v1038
      %1048 = vst [vmem:[%s330 + $0x10] sm:$0xff] %v1031
      %1049 = vst [vmem:[%s330 + $0x18] sm:$0xff] %v1039
      %1050 = vst [vmem:[%s330 + $0x20] sm:$0xff] %v1032
      %1051 = vst [vmem:[%s330 + $0x28] sm:$0xff] %v1040
      %1052 = vst [vmem:[%s330 + $0x30] sm:$0xff] %v1033
      %1053 = vst [vmem:[%s330 + $0x38] sm:$0xff] %v1041
      %1054 = vst [vmem:[%s330 + $0x40] sm:$0xff] %v1034
      %1055 = vst [vmem:[%s330 + $0x48] sm:$0xff] %v1042
      %1056 = vst [vmem:[%s330 + $0x50] sm:$0xff] %v1035
      %1057 = vst [vmem:[%s330 + $0x58] sm:$0xff] %v1043
      %1058 = vst [vmem:[%s330 + $0x60] sm:$0xff] %v1036
      %1059 = vst [vmem:[%s330 + $0x68] sm:$0xff] %v1044
      %1060 = vst [vmem:[%s330 + $0x70] sm:$0xff] %v1037
      %1061 = vst [vmem:[%s330 + $0x78] sm:$0xff] %v1045
      %s1062 = smul.u32 8, %s22
      %p1063 = scmp.lt.s32.totalorder %s21, 1
      %s1064 = scalar_select %p1063, %s21, 1
      %p1065 = scmp.lt.s32.totalorder %s1062, 7
      %s1066 = scalar_select %p1065, %s1062, 7
      %s1067 = smul.addr %s1066, 2
      %s1068 = smul.addr %s1064, 16
      %s1069 = sadd.s32 %s1067, %s1068
      %s1070 = smul.addr %s1069, 8
      %s1071 = scalar_lea.vmem %s6, %s1070
      // Predicated region
      $region45: #{fatnet_forward.20} parent=43 // pred_check
        %p1072 = pneg %p189
      $region46: #{fatnet_forward.20} parent=43 // pred_check_branch
        %1074 = sbr.rel (%p1072) target = $region48
      $region47: #{fatnet_forward.20} parent=43 // pred_region
        %s1075 = smul.u32 8, %s22
      $region48: #{fatnet_forward.20} parent=43 // pred_fallthru
        _
    $region44: #{fatnet_forward.20} parent=5 // pred_fallthru
      _
    %p1076 = scmp.le.s32.totalorder 2, %s12
    // Predicated region
    $region49: #{fatnet_forward.20} parent=5 // pred_check
      %p1077 = pneg %p1076
    $region50: #{fatnet_forward.20} parent=5 // pred_check_branch
      %1079 = sbr.rel (%p1077) target = $region52
    $region51: #{fatnet_forward.20} parent=5 // pred_region
      %s1080 = ssub.s32 %s12, 2
      // Predicated region
      $region53: #{fatnet_forward.20} parent=51 // pred_check
        %p1081 = pneg %p195
      $region54: #{fatnet_forward.20} parent=51 // pred_check_branch
        %1083 = sbr.rel (%p1081) target = $region56
      $region55: #{fatnet_forward.20} parent=51 // pred_region
        %s1084 = smul.u32 8, %s24
        %p1085 = scmp.lt.s32.totalorder %s23, 1
        %s1086 = scalar_select %p1085, %s23, 1
        %p1087 = scmp.lt.s32.totalorder %s1084, 7
        %s1088 = scalar_select %p1087, %s1084, 7
        %s1089 = smul.addr %s1088, 2
        %s1090 = smul.addr %s1086, 16
        %s1091 = sadd.s32 %s1089, %s1090
        %s1092 = smul.addr %s1091, 8
        %s1093 = scalar_lea.vmem %s6, %s1092
      $region56: #{fatnet_forward.20} parent=51 // pred_fallthru
        _
    $region52: #{fatnet_forward.20} parent=5 // pred_fallthru
      _
  $region6: #{fatnet_forward.20} parent=0 // loop_footer
    %s16 = sadd.s32 1, %s12
  $region7: #{fatnet_forward.20} parent=0 // loop_footer_branch
    %11 = sbr.rel target = $region3
  $region8: #{fatnet_forward.20} parent=0 // loop_exit
    _

// kernel: fatnet_forward.21
$region0: #{fatnet_forward.21}
  #allocation0 [shape = 'u32[]', space=smem, size = 0x4, offset = 0x4, fixed_abs, tag = 'smem constant byte address 0x4 - core index']
  #allocation1 [shape = 'u32[72,128]{1,0:T(1,128)}', space=vmem, size = 0x9000, scoped, tag = 'internal scratch']
  %s0 = inlined_call_operand.vmem [shape: bf16[2,64,576], index: 0, kind: input, shape index: {}]
  %s1 = inlined_call_operand.vmem [shape: bf16[2,64,256], index: 1, kind: input, shape index: {}]
  %s2 = inlined_call_operand.vmem [shape: bf16[576,64], index: 2, kind: input, shape index: {}]
  %s3 = inlined_call_operand.vmem [shape: f32[1,64], index: 3, kind: input, shape index: {}]
  %s4 = inlined_call_operand.vmem [shape: bf16[64,64], index: 4, kind: input, shape index: {}]
  %s5 = inlined_call_operand.vmem [shape: f32[1,64], index: 5, kind: input, shape index: {}]
  %s6 = inlined_call_operand.vmem [shape: f32[2,64,256], index: 6, kind: output, shape index: {}]
  %s7 = sld [smem:[#allocation0]]
  $region57: #{fatnet_forward.21} parent=0
    _
  %s9 = ssub.s32 1, %s7
  %s10 = scalar_select 0, %s9, %s7
  loop: start=0, step=1, limit=4
  $region2: #{fatnet_forward.21} parent=0 // loop_pre_header
    _
  $region3: #{fatnet_forward.21} parent=0 // loop_header
    %s12 = sphi 0, %s16
    %p13 = scmp.ge.s32.totalorder %s12, 4
    %s19 = sphi 0, %s31
    %s20 = sphi 0, %s27
    %s21 = sphi 0, %s19
    %s22 = sphi 0, %s20
    %s23 = sphi 0, %s21
    %s24 = sphi 0, %s22
    %s36 = sphi 0, %s38
    %s39 = sphi 0, %s36
    %s40 = sphi 0, %s39
    %s56 = sphi 0, %s40
    %s64 = sphi 0, %s66
    %s67 = sphi 0, %s64
    %s68 = sphi 0, %s67
    %s84 = sphi 0, %s68
    %s88 = sphi 0, %s88
    %s90 = sphi 0, %s88
    %s91 = sphi 0, %s90
    %s105 = sphi 0, %s91
    %s109 = sphi 0, %s109
    %s111 = sphi 0, %s109
    %s112 = sphi 0, %s111
    %s126 = sphi 0, %s112
    %s130 = sphi 0, %s130
    %s132 = sphi 0, %s130
    %s133 = sphi 0, %s132
    %s147 = sphi 0, %s133
    %s151 = sphi 0, %s151
    %s153 = sphi 0, %s151
    %s154 = sphi 0, %s153
    %s168 = sphi 0, %s154
    %s176 = sphi 0, %s178
    %s179 = sphi 0, %s176
    %s180 = sphi 0, %s179
    %s196 = sphi 0, %s180
  $region4: #{fatnet_forward.21} parent=0 // loop_header_branch
    %15 = sbr.rel (%p13) target = $region8
  $region5: #{fatnet_forward.21} parent=0 // loop_body
    %s17 = ssub.s32 %s12, 1
    %s18 = ssub.s32 %s12, 2
    %s25 = sadd.s32 1, %s20
    %p26 = scmp.ge.s32.totalorder %s25, 1
    %s27 = scalar_select %p26, 0, %s25
    %s28 = sadd.s32 1, %s19
    %s29 = scalar_select %p26, %s28, %s19
    %p30 = scmp.ge.s32.totalorder %s29, 2
    %s31 = scalar_select %p30, 0, %s29
    %s32 = ssub.s32 %s19, %s31
    %s33 = ssub.s32 %s20, %s27
    %s34 = sor.u32 %s32, %s33
    %p35 = scmp.eq.s32.totalorder %s34, 0
    %s37 = sadd.s32 %s36, 1
    %s38 = scalar_select %p35, %s36, %s37
    %p41 = pneg %p35
    %p42 = scmp.eq.s32.totalorder %s12, 1
    %p43 = por %p41, %p42
    %p44 = scmp.ne.s32.totalorder %s36, %s39
    %p45 = scmp.eq.s32.totalorder %s12, 0
    %p46 = por %p44, %p45
    %p47 = scmp.ne.s32.totalorder %s36, %s39
    %p48 = scmp.eq.s32.totalorder %s17, 1
    %p49 = por %p47, %p48
    %p50 = scmp.ne.s32.totalorder %s39, %s40
    %p51 = scmp.eq.s32.totalorder %s17, 0
    %p52 = por %p50, %p51
    %p53 = scmp.ne.s32.totalorder %s39, %s40
    %p54 = scmp.eq.s32.totalorder %s18, 1
    %p55 = por %p53, %p54
    %p57 = scmp.ne.s32.totalorder %s40, %s56
    %p58 = scmp.eq.s32.totalorder %s18, 0
    %p59 = por %p57, %p58
    %s60 = ssub.s32 %s19, %s31
    %s61 = ssub.s32 %s20, %s27
    %s62 = sor.u32 %s60, %s61
    %p63 = scmp.eq.s32.totalorder %s62, 0
    %s65 = sadd.s32 %s64, 1
    %s66 = scalar_select %p63, %s64, %s65
    %p69 = pneg %p63
    %p70 = scmp.eq.s32.totalorder %s12, 1
    %p71 = por %p69, %p70
    %p72 = scmp.ne.s32.totalorder %s64, %s67
    %p73 = scmp.eq.s32.totalorder %s12, 0
    %p74 = por %p72, %p73
    %p75 = scmp.ne.s32.totalorder %s64, %s67
    %p76 = scmp.eq.s32.totalorder %s17, 1
    %p77 = por %p75, %p76
    %p78 = scmp.ne.s32.totalorder %s67, %s68
    %p79 = scmp.eq.s32.totalorder %s17, 0
    %p80 = por %p78, %p79
    %p81 = scmp.ne.s32.totalorder %s67, %s68
    %p82 = scmp.eq.s32.totalorder %s18, 1
    %p83 = por %p81, %p82
    %p85 = scmp.ne.s32.totalorder %s68, %s84
    %p86 = scmp.eq.s32.totalorder %s18, 0
    %p87 = por %p85, %p86
    %s89 = sadd.s32 %s88, 1
    %p92 = scmp.eq.s32.totalorder %s12, 1
    %p93 = scmp.ne.s32.totalorder %s88, %s90
    %p94 = scmp.eq.s32.totalorder %s12, 0
    %p95 = por %p93, %p94
    %p96 = scmp.ne.s32.totalorder %s88, %s90
    %p97 = scmp.eq.s32.totalorder %s17, 1
    %p98 = por %p96, %p97
    %p99 = scmp.ne.s32.totalorder %s90, %s91
    %p100 = scmp.eq.s32.totalorder %s17, 0
    %p101 = por %p99, %p100
    %p102 = scmp.ne.s32.totalorder %s90, %s91
    %p103 = scmp.eq.s32.totalorder %s18, 1
    %p104 = por %p102, %p103
    %p106 = scmp.ne.s32.totalorder %s91, %s105
    %p107 = scmp.eq.s32.totalorder %s18, 0
    %p108 = por %p106, %p107
    %s110 = sadd.s32 %s109, 1
    %p113 = scmp.eq.s32.totalorder %s12, 1
    %p114 = scmp.ne.s32.totalorder %s109, %s111
    %p115 = scmp.eq.s32.totalorder %s12, 0
    %p116 = por %p114, %p115
    %p117 = scmp.ne.s32.totalorder %s109, %s111
    %p118 = scmp.eq.s32.totalorder %s17, 1
    %p119 = por %p117, %p118
    %p120 = scmp.ne.s32.totalorder %s111, %s112
    %p121 = scmp.eq.s32.totalorder %s17, 0
    %p122 = por %p120, %p121
    %p123 = scmp.ne.s32.totalorder %s111, %s112
    %p124 = scmp.eq.s32.totalorder %s18, 1
    %p125 = por %p123, %p124
    %p127 = scmp.ne.s32.totalorder %s112, %s126
    %p128 = scmp.eq.s32.totalorder %s18, 0
    %p129 = por %p127, %p128
    %s131 = sadd.s32 %s130, 1
    %p134 = scmp.eq.s32.totalorder %s12, 1
    %p135 = scmp.ne.s32.totalorder %s130, %s132
    %p136 = scmp.eq.s32.totalorder %s12, 0
    %p137 = por %p135, %p136
    %p138 = scmp.ne.s32.totalorder %s130, %s132
    %p139 = scmp.eq.s32.totalorder %s17, 1
    %p140 = por %p138, %p139
    %p141 = scmp.ne.s32.totalorder %s132, %s133
    %p142 = scmp.eq.s32.totalorder %s17, 0
    %p143 = por %p141, %p142
    %p144 = scmp.ne.s32.totalorder %s132, %s133
    %p145 = scmp.eq.s32.totalorder %s18, 1
    %p146 = por %p144, %p145
    %p148 = scmp.ne.s32.totalorder %s133, %s147
    %p149 = scmp.eq.s32.totalorder %s18, 0
    %p150 = por %p148, %p149
    %s152 = sadd.s32 %s151, 1
    %p155 = scmp.eq.s32.totalorder %s12, 1
    %p156 = scmp.ne.s32.totalorder %s151, %s153
    %p157 = scmp.eq.s32.totalorder %s12, 0
    %p158 = por %p156, %p157
    %p159 = scmp.ne.s32.totalorder %s151, %s153
    %p160 = scmp.eq.s32.totalorder %s17, 1
    %p161 = por %p159, %p160
    %p162 = scmp.ne.s32.totalorder %s153, %s154
    %p163 = scmp.eq.s32.totalorder %s17, 0
    %p164 = por %p162, %p163
    %p165 = scmp.ne.s32.totalorder %s153, %s154
    %p166 = scmp.eq.s32.totalorder %s18, 1
    %p167 = por %p165, %p166
    %p169 = scmp.ne.s32.totalorder %s154, %s168
    %p170 = scmp.eq.s32.totalorder %s18, 0
    %p171 = por %p169, %p170
    %s172 = ssub.s32 %s19, %s31
    %s173 = ssub.s32 %s20, %s27
    %s174 = sor.u32 %s172, %s173
    %p175 = scmp.eq.s32.totalorder %s174, 0
    %s177 = sadd.s32 %s176, 1
    %s178 = scalar_select %p175, %s176, %s177
    %p181 = pneg %p175
    %p182 = scmp.eq.s32.totalorder %s12, 1
    %p183 = por %p181, %p182
    %p184 = scmp.ne.s32.totalorder %s176, %s179
    %p185 = scmp.eq.s32.totalorder %s12, 0
    %p186 = por %p184, %p185
    %p187 = scmp.ne.s32.totalorder %s176, %s179
    %p188 = scmp.eq.s32.totalorder %s17, 1
    %p189 = por %p187, %p188
    %p190 = scmp.ne.s32.totalorder %s179, %s180
    %p191 = scmp.eq.s32.totalorder %s17, 0
    %p192 = por %p190, %p191
    %p193 = scmp.ne.s32.totalorder %s179, %s180
    %p194 = scmp.eq.s32.totalorder %s18, 1
    %p195 = por %p193, %p194
    %p197 = scmp.ne.s32.totalorder %s180, %s196
    %p198 = scmp.eq.s32.totalorder %s18, 0
    %p199 = por %p197, %p198
    %p200 = scmp.le.s32.totalorder 1, %s12
    %p201 = scmp.lt.s32.totalorder %s12, 3
    %p202 = pnand %p200, %p201
    %p203 = pneg %p202
    // Predicated region
    $region9: #{fatnet_forward.21} parent=5 // pred_check
      _
    $region10: #{fatnet_forward.21} parent=5 // pred_check_branch
      %205 = sbr.rel (%p202) target = $region12
    $region11: #{fatnet_forward.21} parent=5 // pred_region
      %s206 = ssub.s32 %s12, 1
      // Predicated region
      $region13: #{fatnet_forward.21} parent=11 // pred_check
        %p207 = pneg %p101
      $region14: #{fatnet_forward.21} parent=11 // pred_check_branch
        %209 = sbr.rel (%p207) target = $region16
      $region15: #{fatnet_forward.21} parent=11 // pred_region
        _
      $region16: #{fatnet_forward.21} parent=11 // pred_fallthru
        _
      // Predicated region
      $region17: #{fatnet_forward.21} parent=11 // pred_check
        %p210 = pneg %p122
      $region18: #{fatnet_forward.21} parent=11 // pred_check_branch
        %212 = sbr.rel (%p210) target = $region20
      $region19: #{fatnet_forward.21} parent=11 // pred_region
        _
      $region20: #{fatnet_forward.21} parent=11 // pred_fallthru
        _
      // Predicated region
      $region21: #{fatnet_forward.21} parent=11 // pred_check
        %p213 = pneg %p143
      $region22: #{fatnet_forward.21} parent=11 // pred_check_branch
        %215 = sbr.rel (%p213) target = $region24
      $region23: #{fatnet_forward.21} parent=11 // pred_region
        _
      $region24: #{fatnet_forward.21} parent=11 // pred_fallthru
        _
      // Predicated region
      $region25: #{fatnet_forward.21} parent=11 // pred_check
        %p216 = pneg %p164
      $region26: #{fatnet_forward.21} parent=11 // pred_check_branch
        %218 = sbr.rel (%p216) target = $region28
      $region27: #{fatnet_forward.21} parent=11 // pred_region
        _
      $region28: #{fatnet_forward.21} parent=11 // pred_fallthru
        _
    $region12: #{fatnet_forward.21} parent=5 // pred_fallthru
      _
    %p219 = scmp.lt.s32.totalorder %s12, 2
    // Predicated region
    $region29: #{fatnet_forward.21} parent=5 // pred_check
      %p220 = pneg %p219
    $region30: #{fatnet_forward.21} parent=5 // pred_check_branch
      %222 = sbr.rel (%p220) target = $region32
    $region31: #{fatnet_forward.21} parent=5 // pred_region
      // Predicated region
      $region33: #{fatnet_forward.21} parent=31 // pred_check
        %p223 = pneg %p46
      $region34: #{fatnet_forward.21} parent=31 // pred_check_branch
        %225 = sbr.rel (%p223) target = $region36
      $region35: #{fatnet_forward.21} parent=31 // pred_region
        %s226 = smul.u32 8, %s20
        %p227 = scmp.lt.s32.totalorder %s19, 1
        %s228 = scalar_select %p227, %s19, 1
        %p229 = scmp.lt.s32.totalorder %s226, 7
        %s230 = scalar_select %p229, %s226, 7
        %s231 = smul.addr %s230, 5
        %s232 = smul.addr %s228, 40
        %s233 = sadd.s32 %s231, %s232
        %s234 = smul.addr %s233, 4
        %s235 = scalar_lea.vmem %s0, %s234
        %s236 = smul.u32 8, %s20
      $region36: #{fatnet_forward.21} parent=31 // pred_fallthru
        _
      // Predicated region
      $region37: #{fatnet_forward.21} parent=31 // pred_check
        %p237 = pneg %p74
      $region38: #{fatnet_forward.21} parent=31 // pred_check_branch
        %239 = sbr.rel (%p237) target = $region40
      $region39: #{fatnet_forward.21} parent=31 // pred_region
        %s240 = smul.u32 8, %s20
        %p241 = scmp.lt.s32.totalorder %s19, 1
        %s242 = scalar_select %p241, %s19, 1
        %p243 = scmp.lt.s32.totalorder %s240, 7
        %s244 = scalar_select %p243, %s240, 7
        %s245 = smul.addr %s244, 2
        %s246 = smul.addr %s242, 16
        %s247 = sadd.s32 %s245, %s246
        %s248 = smul.addr %s247, 4
        %s249 = scalar_lea.vmem %s1, %s248
        %s250 = smul.u32 8, %s20
      $region40: #{fatnet_forward.21} parent=31 // pred_fallthru
        _
    $region32: #{fatnet_forward.21} parent=5 // pred_fallthru
      _
    %p251 = scmp.le.s32.totalorder 1, %s12
    %p252 = scmp.lt.s32.totalorder %s12, 3
    %p253 = pnand %p251, %p252
    %p254 = pneg %p253
    // Predicated region
    $region41: #{fatnet_forward.21} parent=5 // pred_check
      _
    $region42: #{fatnet_forward.21} parent=5 // pred_check_branch
      %256 = sbr.rel (%p253) target = $region44
    $region43: #{fatnet_forward.21} parent=5 // pred_region
      %s257 = ssub.s32 %s12, 1
      %s258 = smul.u32 8, %s22
      %p259 = scmp.lt.s32.totalorder %s21, 1
      %s260 = scalar_select %p259, %s21, 1
      %p261 = scmp.lt.s32.totalorder %s258, 7
      %s262 = scalar_select %p261, %s258, 7
      %s263 = smul.addr %s262, 5
      %s264 = smul.addr %s260, 40
      %s265 = sadd.s32 %s263, %s264
      %s266 = smul.addr %s265, 4
      %s267 = scalar_lea.vmem %s0, %s266
      %p268 = pneg %p52
      %p269 = pneg %p49
      %s270 = smul.u32 8, %s22
      %p271 = scmp.lt.s32.totalorder %s21, 1
      %s272 = scalar_select %p271, %s21, 1
      %p273 = scmp.lt.s32.totalorder %s270, 7
      %s274 = scalar_select %p273, %s270, 7
      %s275 = smul.addr %s274, 2
      %s276 = smul.addr %s272, 16
      %s277 = sadd.s32 %s275, %s276
      %s278 = smul.addr %s277, 4
      %s279 = scalar_lea.vmem %s1, %s278
      %p280 = pneg %p80
      %p281 = pneg %p77
      %p282 = pneg %p101
      %p283 = pneg %p98
      %p284 = pneg %p122
      %p285 = pneg %p119
      %p286 = pneg %p143
      %p287 = pneg %p140
      %p288 = pneg %p164
      %p289 = pneg %p161
      %p290 = pneg %p192
      %p291 = pneg %p189
      %s292 = smul.u32 8, %s22
      %p293 = scmp.lt.s32.totalorder %s21, 1
      %s294 = scalar_select %p293, %s21, 1
      %p295 = scmp.lt.s32.totalorder %s292, 7
      %s296 = scalar_select %p295, %s292, 7
      %s297 = smul.addr %s296, 2
      %s298 = smul.addr %s294, 16
      %s299 = sadd.s32 %s297, %s298
      %s300 = smul.addr %s299, 8
      %s301 = scalar_lea.vmem %s6, %s300
      %s302 = smul.u32 8, %s22
      %p303 = scmp.lt.s32.totalorder %s21, 1
      %s304 = scalar_select %p303, %s21, 1
      %p305 = scmp.lt.s32.totalorder %s302, 7
      %s306 = scalar_select %p305, %s302, 7
      %s307 = smul.addr %s306, 5
      %s308 = smul.addr %s304, 40
      %s309 = sadd.s32 %s307, %s308
      %s310 = smul.addr %s309, 4
      %s311 = scalar_lea.vmem %s0, %s310
      %s312 = smul.u32 8, %s22
      %s313 = smul.u32 8, %s22
      %p314 = scmp.lt.s32.totalorder %s21, 1
      %s315 = scalar_select %p314, %s21, 1
      %p316 = scmp.lt.s32.totalorder %s313, 7
      %s317 = scalar_select %p316, %s313, 7
      %s318 = smul.addr %s317, 2
      %s319 = smul.addr %s315, 16
      %s320 = sadd.s32 %s318, %s319
      %s321 = smul.addr %s320, 4
      %s322 = scalar_lea.vmem %s1, %s321
      %s323 = smul.u32 8, %s22
      %s324 = smul.u32 8, %s22
      %p325 = scmp.lt.s32.totalorder %s21, 1
      %s326 = scalar_select %p325, %s21, 1
      %p327 = scmp.lt.s32.totalorder %s324, 7
      %s328 = scalar_select %p327, %s324, 7
      %s329 = smul.addr %s328, 2
      %s330 = smul.addr %s326, 16
      %s331 = sadd.s32 %s329, %s330
      %s332 = smul.addr %s331, 8
      %s333 = scalar_lea.vmem %s6, %s332
      %s334 = smul.u32 8, %s22
      %v336 = vld [vmem:[%s311] sm:$0xff]
      %v337 = vld [vmem:[%s311 + $0x8] sm:$0xff]
      %v338 = vld [vmem:[%s311 + $0x10] sm:$0xf]
      %v339 = vld [vmem:[%s311 + $0x14] sm:$0xff]
      %v340 = vld [vmem:[%s311 + $0x1c] sm:$0xff]
      %v341 = vld [vmem:[%s311 + $0x24] sm:$0xf]
      %v342 = vld [vmem:[%s311 + $0x28] sm:$0xff]
      %v343 = vld [vmem:[%s311 + $0x30] sm:$0xff]
      %v344 = vld [vmem:[%s311 + $0x38] sm:$0xf]
      %v345 = vld [vmem:[%s311 + $0x3c] sm:$0xff]
      %v346 = vld [vmem:[%s311 + $0x44] sm:$0xff]
      %v347 = vld [vmem:[%s311 + $0x4c] sm:$0xf]
      %v348 = vld [vmem:[%s311 + $0x50] sm:$0xff]
      %v349 = vld [vmem:[%s311 + $0x58] sm:$0xff]
      %v350 = vld [vmem:[%s311 + $0x60] sm:$0xf]
      %v351 = vld [vmem:[%s311 + $0x64] sm:$0xff]
      %v352 = vld [vmem:[%s311 + $0x6c] sm:$0xff]
      %v353 = vld [vmem:[%s311 + $0x74] sm:$0xf]
      %v354 = vld [vmem:[%s311 + $0x78] sm:$0xff]
      %v355 = vld [vmem:[%s311 + $0x80] sm:$0xff]
      %v356 = vld [vmem:[%s311 + $0x88] sm:$0xf]
      %v357 = vld [vmem:[%s311 + $0x8c] sm:$0xff]
      %v358 = vld [vmem:[%s311 + $0x94] sm:$0xff]
      %v359 = vld [vmem:[%s311 + $0x9c] sm:$0xf]
      %v360 = vld [vmem:[%s2] sm:$0xf]
      %v361 = vld [vmem:[%s2 + $0x4] sm:$0xf]
      %v362 = vld [vmem:[%s2 + $0x8] sm:$0xf]
      %v363 = vld [vmem:[%s2 + $0xc] sm:$0xf]
      %v364 = vld [vmem:[%s2 + $0x10] sm:$0xf]
      %v365 = vld [vmem:[%s2 + $0x14] sm:$0xf]
      %v366 = vld [vmem:[%s2 + $0x18] sm:$0xf]
      %v367 = vld [vmem:[%s2 + $0x1c] sm:$0xf]
      %v368 = vld [vmem:[%s2 + $0x20] sm:$0xf]
      %v369 = vld [vmem:[%s2 + $0x24] sm:$0xf]
      %v370 = vld [vmem:[%s2 + $0x28] sm:$0xf]
      %v371 = vld [vmem:[%s2 + $0x2c] sm:$0xf]
      %v372 = vld [vmem:[%s2 + $0x30] sm:$0xf]
      %v373 = vld [vmem:[%s2 + $0x34] sm:$0xf]
      %v374 = vld [vmem:[%s2 + $0x38] sm:$0xf]
      %v375 = vld [vmem:[%s2 + $0x3c] sm:$0xf]
      %v376 = vld [vmem:[%s2 + $0x40] sm:$0xf]
      %v377 = vld [vmem:[%s2 + $0x44] sm:$0xf]
      %v378 = vld [vmem:[%s2 + $0x48] sm:$0xf]
      %v379 = vld [vmem:[%s2 + $0x4c] sm:$0xf]
      %v380 = vld [vmem:[%s2 + $0x50] sm:$0xf]
      %v381 = vld [vmem:[%s2 + $0x54] sm:$0xf]
      %v382 = vld [vmem:[%s2 + $0x58] sm:$0xf]
      %v383 = vld [vmem:[%s2 + $0x5c] sm:$0xf]
      %v384 = vld [vmem:[%s2 + $0x60] sm:$0xf]
      %v385 = vld [vmem:[%s2 + $0x64] sm:$0xf]
      %v386 = vld [vmem:[%s2 + $0x68] sm:$0xf]
      %v387 = vld [vmem:[%s2 + $0x6c] sm:$0xf]
      %v388 = vld [vmem:[%s2 + $0x70] sm:$0xf]
      %v389 = vld [vmem:[%s2 + $0x74] sm:$0xf]
      %v390 = vld [vmem:[%s2 + $0x78] sm:$0xf]
      %v391 = vld [vmem:[%s2 + $0x7c] sm:$0xf]
      %v392 = vld [vmem:[%s2 + $0x80] sm:$0xf]
      %v393 = vld [vmem:[%s2 + $0x84] sm:$0xf]
      %v394 = vld [vmem:[%s2 + $0x88] sm:$0xf]
      %v395 = vld [vmem:[%s2 + $0x8c] sm:$0xf]
      %v396 = vld [vmem:[%s2 + $0x90] sm:$0xf]
      %v397 = vld [vmem:[%s2 + $0x94] sm:$0xf]
      %v398 = vld [vmem:[%s2 + $0x98] sm:$0xf]
      %v399 = vld [vmem:[%s2 + $0x9c] sm:$0xf]
      %v400 = vld [vmem:[%s2 + $0xa0] sm:$0xf]
      %v401 = vld [vmem:[%s2 + $0xa4] sm:$0xf]
      %v402 = vld [vmem:[%s2 + $0xa8] sm:$0xf]
      %v403 = vld [vmem:[%s2 + $0xac] sm:$0xf]
      %v404 = vld [vmem:[%s2 + $0xb0] sm:$0xf]
      %v405 = vld [vmem:[%s2 + $0xb4] sm:$0xf]
      %v406 = vld [vmem:[%s2 + $0xb8] sm:$0xf]
      %v407 = vld [vmem:[%s2 + $0xbc] sm:$0xf]
      %v408 = vld [vmem:[%s2 + $0xc0] sm:$0xf]
      %v409 = vld [vmem:[%s2 + $0xc4] sm:$0xf]
      %v410 = vld [vmem:[%s2 + $0xc8] sm:$0xf]
      %v411 = vld [vmem:[%s2 + $0xcc] sm:$0xf]
      %v412 = vld [vmem:[%s2 + $0xd0] sm:$0xf]
      %v413 = vld [vmem:[%s2 + $0xd4] sm:$0xf]
      %v414 = vld [vmem:[%s2 + $0xd8] sm:$0xf]
      %v415 = vld [vmem:[%s2 + $0xdc] sm:$0xf]
      %v416 = vld [vmem:[%s2 + $0xe0] sm:$0xf]
      %v417 = vld [vmem:[%s2 + $0xe4] sm:$0xf]
      %v418 = vld [vmem:[%s2 + $0xe8] sm:$0xf]
      %v419 = vld [vmem:[%s2 + $0xec] sm:$0xf]
      %v420 = vld [vmem:[%s2 + $0xf0] sm:$0xf]
      %v421 = vld [vmem:[%s2 + $0xf4] sm:$0xf]
      %v422 = vld [vmem:[%s2 + $0xf8] sm:$0xf]
      %v423 = vld [vmem:[%s2 + $0xfc] sm:$0xf]
      %v424 = vld [vmem:[%s2 + $0x100] sm:$0xf]
      %v425 = vld [vmem:[%s2 + $0x104] sm:$0xf]
      %v426 = vld [vmem:[%s2 + $0x108] sm:$0xf]
      %v427 = vld [vmem:[%s2 + $0x10c] sm:$0xf]
      %v428 = vld [vmem:[%s2 + $0x110] sm:$0xf]
      %v429 = vld [vmem:[%s2 + $0x114] sm:$0xf]
      %v430 = vld [vmem:[%s2 + $0x118] sm:$0xf]
      %v431 = vld [vmem:[%s2 + $0x11c] sm:$0xf]
      %v432 = vld [vmem:[%s3] sm:$0x1]
      %v434 = vperm.slane %v432, 0
      %v460 = vunpack.c.l.b16 %v336
      %v461 = vunpack.c.h.b16 %v336
      %v462 = vunpack.c.l.b16 %v337
      %v463 = vunpack.c.h.b16 %v337
      %v464 = vunpack.c.l.b16 %v338
      %v465 = vunpack.c.l.b16 %v339
      %v466 = vunpack.c.h.b16 %v339
      %v467 = vunpack.c.l.b16 %v340
      %v468 = vunpack.c.h.b16 %v340
      %v469 = vunpack.c.l.b16 %v341
      %v470 = vunpack.c.l.b16 %v342
      %v471 = vunpack.c.h.b16 %v342
      %v472 = vunpack.c.l.b16 %v343
      %v473 = vunpack.c.h.b16 %v343
      %v474 = vunpack.c.l.b16 %v344
      %v475 = vunpack.c.l.b16 %v345
      %v476 = vunpack.c.h.b16 %v345
      %v477 = vunpack.c.l.b16 %v346
      %v478 = vunpack.c.h.b16 %v346
      %v479 = vunpack.c.l.b16 %v347
      %v480 = vunpack.c.l.b16 %v348
      %v481 = vunpack.c.h.b16 %v348
      %v482 = vunpack.c.l.b16 %v349
      %v483 = vunpack.c.h.b16 %v349
      %v484 = vunpack.c.l.b16 %v350
      %v485 = vunpack.c.l.b16 %v351
      %v486 = vunpack.c.h.b16 %v351
      %v487 = vunpack.c.l.b16 %v352
      %v488 = vunpack.c.h.b16 %v352
      %v489 = vunpack.c.l.b16 %v353
      %v490 = vunpack.c.l.b16 %v354
      %v491 = vunpack.c.h.b16 %v354
      %v492 = vunpack.c.l.b16 %v355
      %v493 = vunpack.c.h.b16 %v355
      %v494 = vunpack.c.l.b16 %v356
      %v495 = vunpack.c.l.b16 %v357
      %v496 = vunpack.c.h.b16 %v357
      %v497 = vunpack.c.l.b16 %v358
      %v498 = vunpack.c.h.b16 %v358
      %v499 = vunpack.c.l.b16 %v359
      %v500 = vpack.c.b16 %v465, %v460
      %v501 = vpack.c.b16 %v466, %v461
      %v502 = vpack.c.b16 %v467, %v462
      %v503 = vpack.c.b16 %v468, %v463
      %v504 = vpack.c.b16 %v469, %v464
      %v505 = vpack.c.b16 %v475, %v470
      %v506 = vpack.c.b16 %v476, %v471
      %v507 = vpack.c.b16 %v477, %v472
      %v508 = vpack.c.b16 %v478, %v473
      %v509 = vpack.c.b16 %v479, %v474
      %v510 = vpack.c.b16 %v485, %v480
      %v511 = vpack.c.b16 %v486, %v481
      %v512 = vpack.c.b16 %v487, %v482
      %v513 = vpack.c.b16 %v488, %v483
      %v514 = vpack.c.b16 %v489, %v484
      %v515 = vpack.c.b16 %v495, %v490
      %v516 = vpack.c.b16 %v496, %v491
      %v517 = vpack.c.b16 %v497, %v492
      %v518 = vpack.c.b16 %v498, %v493
      %v519 = vpack.c.b16 %v499, %v494
      %v608 = vunpack.c.l.b16 %v360
      %v609 = vunpack.c.l.b16 %v361
      %v610 = vunpack.c.l.b16 %v362
      %v611 = vunpack.c.l.b16 %v363
      %v612 = vunpack.c.l.b16 %v364
      %v613 = vunpack.c.l.b16 %v365
      %v614 = vunpack.c.l.b16 %v366
      %v615 = vunpack.c.l.b16 %v367
      %v616 = vunpack.c.l.b16 %v368
      %v617 = vunpack.c.l.b16 %v369
      %v618 = vunpack.c.l.b16 %v370
      %v619 = vunpack.c.l.b16 %v371
      %v620 = vunpack.c.l.b16 %v372
      %v621 = vunpack.c.l.b16 %v373
      %v622 = vunpack.c.l.b16 %v374
      %v623 = vunpack.c.l.b16 %v375
      %v624 = vunpack.c.l.b16 %v376
      %v625 = vunpack.c.l.b16 %v377
      %v626 = vunpack.c.l.b16 %v378
      %v627 = vunpack.c.l.b16 %v379
      %v628 = vunpack.c.l.b16 %v380
      %v629 = vunpack.c.l.b16 %v381
      %v630 = vunpack.c.l.b16 %v382
      %v631 = vunpack.c.l.b16 %v383
      %v632 = vunpack.c.l.b16 %v384
      %v633 = vunpack.c.l.b16 %v385
      %v634 = vunpack.c.l.b16 %v386
      %v635 = vunpack.c.l.b16 %v387
      %v636 = vunpack.c.l.b16 %v388
      %v637 = vunpack.c.l.b16 %v389
      %v638 = vunpack.c.l.b16 %v390
      %v639 = vunpack.c.l.b16 %v391
      %v640 = vunpack.c.l.b16 %v392
      %v641 = vunpack.c.l.b16 %v393
      %v642 = vunpack.c.l.b16 %v394
      %v643 = vunpack.c.l.b16 %v395
      %v644 = vunpack.c.l.b16 %v396
      %v645 = vunpack.c.l.b16 %v397
      %v646 = vunpack.c.l.b16 %v398
      %v647 = vunpack.c.l.b16 %v399
      %v648 = vunpack.c.l.b16 %v400
      %v649 = vunpack.c.l.b16 %v401
      %v650 = vunpack.c.l.b16 %v402
      %v651 = vunpack.c.l.b16 %v403
      %v652 = vunpack.c.l.b16 %v404
      %v653 = vunpack.c.l.b16 %v405
      %v654 = vunpack.c.l.b16 %v406
      %v655 = vunpack.c.l.b16 %v407
      %v656 = vunpack.c.l.b16 %v408
      %v657 = vunpack.c.l.b16 %v409
      %v658 = vunpack.c.l.b16 %v410
      %v659 = vunpack.c.l.b16 %v411
      %v660 = vunpack.c.l.b16 %v412
      %v661 = vunpack.c.l.b16 %v413
      %v662 = vunpack.c.l.b16 %v414
      %v663 = vunpack.c.l.b16 %v415
      %v664 = vunpack.c.l.b16 %v416
      %v665 = vunpack.c.l.b16 %v417
      %v666 = vunpack.c.l.b16 %v418
      %v667 = vunpack.c.l.b16 %v419
      %v668 = vunpack.c.l.b16 %v420
      %v669 = vunpack.c.l.b16 %v421
      %v670 = vunpack.c.l.b16 %v422
      %v671 = vunpack.c.l.b16 %v423
      %v672 = vunpack.c.l.b16 %v424
      %v673 = vunpack.c.l.b16 %v425
      %v674 = vunpack.c.l.b16 %v426
      %v675 = vunpack.c.l.b16 %v427
      %v676 = vunpack.c.l.b16 %v428
      %v677 = vunpack.c.l.b16 %v429
      %v678 = vunpack.c.l.b16 %v430
      %v679 = vunpack.c.l.b16 %v431
      %v680 = vpack.c.b16 %v609, %v608
      %v681 = vpack.c.b16 %v611, %v610
      %v682 = vpack.c.b16 %v613, %v612
      %v683 = vpack.c.b16 %v615, %v614
      %v684 = vpack.c.b16 %v617, %v616
      %v685 = vpack.c.b16 %v619, %v618
      %v686 = vpack.c.b16 %v621, %v620
      %v687 = vpack.c.b16 %v623, %v622
      %v688 = vpack.c.b16 %v625, %v624
      %v689 = vpack.c.b16 %v627, %v626
      %v690 = vpack.c.b16 %v629, %v628
      %v691 = vpack.c.b16 %v631, %v630
      %v692 = vpack.c.b16 %v633, %v632
      %v693 = vpack.c.b16 %v635, %v634
      %v694 = vpack.c.b16 %v637, %v636
      %v695 = vpack.c.b16 %v639, %v638
      %v696 = vpack.c.b16 %v641, %v640
      %v697 = vpack.c.b16 %v643, %v642
      %v698 = vpack.c.b16 %v645, %v644
      %v699 = vpack.c.b16 %v647, %v646
      %v700 = vpack.c.b16 %v649, %v648
      %v701 = vpack.c.b16 %v651, %v650
      %v702 = vpack.c.b16 %v653, %v652
      %v703 = vpack.c.b16 %v655, %v654
      %v704 = vpack.c.b16 %v657, %v656
      %v705 = vpack.c.b16 %v659, %v658
      %v706 = vpack.c.b16 %v661, %v660
      %v707 = vpack.c.b16 %v663, %v662
      %v708 = vpack.c.b16 %v665, %v664
      %v709 = vpack.c.b16 %v667, %v666
      %v710 = vpack.c.b16 %v669, %v668
      %v711 = vpack.c.b16 %v671, %v670
      %v712 = vpack.c.b16 %v673, %v672
      %v713 = vpack.c.b16 %v675, %v674
      %v714 = vpack.c.b16 %v677, %v676
      %v715 = vpack.c.b16 %v679, %v678
      %vm752 = vcmask 523264
      %v754 = vsel %vm752, %v504, 0
      %v757 = vsel %vm752, %v509, 0
      %v760 = vsel %vm752, %v514, 0
      %v763 = vsel %vm752, %v519, 0
      %765 = vmatpush.bf16.msra.mxu0 %v687
      %766 = vmatpush.bf16.msra.mxu0 %v686
      %767 = vmatpush.bf16.msra.mxu0 %v685
      %768 = vmatpush.bf16.msra.mxu0 %v684
      %769 = vmatpush.bf16.msra.mxu0 %v683
      %770 = vmatpush.bf16.msra.mxu0 %v682
      %771 = vmatpush.bf16.msra.mxu0 %v681
      %772 = vmatpush.bf16.msra.mxu0 %v680
      %773 = vmatmul.bf16.gmra.mxu0 %v500
      %v774 = vpop.f32.mrf.mxu0
      %v775 = vadd.f32 %v434, %v774
      %v776 = vpop.f32.mrf.mxu0
      %v777 = vadd.f32 %v434, %v776
      %778 = vmatmul.bf16.gmra.mxu0 %v505
      %v779 = vpop.f32.mrf.mxu0
      %v780 = vadd.f32 %v434, %v779
      %v781 = vpop.f32.mrf.mxu0
      %v782 = vadd.f32 %v434, %v781
      %783 = vmatmul.bf16.gmra.mxu0 %v510
      %v784 = vpop.f32.mrf.mxu0
      %v785 = vadd.f32 %v434, %v784
      %v786 = vpop.f32.mrf.mxu0
      %v787 = vadd.f32 %v434, %v786
      %788 = vmatmul.bf16.gmra.mxu0 %v515
      %v789 = vpop.f32.mrf.mxu0
      %v790 = vadd.f32 %v434, %v789
      %v791 = vpop.f32.mrf.mxu0
      %v792 = vadd.f32 %v434, %v791
      %793 = vdwg.mxu0
      %794 = vmatpush.bf16.msra.mxu0 %v695
      %795 = vmatpush.bf16.msra.mxu0 %v694
      %796 = vmatpush.bf16.msra.mxu0 %v693
      %797 = vmatpush.bf16.msra.mxu0 %v692
      %798 = vmatpush.bf16.msra.mxu0 %v691
      %799 = vmatpush.bf16.msra.mxu0 %v690
      %800 = vmatpush.bf16.msra.mxu0 %v689
      %801 = vmatpush.bf16.msra.mxu0 %v688
      %802 = vmatmul.bf16.gmra.mxu0 %v501
      %v803 = vpop.f32.mrf.mxu0
      %v804 = vadd.f32 %v775, %v803
      %v805 = vpop.f32.mrf.mxu0
      %v806 = vadd.f32 %v777, %v805
      %807 = vmatmul.bf16.gmra.mxu0 %v506
      %v808 = vpop.f32.mrf.mxu0
      %v809 = vadd.f32 %v780, %v808
      %v810 = vpop.f32.mrf.mxu0
      %v811 = vadd.f32 %v782, %v810
      %812 = vmatmul.bf16.gmra.mxu0 %v511
      %v813 = vpop.f32.mrf.mxu0
      %v814 = vadd.f32 %v785, %v813
      %v815 = vpop.f32.mrf.mxu0
      %v816 = vadd.f32 %v787, %v815
      %817 = vmatmul.bf16.gmra.mxu0 %v516
      %v818 = vpop.f32.mrf.mxu0
      %v819 = vadd.f32 %v790, %v818
      %v820 = vpop.f32.mrf.mxu0
      %v821 = vadd.f32 %v792, %v820
      %822 = vdwg.mxu0
      %823 = vmatpush.bf16.msra.mxu0 %v703
      %824 = vmatpush.bf16.msra.mxu0 %v702
      %825 = vmatpush.bf16.msra.mxu0 %v701
      %826 = vmatpush.bf16.msra.mxu0 %v700
      %827 = vmatpush.bf16.msra.mxu0 %v699
      %828 = vmatpush.bf16.msra.mxu0 %v698
      %829 = vmatpush.bf16.msra.mxu0 %v697
      %830 = vmatpush.bf16.msra.mxu0 %v696
      %831 = vmatmul.bf16.gmra.mxu0 %v502
      %v832 = vpop.f32.mrf.mxu0
      %v833 = vadd.f32 %v804, %v832
      %v834 = vpop.f32.mrf.mxu0
      %v835 = vadd.f32 %v806, %v834
      %836 = vmatmul.bf16.gmra.mxu0 %v507
      %v837 = vpop.f32.mrf.mxu0
      %v838 = vadd.f32 %v809, %v837
      %v839 = vpop.f32.mrf.mxu0
      %v840 = vadd.f32 %v811, %v839
      %841 = vmatmul.bf16.gmra.mxu0 %v512
      %v842 = vpop.f32.mrf.mxu0
      %v843 = vadd.f32 %v814, %v842
      %v844 = vpop.f32.mrf.mxu0
      %v845 = vadd.f32 %v816, %v844
      %846 = vmatmul.bf16.gmra.mxu0 %v517
      %v847 = vpop.f32.mrf.mxu0
      %v848 = vadd.f32 %v819, %v847
      %v849 = vpop.f32.mrf.mxu0
      %v850 = vadd.f32 %v821, %v849
      %851 = vdwg.mxu0
      %852 = vmatpush.bf16.msra.mxu0 %v711
      %853 = vmatpush.bf16.msra.mxu0 %v710
      %854 = vmatpush.bf16.msra.mxu0 %v709
      %855 = vmatpush.bf16.msra.mxu0 %v708
      %856 = vmatpush.bf16.msra.mxu0 %v707
      %857 = vmatpush.bf16.msra.mxu0 %v706
      %858 = vmatpush.bf16.msra.mxu0 %v705
      %859 = vmatpush.bf16.msra.mxu0 %v704
      %860 = vmatmul.bf16.gmra.mxu0 %v503
      %v861 = vpop.f32.mrf.mxu0
      %v862 = vadd.f32 %v833, %v861
      %v863 = vpop.f32.mrf.mxu0
      %v864 = vadd.f32 %v835, %v863
      %865 = vmatmul.bf16.gmra.mxu0 %v508
      %v866 = vpop.f32.mrf.mxu0
      %v867 = vadd.f32 %v838, %v866
      %v868 = vpop.f32.mrf.mxu0
      %v869 = vadd.f32 %v840, %v868
      %870 = vmatmul.bf16.gmra.mxu0 %v513
      %v871 = vpop.f32.mrf.mxu0
      %v872 = vadd.f32 %v843, %v871
      %v873 = vpop.f32.mrf.mxu0
      %v874 = vadd.f32 %v845, %v873
      %875 = vmatmul.bf16.gmra.mxu0 %v518
      %v876 = vpop.f32.mrf.mxu0
      %v877 = vadd.f32 %v848, %v876
      %v878 = vpop.f32.mrf.mxu0
      %v879 = vadd.f32 %v850, %v878
      %880 = vdwg.mxu0
      %881 = vmatpush.bf16.msra.mxu0 0
      %882 = vmatpush.bf16.msra.mxu0 0
      %883 = vmatpush.bf16.msra.mxu0 0
      %884 = vmatpush.bf16.msra.mxu0 0
      %885 = vmatpush.bf16.msra.mxu0 %v715
      %886 = vmatpush.bf16.msra.mxu0 %v714
      %887 = vmatpush.bf16.msra.mxu0 %v713
      %888 = vmatpush.bf16.msra.mxu0 %v712
      %889 = vmatmul.bf16.gmra.mxu0 %v754
      %v890 = vpop.f32.mrf.mxu0
      %v891 = vadd.f32 %v862, %v890
      %v892 = vpop.f32.mrf.mxu0
      %v893 = vadd.f32 %v864, %v892
      %894 = vmatmul.bf16.gmra.mxu0 %v757
      %v895 = vpop.f32.mrf.mxu0
      %v896 = vadd.f32 %v867, %v895
      %v897 = vpop.f32.mrf.mxu0
      %v898 = vadd.f32 %v869, %v897
      %899 = vmatmul.bf16.gmra.mxu0 %v760
      %v900 = vpop.f32.mrf.mxu0
      %v901 = vadd.f32 %v872, %v900
      %v902 = vpop.f32.mrf.mxu0
      %v903 = vadd.f32 %v874, %v902
      %904 = vmatmul.bf16.gmra.mxu0 %v763
      %v905 = vpop.f32.mrf.mxu0
      %v906 = vadd.f32 %v877, %v905
      %v907 = vpop.f32.mrf.mxu0
      %v908 = vadd.f32 %v879, %v907
      %909 = vdwg.mxu0
      %v910 = vmax.f32 %v891, 0.0
      %v911 = vmax.f32 %v893, 0.0
      %v912 = vmax.f32 %v896, 0.0
      %v913 = vmax.f32 %v898, 0.0
      %v914 = vmax.f32 %v901, 0.0
      %v915 = vmax.f32 %v903, 0.0
      %v916 = vmax.f32 %v906, 0.0
      %v917 = vmax.f32 %v908, 0.0
      %v918 = vld [vmem:[%s322] sm:$0xff]
      %v919 = vld [vmem:[%s322 + $0x8] sm:$0xff]
      %v920 = vld [vmem:[%s322 + $0x10] sm:$0xff]
      %v921 = vld [vmem:[%s322 + $0x18] sm:$0xff]
      %v922 = vld [vmem:[%s322 + $0x20] sm:$0xff]
      %v923 = vld [vmem:[%s322 + $0x28] sm:$0xff]
      %v924 = vld [vmem:[%s322 + $0x30] sm:$0xff]
      %v925 = vld [vmem:[%s322 + $0x38] sm:$0xff]
      %v926 = vld [vmem:[%s4] sm:$0xf]
      %v927 = vld [vmem:[%s4 + $0x4] sm:$0xf]
      %v928 = vld [vmem:[%s4 + $0x8] sm:$0xf]
      %v929 = vld [vmem:[%s4 + $0xc] sm:$0xf]
      %v930 = vld [vmem:[%s4 + $0x10] sm:$0xf]
      %v931 = vld [vmem:[%s4 + $0x14] sm:$0xf]
      %v932 = vld [vmem:[%s4 + $0x18] sm:$0xf]
      %v933 = vld [vmem:[%s4 + $0x1c] sm:$0xf]
      %v934 = vld [vmem:[%s5] sm:$0x1]
      %v936 = vperm.slane %v934, 0
      %v946 = vunpack.c.l.b16 %v918
      %v947 = vunpack.c.l.b16 %v919
      %v948 = vunpack.c.l.b16 %v920
      %v949 = vunpack.c.l.b16 %v921
      %v950 = vunpack.c.l.b16 %v922
      %v951 = vunpack.c.l.b16 %v923
      %v952 = vunpack.c.l.b16 %v924
      %v953 = vunpack.c.l.b16 %v925
      %v954 = vpack.c.b16 %v947, %v946
      %v955 = vpack.c.b16 %v949, %v948
      %v956 = vpack.c.b16 %v951, %v950
      %v957 = vpack.c.b16 %v953, %v952
      %v966 = vunpack.c.l.b16 %v926
      %v967 = vunpack.c.l.b16 %v927
      %v968 = vunpack.c.l.b16 %v928
      %v969 = vunpack.c.l.b16 %v929
      %v970 = vunpack.c.l.b16 %v930
      %v971 = vunpack.c.l.b16 %v931
      %v972 = vunpack.c.l.b16 %v932
      %v973 = vunpack.c.l.b16 %v933
      %v974 = vpack.c.b16 %v967, %v966
      %v975 = vpack.c.b16 %v969, %v968
      %v976 = vpack.c.b16 %v971, %v970
      %v977 = vpack.c.b16 %v973, %v972
      %v983 = vsel %vm752, %v954, 0
      %v986 = vsel %vm752, %v955, 0
      %v989 = vsel %vm752, %v956, 0
      %v992 = vsel %vm752, %v957, 0
      %994 = vmatpush.bf16.msra.mxu0 0
      %995 = vmatpush.bf16.msra.mxu0 0
      %996 = vmatpush.bf16.msra.mxu0 0
      %997 = vmatpush.bf16.msra.mxu0 0
      %998 = vmatpush.bf16.msra.mxu0 %v977
      %999 = vmatpush.bf16.msra.mxu0 %v976
      %1000 = vmatpush.bf16.msra.mxu0 %v975
      %1001 = vmatpush.bf16.msra.mxu0 %v974
      %1002 = vmatmul.bf16.gmra.mxu0 %v983
      %v1003 = vpop.f32.mrf.mxu0
      %v1004 = vadd.f32 %v936, %v1003
      %v1005 = vpop.f32.mrf.mxu0
      %v1006 = vadd.f32 %v936, %v1005
      %1007 = vmatmul.bf16.gmra.mxu0 %v986
      %v1008 = vpop.f32.mrf.mxu0
      %v1009 = vadd.f32 %v936, %v1008
      %v1010 = vpop.f32.mrf.mxu0
      %v1011 = vadd.f32 %v936, %v1010
      %1012 = vmatmul.bf16.gmra.mxu0 %v989
      %v1013 = vpop.f32.mrf.mxu0
      %v1014 = vadd.f32 %v936, %v1013
      %v1015 = vpop.f32.mrf.mxu0
      %v1016 = vadd.f32 %v936, %v1015
      %1017 = vmatmul.bf16.gmra.mxu0 %v992
      %v1018 = vpop.f32.mrf.mxu0
      %v1019 = vadd.f32 %v936, %v1018
      %v1020 = vpop.f32.mrf.mxu0
      %v1021 = vadd.f32 %v936, %v1020
      %1022 = vdwg.mxu0
      %v1023 = vmax.f32 %v1004, 0.0
      %v1024 = vmax.f32 %v1006, 0.0
      %v1025 = vmax.f32 %v1009, 0.0
      %v1026 = vmax.f32 %v1011, 0.0
      %v1027 = vmax.f32 %v1014, 0.0
      %v1028 = vmax.f32 %v1016, 0.0
      %v1029 = vmax.f32 %v1019, 0.0
      %v1030 = vmax.f32 %v1021, 0.0
      %v1031 = vadd.f32 %v910, %v1023
      %v1032 = vadd.f32 %v911, %v1024
      %v1033 = vadd.f32 %v912, %v1025
      %v1034 = vadd.f32 %v913, %v1026
      %v1035 = vadd.f32 %v914, %v1027
      %v1036 = vadd.f32 %v915, %v1028
      %v1037 = vadd.f32 %v916, %v1029
      %v1038 = vadd.f32 %v917, %v1030
      %1039 = vrot.lane.b32.xlu0 %v954, 64
      %v1040 = vpop.permute.xlu0 %1039
      %1041 = vrot.lane.b32.xlu0 %v955, 64
      %v1042 = vpop.permute.xlu0 %1041
      %1043 = vrot.lane.b32.xlu0 %v956, 64
      %v1044 = vpop.permute.xlu0 %1043
      %1045 = vrot.lane.b32.xlu0 %v957, 64
      %v1046 = vpop.permute.xlu0 %1045
      %v1048 = vsel %vm752, %v1040, 0
      %v1051 = vsel %vm752, %v1042, 0
      %v1054 = vsel %vm752, %v1044, 0
      %v1057 = vsel %vm752, %v1046, 0
      %1059 = vmatpush.bf16.msra.mxu0 0
      %1060 = vmatpush.bf16.msra.mxu0 0
      %1061 = vmatpush.bf16.msra.mxu0 0
      %1062 = vmatpush.bf16.msra.mxu0 0
      %1063 = vmatpush.bf16.msra.mxu0 %v977
      %1064 = vmatpush.bf16.msra.mxu0 %v976
      %1065 = vmatpush.bf16.msra.mxu0 %v975
      %1066 = vmatpush.bf16.msra.mxu0 %v974
      %1067 = vmatmul.bf16.gmra.mxu0 %v1048
      %v1068 = vpop.f32.mrf.mxu0
      %v1069 = vadd.f32 %v936, %v1068
      %v1070 = vpop.f32.mrf.mxu0
      %v1071 = vadd.f32 %v936, %v1070
      %1072 = vmatmul.bf16.gmra.mxu0 %v1051
      %v1073 = vpop.f32.mrf.mxu0
      %v1074 = vadd.f32 %v936, %v1073
      %v1075 = vpop.f32.mrf.mxu0
      %v1076 = vadd.f32 %v936, %v1075
      %1077 = vmatmul.bf16.gmra.mxu0 %v1054
      %v1078 = vpop.f32.mrf.mxu0
      %v1079 = vadd.f32 %v936, %v1078
      %v1080 = vpop.f32.mrf.mxu0
      %v1081 = vadd.f32 %v936, %v1080
      %1082 = vmatmul.bf16.gmra.mxu0 %v1057
      %v1083 = vpop.f32.mrf.mxu0
      %v1084 = vadd.f32 %v936, %v1083
      %v1085 = vpop.f32.mrf.mxu0
      %v1086 = vadd.f32 %v936, %v1085
      %1087 = vdwg.mxu0
      %v1088 = vmax.f32 %v1069, 0.0
      %v1089 = vmax.f32 %v1071, 0.0
      %v1090 = vmax.f32 %v1074, 0.0
      %v1091 = vmax.f32 %v1076, 0.0
      %v1092 = vmax.f32 %v1079, 0.0
      %v1093 = vmax.f32 %v1081, 0.0
      %v1094 = vmax.f32 %v1084, 0.0
      %v1095 = vmax.f32 %v1086, 0.0
      %v1096 = vadd.f32 %v910, %v1088
      %v1097 = vadd.f32 %v911, %v1089
      %v1098 = vadd.f32 %v912, %v1090
      %v1099 = vadd.f32 %v913, %v1091
      %v1100 = vadd.f32 %v914, %v1092
      %v1101 = vadd.f32 %v915, %v1093
      %v1102 = vadd.f32 %v916, %v1094
      %v1103 = vadd.f32 %v917, %v1095
      %v1104 = vunpack.c.h.b16 %v918
      %v1105 = vunpack.c.h.b16 %v919
      %v1106 = vunpack.c.h.b16 %v920
      %v1107 = vunpack.c.h.b16 %v921
      %v1108 = vunpack.c.h.b16 %v922
      %v1109 = vunpack.c.h.b16 %v923
      %v1110 = vunpack.c.h.b16 %v924
      %v1111 = vunpack.c.h.b16 %v925
      %v1112 = vpack.c.b16 %v1105, %v1104
      %v1113 = vpack.c.b16 %v1107, %v1106
      %v1114 = vpack.c.b16 %v1109, %v1108
      %v1115 = vpack.c.b16 %v1111, %v1110
      %v1117 = vsel %vm752, %v1112, 0
      %v1120 = vsel %vm752, %v1113, 0
      %v1123 = vsel %vm752, %v1114, 0
      %v1126 = vsel %vm752, %v1115, 0
      %1128 = vmatpush.bf16.msra.mxu0 0
      %1129 = vmatpush.bf16.msra.mxu0 0
      %1130 = vmatpush.bf16.msra.mxu0 0
      %1131 = vmatpush.bf16.msra.mxu0 0
      %1132 = vmatpush.bf16.msra.mxu0 %v977
      %1133 = vmatpush.bf16.msra.mxu0 %v976
      %1134 = vmatpush.bf16.msra.mxu0 %v975
      %1135 = vmatpush.bf16.msra.mxu0 %v974
      %1136 = vmatmul.bf16.gmra.mxu0 %v1117
      %v1137 = vpop.f32.mrf.mxu0
      %v1138 = vadd.f32 %v936, %v1137
      %v1139 = vpop.f32.mrf.mxu0
      %v1140 = vadd.f32 %v936, %v1139
      %1141 = vmatmul.bf16.gmra.mxu0 %v1120
      %v1142 = vpop.f32.mrf.mxu0
      %v1143 = vadd.f32 %v936, %v1142
      %v1144 = vpop.f32.mrf.mxu0
      %v1145 = vadd.f32 %v936, %v1144
      %1146 = vmatmul.bf16.gmra.mxu0 %v1123
      %v1147 = vpop.f32.mrf.mxu0
      %v1148 = vadd.f32 %v936, %v1147
      %v1149 = vpop.f32.mrf.mxu0
      %v1150 = vadd.f32 %v936, %v1149
      %1151 = vmatmul.bf16.gmra.mxu0 %v1126
      %v1152 = vpop.f32.mrf.mxu0
      %v1153 = vadd.f32 %v936, %v1152
      %v1154 = vpop.f32.mrf.mxu0
      %v1155 = vadd.f32 %v936, %v1154
      %1156 = vdwg.mxu0
      %v1157 = vmax.f32 %v1138, 0.0
      %v1158 = vmax.f32 %v1140, 0.0
      %v1159 = vmax.f32 %v1143, 0.0
      %v1160 = vmax.f32 %v1145, 0.0
      %v1161 = vmax.f32 %v1148, 0.0
      %v1162 = vmax.f32 %v1150, 0.0
      %v1163 = vmax.f32 %v1153, 0.0
      %v1164 = vmax.f32 %v1155, 0.0
      %v1165 = vadd.f32 %v910, %v1157
      %v1166 = vadd.f32 %v911, %v1158
      %v1167 = vadd.f32 %v912, %v1159
      %v1168 = vadd.f32 %v913, %v1160
      %v1169 = vadd.f32 %v914, %v1161
      %v1170 = vadd.f32 %v915, %v1162
      %v1171 = vadd.f32 %v916, %v1163
      %v1172 = vadd.f32 %v917, %v1164
      %1173 = vrot.lane.b32.xlu0 %v1112, 64
      %v1174 = vpop.permute.xlu0 %1173
      %1175 = vrot.lane.b32.xlu0 %v1113, 64
      %v1176 = vpop.permute.xlu0 %1175
      %1177 = vrot.lane.b32.xlu0 %v1114, 64
      %v1178 = vpop.permute.xlu0 %1177
      %1179 = vrot.lane.b32.xlu0 %v1115, 64
      %v1180 = vpop.permute.xlu0 %1179
      %v1182 = vsel %vm752, %v1174, 0
      %v1185 = vsel %vm752, %v1176, 0
      %v1188 = vsel %vm752, %v1178, 0
      %v1191 = vsel %vm752, %v1180, 0
      %1193 = vmatpush.bf16.msra.mxu0 0
      %1194 = vmatpush.bf16.msra.mxu0 0
      %1195 = vmatpush.bf16.msra.mxu0 0
      %1196 = vmatpush.bf16.msra.mxu0 0
      %1197 = vmatpush.bf16.msra.mxu0 %v977
      %1198 = vmatpush.bf16.msra.mxu0 %v976
      %1199 = vmatpush.bf16.msra.mxu0 %v975
      %1200 = vmatpush.bf16.msra.mxu0 %v974
      %1201 = vmatmul.bf16.gmra.mxu0 %v1182
      %v1202 = vpop.f32.mrf.mxu0
      %v1203 = vadd.f32 %v936, %v1202
      %v1204 = vpop.f32.mrf.mxu0
      %v1205 = vadd.f32 %v936, %v1204
      %1206 = vmatmul.bf16.gmra.mxu0 %v1185
      %v1207 = vpop.f32.mrf.mxu0
      %v1208 = vadd.f32 %v936, %v1207
      %v1209 = vpop.f32.mrf.mxu0
      %v1210 = vadd.f32 %v936, %v1209
      %1211 = vmatmul.bf16.gmra.mxu0 %v1188
      %v1212 = vpop.f32.mrf.mxu0
      %v1213 = vadd.f32 %v936, %v1212
      %v1214 = vpop.f32.mrf.mxu0
      %v1215 = vadd.f32 %v936, %v1214
      %1216 = vmatmul.bf16.gmra.mxu0 %v1191
      %v1217 = vpop.f32.mrf.mxu0
      %v1218 = vadd.f32 %v936, %v1217
      %v1219 = vpop.f32.mrf.mxu0
      %v1220 = vadd.f32 %v936, %v1219
      %1221 = vdwg.mxu0
      %v1222 = vmax.f32 %v1203, 0.0
      %v1223 = vmax.f32 %v1205, 0.0
      %v1224 = vmax.f32 %v1208, 0.0
      %v1225 = vmax.f32 %v1210, 0.0
      %v1226 = vmax.f32 %v1213, 0.0
      %v1227 = vmax.f32 %v1215, 0.0
      %v1228 = vmax.f32 %v1218, 0.0
      %v1229 = vmax.f32 %v1220, 0.0
      %v1230 = vadd.f32 %v910, %v1222
      %v1231 = vadd.f32 %v911, %v1223
      %v1232 = vadd.f32 %v912, %v1224
      %v1233 = vadd.f32 %v913, %v1225
      %v1234 = vadd.f32 %v914, %v1226
      %v1235 = vadd.f32 %v915, %v1227
      %v1236 = vadd.f32 %v916, %v1228
      %v1237 = vadd.f32 %v917, %v1229
      %1246 = vrot.lane.b32.xlu0 %v1096, 64
      %v1247 = vpop.permute.xlu0 %1246
      %1248 = vrot.lane.b32.xlu0 %v1097, 64
      %v1249 = vpop.permute.xlu0 %1248
      %1250 = vrot.lane.b32.xlu0 %v1098, 64
      %v1251 = vpop.permute.xlu0 %1250
      %1252 = vrot.lane.b32.xlu0 %v1099, 64
      %v1253 = vpop.permute.xlu0 %1252
      %1254 = vrot.lane.b32.xlu0 %v1100, 64
      %v1255 = vpop.permute.xlu0 %1254
      %1256 = vrot.lane.b32.xlu0 %v1101, 64
      %v1257 = vpop.permute.xlu0 %1256
      %1258 = vrot.lane.b32.xlu0 %v1102, 64
      %v1259 = vpop.permute.xlu0 %1258
      %1260 = vrot.lane.b32.xlu0 %v1103, 64
      %v1261 = vpop.permute.xlu0 %1260
      %1278 = vrot.lane.b32.xlu0 %v1230, 64
      %v1279 = vpop.permute.xlu0 %1278
      %1280 = vrot.lane.b32.xlu0 %v1231, 64
      %v1281 = vpop.permute.xlu0 %1280
      %1282 = vrot.lane.b32.xlu0 %v1232, 64
      %v1283 = vpop.permute.xlu0 %1282
      %1284 = vrot.lane.b32.xlu0 %v1233, 64
      %v1285 = vpop.permute.xlu0 %1284
      %1286 = vrot.lane.b32.xlu0 %v1234, 64
      %v1287 = vpop.permute.xlu0 %1286
      %1288 = vrot.lane.b32.xlu0 %v1235, 64
      %v1289 = vpop.permute.xlu0 %1288
      %1290 = vrot.lane.b32.xlu0 %v1236, 64
      %v1291 = vpop.permute.xlu0 %1290
      %1292 = vrot.lane.b32.xlu0 %v1237, 64
      %v1293 = vpop.permute.xlu0 %1292
      %v1302 = vsel %vm752, %v1031, %v1247
      %v1303 = vsel %vm752, %v1032, %v1249
      %v1304 = vsel %vm752, %v1033, %v1251
      %v1305 = vsel %vm752, %v1034, %v1253
      %v1306 = vsel %vm752, %v1035, %v1255
      %v1307 = vsel %vm752, %v1036, %v1257
      %v1308 = vsel %vm752, %v1037, %v1259
      %v1309 = vsel %vm752, %v1038, %v1261
      %v1310 = vsel %vm752, %v1165, %v1279
      %v1311 = vsel %vm752, %v1166, %v1281
      %v1312 = vsel %vm752, %v1167, %v1283
      %v1313 = vsel %vm752, %v1168, %v1285
      %v1314 = vsel %vm752, %v1169, %v1287
      %v1315 = vsel %vm752, %v1170, %v1289
      %v1316 = vsel %vm752, %v1171, %v1291
      %v1317 = vsel %vm752, %v1172, %v1293
      %1318 = vst [vmem:[%s333] sm:$0xff] %v1302
      %1319 = vst [vmem:[%s333 + $0x8] sm:$0xff] %v1310
      %1320 = vst [vmem:[%s333 + $0x10] sm:$0xff] %v1303
      %1321 = vst [vmem:[%s333 + $0x18] sm:$0xff] %v1311
      %1322 = vst [vmem:[%s333 + $0x20] sm:$0xff] %v1304
      %1323 = vst [vmem:[%s333 + $0x28] sm:$0xff] %v1312
      %1324 = vst [vmem:[%s333 + $0x30] sm:$0xff] %v1305
      %1325 = vst [vmem:[%s333 + $0x38] sm:$0xff] %v1313
      %1326 = vst [vmem:[%s333 + $0x40] sm:$0xff] %v1306
      %1327 = vst [vmem:[%s333 + $0x48] sm:$0xff] %v1314
      %1328 = vst [vmem:[%s333 + $0x50] sm:$0xff] %v1307
      %1329 = vst [vmem:[%s333 + $0x58] sm:$0xff] %v1315
      %1330 = vst [vmem:[%s333 + $0x60] sm:$0xff] %v1308
      %1331 = vst [vmem:[%s333 + $0x68] sm:$0xff] %v1316
      %1332 = vst [vmem:[%s333 + $0x70] sm:$0xff] %v1309
      %1333 = vst [vmem:[%s333 + $0x78] sm:$0xff] %v1317
      %s1334 = smul.u32 8, %s22
      %p1335 = scmp.lt.s32.totalorder %s21, 1
      %s1336 = scalar_select %p1335, %s21, 1
      %p1337 = scmp.lt.s32.totalorder %s1334, 7
      %s1338 = scalar_select %p1337, %s1334, 7
      %s1339 = smul.addr %s1338, 2
      %s1340 = smul.addr %s1336, 16
      %s1341 = sadd.s32 %s1339, %s1340
      %s1342 = smul.addr %s1341, 8
      %s1343 = scalar_lea.vmem %s6, %s1342
      // Predicated region
      $region45: #{fatnet_forward.21} parent=43 // pred_check
        %p1344 = pneg %p189
      $region46: #{fatnet_forward.21} parent=43 // pred_check_branch
        %1346 = sbr.rel (%p1344) target = $region48
      $region47: #{fatnet_forward.21} parent=43 // pred_region
        %s1347 = smul.u32 8, %s22
      $region48: #{fatnet_forward.21} parent=43 // pred_fallthru
        _
    $region44: #{fatnet_forward.21} parent=5 // pred_fallthru
      _
    %p1348 = scmp.le.s32.totalorder 2, %s12
    // Predicated region
    $region49: #{fatnet_forward.21} parent=5 // pred_check
      %p1349 = pneg %p1348
    $region50: #{fatnet_forward.21} parent=5 // pred_check_branch
      %1351 = sbr.rel (%p1349) target = $region52
    $region51: #{fatnet_forward.21} parent=5 // pred_region
      %s1352 = ssub.s32 %s12, 2
      // Predicated region
      $region53: #{fatnet_forward.21} parent=51 // pred_check
        %p1353 = pneg %p195
      $region54: #{fatnet_forward.21} parent=51 // pred_check_branch
        %1355 = sbr.rel (%p1353) target = $region56
      $region55: #{fatnet_forward.21} parent=51 // pred_region
        %s1356 = smul.u32 8, %s24
        %p1357 = scmp.lt.s32.totalorder %s23, 1
        %s1358 = scalar_select %p1357, %s23, 1
        %p1359 = scmp.lt.s32.totalorder %s1356, 7
        %s1360 = scalar_select %p1359, %s1356, 7
        %s1361 = smul.addr %s1360, 2
        %s1362 = smul.addr %s1358, 16
        %s1363 = sadd.s32 %s1361, %s1362
        %s1364 = smul.addr %s1363, 8
        %s1365 = scalar_lea.vmem %s6, %s1364
      $region56: #{fatnet_forward.21} parent=51 // pred_fallthru
        _
    $region52: #{fatnet_forward.21} parent=5 // pred_fallthru
      _
  $region6: #{fatnet_forward.21} parent=0 // loop_footer
    %s16 = sadd.s32 1, %s12
  $region7: #{fatnet_forward.21} parent=0 // loop_footer_branch
    %11 = sbr.rel target = $region3
  $region8: #{fatnet_forward.21} parent=0 // loop_exit
    _

// kernel: fatnet_forward.23
$region0: #{fatnet_forward.23}
  #allocation0 [shape = 'u32[]', space=smem, size = 0x4, offset = 0x4, fixed_abs, tag = 'smem constant byte address 0x4 - core index']
  #allocation1 [shape = 'u32[72,128]{1,0:T(1,128)}', space=vmem, size = 0x9000, scoped, tag = 'internal scratch']
  %s0 = inlined_call_operand.vmem [shape: bf16[2,64,576], index: 0, kind: input, shape index: {}]
  %s1 = inlined_call_operand.vmem [shape: bf16[2,64,256], index: 1, kind: input, shape index: {}]
  %s2 = inlined_call_operand.vmem [shape: bf16[576,128], index: 2, kind: input, shape index: {}]
  %s3 = inlined_call_operand.vmem [shape: f32[1,128], index: 3, kind: input, shape index: {}]
  %s4 = inlined_call_operand.vmem [shape: bf16[64,128], index: 4, kind: input, shape index: {}]
  %s5 = inlined_call_operand.vmem [shape: f32[1,128], index: 5, kind: input, shape index: {}]
  %s6 = inlined_call_operand.vmem [shape: f32[2,64,512], index: 6, kind: output, shape index: {}]
  %s7 = sld [smem:[#allocation0]]
  $region57: #{fatnet_forward.23} parent=0
    _
  %s9 = ssub.s32 1, %s7
  %s10 = scalar_select 0, %s9, %s7
  loop: start=0, step=1, limit=4
  $region2: #{fatnet_forward.23} parent=0 // loop_pre_header
    _
  $region3: #{fatnet_forward.23} parent=0 // loop_header
    %s12 = sphi 0, %s16
    %p13 = scmp.ge.s32.totalorder %s12, 4
    %s19 = sphi 0, %s31
    %s20 = sphi 0, %s27
    %s21 = sphi 0, %s19
    %s22 = sphi 0, %s20
    %s23 = sphi 0, %s21
    %s24 = sphi 0, %s22
    %s36 = sphi 0, %s38
    %s39 = sphi 0, %s36
    %s40 = sphi 0, %s39
    %s56 = sphi 0, %s40
    %s64 = sphi 0, %s66
    %s67 = sphi 0, %s64
    %s68 = sphi 0, %s67
    %s84 = sphi 0, %s68
    %s88 = sphi 0, %s88
    %s90 = sphi 0, %s88
    %s91 = sphi 0, %s90
    %s105 = sphi 0, %s91
    %s109 = sphi 0, %s109
    %s111 = sphi 0, %s109
    %s112 = sphi 0, %s111
    %s126 = sphi 0, %s112
    %s130 = sphi 0, %s130
    %s132 = sphi 0, %s130
    %s133 = sphi 0, %s132
    %s147 = sphi 0, %s133
    %s151 = sphi 0, %s151
    %s153 = sphi 0, %s151
    %s154 = sphi 0, %s153
    %s168 = sphi 0, %s154
    %s176 = sphi 0, %s178
    %s179 = sphi 0, %s176
    %s180 = sphi 0, %s179
    %s196 = sphi 0, %s180
  $region4: #{fatnet_forward.23} parent=0 // loop_header_branch
    %15 = sbr.rel (%p13) target = $region8
  $region5: #{fatnet_forward.23} parent=0 // loop_body
    %s17 = ssub.s32 %s12, 1
    %s18 = ssub.s32 %s12, 2
    %s25 = sadd.s32 1, %s20
    %p26 = scmp.ge.s32.totalorder %s25, 1
    %s27 = scalar_select %p26, 0, %s25
    %s28 = sadd.s32 1, %s19
    %s29 = scalar_select %p26, %s28, %s19
    %p30 = scmp.ge.s32.totalorder %s29, 2
    %s31 = scalar_select %p30, 0, %s29
    %s32 = ssub.s32 %s19, %s31
    %s33 = ssub.s32 %s20, %s27
    %s34 = sor.u32 %s32, %s33
    %p35 = scmp.eq.s32.totalorder %s34, 0
    %s37 = sadd.s32 %s36, 1
    %s38 = scalar_select %p35, %s36, %s37
    %p41 = pneg %p35
    %p42 = scmp.eq.s32.totalorder %s12, 1
    %p43 = por %p41, %p42
    %p44 = scmp.ne.s32.totalorder %s36, %s39
    %p45 = scmp.eq.s32.totalorder %s12, 0
    %p46 = por %p44, %p45
    %p47 = scmp.ne.s32.totalorder %s36, %s39
    %p48 = scmp.eq.s32.totalorder %s17, 1
    %p49 = por %p47, %p48
    %p50 = scmp.ne.s32.totalorder %s39, %s40
    %p51 = scmp.eq.s32.totalorder %s17, 0
    %p52 = por %p50, %p51
    %p53 = scmp.ne.s32.totalorder %s39, %s40
    %p54 = scmp.eq.s32.totalorder %s18, 1
    %p55 = por %p53, %p54
    %p57 = scmp.ne.s32.totalorder %s40, %s56
    %p58 = scmp.eq.s32.totalorder %s18, 0
    %p59 = por %p57, %p58
    %s60 = ssub.s32 %s19, %s31
    %s61 = ssub.s32 %s20, %s27
    %s62 = sor.u32 %s60, %s61
    %p63 = scmp.eq.s32.totalorder %s62, 0
    %s65 = sadd.s32 %s64, 1
    %s66 = scalar_select %p63, %s64, %s65
    %p69 = pneg %p63
    %p70 = scmp.eq.s32.totalorder %s12, 1
    %p71 = por %p69, %p70
    %p72 = scmp.ne.s32.totalorder %s64, %s67
    %p73 = scmp.eq.s32.totalorder %s12, 0
    %p74 = por %p72, %p73
    %p75 = scmp.ne.s32.totalorder %s64, %s67
    %p76 = scmp.eq.s32.totalorder %s17, 1
    %p77 = por %p75, %p76
    %p78 = scmp.ne.s32.totalorder %s67, %s68
    %p79 = scmp.eq.s32.totalorder %s17, 0
    %p80 = por %p78, %p79
    %p81 = scmp.ne.s32.totalorder %s67, %s68
    %p82 = scmp.eq.s32.totalorder %s18, 1
    %p83 = por %p81, %p82
    %p85 = scmp.ne.s32.totalorder %s68, %s84
    %p86 = scmp.eq.s32.totalorder %s18, 0
    %p87 = por %p85, %p86
    %s89 = sadd.s32 %s88, 1
    %p92 = scmp.eq.s32.totalorder %s12, 1
    %p93 = scmp.ne.s32.totalorder %s88, %s90
    %p94 = scmp.eq.s32.totalorder %s12, 0
    %p95 = por %p93, %p94
    %p96 = scmp.ne.s32.totalorder %s88, %s90
    %p97 = scmp.eq.s32.totalorder %s17, 1
    %p98 = por %p96, %p97
    %p99 = scmp.ne.s32.totalorder %s90, %s91
    %p100 = scmp.eq.s32.totalorder %s17, 0
    %p101 = por %p99, %p100
    %p102 = scmp.ne.s32.totalorder %s90, %s91
    %p103 = scmp.eq.s32.totalorder %s18, 1
    %p104 = por %p102, %p103
    %p106 = scmp.ne.s32.totalorder %s91, %s105
    %p107 = scmp.eq.s32.totalorder %s18, 0
    %p108 = por %p106, %p107
    %s110 = sadd.s32 %s109, 1
    %p113 = scmp.eq.s32.totalorder %s12, 1
    %p114 = scmp.ne.s32.totalorder %s109, %s111
    %p115 = scmp.eq.s32.totalorder %s12, 0
    %p116 = por %p114, %p115
    %p117 = scmp.ne.s32.totalorder %s109, %s111
    %p118 = scmp.eq.s32.totalorder %s17, 1
    %p119 = por %p117, %p118
    %p120 = scmp.ne.s32.totalorder %s111, %s112
    %p121 = scmp.eq.s32.totalorder %s17, 0
    %p122 = por %p120, %p121
    %p123 = scmp.ne.s32.totalorder %s111, %s112
    %p124 = scmp.eq.s32.totalorder %s18, 1
    %p125 = por %p123, %p124
    %p127 = scmp.ne.s32.totalorder %s112, %s126
    %p128 = scmp.eq.s32.totalorder %s18, 0
    %p129 = por %p127, %p128
    %s131 = sadd.s32 %s130, 1
    %p134 = scmp.eq.s32.totalorder %s12, 1
    %p135 = scmp.ne.s32.totalorder %s130, %s132
    %p136 = scmp.eq.s32.totalorder %s12, 0
    %p137 = por %p135, %p136
    %p138 = scmp.ne.s32.totalorder %s130, %s132
    %p139 = scmp.eq.s32.totalorder %s17, 1
    %p140 = por %p138, %p139
    %p141 = scmp.ne.s32.totalorder %s132, %s133
    %p142 = scmp.eq.s32.totalorder %s17, 0
    %p143 = por %p141, %p142
    %p144 = scmp.ne.s32.totalorder %s132, %s133
    %p145 = scmp.eq.s32.totalorder %s18, 1
    %p146 = por %p144, %p145
    %p148 = scmp.ne.s32.totalorder %s133, %s147
    %p149 = scmp.eq.s32.totalorder %s18, 0
    %p150 = por %p148, %p149
    %s152 = sadd.s32 %s151, 1
    %p155 = scmp.eq.s32.totalorder %s12, 1
    %p156 = scmp.ne.s32.totalorder %s151, %s153
    %p157 = scmp.eq.s32.totalorder %s12, 0
    %p158 = por %p156, %p157
    %p159 = scmp.ne.s32.totalorder %s151, %s153
    %p160 = scmp.eq.s32.totalorder %s17, 1
    %p161 = por %p159, %p160
    %p162 = scmp.ne.s32.totalorder %s153, %s154
    %p163 = scmp.eq.s32.totalorder %s17, 0
    %p164 = por %p162, %p163
    %p165 = scmp.ne.s32.totalorder %s153, %s154
    %p166 = scmp.eq.s32.totalorder %s18, 1
    %p167 = por %p165, %p166
    %p169 = scmp.ne.s32.totalorder %s154, %s168
    %p170 = scmp.eq.s32.totalorder %s18, 0
    %p171 = por %p169, %p170
    %s172 = ssub.s32 %s19, %s31
    %s173 = ssub.s32 %s20, %s27
    %s174 = sor.u32 %s172, %s173
    %p175 = scmp.eq.s32.totalorder %s174, 0
    %s177 = sadd.s32 %s176, 1
    %s178 = scalar_select %p175, %s176, %s177
    %p181 = pneg %p175
    %p182 = scmp.eq.s32.totalorder %s12, 1
    %p183 = por %p181, %p182
    %p184 = scmp.ne.s32.totalorder %s176, %s179
    %p185 = scmp.eq.s32.totalorder %s12, 0
    %p186 = por %p184, %p185
    %p187 = scmp.ne.s32.totalorder %s176, %s179
    %p188 = scmp.eq.s32.totalorder %s17, 1
    %p189 = por %p187, %p188
    %p190 = scmp.ne.s32.totalorder %s179, %s180
    %p191 = scmp.eq.s32.totalorder %s17, 0
    %p192 = por %p190, %p191
    %p193 = scmp.ne.s32.totalorder %s179, %s180
    %p194 = scmp.eq.s32.totalorder %s18, 1
    %p195 = por %p193, %p194
    %p197 = scmp.ne.s32.totalorder %s180, %s196
    %p198 = scmp.eq.s32.totalorder %s18, 0
    %p199 = por %p197, %p198
    %p200 = scmp.le.s32.totalorder 1, %s12
    %p201 = scmp.lt.s32.totalorder %s12, 3
    %p202 = pnand %p200, %p201
    %p203 = pneg %p202
    // Predicated region
    $region9: #{fatnet_forward.23} parent=5 // pred_check
      _
    $region10: #{fatnet_forward.23} parent=5 // pred_check_branch
      %205 = sbr.rel (%p202) target = $region12
    $region11: #{fatnet_forward.23} parent=5 // pred_region
      %s206 = ssub.s32 %s12, 1
      // Predicated region
      $region13: #{fatnet_forward.23} parent=11 // pred_check
        %p207 = pneg %p101
      $region14: #{fatnet_forward.23} parent=11 // pred_check_branch
        %209 = sbr.rel (%p207) target = $region16
      $region15: #{fatnet_forward.23} parent=11 // pred_region
        _
      $region16: #{fatnet_forward.23} parent=11 // pred_fallthru
        _
      // Predicated region
      $region17: #{fatnet_forward.23} parent=11 // pred_check
        %p210 = pneg %p122
      $region18: #{fatnet_forward.23} parent=11 // pred_check_branch
        %212 = sbr.rel (%p210) target = $region20
      $region19: #{fatnet_forward.23} parent=11 // pred_region
        _
      $region20: #{fatnet_forward.23} parent=11 // pred_fallthru
        _
      // Predicated region
      $region21: #{fatnet_forward.23} parent=11 // pred_check
        %p213 = pneg %p143
      $region22: #{fatnet_forward.23} parent=11 // pred_check_branch
        %215 = sbr.rel (%p213) target = $region24
      $region23: #{fatnet_forward.23} parent=11 // pred_region
        _
      $region24: #{fatnet_forward.23} parent=11 // pred_fallthru
        _
      // Predicated region
      $region25: #{fatnet_forward.23} parent=11 // pred_check
        %p216 = pneg %p164
      $region26: #{fatnet_forward.23} parent=11 // pred_check_branch
        %218 = sbr.rel (%p216) target = $region28
      $region27: #{fatnet_forward.23} parent=11 // pred_region
        _
      $region28: #{fatnet_forward.23} parent=11 // pred_fallthru
        _
    $region12: #{fatnet_forward.23} parent=5 // pred_fallthru
      _
    %p219 = scmp.lt.s32.totalorder %s12, 2
    // Predicated region
    $region29: #{fatnet_forward.23} parent=5 // pred_check
      %p220 = pneg %p219
    $region30: #{fatnet_forward.23} parent=5 // pred_check_branch
      %222 = sbr.rel (%p220) target = $region32
    $region31: #{fatnet_forward.23} parent=5 // pred_region
      // Predicated region
      $region33: #{fatnet_forward.23} parent=31 // pred_check
        %p223 = pneg %p46
      $region34: #{fatnet_forward.23} parent=31 // pred_check_branch
        %225 = sbr.rel (%p223) target = $region36
      $region35: #{fatnet_forward.23} parent=31 // pred_region
        %s226 = smul.u32 8, %s20
        %p227 = scmp.lt.s32.totalorder %s19, 1
        %s228 = scalar_select %p227, %s19, 1
        %p229 = scmp.lt.s32.totalorder %s226, 7
        %s230 = scalar_select %p229, %s226, 7
        %s231 = smul.addr %s230, 5
        %s232 = smul.addr %s228, 40
        %s233 = sadd.s32 %s231, %s232
        %s234 = smul.addr %s233, 4
        %s235 = scalar_lea.vmem %s0, %s234
        %s236 = smul.u32 8, %s20
      $region36: #{fatnet_forward.23} parent=31 // pred_fallthru
        _
      // Predicated region
      $region37: #{fatnet_forward.23} parent=31 // pred_check
        %p237 = pneg %p74
      $region38: #{fatnet_forward.23} parent=31 // pred_check_branch
        %239 = sbr.rel (%p237) target = $region40
      $region39: #{fatnet_forward.23} parent=31 // pred_region
        %s240 = smul.u32 8, %s20
        %p241 = scmp.lt.s32.totalorder %s19, 1
        %s242 = scalar_select %p241, %s19, 1
        %p243 = scmp.lt.s32.totalorder %s240, 7
        %s244 = scalar_select %p243, %s240, 7
        %s245 = smul.addr %s244, 2
        %s246 = smul.addr %s242, 16
        %s247 = sadd.s32 %s245, %s246
        %s248 = smul.addr %s247, 4
        %s249 = scalar_lea.vmem %s1, %s248
        %s250 = smul.u32 8, %s20
      $region40: #{fatnet_forward.23} parent=31 // pred_fallthru
        _
    $region32: #{fatnet_forward.23} parent=5 // pred_fallthru
      _
    %p251 = scmp.le.s32.totalorder 1, %s12
    %p252 = scmp.lt.s32.totalorder %s12, 3
    %p253 = pnand %p251, %p252
    %p254 = pneg %p253
    // Predicated region
    $region41: #{fatnet_forward.23} parent=5 // pred_check
      _
    $region42: #{fatnet_forward.23} parent=5 // pred_check_branch
      %256 = sbr.rel (%p253) target = $region44
    $region43: #{fatnet_forward.23} parent=5 // pred_region
      %s257 = ssub.s32 %s12, 1
      %s258 = smul.u32 8, %s22
      %p259 = scmp.lt.s32.totalorder %s21, 1
      %s260 = scalar_select %p259, %s21, 1
      %p261 = scmp.lt.s32.totalorder %s258, 7
      %s262 = scalar_select %p261, %s258, 7
      %s263 = smul.addr %s262, 5
      %s264 = smul.addr %s260, 40
      %s265 = sadd.s32 %s263, %s264
      %s266 = smul.addr %s265, 4
      %s267 = scalar_lea.vmem %s0, %s266
      %p268 = pneg %p52
      %p269 = pneg %p49
      %s270 = smul.u32 8, %s22
      %p271 = scmp.lt.s32.totalorder %s21, 1
      %s272 = scalar_select %p271, %s21, 1
      %p273 = scmp.lt.s32.totalorder %s270, 7
      %s274 = scalar_select %p273, %s270, 7
      %s275 = smul.addr %s274, 2
      %s276 = smul.addr %s272, 16
      %s277 = sadd.s32 %s275, %s276
      %s278 = smul.addr %s277, 4
      %s279 = scalar_lea.vmem %s1, %s278
      %p280 = pneg %p80
      %p281 = pneg %p77
      %p282 = pneg %p101
      %p283 = pneg %p98
      %p284 = pneg %p122
      %p285 = pneg %p119
      %p286 = pneg %p143
      %p287 = pneg %p140
      %p288 = pneg %p164
      %p289 = pneg %p161
      %p290 = pneg %p192
      %p291 = pneg %p189
      %s292 = smul.u32 8, %s22
      %p293 = scmp.lt.s32.totalorder %s21, 1
      %s294 = scalar_select %p293, %s21, 1
      %p295 = scmp.lt.s32.totalorder %s292, 7
      %s296 = scalar_select %p295, %s292, 7
      %s297 = smul.addr %s296, 4
      %s298 = smul.addr %s294, 32
      %s299 = sadd.s32 %s297, %s298
      %s300 = smul.addr %s299, 8
      %s301 = scalar_lea.vmem %s6, %s300
      %s302 = smul.u32 8, %s22
      %p303 = scmp.lt.s32.totalorder %s21, 1
      %s304 = scalar_select %p303, %s21, 1
      %p305 = scmp.lt.s32.totalorder %s302, 7
      %s306 = scalar_select %p305, %s302, 7
      %s307 = smul.addr %s306, 5
      %s308 = smul.addr %s304, 40
      %s309 = sadd.s32 %s307, %s308
      %s310 = smul.addr %s309, 4
      %s311 = scalar_lea.vmem %s0, %s310
      %s312 = smul.u32 8, %s22
      %s313 = smul.u32 8, %s22
      %p314 = scmp.lt.s32.totalorder %s21, 1
      %s315 = scalar_select %p314, %s21, 1
      %p316 = scmp.lt.s32.totalorder %s313, 7
      %s317 = scalar_select %p316, %s313, 7
      %s318 = smul.addr %s317, 2
      %s319 = smul.addr %s315, 16
      %s320 = sadd.s32 %s318, %s319
      %s321 = smul.addr %s320, 4
      %s322 = scalar_lea.vmem %s1, %s321
      %s323 = smul.u32 8, %s22
      %s324 = smul.u32 8, %s22
      %p325 = scmp.lt.s32.totalorder %s21, 1
      %s326 = scalar_select %p325, %s21, 1
      %p327 = scmp.lt.s32.totalorder %s324, 7
      %s328 = scalar_select %p327, %s324, 7
      %s329 = smul.addr %s328, 4
      %s330 = smul.addr %s326, 32
      %s331 = sadd.s32 %s329, %s330
      %s332 = smul.addr %s331, 8
      %s333 = scalar_lea.vmem %s6, %s332
      %s334 = smul.u32 8, %s22
      %v336 = vld [vmem:[%s311] sm:$0xff]
      %v337 = vld [vmem:[%s311 + $0x8] sm:$0xff]
      %v338 = vld [vmem:[%s311 + $0x10] sm:$0xf]
      %v339 = vld [vmem:[%s311 + $0x14] sm:$0xff]
      %v340 = vld [vmem:[%s311 + $0x1c] sm:$0xff]
      %v341 = vld [vmem:[%s311 + $0x24] sm:$0xf]
      %v342 = vld [vmem:[%s311 + $0x28] sm:$0xff]
      %v343 = vld [vmem:[%s311 + $0x30] sm:$0xff]
      %v344 = vld [vmem:[%s311 + $0x38] sm:$0xf]
      %v345 = vld [vmem:[%s311 + $0x3c] sm:$0xff]
      %v346 = vld [vmem:[%s311 + $0x44] sm:$0xff]
      %v347 = vld [vmem:[%s311 + $0x4c] sm:$0xf]
      %v348 = vld [vmem:[%s311 + $0x50] sm:$0xff]
      %v349 = vld [vmem:[%s311 + $0x58] sm:$0xff]
      %v350 = vld [vmem:[%s311 + $0x60] sm:$0xf]
      %v351 = vld [vmem:[%s311 + $0x64] sm:$0xff]
      %v352 = vld [vmem:[%s311 + $0x6c] sm:$0xff]
      %v353 = vld [vmem:[%s311 + $0x74] sm:$0xf]
      %v354 = vld [vmem:[%s311 + $0x78] sm:$0xff]
      %v355 = vld [vmem:[%s311 + $0x80] sm:$0xff]
      %v356 = vld [vmem:[%s311 + $0x88] sm:$0xf]
      %v357 = vld [vmem:[%s311 + $0x8c] sm:$0xff]
      %v358 = vld [vmem:[%s311 + $0x94] sm:$0xff]
      %v359 = vld [vmem:[%s311 + $0x9c] sm:$0xf]
      %v360 = vld [vmem:[%s2] sm:$0xf]
      %v361 = vld [vmem:[%s2 + $0x4] sm:$0xf]
      %v362 = vld [vmem:[%s2 + $0x8] sm:$0xf]
      %v363 = vld [vmem:[%s2 + $0xc] sm:$0xf]
      %v364 = vld [vmem:[%s2 + $0x10] sm:$0xf]
      %v365 = vld [vmem:[%s2 + $0x14] sm:$0xf]
      %v366 = vld [vmem:[%s2 + $0x18] sm:$0xf]
      %v367 = vld [vmem:[%s2 + $0x1c] sm:$0xf]
      %v368 = vld [vmem:[%s2 + $0x20] sm:$0xf]
      %v369 = vld [vmem:[%s2 + $0x24] sm:$0xf]
      %v370 = vld [vmem:[%s2 + $0x28] sm:$0xf]
      %v371 = vld [vmem:[%s2 + $0x2c] sm:$0xf]
      %v372 = vld [vmem:[%s2 + $0x30] sm:$0xf]
      %v373 = vld [vmem:[%s2 + $0x34] sm:$0xf]
      %v374 = vld [vmem:[%s2 + $0x38] sm:$0xf]
      %v375 = vld [vmem:[%s2 + $0x3c] sm:$0xf]
      %v376 = vld [vmem:[%s2 + $0x40] sm:$0xf]
      %v377 = vld [vmem:[%s2 + $0x44] sm:$0xf]
      %v378 = vld [vmem:[%s2 + $0x48] sm:$0xf]
      %v379 = vld [vmem:[%s2 + $0x4c] sm:$0xf]
      %v380 = vld [vmem:[%s2 + $0x50] sm:$0xf]
      %v381 = vld [vmem:[%s2 + $0x54] sm:$0xf]
      %v382 = vld [vmem:[%s2 + $0x58] sm:$0xf]
      %v383 = vld [vmem:[%s2 + $0x5c] sm:$0xf]
      %v384 = vld [vmem:[%s2 + $0x60] sm:$0xf]
      %v385 = vld [vmem:[%s2 + $0x64] sm:$0xf]
      %v386 = vld [vmem:[%s2 + $0x68] sm:$0xf]
      %v387 = vld [vmem:[%s2 + $0x6c] sm:$0xf]
      %v388 = vld [vmem:[%s2 + $0x70] sm:$0xf]
      %v389 = vld [vmem:[%s2 + $0x74] sm:$0xf]
      %v390 = vld [vmem:[%s2 + $0x78] sm:$0xf]
      %v391 = vld [vmem:[%s2 + $0x7c] sm:$0xf]
      %v392 = vld [vmem:[%s2 + $0x80] sm:$0xf]
      %v393 = vld [vmem:[%s2 + $0x84] sm:$0xf]
      %v394 = vld [vmem:[%s2 + $0x88] sm:$0xf]
      %v395 = vld [vmem:[%s2 + $0x8c] sm:$0xf]
      %v396 = vld [vmem:[%s2 + $0x90] sm:$0xf]
      %v397 = vld [vmem:[%s2 + $0x94] sm:$0xf]
      %v398 = vld [vmem:[%s2 + $0x98] sm:$0xf]
      %v399 = vld [vmem:[%s2 + $0x9c] sm:$0xf]
      %v400 = vld [vmem:[%s2 + $0xa0] sm:$0xf]
      %v401 = vld [vmem:[%s2 + $0xa4] sm:$0xf]
      %v402 = vld [vmem:[%s2 + $0xa8] sm:$0xf]
      %v403 = vld [vmem:[%s2 + $0xac] sm:$0xf]
      %v404 = vld [vmem:[%s2 + $0xb0] sm:$0xf]
      %v405 = vld [vmem:[%s2 + $0xb4] sm:$0xf]
      %v406 = vld [vmem:[%s2 + $0xb8] sm:$0xf]
      %v407 = vld [vmem:[%s2 + $0xbc] sm:$0xf]
      %v408 = vld [vmem:[%s2 + $0xc0] sm:$0xf]
      %v409 = vld [vmem:[%s2 + $0xc4] sm:$0xf]
      %v410 = vld [vmem:[%s2 + $0xc8] sm:$0xf]
      %v411 = vld [vmem:[%s2 + $0xcc] sm:$0xf]
      %v412 = vld [vmem:[%s2 + $0xd0] sm:$0xf]
      %v413 = vld [vmem:[%s2 + $0xd4] sm:$0xf]
      %v414 = vld [vmem:[%s2 + $0xd8] sm:$0xf]
      %v415 = vld [vmem:[%s2 + $0xdc] sm:$0xf]
      %v416 = vld [vmem:[%s2 + $0xe0] sm:$0xf]
      %v417 = vld [vmem:[%s2 + $0xe4] sm:$0xf]
      %v418 = vld [vmem:[%s2 + $0xe8] sm:$0xf]
      %v419 = vld [vmem:[%s2 + $0xec] sm:$0xf]
      %v420 = vld [vmem:[%s2 + $0xf0] sm:$0xf]
      %v421 = vld [vmem:[%s2 + $0xf4] sm:$0xf]
      %v422 = vld [vmem:[%s2 + $0xf8] sm:$0xf]
      %v423 = vld [vmem:[%s2 + $0xfc] sm:$0xf]
      %v424 = vld [vmem:[%s2 + $0x100] sm:$0xf]
      %v425 = vld [vmem:[%s2 + $0x104] sm:$0xf]
      %v426 = vld [vmem:[%s2 + $0x108] sm:$0xf]
      %v427 = vld [vmem:[%s2 + $0x10c] sm:$0xf]
      %v428 = vld [vmem:[%s2 + $0x110] sm:$0xf]
      %v429 = vld [vmem:[%s2 + $0x114] sm:$0xf]
      %v430 = vld [vmem:[%s2 + $0x118] sm:$0xf]
      %v431 = vld [vmem:[%s2 + $0x11c] sm:$0xf]
      %v432 = vld [vmem:[%s3] sm:$0x1]
      %v434 = vperm.slane %v432, 0
      %v460 = vunpack.c.l.b16 %v336
      %v461 = vunpack.c.h.b16 %v336
      %v462 = vunpack.c.l.b16 %v337
      %v463 = vunpack.c.h.b16 %v337
      %v464 = vunpack.c.l.b16 %v338
      %v465 = vunpack.c.l.b16 %v339
      %v466 = vunpack.c.h.b16 %v339
      %v467 = vunpack.c.l.b16 %v340
      %v468 = vunpack.c.h.b16 %v340
      %v469 = vunpack.c.l.b16 %v341
      %v470 = vunpack.c.l.b16 %v342
      %v471 = vunpack.c.h.b16 %v342
      %v472 = vunpack.c.l.b16 %v343
      %v473 = vunpack.c.h.b16 %v343
      %v474 = vunpack.c.l.b16 %v344
      %v475 = vunpack.c.l.b16 %v345
      %v476 = vunpack.c.h.b16 %v345
      %v477 = vunpack.c.l.b16 %v346
      %v478 = vunpack.c.h.b16 %v346
      %v479 = vunpack.c.l.b16 %v347
      %v480 = vunpack.c.l.b16 %v348
      %v481 = vunpack.c.h.b16 %v348
      %v482 = vunpack.c.l.b16 %v349
      %v483 = vunpack.c.h.b16 %v349
      %v484 = vunpack.c.l.b16 %v350
      %v485 = vunpack.c.l.b16 %v351
      %v486 = vunpack.c.h.b16 %v351
      %v487 = vunpack.c.l.b16 %v352
      %v488 = vunpack.c.h.b16 %v352
      %v489 = vunpack.c.l.b16 %v353
      %v490 = vunpack.c.l.b16 %v354
      %v491 = vunpack.c.h.b16 %v354
      %v492 = vunpack.c.l.b16 %v355
      %v493 = vunpack.c.h.b16 %v355
      %v494 = vunpack.c.l.b16 %v356
      %v495 = vunpack.c.l.b16 %v357
      %v496 = vunpack.c.h.b16 %v357
      %v497 = vunpack.c.l.b16 %v358
      %v498 = vunpack.c.h.b16 %v358
      %v499 = vunpack.c.l.b16 %v359
      %v500 = vpack.c.b16 %v465, %v460
      %v501 = vpack.c.b16 %v466, %v461
      %v502 = vpack.c.b16 %v467, %v462
      %v503 = vpack.c.b16 %v468, %v463
      %v504 = vpack.c.b16 %v469, %v464
      %v505 = vpack.c.b16 %v475, %v470
      %v506 = vpack.c.b16 %v476, %v471
      %v507 = vpack.c.b16 %v477, %v472
      %v508 = vpack.c.b16 %v478, %v473
      %v509 = vpack.c.b16 %v479, %v474
      %v510 = vpack.c.b16 %v485, %v480
      %v511 = vpack.c.b16 %v486, %v481
      %v512 = vpack.c.b16 %v487, %v482
      %v513 = vpack.c.b16 %v488, %v483
      %v514 = vpack.c.b16 %v489, %v484
      %v515 = vpack.c.b16 %v495, %v490
      %v516 = vpack.c.b16 %v496, %v491
      %v517 = vpack.c.b16 %v497, %v492
      %v518 = vpack.c.b16 %v498, %v493
      %v519 = vpack.c.b16 %v499, %v494
      %v608 = vunpack.c.l.b16 %v360
      %v609 = vunpack.c.l.b16 %v361
      %v610 = vunpack.c.l.b16 %v362
      %v611 = vunpack.c.l.b16 %v363
      %v612 = vunpack.c.l.b16 %v364
      %v613 = vunpack.c.l.b16 %v365
      %v614 = vunpack.c.l.b16 %v366
      %v615 = vunpack.c.l.b16 %v367
      %v616 = vunpack.c.l.b16 %v368
      %v617 = vunpack.c.l.b16 %v369
      %v618 = vunpack.c.l.b16 %v370
      %v619 = vunpack.c.l.b16 %v371
      %v620 = vunpack.c.l.b16 %v372
      %v621 = vunpack.c.l.b16 %v373
      %v622 = vunpack.c.l.b16 %v374
      %v623 = vunpack.c.l.b16 %v375
      %v624 = vunpack.c.l.b16 %v376
      %v625 = vunpack.c.l.b16 %v377
      %v626 = vunpack.c.l.b16 %v378
      %v627 = vunpack.c.l.b16 %v379
      %v628 = vunpack.c.l.b16 %v380
      %v629 = vunpack.c.l.b16 %v381
      %v630 = vunpack.c.l.b16 %v382
      %v631 = vunpack.c.l.b16 %v383
      %v632 = vunpack.c.l.b16 %v384
      %v633 = vunpack.c.l.b16 %v385
      %v634 = vunpack.c.l.b16 %v386
      %v635 = vunpack.c.l.b16 %v387
      %v636 = vunpack.c.l.b16 %v388
      %v637 = vunpack.c.l.b16 %v389
      %v638 = vunpack.c.l.b16 %v390
      %v639 = vunpack.c.l.b16 %v391
      %v640 = vunpack.c.l.b16 %v392
      %v641 = vunpack.c.l.b16 %v393
      %v642 = vunpack.c.l.b16 %v394
      %v643 = vunpack.c.l.b16 %v395
      %v644 = vunpack.c.l.b16 %v396
      %v645 = vunpack.c.l.b16 %v397
      %v646 = vunpack.c.l.b16 %v398
      %v647 = vunpack.c.l.b16 %v399
      %v648 = vunpack.c.l.b16 %v400
      %v649 = vunpack.c.l.b16 %v401
      %v650 = vunpack.c.l.b16 %v402
      %v651 = vunpack.c.l.b16 %v403
      %v652 = vunpack.c.l.b16 %v404
      %v653 = vunpack.c.l.b16 %v405
      %v654 = vunpack.c.l.b16 %v406
      %v655 = vunpack.c.l.b16 %v407
      %v656 = vunpack.c.l.b16 %v408
      %v657 = vunpack.c.l.b16 %v409
      %v658 = vunpack.c.l.b16 %v410
      %v659 = vunpack.c.l.b16 %v411
      %v660 = vunpack.c.l.b16 %v412
      %v661 = vunpack.c.l.b16 %v413
      %v662 = vunpack.c.l.b16 %v414
      %v663 = vunpack.c.l.b16 %v415
      %v664 = vunpack.c.l.b16 %v416
      %v665 = vunpack.c.l.b16 %v417
      %v666 = vunpack.c.l.b16 %v418
      %v667 = vunpack.c.l.b16 %v419
      %v668 = vunpack.c.l.b16 %v420
      %v669 = vunpack.c.l.b16 %v421
      %v670 = vunpack.c.l.b16 %v422
      %v671 = vunpack.c.l.b16 %v423
      %v672 = vunpack.c.l.b16 %v424
      %v673 = vunpack.c.l.b16 %v425
      %v674 = vunpack.c.l.b16 %v426
      %v675 = vunpack.c.l.b16 %v427
      %v676 = vunpack.c.l.b16 %v428
      %v677 = vunpack.c.l.b16 %v429
      %v678 = vunpack.c.l.b16 %v430
      %v679 = vunpack.c.l.b16 %v431
      %v680 = vpack.c.b16 %v609, %v608
      %v681 = vpack.c.b16 %v611, %v610
      %v682 = vpack.c.b16 %v613, %v612
      %v683 = vpack.c.b16 %v615, %v614
      %v684 = vpack.c.b16 %v617, %v616
      %v685 = vpack.c.b16 %v619, %v618
      %v686 = vpack.c.b16 %v621, %v620
      %v687 = vpack.c.b16 %v623, %v622
      %v688 = vpack.c.b16 %v625, %v624
      %v689 = vpack.c.b16 %v627, %v626
      %v690 = vpack.c.b16 %v629, %v628
      %v691 = vpack.c.b16 %v631, %v630
      %v692 = vpack.c.b16 %v633, %v632
      %v693 = vpack.c.b16 %v635, %v634
      %v694 = vpack.c.b16 %v637, %v636
      %v695 = vpack.c.b16 %v639, %v638
      %v696 = vpack.c.b16 %v641, %v640
      %v697 = vpack.c.b16 %v643, %v642
      %v698 = vpack.c.b16 %v645, %v644
      %v699 = vpack.c.b16 %v647, %v646
      %v700 = vpack.c.b16 %v649, %v648
      %v701 = vpack.c.b16 %v651, %v650
      %v702 = vpack.c.b16 %v653, %v652
      %v703 = vpack.c.b16 %v655, %v654
      %v704 = vpack.c.b16 %v657, %v656
      %v705 = vpack.c.b16 %v659, %v658
      %v706 = vpack.c.b16 %v661, %v660
      %v707 = vpack.c.b16 %v663, %v662
      %v708 = vpack.c.b16 %v665, %v664
      %v709 = vpack.c.b16 %v667, %v666
      %v710 = vpack.c.b16 %v669, %v668
      %v711 = vpack.c.b16 %v671, %v670
      %v712 = vpack.c.b16 %v673, %v672
      %v713 = vpack.c.b16 %v675, %v674
      %v714 = vpack.c.b16 %v677, %v676
      %v715 = vpack.c.b16 %v679, %v678
      %vm752 = vcmask 523264
      %v754 = vsel %vm752, %v504, 0
      %v757 = vsel %vm752, %v509, 0
      %v760 = vsel %vm752, %v514, 0
      %v763 = vsel %vm752, %v519, 0
      %765 = vmatpush.bf16.msra.mxu0 %v687
      %766 = vmatpush.bf16.msra.mxu0 %v686
      %767 = vmatpush.bf16.msra.mxu0 %v685
      %768 = vmatpush.bf16.msra.mxu0 %v684
      %769 = vmatpush.bf16.msra.mxu0 %v683
      %770 = vmatpush.bf16.msra.mxu0 %v682
      %771 = vmatpush.bf16.msra.mxu0 %v681
      %772 = vmatpush.bf16.msra.mxu0 %v680
      %773 = vmatmul.bf16.gmra.mxu0 %v500
      %v774 = vpop.f32.mrf.mxu0
      %v775 = vadd.f32 %v434, %v774
      %v776 = vpop.f32.mrf.mxu0
      %v777 = vadd.f32 %v434, %v776
      %778 = vmatmul.bf16.gmra.mxu0 %v505
      %v779 = vpop.f32.mrf.mxu0
      %v780 = vadd.f32 %v434, %v779
      %v781 = vpop.f32.mrf.mxu0
      %v782 = vadd.f32 %v434, %v781
      %783 = vmatmul.bf16.gmra.mxu0 %v510
      %v784 = vpop.f32.mrf.mxu0
      %v785 = vadd.f32 %v434, %v784
      %v786 = vpop.f32.mrf.mxu0
      %v787 = vadd.f32 %v434, %v786
      %788 = vmatmul.bf16.gmra.mxu0 %v515
      %v789 = vpop.f32.mrf.mxu0
      %v790 = vadd.f32 %v434, %v789
      %v791 = vpop.f32.mrf.mxu0
      %v792 = vadd.f32 %v434, %v791
      %793 = vdwg.mxu0
      %794 = vmatpush.bf16.msra.mxu0 %v695
      %795 = vmatpush.bf16.msra.mxu0 %v694
      %796 = vmatpush.bf16.msra.mxu0 %v693
      %797 = vmatpush.bf16.msra.mxu0 %v692
      %798 = vmatpush.bf16.msra.mxu0 %v691
      %799 = vmatpush.bf16.msra.mxu0 %v690
      %800 = vmatpush.bf16.msra.mxu0 %v689
      %801 = vmatpush.bf16.msra.mxu0 %v688
      %802 = vmatmul.bf16.gmra.mxu0 %v501
      %v803 = vpop.f32.mrf.mxu0
      %v804 = vadd.f32 %v775, %v803
      %v805 = vpop.f32.mrf.mxu0
      %v806 = vadd.f32 %v777, %v805
      %807 = vmatmul.bf16.gmra.mxu0 %v506
      %v808 = vpop.f32.mrf.mxu0
      %v809 = vadd.f32 %v780, %v808
      %v810 = vpop.f32.mrf.mxu0
      %v811 = vadd.f32 %v782, %v810
      %812 = vmatmul.bf16.gmra.mxu0 %v511
      %v813 = vpop.f32.mrf.mxu0
      %v814 = vadd.f32 %v785, %v813
      %v815 = vpop.f32.mrf.mxu0
      %v816 = vadd.f32 %v787, %v815
      %817 = vmatmul.bf16.gmra.mxu0 %v516
      %v818 = vpop.f32.mrf.mxu0
      %v819 = vadd.f32 %v790, %v818
      %v820 = vpop.f32.mrf.mxu0
      %v821 = vadd.f32 %v792, %v820
      %822 = vdwg.mxu0
      %823 = vmatpush.bf16.msra.mxu0 %v703
      %824 = vmatpush.bf16.msra.mxu0 %v702
      %825 = vmatpush.bf16.msra.mxu0 %v701
      %826 = vmatpush.bf16.msra.mxu0 %v700
      %827 = vmatpush.bf16.msra.mxu0 %v699
      %828 = vmatpush.bf16.msra.mxu0 %v698
      %829 = vmatpush.bf16.msra.mxu0 %v697
      %830 = vmatpush.bf16.msra.mxu0 %v696
      %831 = vmatmul.bf16.gmra.mxu0 %v502
      %v832 = vpop.f32.mrf.mxu0
      %v833 = vadd.f32 %v804, %v832
      %v834 = vpop.f32.mrf.mxu0
      %v835 = vadd.f32 %v806, %v834
      %836 = vmatmul.bf16.gmra.mxu0 %v507
      %v837 = vpop.f32.mrf.mxu0
      %v838 = vadd.f32 %v809, %v837
      %v839 = vpop.f32.mrf.mxu0
      %v840 = vadd.f32 %v811, %v839
      %841 = vmatmul.bf16.gmra.mxu0 %v512
      %v842 = vpop.f32.mrf.mxu0
      %v843 = vadd.f32 %v814, %v842
      %v844 = vpop.f32.mrf.mxu0
      %v845 = vadd.f32 %v816, %v844
      %846 = vmatmul.bf16.gmra.mxu0 %v517
      %v847 = vpop.f32.mrf.mxu0
      %v848 = vadd.f32 %v819, %v847
      %v849 = vpop.f32.mrf.mxu0
      %v850 = vadd.f32 %v821, %v849
      %851 = vdwg.mxu0
      %852 = vmatpush.bf16.msra.mxu0 %v711
      %853 = vmatpush.bf16.msra.mxu0 %v710
      %854 = vmatpush.bf16.msra.mxu0 %v709
      %855 = vmatpush.bf16.msra.mxu0 %v708
      %856 = vmatpush.bf16.msra.mxu0 %v707
      %857 = vmatpush.bf16.msra.mxu0 %v706
      %858 = vmatpush.bf16.msra.mxu0 %v705
      %859 = vmatpush.bf16.msra.mxu0 %v704
      %860 = vmatmul.bf16.gmra.mxu0 %v503
      %v861 = vpop.f32.mrf.mxu0
      %v862 = vadd.f32 %v833, %v861
      %v863 = vpop.f32.mrf.mxu0
      %v864 = vadd.f32 %v835, %v863
      %865 = vmatmul.bf16.gmra.mxu0 %v508
      %v866 = vpop.f32.mrf.mxu0
      %v867 = vadd.f32 %v838, %v866
      %v868 = vpop.f32.mrf.mxu0
      %v869 = vadd.f32 %v840, %v868
      %870 = vmatmul.bf16.gmra.mxu0 %v513
      %v871 = vpop.f32.mrf.mxu0
      %v872 = vadd.f32 %v843, %v871
      %v873 = vpop.f32.mrf.mxu0
      %v874 = vadd.f32 %v845, %v873
      %875 = vmatmul.bf16.gmra.mxu0 %v518
      %v876 = vpop.f32.mrf.mxu0
      %v877 = vadd.f32 %v848, %v876
      %v878 = vpop.f32.mrf.mxu0
      %v879 = vadd.f32 %v850, %v878
      %880 = vdwg.mxu0
      %881 = vmatpush.bf16.msra.mxu0 0
      %882 = vmatpush.bf16.msra.mxu0 0
      %883 = vmatpush.bf16.msra.mxu0 0
      %884 = vmatpush.bf16.msra.mxu0 0
      %885 = vmatpush.bf16.msra.mxu0 %v715
      %886 = vmatpush.bf16.msra.mxu0 %v714
      %887 = vmatpush.bf16.msra.mxu0 %v713
      %888 = vmatpush.bf16.msra.mxu0 %v712
      %889 = vmatmul.bf16.gmra.mxu0 %v754
      %v890 = vpop.f32.mrf.mxu0
      %v891 = vadd.f32 %v862, %v890
      %v892 = vpop.f32.mrf.mxu0
      %v893 = vadd.f32 %v864, %v892
      %894 = vmatmul.bf16.gmra.mxu0 %v757
      %v895 = vpop.f32.mrf.mxu0
      %v896 = vadd.f32 %v867, %v895
      %v897 = vpop.f32.mrf.mxu0
      %v898 = vadd.f32 %v869, %v897
      %899 = vmatmul.bf16.gmra.mxu0 %v760
      %v900 = vpop.f32.mrf.mxu0
      %v901 = vadd.f32 %v872, %v900
      %v902 = vpop.f32.mrf.mxu0
      %v903 = vadd.f32 %v874, %v902
      %904 = vmatmul.bf16.gmra.mxu0 %v763
      %v905 = vpop.f32.mrf.mxu0
      %v906 = vadd.f32 %v877, %v905
      %v907 = vpop.f32.mrf.mxu0
      %v908 = vadd.f32 %v879, %v907
      %909 = vdwg.mxu0
      %v910 = vmax.f32 %v891, 0.0
      %v911 = vmax.f32 %v893, 0.0
      %v912 = vmax.f32 %v896, 0.0
      %v913 = vmax.f32 %v898, 0.0
      %v914 = vmax.f32 %v901, 0.0
      %v915 = vmax.f32 %v903, 0.0
      %v916 = vmax.f32 %v906, 0.0
      %v917 = vmax.f32 %v908, 0.0
      %v918 = vld [vmem:[%s322] sm:$0xff]
      %v919 = vld [vmem:[%s322 + $0x8] sm:$0xff]
      %v920 = vld [vmem:[%s322 + $0x10] sm:$0xff]
      %v921 = vld [vmem:[%s322 + $0x18] sm:$0xff]
      %v922 = vld [vmem:[%s322 + $0x20] sm:$0xff]
      %v923 = vld [vmem:[%s322 + $0x28] sm:$0xff]
      %v924 = vld [vmem:[%s322 + $0x30] sm:$0xff]
      %v925 = vld [vmem:[%s322 + $0x38] sm:$0xff]
      %v926 = vld [vmem:[%s4] sm:$0xf]
      %v927 = vld [vmem:[%s4 + $0x4] sm:$0xf]
      %v928 = vld [vmem:[%s4 + $0x8] sm:$0xf]
      %v929 = vld [vmem:[%s4 + $0xc] sm:$0xf]
      %v930 = vld [vmem:[%s4 + $0x10] sm:$0xf]
      %v931 = vld [vmem:[%s4 + $0x14] sm:$0xf]
      %v932 = vld [vmem:[%s4 + $0x18] sm:$0xf]
      %v933 = vld [vmem:[%s4 + $0x1c] sm:$0xf]
      %v934 = vld [vmem:[%s5] sm:$0x1]
      %v936 = vperm.slane %v934, 0
      %v946 = vunpack.c.l.b16 %v918
      %v947 = vunpack.c.l.b16 %v919
      %v948 = vunpack.c.l.b16 %v920
      %v949 = vunpack.c.l.b16 %v921
      %v950 = vunpack.c.l.b16 %v922
      %v951 = vunpack.c.l.b16 %v923
      %v952 = vunpack.c.l.b16 %v924
      %v953 = vunpack.c.l.b16 %v925
      %v954 = vpack.c.b16 %v947, %v946
      %v955 = vpack.c.b16 %v949, %v948
      %v956 = vpack.c.b16 %v951, %v950
      %v957 = vpack.c.b16 %v953, %v952
      %v966 = vunpack.c.l.b16 %v926
      %v967 = vunpack.c.l.b16 %v927
      %v968 = vunpack.c.l.b16 %v928
      %v969 = vunpack.c.l.b16 %v929
      %v970 = vunpack.c.l.b16 %v930
      %v971 = vunpack.c.l.b16 %v931
      %v972 = vunpack.c.l.b16 %v932
      %v973 = vunpack.c.l.b16 %v933
      %v974 = vpack.c.b16 %v967, %v966
      %v975 = vpack.c.b16 %v969, %v968
      %v976 = vpack.c.b16 %v971, %v970
      %v977 = vpack.c.b16 %v973, %v972
      %v983 = vsel %vm752, %v954, 0
      %v986 = vsel %vm752, %v955, 0
      %v989 = vsel %vm752, %v956, 0
      %v992 = vsel %vm752, %v957, 0
      %994 = vmatpush.bf16.msra.mxu0 0
      %995 = vmatpush.bf16.msra.mxu0 0
      %996 = vmatpush.bf16.msra.mxu0 0
      %997 = vmatpush.bf16.msra.mxu0 0
      %998 = vmatpush.bf16.msra.mxu0 %v977
      %999 = vmatpush.bf16.msra.mxu0 %v976
      %1000 = vmatpush.bf16.msra.mxu0 %v975
      %1001 = vmatpush.bf16.msra.mxu0 %v974
      %1002 = vmatmul.bf16.gmra.mxu0 %v983
      %v1003 = vpop.f32.mrf.mxu0
      %v1004 = vadd.f32 %v936, %v1003
      %v1005 = vpop.f32.mrf.mxu0
      %v1006 = vadd.f32 %v936, %v1005
      %1007 = vmatmul.bf16.gmra.mxu0 %v986
      %v1008 = vpop.f32.mrf.mxu0
      %v1009 = vadd.f32 %v936, %v1008
      %v1010 = vpop.f32.mrf.mxu0
      %v1011 = vadd.f32 %v936, %v1010
      %1012 = vmatmul.bf16.gmra.mxu0 %v989
      %v1013 = vpop.f32.mrf.mxu0
      %v1014 = vadd.f32 %v936, %v1013
      %v1015 = vpop.f32.mrf.mxu0
      %v1016 = vadd.f32 %v936, %v1015
      %1017 = vmatmul.bf16.gmra.mxu0 %v992
      %v1018 = vpop.f32.mrf.mxu0
      %v1019 = vadd.f32 %v936, %v1018
      %v1020 = vpop.f32.mrf.mxu0
      %v1021 = vadd.f32 %v936, %v1020
      %1022 = vdwg.mxu0
      %v1023 = vmax.f32 %v1004, 0.0
      %v1024 = vmax.f32 %v1006, 0.0
      %v1025 = vmax.f32 %v1009, 0.0
      %v1026 = vmax.f32 %v1011, 0.0
      %v1027 = vmax.f32 %v1014, 0.0
      %v1028 = vmax.f32 %v1016, 0.0
      %v1029 = vmax.f32 %v1019, 0.0
      %v1030 = vmax.f32 %v1021, 0.0
      %v1031 = vadd.f32 %v910, %v1023
      %v1032 = vadd.f32 %v911, %v1024
      %v1033 = vadd.f32 %v912, %v1025
      %v1034 = vadd.f32 %v913, %v1026
      %v1035 = vadd.f32 %v914, %v1027
      %v1036 = vadd.f32 %v915, %v1028
      %v1037 = vadd.f32 %v916, %v1029
      %v1038 = vadd.f32 %v917, %v1030
      %1039 = vrot.lane.b32.xlu0 %v954, 64
      %v1040 = vpop.permute.xlu0 %1039
      %1041 = vrot.lane.b32.xlu0 %v955, 64
      %v1042 = vpop.permute.xlu0 %1041
      %1043 = vrot.lane.b32.xlu0 %v956, 64
      %v1044 = vpop.permute.xlu0 %1043
      %1045 = vrot.lane.b32.xlu0 %v957, 64
      %v1046 = vpop.permute.xlu0 %1045
      %v1048 = vsel %vm752, %v1040, 0
      %v1051 = vsel %vm752, %v1042, 0
      %v1054 = vsel %vm752, %v1044, 0
      %v1057 = vsel %vm752, %v1046, 0
      %1059 = vmatpush.bf16.msra.mxu0 0
      %1060 = vmatpush.bf16.msra.mxu0 0
      %1061 = vmatpush.bf16.msra.mxu0 0
      %1062 = vmatpush.bf16.msra.mxu0 0
      %1063 = vmatpush.bf16.msra.mxu0 %v977
      %1064 = vmatpush.bf16.msra.mxu0 %v976
      %1065 = vmatpush.bf16.msra.mxu0 %v975
      %1066 = vmatpush.bf16.msra.mxu0 %v974
      %1067 = vmatmul.bf16.gmra.mxu0 %v1048
      %v1068 = vpop.f32.mrf.mxu0
      %v1069 = vadd.f32 %v936, %v1068
      %v1070 = vpop.f32.mrf.mxu0
      %v1071 = vadd.f32 %v936, %v1070
      %1072 = vmatmul.bf16.gmra.mxu0 %v1051
      %v1073 = vpop.f32.mrf.mxu0
      %v1074 = vadd.f32 %v936, %v1073
      %v1075 = vpop.f32.mrf.mxu0
      %v1076 = vadd.f32 %v936, %v1075
      %1077 = vmatmul.bf16.gmra.mxu0 %v1054
      %v1078 = vpop.f32.mrf.mxu0
      %v1079 = vadd.f32 %v936, %v1078
      %v1080 = vpop.f32.mrf.mxu0
      %v1081 = vadd.f32 %v936, %v1080
      %1082 = vmatmul.bf16.gmra.mxu0 %v1057
      %v1083 = vpop.f32.mrf.mxu0
      %v1084 = vadd.f32 %v936, %v1083
      %v1085 = vpop.f32.mrf.mxu0
      %v1086 = vadd.f32 %v936, %v1085
      %1087 = vdwg.mxu0
      %v1088 = vmax.f32 %v1069, 0.0
      %v1089 = vmax.f32 %v1071, 0.0
      %v1090 = vmax.f32 %v1074, 0.0
      %v1091 = vmax.f32 %v1076, 0.0
      %v1092 = vmax.f32 %v1079, 0.0
      %v1093 = vmax.f32 %v1081, 0.0
      %v1094 = vmax.f32 %v1084, 0.0
      %v1095 = vmax.f32 %v1086, 0.0
      %v1096 = vadd.f32 %v910, %v1088
      %v1097 = vadd.f32 %v911, %v1089
      %v1098 = vadd.f32 %v912, %v1090
      %v1099 = vadd.f32 %v913, %v1091
      %v1100 = vadd.f32 %v914, %v1092
      %v1101 = vadd.f32 %v915, %v1093
      %v1102 = vadd.f32 %v916, %v1094
      %v1103 = vadd.f32 %v917, %v1095
      %v1104 = vunpack.c.h.b16 %v918
      %v1105 = vunpack.c.h.b16 %v919
      %v1106 = vunpack.c.h.b16 %v920
      %v1107 = vunpack.c.h.b16 %v921
      %v1108 = vunpack.c.h.b16 %v922
      %v1109 = vunpack.c.h.b16 %v923
      %v1110 = vunpack.c.h.b16 %v924
      %v1111 = vunpack.c.h.b16 %v925
      %v1112 = vpack.c.b16 %v1105, %v1104
      %v1113 = vpack.c.b16 %v1107, %v1106
      %v1114 = vpack.c.b16 %v1109, %v1108
      %v1115 = vpack.c.b16 %v1111, %v1110
      %v1117 = vsel %vm752, %v1112, 0
      %v1120 = vsel %vm752, %v1113, 0
      %v1123 = vsel %vm752, %v1114, 0
      %v1126 = vsel %vm752, %v1115, 0
      %1128 = vmatpush.bf16.msra.mxu0 0
      %1129 = vmatpush.bf16.msra.mxu0 0
      %1130 = vmatpush.bf16.msra.mxu0 0
      %1131 = vmatpush.bf16.msra.mxu0 0
      %1132 = vmatpush.bf16.msra.mxu0 %v977
      %1133 = vmatpush.bf16.msra.mxu0 %v976
      %1134 = vmatpush.bf16.msra.mxu0 %v975
      %1135 = vmatpush.bf16.msra.mxu0 %v974
      %1136 = vmatmul.bf16.gmra.mxu0 %v1117
      %v1137 = vpop.f32.mrf.mxu0
      %v1138 = vadd.f32 %v936, %v1137
      %v1139 = vpop.f32.mrf.mxu0
      %v1140 = vadd.f32 %v936, %v1139
      %1141 = vmatmul.bf16.gmra.mxu0 %v1120
      %v1142 = vpop.f32.mrf.mxu0
      %v1143 = vadd.f32 %v936, %v1142
      %v1144 = vpop.f32.mrf.mxu0
      %v1145 = vadd.f32 %v936, %v1144
      %1146 = vmatmul.bf16.gmra.mxu0 %v1123
      %v1147 = vpop.f32.mrf.mxu0
      %v1148 = vadd.f32 %v936, %v1147
      %v1149 = vpop.f32.mrf.mxu0
      %v1150 = vadd.f32 %v936, %v1149
      %1151 = vmatmul.bf16.gmra.mxu0 %v1126
      %v1152 = vpop.f32.mrf.mxu0
      %v1153 = vadd.f32 %v936, %v1152
      %v1154 = vpop.f32.mrf.mxu0
      %v1155 = vadd.f32 %v936, %v1154
      %1156 = vdwg.mxu0
      %v1157 = vmax.f32 %v1138, 0.0
      %v1158 = vmax.f32 %v1140, 0.0
      %v1159 = vmax.f32 %v1143, 0.0
      %v1160 = vmax.f32 %v1145, 0.0
      %v1161 = vmax.f32 %v1148, 0.0
      %v1162 = vmax.f32 %v1150, 0.0
      %v1163 = vmax.f32 %v1153, 0.0
      %v1164 = vmax.f32 %v1155, 0.0
      %v1165 = vadd.f32 %v910, %v1157
      %v1166 = vadd.f32 %v911, %v1158
      %v1167 = vadd.f32 %v912, %v1159
      %v1168 = vadd.f32 %v913, %v1160
      %v1169 = vadd.f32 %v914, %v1161
      %v1170 = vadd.f32 %v915, %v1162
      %v1171 = vadd.f32 %v916, %v1163
      %v1172 = vadd.f32 %v917, %v1164
      %1173 = vrot.lane.b32.xlu0 %v1112, 64
      %v1174 = vpop.permute.xlu0 %1173
      %1175 = vrot.lane.b32.xlu0 %v1113, 64
      %v1176 = vpop.permute.xlu0 %1175
      %1177 = vrot.lane.b32.xlu0 %v1114, 64
      %v1178 = vpop.permute.xlu0 %1177
      %1179 = vrot.lane.b32.xlu0 %v1115, 64
      %v1180 = vpop.permute.xlu0 %1179
      %v1182 = vsel %vm752, %v1174, 0
      %v1185 = vsel %vm752, %v1176, 0
      %v1188 = vsel %vm752, %v1178, 0
      %v1191 = vsel %vm752, %v1180, 0
      %1193 = vmatpush.bf16.msra.mxu0 0
      %1194 = vmatpush.bf16.msra.mxu0 0
      %1195 = vmatpush.bf16.msra.mxu0 0
      %1196 = vmatpush.bf16.msra.mxu0 0
      %1197 = vmatpush.bf16.msra.mxu0 %v977
      %1198 = vmatpush.bf16.msra.mxu0 %v976
      %1199 = vmatpush.bf16.msra.mxu0 %v975
      %1200 = vmatpush.bf16.msra.mxu0 %v974
      %1201 = vmatmul.bf16.gmra.mxu0 %v1182
      %v1202 = vpop.f32.mrf.mxu0
      %v1203 = vadd.f32 %v936, %v1202
      %v1204 = vpop.f32.mrf.mxu0
      %v1205 = vadd.f32 %v936, %v1204
      %1206 = vmatmul.bf16.gmra.mxu0 %v1185
      %v1207 = vpop.f32.mrf.mxu0
      %v1208 = vadd.f32 %v936, %v1207
      %v1209 = vpop.f32.mrf.mxu0
      %v1210 = vadd.f32 %v936, %v1209
      %1211 = vmatmul.bf16.gmra.mxu0 %v1188
      %v1212 = vpop.f32.mrf.mxu0
      %v1213 = vadd.f32 %v936, %v1212
      %v1214 = vpop.f32.mrf.mxu0
      %v1215 = vadd.f32 %v936, %v1214
      %1216 = vmatmul.bf16.gmra.mxu0 %v1191
      %v1217 = vpop.f32.mrf.mxu0
      %v1218 = vadd.f32 %v936, %v1217
      %v1219 = vpop.f32.mrf.mxu0
      %v1220 = vadd.f32 %v936, %v1219
      %1221 = vdwg.mxu0
      %v1222 = vmax.f32 %v1203, 0.0
      %v1223 = vmax.f32 %v1205, 0.0
      %v1224 = vmax.f32 %v1208, 0.0
      %v1225 = vmax.f32 %v1210, 0.0
      %v1226 = vmax.f32 %v1213, 0.0
      %v1227 = vmax.f32 %v1215, 0.0
      %v1228 = vmax.f32 %v1218, 0.0
      %v1229 = vmax.f32 %v1220, 0.0
      %v1230 = vadd.f32 %v910, %v1222
      %v1231 = vadd.f32 %v911, %v1223
      %v1232 = vadd.f32 %v912, %v1224
      %v1233 = vadd.f32 %v913, %v1225
      %v1234 = vadd.f32 %v914, %v1226
      %v1235 = vadd.f32 %v915, %v1227
      %v1236 = vadd.f32 %v916, %v1228
      %v1237 = vadd.f32 %v917, %v1229
      %1238 = vst [vmem:[%s333] sm:$0xff] %v1031
      %1239 = vst [vmem:[%s333 + $0x8] sm:$0xff] %v1096
      %1240 = vst [vmem:[%s333 + $0x10] sm:$0xff] %v1165
      %1241 = vst [vmem:[%s333 + $0x18] sm:$0xff] %v1230
      %1242 = vst [vmem:[%s333 + $0x20] sm:$0xff] %v1032
      %1243 = vst [vmem:[%s333 + $0x28] sm:$0xff] %v1097
      %1244 = vst [vmem:[%s333 + $0x30] sm:$0xff] %v1166
      %1245 = vst [vmem:[%s333 + $0x38] sm:$0xff] %v1231
      %1246 = vst [vmem:[%s333 + $0x40] sm:$0xff] %v1033
      %1247 = vst [vmem:[%s333 + $0x48] sm:$0xff] %v1098
      %1248 = vst [vmem:[%s333 + $0x50] sm:$0xff] %v1167
      %1249 = vst [vmem:[%s333 + $0x58] sm:$0xff] %v1232
      %1250 = vst [vmem:[%s333 + $0x60] sm:$0xff] %v1034
      %1251 = vst [vmem:[%s333 + $0x68] sm:$0xff] %v1099
      %1252 = vst [vmem:[%s333 + $0x70] sm:$0xff] %v1168
      %1253 = vst [vmem:[%s333 + $0x78] sm:$0xff] %v1233
      %1254 = vst [vmem:[%s333 + $0x80] sm:$0xff] %v1035
      %1255 = vst [vmem:[%s333 + $0x88] sm:$0xff] %v1100
      %1256 = vst [vmem:[%s333 + $0x90] sm:$0xff] %v1169
      %1257 = vst [vmem:[%s333 + $0x98] sm:$0xff] %v1234
      %1258 = vst [vmem:[%s333 + $0xa0] sm:$0xff] %v1036
      %1259 = vst [vmem:[%s333 + $0xa8] sm:$0xff] %v1101
      %1260 = vst [vmem:[%s333 + $0xb0] sm:$0xff] %v1170
      %1261 = vst [vmem:[%s333 + $0xb8] sm:$0xff] %v1235
      %1262 = vst [vmem:[%s333 + $0xc0] sm:$0xff] %v1037
      %1263 = vst [vmem:[%s333 + $0xc8] sm:$0xff] %v1102
      %1264 = vst [vmem:[%s333 + $0xd0] sm:$0xff] %v1171
      %1265 = vst [vmem:[%s333 + $0xd8] sm:$0xff] %v1236
      %1266 = vst [vmem:[%s333 + $0xe0] sm:$0xff] %v1038
      %1267 = vst [vmem:[%s333 + $0xe8] sm:$0xff] %v1103
      %1268 = vst [vmem:[%s333 + $0xf0] sm:$0xff] %v1172
      %1269 = vst [vmem:[%s333 + $0xf8] sm:$0xff] %v1237
      %s1270 = smul.u32 8, %s22
      %p1271 = scmp.lt.s32.totalorder %s21, 1
      %s1272 = scalar_select %p1271, %s21, 1
      %p1273 = scmp.lt.s32.totalorder %s1270, 7
      %s1274 = scalar_select %p1273, %s1270, 7
      %s1275 = smul.addr %s1274, 4
      %s1276 = smul.addr %s1272, 32
      %s1277 = sadd.s32 %s1275, %s1276
      %s1278 = smul.addr %s1277, 8
      %s1279 = scalar_lea.vmem %s6, %s1278
      // Predicated region
      $region45: #{fatnet_forward.23} parent=43 // pred_check
        %p1280 = pneg %p189
      $region46: #{fatnet_forward.23} parent=43 // pred_check_branch
        %1282 = sbr.rel (%p1280) target = $region48
      $region47: #{fatnet_forward.23} parent=43 // pred_region
        %s1283 = smul.u32 8, %s22
      $region48: #{fatnet_forward.23} parent=43 // pred_fallthru
        _
    $region44: #{fatnet_forward.23} parent=5 // pred_fallthru
      _
    %p1284 = scmp.le.s32.totalorder 2, %s12
    // Predicated region
    $region49: #{fatnet_forward.23} parent=5 // pred_check
      %p1285 = pneg %p1284
    $region50: #{fatnet_forward.23} parent=5 // pred_check_branch
      %1287 = sbr.rel (%p1285) target = $region52
    $region51: #{fatnet_forward.23} parent=5 // pred_region
      %s1288 = ssub.s32 %s12, 2
      // Predicated region
      $region53: #{fatnet_forward.23} parent=51 // pred_check
        %p1289 = pneg %p195
      $region54: #{fatnet_forward.23} parent=51 // pred_check_branch
        %1291 = sbr.rel (%p1289) target = $region56
      $region55: #{fatnet_forward.23} parent=51 // pred_region
        %s1292 = smul.u32 8, %s24
        %p1293 = scmp.lt.s32.totalorder %s23, 1
        %s1294 = scalar_select %p1293, %s23, 1
        %p1295 = scmp.lt.s32.totalorder %s1292, 7
        %s1296 = scalar_select %p1295, %s1292, 7
        %s1297 = smul.addr %s1296, 4
        %s1298 = smul.addr %s1294, 32
        %s1299 = sadd.s32 %s1297, %s1298
        %s1300 = smul.addr %s1299, 8
        %s1301 = scalar_lea.vmem %s6, %s1300
      $region56: #{fatnet_forward.23} parent=51 // pred_fallthru
        _
    $region52: #{fatnet_forward.23} parent=5 // pred_fallthru
      _
  $region6: #{fatnet_forward.23} parent=0 // loop_footer
    %s16 = sadd.s32 1, %s12
  $region7: #{fatnet_forward.23} parent=0 // loop_footer_branch
    %11 = sbr.rel target = $region3
  $region8: #{fatnet_forward.23} parent=0 // loop_exit
    _

// kernel: fatnet_forward.24
$region0: #{fatnet_forward.24}
  #allocation0 [shape = 'u32[]', space=smem, size = 0x4, offset = 0x4, fixed_abs, tag = 'smem constant byte address 0x4 - core index']
  #allocation1 [shape = 'u32[72,128]{1,0:T(1,128)}', space=vmem, size = 0x9000, scoped, tag = 'internal scratch']
  %s0 = inlined_call_operand.vmem [shape: bf16[2,64,1152], index: 0, kind: input, shape index: {}]
  %s1 = inlined_call_operand.vmem [shape: bf16[2,64,512], index: 1, kind: input, shape index: {}]
  %s2 = inlined_call_operand.vmem [shape: bf16[1152,128], index: 2, kind: input, shape index: {}]
  %s3 = inlined_call_operand.vmem [shape: f32[1,128], index: 3, kind: input, shape index: {}]
  %s4 = inlined_call_operand.vmem [shape: bf16[128,128], index: 4, kind: input, shape index: {}]
  %s5 = inlined_call_operand.vmem [shape: f32[1,128], index: 5, kind: input, shape index: {}]
  %s6 = inlined_call_operand.vmem [shape: f32[2,64,512], index: 6, kind: output, shape index: {}]
  %s7 = sld [smem:[#allocation0]]
  $region57: #{fatnet_forward.24} parent=0
    _
  %s9 = ssub.s32 1, %s7
  %s10 = scalar_select 0, %s9, %s7
  loop: start=0, step=1, limit=4
  $region2: #{fatnet_forward.24} parent=0 // loop_pre_header
    _
  $region3: #{fatnet_forward.24} parent=0 // loop_header
    %s12 = sphi 0, %s16
    %p13 = scmp.ge.s32.totalorder %s12, 4
    %s19 = sphi 0, %s31
    %s20 = sphi 0, %s27
    %s21 = sphi 0, %s19
    %s22 = sphi 0, %s20
    %s23 = sphi 0, %s21
    %s24 = sphi 0, %s22
    %s36 = sphi 0, %s38
    %s39 = sphi 0, %s36
    %s40 = sphi 0, %s39
    %s56 = sphi 0, %s40
    %s64 = sphi 0, %s66
    %s67 = sphi 0, %s64
    %s68 = sphi 0, %s67
    %s84 = sphi 0, %s68
    %s88 = sphi 0, %s88
    %s90 = sphi 0, %s88
    %s91 = sphi 0, %s90
    %s105 = sphi 0, %s91
    %s109 = sphi 0, %s109
    %s111 = sphi 0, %s109
    %s112 = sphi 0, %s111
    %s126 = sphi 0, %s112
    %s130 = sphi 0, %s130
    %s132 = sphi 0, %s130
    %s133 = sphi 0, %s132
    %s147 = sphi 0, %s133
    %s151 = sphi 0, %s151
    %s153 = sphi 0, %s151
    %s154 = sphi 0, %s153
    %s168 = sphi 0, %s154
    %s176 = sphi 0, %s178
    %s179 = sphi 0, %s176
    %s180 = sphi 0, %s179
    %s196 = sphi 0, %s180
  $region4: #{fatnet_forward.24} parent=0 // loop_header_branch
    %15 = sbr.rel (%p13) target = $region8
  $region5: #{fatnet_forward.24} parent=0 // loop_body
    %s17 = ssub.s32 %s12, 1
    %s18 = ssub.s32 %s12, 2
    %s25 = sadd.s32 1, %s20
    %p26 = scmp.ge.s32.totalorder %s25, 1
    %s27 = scalar_select %p26, 0, %s25
    %s28 = sadd.s32 1, %s19
    %s29 = scalar_select %p26, %s28, %s19
    %p30 = scmp.ge.s32.totalorder %s29, 2
    %s31 = scalar_select %p30, 0, %s29
    %s32 = ssub.s32 %s19, %s31
    %s33 = ssub.s32 %s20, %s27
    %s34 = sor.u32 %s32, %s33
    %p35 = scmp.eq.s32.totalorder %s34, 0
    %s37 = sadd.s32 %s36, 1
    %s38 = scalar_select %p35, %s36, %s37
    %p41 = pneg %p35
    %p42 = scmp.eq.s32.totalorder %s12, 1
    %p43 = por %p41, %p42
    %p44 = scmp.ne.s32.totalorder %s36, %s39
    %p45 = scmp.eq.s32.totalorder %s12, 0
    %p46 = por %p44, %p45
    %p47 = scmp.ne.s32.totalorder %s36, %s39
    %p48 = scmp.eq.s32.totalorder %s17, 1
    %p49 = por %p47, %p48
    %p50 = scmp.ne.s32.totalorder %s39, %s40
    %p51 = scmp.eq.s32.totalorder %s17, 0
    %p52 = por %p50, %p51
    %p53 = scmp.ne.s32.totalorder %s39, %s40
    %p54 = scmp.eq.s32.totalorder %s18, 1
    %p55 = por %p53, %p54
    %p57 = scmp.ne.s32.totalorder %s40, %s56
    %p58 = scmp.eq.s32.totalorder %s18, 0
    %p59 = por %p57, %p58
    %s60 = ssub.s32 %s19, %s31
    %s61 = ssub.s32 %s20, %s27
    %s62 = sor.u32 %s60, %s61
    %p63 = scmp.eq.s32.totalorder %s62, 0
    %s65 = sadd.s32 %s64, 1
    %s66 = scalar_select %p63, %s64, %s65
    %p69 = pneg %p63
    %p70 = scmp.eq.s32.totalorder %s12, 1
    %p71 = por %p69, %p70
    %p72 = scmp.ne.s32.totalorder %s64, %s67
    %p73 = scmp.eq.s32.totalorder %s12, 0
    %p74 = por %p72, %p73
    %p75 = scmp.ne.s32.totalorder %s64, %s67
    %p76 = scmp.eq.s32.totalorder %s17, 1
    %p77 = por %p75, %p76
    %p78 = scmp.ne.s32.totalorder %s67, %s68
    %p79 = scmp.eq.s32.totalorder %s17, 0
    %p80 = por %p78, %p79
    %p81 = scmp.ne.s32.totalorder %s67, %s68
    %p82 = scmp.eq.s32.totalorder %s18, 1
    %p83 = por %p81, %p82
    %p85 = scmp.ne.s32.totalorder %s68, %s84
    %p86 = scmp.eq.s32.totalorder %s18, 0
    %p87 = por %p85, %p86
    %s89 = sadd.s32 %s88, 1
    %p92 = scmp.eq.s32.totalorder %s12, 1
    %p93 = scmp.ne.s32.totalorder %s88, %s90
    %p94 = scmp.eq.s32.totalorder %s12, 0
    %p95 = por %p93, %p94
    %p96 = scmp.ne.s32.totalorder %s88, %s90
    %p97 = scmp.eq.s32.totalorder %s17, 1
    %p98 = por %p96, %p97
    %p99 = scmp.ne.s32.totalorder %s90, %s91
    %p100 = scmp.eq.s32.totalorder %s17, 0
    %p101 = por %p99, %p100
    %p102 = scmp.ne.s32.totalorder %s90, %s91
    %p103 = scmp.eq.s32.totalorder %s18, 1
    %p104 = por %p102, %p103
    %p106 = scmp.ne.s32.totalorder %s91, %s105
    %p107 = scmp.eq.s32.totalorder %s18, 0
    %p108 = por %p106, %p107
    %s110 = sadd.s32 %s109, 1
    %p113 = scmp.eq.s32.totalorder %s12, 1
    %p114 = scmp.ne.s32.totalorder %s109, %s111
    %p115 = scmp.eq.s32.totalorder %s12, 0
    %p116 = por %p114, %p115
    %p117 = scmp.ne.s32.totalorder %s109, %s111
    %p118 = scmp.eq.s32.totalorder %s17, 1
    %p119 = por %p117, %p118
    %p120 = scmp.ne.s32.totalorder %s111, %s112
    %p121 = scmp.eq.s32.totalorder %s17, 0
    %p122 = por %p120, %p121
    %p123 = scmp.ne.s32.totalorder %s111, %s112
    %p124 = scmp.eq.s32.totalorder %s18, 1
    %p125 = por %p123, %p124
    %p127 = scmp.ne.s32.totalorder %s112, %s126
    %p128 = scmp.eq.s32.totalorder %s18, 0
    %p129 = por %p127, %p128
    %s131 = sadd.s32 %s130, 1
    %p134 = scmp.eq.s32.totalorder %s12, 1
    %p135 = scmp.ne.s32.totalorder %s130, %s132
    %p136 = scmp.eq.s32.totalorder %s12, 0
    %p137 = por %p135, %p136
    %p138 = scmp.ne.s32.totalorder %s130, %s132
    %p139 = scmp.eq.s32.totalorder %s17, 1
    %p140 = por %p138, %p139
    %p141 = scmp.ne.s32.totalorder %s132, %s133
    %p142 = scmp.eq.s32.totalorder %s17, 0
    %p143 = por %p141, %p142
    %p144 = scmp.ne.s32.totalorder %s132, %s133
    %p145 = scmp.eq.s32.totalorder %s18, 1
    %p146 = por %p144, %p145
    %p148 = scmp.ne.s32.totalorder %s133, %s147
    %p149 = scmp.eq.s32.totalorder %s18, 0
    %p150 = por %p148, %p149
    %s152 = sadd.s32 %s151, 1
    %p155 = scmp.eq.s32.totalorder %s12, 1
    %p156 = scmp.ne.s32.totalorder %s151, %s153
    %p157 = scmp.eq.s32.totalorder %s12, 0
    %p158 = por %p156, %p157
    %p159 = scmp.ne.s32.totalorder %s151, %s153
    %p160 = scmp.eq.s32.totalorder %s17, 1
    %p161 = por %p159, %p160
    %p162 = scmp.ne.s32.totalorder %s153, %s154
    %p163 = scmp.eq.s32.totalorder %s17, 0
    %p164 = por %p162, %p163
    %p165 = scmp.ne.s32.totalorder %s153, %s154
    %p166 = scmp.eq.s32.totalorder %s18, 1
    %p167 = por %p165, %p166
    %p169 = scmp.ne.s32.totalorder %s154, %s168
    %p170 = scmp.eq.s32.totalorder %s18, 0
    %p171 = por %p169, %p170
    %s172 = ssub.s32 %s19, %s31
    %s173 = ssub.s32 %s20, %s27
    %s174 = sor.u32 %s172, %s173
    %p175 = scmp.eq.s32.totalorder %s174, 0
    %s177 = sadd.s32 %s176, 1
    %s178 = scalar_select %p175, %s176, %s177
    %p181 = pneg %p175
    %p182 = scmp.eq.s32.totalorder %s12, 1
    %p183 = por %p181, %p182
    %p184 = scmp.ne.s32.totalorder %s176, %s179
    %p185 = scmp.eq.s32.totalorder %s12, 0
    %p186 = por %p184, %p185
    %p187 = scmp.ne.s32.totalorder %s176, %s179
    %p188 = scmp.eq.s32.totalorder %s17, 1
    %p189 = por %p187, %p188
    %p190 = scmp.ne.s32.totalorder %s179, %s180
    %p191 = scmp.eq.s32.totalorder %s17, 0
    %p192 = por %p190, %p191
    %p193 = scmp.ne.s32.totalorder %s179, %s180
    %p194 = scmp.eq.s32.totalorder %s18, 1
    %p195 = por %p193, %p194
    %p197 = scmp.ne.s32.totalorder %s180, %s196
    %p198 = scmp.eq.s32.totalorder %s18, 0
    %p199 = por %p197, %p198
    %p200 = scmp.le.s32.totalorder 1, %s12
    %p201 = scmp.lt.s32.totalorder %s12, 3
    %p202 = pnand %p200, %p201
    %p203 = pneg %p202
    // Predicated region
    $region9: #{fatnet_forward.24} parent=5 // pred_check
      _
    $region10: #{fatnet_forward.24} parent=5 // pred_check_branch
      %205 = sbr.rel (%p202) target = $region12
    $region11: #{fatnet_forward.24} parent=5 // pred_region
      %s206 = ssub.s32 %s12, 1
      // Predicated region
      $region13: #{fatnet_forward.24} parent=11 // pred_check
        %p207 = pneg %p101
      $region14: #{fatnet_forward.24} parent=11 // pred_check_branch
        %209 = sbr.rel (%p207) target = $region16
      $region15: #{fatnet_forward.24} parent=11 // pred_region
        _
      $region16: #{fatnet_forward.24} parent=11 // pred_fallthru
        _
      // Predicated region
      $region17: #{fatnet_forward.24} parent=11 // pred_check
        %p210 = pneg %p122
      $region18: #{fatnet_forward.24} parent=11 // pred_check_branch
        %212 = sbr.rel (%p210) target = $region20
      $region19: #{fatnet_forward.24} parent=11 // pred_region
        _
      $region20: #{fatnet_forward.24} parent=11 // pred_fallthru
        _
      // Predicated region
      $region21: #{fatnet_forward.24} parent=11 // pred_check
        %p213 = pneg %p143
      $region22: #{fatnet_forward.24} parent=11 // pred_check_branch
        %215 = sbr.rel (%p213) target = $region24
      $region23: #{fatnet_forward.24} parent=11 // pred_region
        _
      $region24: #{fatnet_forward.24} parent=11 // pred_fallthru
        _
      // Predicated region
      $region25: #{fatnet_forward.24} parent=11 // pred_check
        %p216 = pneg %p164
      $region26: #{fatnet_forward.24} parent=11 // pred_check_branch
        %218 = sbr.rel (%p216) target = $region28
      $region27: #{fatnet_forward.24} parent=11 // pred_region
        _
      $region28: #{fatnet_forward.24} parent=11 // pred_fallthru
        _
    $region12: #{fatnet_forward.24} parent=5 // pred_fallthru
      _
    %p219 = scmp.lt.s32.totalorder %s12, 2
    // Predicated region
    $region29: #{fatnet_forward.24} parent=5 // pred_check
      %p220 = pneg %p219
    $region30: #{fatnet_forward.24} parent=5 // pred_check_branch
      %222 = sbr.rel (%p220) target = $region32
    $region31: #{fatnet_forward.24} parent=5 // pred_region
      // Predicated region
      $region33: #{fatnet_forward.24} parent=31 // pred_check
        %p223 = pneg %p46
      $region34: #{fatnet_forward.24} parent=31 // pred_check_branch
        %225 = sbr.rel (%p223) target = $region36
      $region35: #{fatnet_forward.24} parent=31 // pred_region
        %s226 = smul.u32 8, %s20
        %p227 = scmp.lt.s32.totalorder %s19, 1
        %s228 = scalar_select %p227, %s19, 1
        %p229 = scmp.lt.s32.totalorder %s226, 7
        %s230 = scalar_select %p229, %s226, 7
        %s231 = smul.addr %s230, 9
        %s232 = smul.addr %s228, 72
        %s233 = sadd.s32 %s231, %s232
        %s234 = smul.addr %s233, 4
        %s235 = scalar_lea.vmem %s0, %s234
        %s236 = smul.u32 8, %s20
      $region36: #{fatnet_forward.24} parent=31 // pred_fallthru
        _
      // Predicated region
      $region37: #{fatnet_forward.24} parent=31 // pred_check
        %p237 = pneg %p74
      $region38: #{fatnet_forward.24} parent=31 // pred_check_branch
        %239 = sbr.rel (%p237) target = $region40
      $region39: #{fatnet_forward.24} parent=31 // pred_region
        %s240 = smul.u32 8, %s20
        %p241 = scmp.lt.s32.totalorder %s19, 1
        %s242 = scalar_select %p241, %s19, 1
        %p243 = scmp.lt.s32.totalorder %s240, 7
        %s244 = scalar_select %p243, %s240, 7
        %s245 = smul.addr %s244, 4
        %s246 = smul.addr %s242, 32
        %s247 = sadd.s32 %s245, %s246
        %s248 = smul.addr %s247, 4
        %s249 = scalar_lea.vmem %s1, %s248
        %s250 = smul.u32 8, %s20
      $region40: #{fatnet_forward.24} parent=31 // pred_fallthru
        _
    $region32: #{fatnet_forward.24} parent=5 // pred_fallthru
      _
    %p251 = scmp.le.s32.totalorder 1, %s12
    %p252 = scmp.lt.s32.totalorder %s12, 3
    %p253 = pnand %p251, %p252
    %p254 = pneg %p253
    // Predicated region
    $region41: #{fatnet_forward.24} parent=5 // pred_check
      _
    $region42: #{fatnet_forward.24} parent=5 // pred_check_branch
      %256 = sbr.rel (%p253) target = $region44
    $region43: #{fatnet_forward.24} parent=5 // pred_region
      %s257 = ssub.s32 %s12, 1
      %s258 = smul.u32 8, %s22
      %p259 = scmp.lt.s32.totalorder %s21, 1
      %s260 = scalar_select %p259, %s21, 1
      %p261 = scmp.lt.s32.totalorder %s258, 7
      %s262 = scalar_select %p261, %s258, 7
      %s263 = smul.addr %s262, 9
      %s264 = smul.addr %s260, 72
      %s265 = sadd.s32 %s263, %s264
      %s266 = smul.addr %s265, 4
      %s267 = scalar_lea.vmem %s0, %s266
      %p268 = pneg %p52
      %p269 = pneg %p49
      %s270 = smul.u32 8, %s22
      %p271 = scmp.lt.s32.totalorder %s21, 1
      %s272 = scalar_select %p271, %s21, 1
      %p273 = scmp.lt.s32.totalorder %s270, 7
      %s274 = scalar_select %p273, %s270, 7
      %s275 = smul.addr %s274, 4
      %s276 = smul.addr %s272, 32
      %s277 = sadd.s32 %s275, %s276
      %s278 = smul.addr %s277, 4
      %s279 = scalar_lea.vmem %s1, %s278
      %p280 = pneg %p80
      %p281 = pneg %p77
      %p282 = pneg %p101
      %p283 = pneg %p98
      %p284 = pneg %p122
      %p285 = pneg %p119
      %p286 = pneg %p143
      %p287 = pneg %p140
      %p288 = pneg %p164
      %p289 = pneg %p161
      %p290 = pneg %p192
      %p291 = pneg %p189
      %s292 = smul.u32 8, %s22
      %p293 = scmp.lt.s32.totalorder %s21, 1
      %s294 = scalar_select %p293, %s21, 1
      %p295 = scmp.lt.s32.totalorder %s292, 7
      %s296 = scalar_select %p295, %s292, 7
      %s297 = smul.addr %s296, 4
      %s298 = smul.addr %s294, 32
      %s299 = sadd.s32 %s297, %s298
      %s300 = smul.addr %s299, 8
      %s301 = scalar_lea.vmem %s6, %s300
      %s302 = smul.u32 8, %s22
      %p303 = scmp.lt.s32.totalorder %s21, 1
      %s304 = scalar_select %p303, %s21, 1
      %p305 = scmp.lt.s32.totalorder %s302, 7
      %s306 = scalar_select %p305, %s302, 7
      %s307 = smul.addr %s306, 9
      %s308 = smul.addr %s304, 72
      %s309 = sadd.s32 %s307, %s308
      %s310 = smul.addr %s309, 4
      %s311 = scalar_lea.vmem %s0, %s310
      %s312 = smul.u32 8, %s22
      %s313 = smul.u32 8, %s22
      %p314 = scmp.lt.s32.totalorder %s21, 1
      %s315 = scalar_select %p314, %s21, 1
      %p316 = scmp.lt.s32.totalorder %s313, 7
      %s317 = scalar_select %p316, %s313, 7
      %s318 = smul.addr %s317, 4
      %s319 = smul.addr %s315, 32
      %s320 = sadd.s32 %s318, %s319
      %s321 = smul.addr %s320, 4
      %s322 = scalar_lea.vmem %s1, %s321
      %s323 = smul.u32 8, %s22
      %s324 = smul.u32 8, %s22
      %p325 = scmp.lt.s32.totalorder %s21, 1
      %s326 = scalar_select %p325, %s21, 1
      %p327 = scmp.lt.s32.totalorder %s324, 7
      %s328 = scalar_select %p327, %s324, 7
      %s329 = smul.addr %s328, 4
      %s330 = smul.addr %s326, 32
      %s331 = sadd.s32 %s329, %s330
      %s332 = smul.addr %s331, 8
      %s333 = scalar_lea.vmem %s6, %s332
      %s334 = smul.u32 8, %s22
      %v335 = vld [vmem:[%s311] sm:$0xff]
      %v336 = vld [vmem:[%s311 + $0x8] sm:$0xff]
      %v337 = vld [vmem:[%s311 + $0x10] sm:$0xff]
      %v338 = vld [vmem:[%s311 + $0x18] sm:$0xff]
      %v339 = vld [vmem:[%s311 + $0x20] sm:$0xf]
      %v340 = vld [vmem:[%s311 + $0x24] sm:$0xff]
      %v341 = vld [vmem:[%s311 + $0x2c] sm:$0xff]
      %v342 = vld [vmem:[%s311 + $0x34] sm:$0xff]
      %v343 = vld [vmem:[%s311 + $0x3c] sm:$0xff]
      %v344 = vld [vmem:[%s311 + $0x44] sm:$0xf]
      %v345 = vld [vmem:[%s311 + $0x48] sm:$0xff]
      %v346 = vld [vmem:[%s311 + $0x50] sm:$0xff]
      %v347 = vld [vmem:[%s311 + $0x58] sm:$0xff]
      %v348 = vld [vmem:[%s311 + $0x60] sm:$0xff]
      %v349 = vld [vmem:[%s311 + $0x68] sm:$0xf]
      %v350 = vld [vmem:[%s311 + $0x6c] sm:$0xff]
      %v351 = vld [vmem:[%s311 + $0x74] sm:$0xff]
      %v352 = vld [vmem:[%s311 + $0x7c] sm:$0xff]
      %v353 = vld [vmem:[%s311 + $0x84] sm:$0xff]
      %v354 = vld [vmem:[%s311 + $0x8c] sm:$0xf]
      %v355 = vld [vmem:[%s311 + $0x90] sm:$0xff]
      %v356 = vld [vmem:[%s311 + $0x98] sm:$0xff]
      %v357 = vld [vmem:[%s311 + $0xa0] sm:$0xff]
      %v358 = vld [vmem:[%s311 + $0xa8] sm:$0xff]
      %v359 = vld [vmem:[%s311 + $0xb0] sm:$0xf]
      %v360 = vld [vmem:[%s311 + $0xb4] sm:$0xff]
      %v361 = vld [vmem:[%s311 + $0xbc] sm:$0xff]
      %v362 = vld [vmem:[%s311 + $0xc4] sm:$0xff]
      %v363 = vld [vmem:[%s311 + $0xcc] sm:$0xff]
      %v364 = vld [vmem:[%s311 + $0xd4] sm:$0xf]
      %v365 = vld [vmem:[%s311 + $0xd8] sm:$0xff]
      %v366 = vld [vmem:[%s311 + $0xe0] sm:$0xff]
      %v367 = vld [vmem:[%s311 + $0xe8] sm:$0xff]
      %v368 = vld [vmem:[%s311 + $0xf0] sm:$0xff]
      %v369 = vld [vmem:[%s311 + $0xf8] sm:$0xf]
      %v370 = vld [vmem:[%s311 + $0xfc] sm:$0xff]
      %v371 = vld [vmem:[%s311 + $0x104] sm:$0xff]
      %v372 = vld [vmem:[%s311 + $0x10c] sm:$0xff]
      %v373 = vld [vmem:[%s311 + $0x114] sm:$0xff]
      %v374 = vld [vmem:[%s311 + $0x11c] sm:$0xf]
      %v375 = vld [vmem:[%s2] sm:$0xf]
      %v376 = vld [vmem:[%s2 + $0x4] sm:$0xf]
      %v377 = vld [vmem:[%s2 + $0x8] sm:$0xf]
      %v378 = vld [vmem:[%s2 + $0xc] sm:$0xf]
      %v379 = vld [vmem:[%s2 + $0x10] sm:$0xf]
      %v380 = vld [vmem:[%s2 + $0x14] sm:$0xf]
      %v381 = vld [vmem:[%s2 + $0x18] sm:$0xf]
      %v382 = vld [vmem:[%s2 + $0x1c] sm:$0xf]
      %v383 = vld [vmem:[%s2 + $0x20] sm:$0xf]
      %v384 = vld [vmem:[%s2 + $0x24] sm:$0xf]
      %v385 = vld [vmem:[%s2 + $0x28] sm:$0xf]
      %v386 = vld [vmem:[%s2 + $0x2c] sm:$0xf]
      %v387 = vld [vmem:[%s2 + $0x30] sm:$0xf]
      %v388 = vld [vmem:[%s2 + $0x34] sm:$0xf]
      %v389 = vld [vmem:[%s2 + $0x38] sm:$0xf]
      %v390 = vld [vmem:[%s2 + $0x3c] sm:$0xf]
      %v391 = vld [vmem:[%s2 + $0x40] sm:$0xf]
      %v392 = vld [vmem:[%s2 + $0x44] sm:$0xf]
      %v393 = vld [vmem:[%s2 + $0x48] sm:$0xf]
      %v394 = vld [vmem:[%s2 + $0x4c] sm:$0xf]
      %v395 = vld [vmem:[%s2 + $0x50] sm:$0xf]
      %v396 = vld [vmem:[%s2 + $0x54] sm:$0xf]
      %v397 = vld [vmem:[%s2 + $0x58] sm:$0xf]
      %v398 = vld [vmem:[%s2 + $0x5c] sm:$0xf]
      %v399 = vld [vmem:[%s2 + $0x60] sm:$0xf]
      %v400 = vld [vmem:[%s2 + $0x64] sm:$0xf]
      %v401 = vld [vmem:[%s2 + $0x68] sm:$0xf]
      %v402 = vld [vmem:[%s2 + $0x6c] sm:$0xf]
      %v403 = vld [vmem:[%s2 + $0x70] sm:$0xf]
      %v404 = vld [vmem:[%s2 + $0x74] sm:$0xf]
      %v405 = vld [vmem:[%s2 + $0x78] sm:$0xf]
      %v406 = vld [vmem:[%s2 + $0x7c] sm:$0xf]
      %v407 = vld [vmem:[%s2 + $0x80] sm:$0xf]
      %v408 = vld [vmem:[%s2 + $0x84] sm:$0xf]
      %v409 = vld [vmem:[%s2 + $0x88] sm:$0xf]
      %v410 = vld [vmem:[%s2 + $0x8c] sm:$0xf]
      %v411 = vld [vmem:[%s2 + $0x90] sm:$0xf]
      %v412 = vld [vmem:[%s2 + $0x94] sm:$0xf]
      %v413 = vld [vmem:[%s2 + $0x98] sm:$0xf]
      %v414 = vld [vmem:[%s2 + $0x9c] sm:$0xf]
      %v415 = vld [vmem:[%s2 + $0xa0] sm:$0xf]
      %v416 = vld [vmem:[%s2 + $0xa4] sm:$0xf]
      %v417 = vld [vmem:[%s2 + $0xa8] sm:$0xf]
      %v418 = vld [vmem:[%s2 + $0xac] sm:$0xf]
      %v419 = vld [vmem:[%s2 + $0xb0] sm:$0xf]
      %v420 = vld [vmem:[%s2 + $0xb4] sm:$0xf]
      %v421 = vld [vmem:[%s2 + $0xb8] sm:$0xf]
      %v422 = vld [vmem:[%s2 + $0xbc] sm:$0xf]
      %v423 = vld [vmem:[%s2 + $0xc0] sm:$0xf]
      %v424 = vld [vmem:[%s2 + $0xc4] sm:$0xf]
      %v425 = vld [vmem:[%s2 + $0xc8] sm:$0xf]
      %v426 = vld [vmem:[%s2 + $0xcc] sm:$0xf]
      %v427 = vld [vmem:[%s2 + $0xd0] sm:$0xf]
      %v428 = vld [vmem:[%s2 + $0xd4] sm:$0xf]
      %v429 = vld [vmem:[%s2 + $0xd8] sm:$0xf]
      %v430 = vld [vmem:[%s2 + $0xdc] sm:$0xf]
      %v431 = vld [vmem:[%s2 + $0xe0] sm:$0xf]
      %v432 = vld [vmem:[%s2 + $0xe4] sm:$0xf]
      %v433 = vld [vmem:[%s2 + $0xe8] sm:$0xf]
      %v434 = vld [vmem:[%s2 + $0xec] sm:$0xf]
      %v435 = vld [vmem:[%s2 + $0xf0] sm:$0xf]
      %v436 = vld [vmem:[%s2 + $0xf4] sm:$0xf]
      %v437 = vld [vmem:[%s2 + $0xf8] sm:$0xf]
      %v438 = vld [vmem:[%s2 + $0xfc] sm:$0xf]
      %v439 = vld [vmem:[%s2 + $0x100] sm:$0xf]
      %v440 = vld [vmem:[%s2 + $0x104] sm:$0xf]
      %v441 = vld [vmem:[%s2 + $0x108] sm:$0xf]
      %v442 = vld [vmem:[%s2 + $0x10c] sm:$0xf]
      %v443 = vld [vmem:[%s2 + $0x110] sm:$0xf]
      %v444 = vld [vmem:[%s2 + $0x114] sm:$0xf]
      %v445 = vld [vmem:[%s2 + $0x118] sm:$0xf]
      %v446 = vld [vmem:[%s2 + $0x11c] sm:$0xf]
      %v447 = vld [vmem:[%s2 + $0x120] sm:$0xf]
      %v448 = vld [vmem:[%s2 + $0x124] sm:$0xf]
      %v449 = vld [vmem:[%s2 + $0x128] sm:$0xf]
      %v450 = vld [vmem:[%s2 + $0x12c] sm:$0xf]
      %v451 = vld [vmem:[%s2 + $0x130] sm:$0xf]
      %v452 = vld [vmem:[%s2 + $0x134] sm:$0xf]
      %v453 = vld [vmem:[%s2 + $0x138] sm:$0xf]
      %v454 = vld [vmem:[%s2 + $0x13c] sm:$0xf]
      %v455 = vld [vmem:[%s2 + $0x140] sm:$0xf]
      %v456 = vld [vmem:[%s2 + $0x144] sm:$0xf]
      %v457 = vld [vmem:[%s2 + $0x148] sm:$0xf]
      %v458 = vld [vmem:[%s2 + $0x14c] sm:$0xf]
      %v459 = vld [vmem:[%s2 + $0x150] sm:$0xf]
      %v460 = vld [vmem:[%s2 + $0x154] sm:$0xf]
      %v461 = vld [vmem:[%s2 + $0x158] sm:$0xf]
      %v462 = vld [vmem:[%s2 + $0x15c] sm:$0xf]
      %v463 = vld [vmem:[%s2 + $0x160] sm:$0xf]
      %v464 = vld [vmem:[%s2 + $0x164] sm:$0xf]
      %v465 = vld [vmem:[%s2 + $0x168] sm:$0xf]
      %v466 = vld [vmem:[%s2 + $0x16c] sm:$0xf]
      %v467 = vld [vmem:[%s2 + $0x170] sm:$0xf]
      %v468 = vld [vmem:[%s2 + $0x174] sm:$0xf]
      %v469 = vld [vmem:[%s2 + $0x178] sm:$0xf]
      %v470 = vld [vmem:[%s2 + $0x17c] sm:$0xf]
      %v471 = vld [vmem:[%s2 + $0x180] sm:$0xf]
      %v472 = vld [vmem:[%s2 + $0x184] sm:$0xf]
      %v473 = vld [vmem:[%s2 + $0x188] sm:$0xf]
      %v474 = vld [vmem:[%s2 + $0x18c] sm:$0xf]
      %v475 = vld [vmem:[%s2 + $0x190] sm:$0xf]
      %v476 = vld [vmem:[%s2 + $0x194] sm:$0xf]
      %v477 = vld [vmem:[%s2 + $0x198] sm:$0xf]
      %v478 = vld [vmem:[%s2 + $0x19c] sm:$0xf]
      %v479 = vld [vmem:[%s2 + $0x1a0] sm:$0xf]
      %v480 = vld [vmem:[%s2 + $0x1a4] sm:$0xf]
      %v481 = vld [vmem:[%s2 + $0x1a8] sm:$0xf]
      %v482 = vld [vmem:[%s2 + $0x1ac] sm:$0xf]
      %v483 = vld [vmem:[%s2 + $0x1b0] sm:$0xf]
      %v484 = vld [vmem:[%s2 + $0x1b4] sm:$0xf]
      %v485 = vld [vmem:[%s2 + $0x1b8] sm:$0xf]
      %v486 = vld [vmem:[%s2 + $0x1bc] sm:$0xf]
      %v487 = vld [vmem:[%s2 + $0x1c0] sm:$0xf]
      %v488 = vld [vmem:[%s2 + $0x1c4] sm:$0xf]
      %v489 = vld [vmem:[%s2 + $0x1c8] sm:$0xf]
      %v490 = vld [vmem:[%s2 + $0x1cc] sm:$0xf]
      %v491 = vld [vmem:[%s2 + $0x1d0] sm:$0xf]
      %v492 = vld [vmem:[%s2 + $0x1d4] sm:$0xf]
      %v493 = vld [vmem:[%s2 + $0x1d8] sm:$0xf]
      %v494 = vld [vmem:[%s2 + $0x1dc] sm:$0xf]
      %v495 = vld [vmem:[%s2 + $0x1e0] sm:$0xf]
      %v496 = vld [vmem:[%s2 + $0x1e4] sm:$0xf]
      %v497 = vld [vmem:[%s2 + $0x1e8] sm:$0xf]
      %v498 = vld [vmem:[%s2 + $0x1ec] sm:$0xf]
      %v499 = vld [vmem:[%s2 + $0x1f0] sm:$0xf]
      %v500 = vld [vmem:[%s2 + $0x1f4] sm:$0xf]
      %v501 = vld [vmem:[%s2 + $0x1f8] sm:$0xf]
      %v502 = vld [vmem:[%s2 + $0x1fc] sm:$0xf]
      %v503 = vld [vmem:[%s2 + $0x200] sm:$0xf]
      %v504 = vld [vmem:[%s2 + $0x204] sm:$0xf]
      %v505 = vld [vmem:[%s2 + $0x208] sm:$0xf]
      %v506 = vld [vmem:[%s2 + $0x20c] sm:$0xf]
      %v507 = vld [vmem:[%s2 + $0x210] sm:$0xf]
      %v508 = vld [vmem:[%s2 + $0x214] sm:$0xf]
      %v509 = vld [vmem:[%s2 + $0x218] sm:$0xf]
      %v510 = vld [vmem:[%s2 + $0x21c] sm:$0xf]
      %v511 = vld [vmem:[%s2 + $0x220] sm:$0xf]
      %v512 = vld [vmem:[%s2 + $0x224] sm:$0xf]
      %v513 = vld [vmem:[%s2 + $0x228] sm:$0xf]
      %v514 = vld [vmem:[%s2 + $0x22c] sm:$0xf]
      %v515 = vld [vmem:[%s2 + $0x230] sm:$0xf]
      %v516 = vld [vmem:[%s2 + $0x234] sm:$0xf]
      %v517 = vld [vmem:[%s2 + $0x238] sm:$0xf]
      %v518 = vld [vmem:[%s2 + $0x23c] sm:$0xf]
      %v519 = vld [vmem:[%s3] sm:$0x1]
      %v521 = vperm.slane %v519, 0
      %v563 = vunpack.c.l.b16 %v335
      %v564 = vunpack.c.h.b16 %v335
      %v565 = vunpack.c.l.b16 %v336
      %v566 = vunpack.c.h.b16 %v336
      %v567 = vunpack.c.l.b16 %v337
      %v568 = vunpack.c.h.b16 %v337
      %v569 = vunpack.c.l.b16 %v338
      %v570 = vunpack.c.h.b16 %v338
      %v571 = vunpack.c.l.b16 %v339
      %v572 = vunpack.c.l.b16 %v340
      %v573 = vunpack.c.h.b16 %v340
      %v574 = vunpack.c.l.b16 %v341
      %v575 = vunpack.c.h.b16 %v341
      %v576 = vunpack.c.l.b16 %v342
      %v577 = vunpack.c.h.b16 %v342
      %v578 = vunpack.c.l.b16 %v343
      %v579 = vunpack.c.h.b16 %v343
      %v580 = vunpack.c.l.b16 %v344
      %v581 = vunpack.c.l.b16 %v345
      %v582 = vunpack.c.h.b16 %v345
      %v583 = vunpack.c.l.b16 %v346
      %v584 = vunpack.c.h.b16 %v346
      %v585 = vunpack.c.l.b16 %v347
      %v586 = vunpack.c.h.b16 %v347
      %v587 = vunpack.c.l.b16 %v348
      %v588 = vunpack.c.h.b16 %v348
      %v589 = vunpack.c.l.b16 %v349
      %v590 = vunpack.c.l.b16 %v350
      %v591 = vunpack.c.h.b16 %v350
      %v592 = vunpack.c.l.b16 %v351
      %v593 = vunpack.c.h.b16 %v351
      %v594 = vunpack.c.l.b16 %v352
      %v595 = vunpack.c.h.b16 %v352
      %v596 = vunpack.c.l.b16 %v353
      %v597 = vunpack.c.h.b16 %v353
      %v598 = vunpack.c.l.b16 %v354
      %v599 = vunpack.c.l.b16 %v355
      %v600 = vunpack.c.h.b16 %v355
      %v601 = vunpack.c.l.b16 %v356
      %v602 = vunpack.c.h.b16 %v356
      %v603 = vunpack.c.l.b16 %v357
      %v604 = vunpack.c.h.b16 %v357
      %v605 = vunpack.c.l.b16 %v358
      %v606 = vunpack.c.h.b16 %v358
      %v607 = vunpack.c.l.b16 %v359
      %v608 = vunpack.c.l.b16 %v360
      %v609 = vunpack.c.h.b16 %v360
      %v610 = vunpack.c.l.b16 %v361
      %v611 = vunpack.c.h.b16 %v361
      %v612 = vunpack.c.l.b16 %v362
      %v613 = vunpack.c.h.b16 %v362
      %v614 = vunpack.c.l.b16 %v363
      %v615 = vunpack.c.h.b16 %v363
      %v616 = vunpack.c.l.b16 %v364
      %v617 = vunpack.c.l.b16 %v365
      %v618 = vunpack.c.h.b16 %v365
      %v619 = vunpack.c.l.b16 %v366
      %v620 = vunpack.c.h.b16 %v366
      %v621 = vunpack.c.l.b16 %v367
      %v622 = vunpack.c.h.b16 %v367
      %v623 = vunpack.c.l.b16 %v368
      %v624 = vunpack.c.h.b16 %v368
      %v625 = vunpack.c.l.b16 %v369
      %v626 = vunpack.c.l.b16 %v370
      %v627 = vunpack.c.h.b16 %v370
      %v628 = vunpack.c.l.b16 %v371
      %v629 = vunpack.c.h.b16 %v371
      %v630 = vunpack.c.l.b16 %v372
      %v631 = vunpack.c.h.b16 %v372
      %v632 = vunpack.c.l.b16 %v373
      %v633 = vunpack.c.h.b16 %v373
      %v634 = vunpack.c.l.b16 %v374
      %v635 = vpack.c.b16 %v572, %v563
      %v636 = vpack.c.b16 %v573, %v564
      %v637 = vpack.c.b16 %v574, %v565
      %v638 = vpack.c.b16 %v575, %v566
      %v639 = vpack.c.b16 %v576, %v567
      %v640 = vpack.c.b16 %v577, %v568
      %v641 = vpack.c.b16 %v578, %v569
      %v642 = vpack.c.b16 %v579, %v570
      %v643 = vpack.c.b16 %v580, %v571
      %v644 = vpack.c.b16 %v590, %v581
      %v645 = vpack.c.b16 %v591, %v582
      %v646 = vpack.c.b16 %v592, %v583
      %v647 = vpack.c.b16 %v593, %v584
      %v648 = vpack.c.b16 %v594, %v585
      %v649 = vpack.c.b16 %v595, %v586
      %v650 = vpack.c.b16 %v596, %v587
      %v651 = vpack.c.b16 %v597, %v588
      %v652 = vpack.c.b16 %v598, %v589
      %v653 = vpack.c.b16 %v608, %v599
      %v654 = vpack.c.b16 %v609, %v600
      %v655 = vpack.c.b16 %v610, %v601
      %v656 = vpack.c.b16 %v611, %v602
      %v657 = vpack.c.b16 %v612, %v603
      %v658 = vpack.c.b16 %v613, %v604
      %v659 = vpack.c.b16 %v614, %v605
      %v660 = vpack.c.b16 %v615, %v606
      %v661 = vpack.c.b16 %v616, %v607
      %v662 = vpack.c.b16 %v626, %v617
      %v663 = vpack.c.b16 %v627, %v618
      %v664 = vpack.c.b16 %v628, %v619
      %v665 = vpack.c.b16 %v629, %v620
      %v666 = vpack.c.b16 %v630, %v621
      %v667 = vpack.c.b16 %v631, %v622
      %v668 = vpack.c.b16 %v632, %v623
      %v669 = vpack.c.b16 %v633, %v624
      %v670 = vpack.c.b16 %v634, %v625
      %v851 = vunpack.c.l.b16 %v375
      %v852 = vunpack.c.l.b16 %v376
      %v853 = vunpack.c.l.b16 %v377
      %v854 = vunpack.c.l.b16 %v378
      %v855 = vunpack.c.l.b16 %v379
      %v856 = vunpack.c.l.b16 %v380
      %v857 = vunpack.c.l.b16 %v381
      %v858 = vunpack.c.l.b16 %v382
      %v859 = vunpack.c.l.b16 %v383
      %v860 = vunpack.c.l.b16 %v384
      %v861 = vunpack.c.l.b16 %v385
      %v862 = vunpack.c.l.b16 %v386
      %v863 = vunpack.c.l.b16 %v387
      %v864 = vunpack.c.l.b16 %v388
      %v865 = vunpack.c.l.b16 %v389
      %v866 = vunpack.c.l.b16 %v390
      %v867 = vunpack.c.l.b16 %v391
      %v868 = vunpack.c.l.b16 %v392
      %v869 = vunpack.c.l.b16 %v393
      %v870 = vunpack.c.l.b16 %v394
      %v871 = vunpack.c.l.b16 %v395
      %v872 = vunpack.c.l.b16 %v396
      %v873 = vunpack.c.l.b16 %v397
      %v874 = vunpack.c.l.b16 %v398
      %v875 = vunpack.c.l.b16 %v399
      %v876 = vunpack.c.l.b16 %v400
      %v877 = vunpack.c.l.b16 %v401
      %v878 = vunpack.c.l.b16 %v402
      %v879 = vunpack.c.l.b16 %v403
      %v880 = vunpack.c.l.b16 %v404
      %v881 = vunpack.c.l.b16 %v405
      %v882 = vunpack.c.l.b16 %v406
      %v883 = vunpack.c.l.b16 %v407
      %v884 = vunpack.c.l.b16 %v408
      %v885 = vunpack.c.l.b16 %v409
      %v886 = vunpack.c.l.b16 %v410
      %v887 = vunpack.c.l.b16 %v411
      %v888 = vunpack.c.l.b16 %v412
      %v889 = vunpack.c.l.b16 %v413
      %v890 = vunpack.c.l.b16 %v414
      %v891 = vunpack.c.l.b16 %v415
      %v892 = vunpack.c.l.b16 %v416
      %v893 = vunpack.c.l.b16 %v417
      %v894 = vunpack.c.l.b16 %v418
      %v895 = vunpack.c.l.b16 %v419
      %v896 = vunpack.c.l.b16 %v420
      %v897 = vunpack.c.l.b16 %v421
      %v898 = vunpack.c.l.b16 %v422
      %v899 = vunpack.c.l.b16 %v423
      %v900 = vunpack.c.l.b16 %v424
      %v901 = vunpack.c.l.b16 %v425
      %v902 = vunpack.c.l.b16 %v426
      %v903 = vunpack.c.l.b16 %v427
      %v904 = vunpack.c.l.b16 %v428
      %v905 = vunpack.c.l.b16 %v429
      %v906 = vunpack.c.l.b16 %v430
      %v907 = vunpack.c.l.b16 %v431
      %v908 = vunpack.c.l.b16 %v432
      %v909 = vunpack.c.l.b16 %v433
      %v910 = vunpack.c.l.b16 %v434
      %v911 = vunpack.c.l.b16 %v435
      %v912 = vunpack.c.l.b16 %v436
      %v913 = vunpack.c.l.b16 %v437
      %v914 = vunpack.c.l.b16 %v438
      %v915 = vunpack.c.l.b16 %v439
      %v916 = vunpack.c.l.b16 %v440
      %v917 = vunpack.c.l.b16 %v441
      %v918 = vunpack.c.l.b16 %v442
      %v919 = vunpack.c.l.b16 %v443
      %v920 = vunpack.c.l.b16 %v444
      %v921 = vunpack.c.l.b16 %v445
      %v922 = vunpack.c.l.b16 %v446
      %v923 = vunpack.c.l.b16 %v447
      %v924 = vunpack.c.l.b16 %v448
      %v925 = vunpack.c.l.b16 %v449
      %v926 = vunpack.c.l.b16 %v450
      %v927 = vunpack.c.l.b16 %v451
      %v928 = vunpack.c.l.b16 %v452
      %v929 = vunpack.c.l.b16 %v453
      %v930 = vunpack.c.l.b16 %v454
      %v931 = vunpack.c.l.b16 %v455
      %v932 = vunpack.c.l.b16 %v456
      %v933 = vunpack.c.l.b16 %v457
      %v934 = vunpack.c.l.b16 %v458
      %v935 = vunpack.c.l.b16 %v459
      %v936 = vunpack.c.l.b16 %v460
      %v937 = vunpack.c.l.b16 %v461
      %v938 = vunpack.c.l.b16 %v462
      %v939 = vunpack.c.l.b16 %v463
      %v940 = vunpack.c.l.b16 %v464
      %v941 = vunpack.c.l.b16 %v465
      %v942 = vunpack.c.l.b16 %v466
      %v943 = vunpack.c.l.b16 %v467
      %v944 = vunpack.c.l.b16 %v468
      %v945 = vunpack.c.l.b16 %v469
      %v946 = vunpack.c.l.b16 %v470
      %v947 = vunpack.c.l.b16 %v471
      %v948 = vunpack.c.l.b16 %v472
      %v949 = vunpack.c.l.b16 %v473
      %v950 = vunpack.c.l.b16 %v474
      %v951 = vunpack.c.l.b16 %v475
      %v952 = vunpack.c.l.b16 %v476
      %v953 = vunpack.c.l.b16 %v477
      %v954 = vunpack.c.l.b16 %v478
      %v955 = vunpack.c.l.b16 %v479
      %v956 = vunpack.c.l.b16 %v480
      %v957 = vunpack.c.l.b16 %v481
      %v958 = vunpack.c.l.b16 %v482
      %v959 = vunpack.c.l.b16 %v483
      %v960 = vunpack.c.l.b16 %v484
      %v961 = vunpack.c.l.b16 %v485
      %v962 = vunpack.c.l.b16 %v486
      %v963 = vunpack.c.l.b16 %v487
      %v964 = vunpack.c.l.b16 %v488
      %v965 = vunpack.c.l.b16 %v489
      %v966 = vunpack.c.l.b16 %v490
      %v967 = vunpack.c.l.b16 %v491
      %v968 = vunpack.c.l.b16 %v492
      %v969 = vunpack.c.l.b16 %v493
      %v970 = vunpack.c.l.b16 %v494
      %v971 = vunpack.c.l.b16 %v495
      %v972 = vunpack.c.l.b16 %v496
      %v973 = vunpack.c.l.b16 %v497
      %v974 = vunpack.c.l.b16 %v498
      %v975 = vunpack.c.l.b16 %v499
      %v976 = vunpack.c.l.b16 %v500
      %v977 = vunpack.c.l.b16 %v501
      %v978 = vunpack.c.l.b16 %v502
      %v979 = vunpack.c.l.b16 %v503
      %v980 = vunpack.c.l.b16 %v504
      %v981 = vunpack.c.l.b16 %v505
      %v982 = vunpack.c.l.b16 %v506
      %v983 = vunpack.c.l.b16 %v507
      %v984 = vunpack.c.l.b16 %v508
      %v985 = vunpack.c.l.b16 %v509
      %v986 = vunpack.c.l.b16 %v510
      %v987 = vunpack.c.l.b16 %v511
      %v988 = vunpack.c.l.b16 %v512
      %v989 = vunpack.c.l.b16 %v513
      %v990 = vunpack.c.l.b16 %v514
      %v991 = vunpack.c.l.b16 %v515
      %v992 = vunpack.c.l.b16 %v516
      %v993 = vunpack.c.l.b16 %v517
      %v994 = vunpack.c.l.b16 %v518
      %v995 = vpack.c.b16 %v852, %v851
      %v996 = vpack.c.b16 %v854, %v853
      %v997 = vpack.c.b16 %v856, %v855
      %v998 = vpack.c.b16 %v858, %v857
      %v999 = vpack.c.b16 %v860, %v859
      %v1000 = vpack.c.b16 %v862, %v861
      %v1001 = vpack.c.b16 %v864, %v863
      %v1002 = vpack.c.b16 %v866, %v865
      %v1003 = vpack.c.b16 %v868, %v867
      %v1004 = vpack.c.b16 %v870, %v869
      %v1005 = vpack.c.b16 %v872, %v871
      %v1006 = vpack.c.b16 %v874, %v873
      %v1007 = vpack.c.b16 %v876, %v875
      %v1008 = vpack.c.b16 %v878, %v877
      %v1009 = vpack.c.b16 %v880, %v879
      %v1010 = vpack.c.b16 %v882, %v881
      %v1011 = vpack.c.b16 %v884, %v883
      %v1012 = vpack.c.b16 %v886, %v885
      %v1013 = vpack.c.b16 %v888, %v887
      %v1014 = vpack.c.b16 %v890, %v889
      %v1015 = vpack.c.b16 %v892, %v891
      %v1016 = vpack.c.b16 %v894, %v893
      %v1017 = vpack.c.b16 %v896, %v895
      %v1018 = vpack.c.b16 %v898, %v897
      %v1019 = vpack.c.b16 %v900, %v899
      %v1020 = vpack.c.b16 %v902, %v901
      %v1021 = vpack.c.b16 %v904, %v903
      %v1022 = vpack.c.b16 %v906, %v905
      %v1023 = vpack.c.b16 %v908, %v907
      %v1024 = vpack.c.b16 %v910, %v909
      %v1025 = vpack.c.b16 %v912, %v911
      %v1026 = vpack.c.b16 %v914, %v913
      %v1027 = vpack.c.b16 %v916, %v915
      %v1028 = vpack.c.b16 %v918, %v917
      %v1029 = vpack.c.b16 %v920, %v919
      %v1030 = vpack.c.b16 %v922, %v921
      %v1031 = vpack.c.b16 %v924, %v923
      %v1032 = vpack.c.b16 %v926, %v925
      %v1033 = vpack.c.b16 %v928, %v927
      %v1034 = vpack.c.b16 %v930, %v929
      %v1035 = vpack.c.b16 %v932, %v931
      %v1036 = vpack.c.b16 %v934, %v933
      %v1037 = vpack.c.b16 %v936, %v935
      %v1038 = vpack.c.b16 %v938, %v937
      %v1039 = vpack.c.b16 %v940, %v939
      %v1040 = vpack.c.b16 %v942, %v941
      %v1041 = vpack.c.b16 %v944, %v943
      %v1042 = vpack.c.b16 %v946, %v945
      %v1043 = vpack.c.b16 %v948, %v947
      %v1044 = vpack.c.b16 %v950, %v949
      %v1045 = vpack.c.b16 %v952, %v951
      %v1046 = vpack.c.b16 %v954, %v953
      %v1047 = vpack.c.b16 %v956, %v955
      %v1048 = vpack.c.b16 %v958, %v957
      %v1049 = vpack.c.b16 %v960, %v959
      %v1050 = vpack.c.b16 %v962, %v961
      %v1051 = vpack.c.b16 %v964, %v963
      %v1052 = vpack.c.b16 %v966, %v965
      %v1053 = vpack.c.b16 %v968, %v967
      %v1054 = vpack.c.b16 %v970, %v969
      %v1055 = vpack.c.b16 %v972, %v971
      %v1056 = vpack.c.b16 %v974, %v973
      %v1057 = vpack.c.b16 %v976, %v975
      %v1058 = vpack.c.b16 %v978, %v977
      %v1059 = vpack.c.b16 %v980, %v979
      %v1060 = vpack.c.b16 %v982, %v981
      %v1061 = vpack.c.b16 %v984, %v983
      %v1062 = vpack.c.b16 %v986, %v985
      %v1063 = vpack.c.b16 %v988, %v987
      %v1064 = vpack.c.b16 %v990, %v989
      %v1065 = vpack.c.b16 %v992, %v991
      %v1066 = vpack.c.b16 %v994, %v993
      %1139 = vmatpush.bf16.msra.mxu0 %v1002
      %1140 = vmatpush.bf16.msra.mxu0 %v1001
      %1141 = vmatpush.bf16.msra.mxu0 %v1000
      %1142 = vmatpush.bf16.msra.mxu0 %v999
      %1143 = vmatpush.bf16.msra.mxu0 %v998
      %1144 = vmatpush.bf16.msra.mxu0 %v997
      %1145 = vmatpush.bf16.msra.mxu0 %v996
      %1146 = vmatpush.bf16.msra.mxu0 %v995
      %1147 = vmatmul.bf16.gmra.mxu0 %v635
      %v1148 = vpop.f32.mrf.mxu0
      %v1149 = vadd.f32 %v521, %v1148
      %v1150 = vpop.f32.mrf.mxu0
      %v1151 = vadd.f32 %v521, %v1150
      %1152 = vmatmul.bf16.gmra.mxu0 %v644
      %v1153 = vpop.f32.mrf.mxu0
      %v1154 = vadd.f32 %v521, %v1153
      %v1155 = vpop.f32.mrf.mxu0
      %v1156 = vadd.f32 %v521, %v1155
      %1157 = vmatmul.bf16.gmra.mxu0 %v653
      %v1158 = vpop.f32.mrf.mxu0
      %v1159 = vadd.f32 %v521, %v1158
      %v1160 = vpop.f32.mrf.mxu0
      %v1161 = vadd.f32 %v521, %v1160
      %1162 = vmatmul.bf16.gmra.mxu0 %v662
      %v1163 = vpop.f32.mrf.mxu0
      %v1164 = vadd.f32 %v521, %v1163
      %v1165 = vpop.f32.mrf.mxu0
      %v1166 = vadd.f32 %v521, %v1165
      %1167 = vdwg.mxu0
      %1168 = vmatpush.bf16.msra.mxu0 %v1010
      %1169 = vmatpush.bf16.msra.mxu0 %v1009
      %1170 = vmatpush.bf16.msra.mxu0 %v1008
      %1171 = vmatpush.bf16.msra.mxu0 %v1007
      %1172 = vmatpush.bf16.msra.mxu0 %v1006
      %1173 = vmatpush.bf16.msra.mxu0 %v1005
      %1174 = vmatpush.bf16.msra.mxu0 %v1004
      %1175 = vmatpush.bf16.msra.mxu0 %v1003
      %1176 = vmatmul.bf16.gmra.mxu0 %v636
      %v1177 = vpop.f32.mrf.mxu0
      %v1178 = vadd.f32 %v1149, %v1177
      %v1179 = vpop.f32.mrf.mxu0
      %v1180 = vadd.f32 %v1151, %v1179
      %1181 = vmatmul.bf16.gmra.mxu0 %v645
      %v1182 = vpop.f32.mrf.mxu0
      %v1183 = vadd.f32 %v1154, %v1182
      %v1184 = vpop.f32.mrf.mxu0
      %v1185 = vadd.f32 %v1156, %v1184
      %1186 = vmatmul.bf16.gmra.mxu0 %v654
      %v1187 = vpop.f32.mrf.mxu0
      %v1188 = vadd.f32 %v1159, %v1187
      %v1189 = vpop.f32.mrf.mxu0
      %v1190 = vadd.f32 %v1161, %v1189
      %1191 = vmatmul.bf16.gmra.mxu0 %v663
      %v1192 = vpop.f32.mrf.mxu0
      %v1193 = vadd.f32 %v1164, %v1192
      %v1194 = vpop.f32.mrf.mxu0
      %v1195 = vadd.f32 %v1166, %v1194
      %1196 = vdwg.mxu0
      %1197 = vmatpush.bf16.msra.mxu0 %v1018
      %1198 = vmatpush.bf16.msra.mxu0 %v1017
      %1199 = vmatpush.bf16.msra.mxu0 %v1016
      %1200 = vmatpush.bf16.msra.mxu0 %v1015
      %1201 = vmatpush.bf16.msra.mxu0 %v1014
      %1202 = vmatpush.bf16.msra.mxu0 %v1013
      %1203 = vmatpush.bf16.msra.mxu0 %v1012
      %1204 = vmatpush.bf16.msra.mxu0 %v1011
      %1205 = vmatmul.bf16.gmra.mxu0 %v637
      %v1206 = vpop.f32.mrf.mxu0
      %v1207 = vadd.f32 %v1178, %v1206
      %v1208 = vpop.f32.mrf.mxu0
      %v1209 = vadd.f32 %v1180, %v1208
      %1210 = vmatmul.bf16.gmra.mxu0 %v646
      %v1211 = vpop.f32.mrf.mxu0
      %v1212 = vadd.f32 %v1183, %v1211
      %v1213 = vpop.f32.mrf.mxu0
      %v1214 = vadd.f32 %v1185, %v1213
      %1215 = vmatmul.bf16.gmra.mxu0 %v655
      %v1216 = vpop.f32.mrf.mxu0
      %v1217 = vadd.f32 %v1188, %v1216
      %v1218 = vpop.f32.mrf.mxu0
      %v1219 = vadd.f32 %v1190, %v1218
      %1220 = vmatmul.bf16.gmra.mxu0 %v664
      %v1221 = vpop.f32.mrf.mxu0
      %v1222 = vadd.f32 %v1193, %v1221
      %v1223 = vpop.f32.mrf.mxu0
      %v1224 = vadd.f32 %v1195, %v1223
      %1225 = vdwg.mxu0
      %1226 = vmatpush.bf16.msra.mxu0 %v1026
      %1227 = vmatpush.bf16.msra.mxu0 %v1025
      %1228 = vmatpush.bf16.msra.mxu0 %v1024
      %1229 = vmatpush.bf16.msra.mxu0 %v1023
      %1230 = vmatpush.bf16.msra.mxu0 %v1022
      %1231 = vmatpush.bf16.msra.mxu0 %v1021
      %1232 = vmatpush.bf16.msra.mxu0 %v1020
      %1233 = vmatpush.bf16.msra.mxu0 %v1019
      %1234 = vmatmul.bf16.gmra.mxu0 %v638
      %v1235 = vpop.f32.mrf.mxu0
      %v1236 = vadd.f32 %v1207, %v1235
      %v1237 = vpop.f32.mrf.mxu0
      %v1238 = vadd.f32 %v1209, %v1237
      %1239 = vmatmul.bf16.gmra.mxu0 %v647
      %v1240 = vpop.f32.mrf.mxu0
      %v1241 = vadd.f32 %v1212, %v1240
      %v1242 = vpop.f32.mrf.mxu0
      %v1243 = vadd.f32 %v1214, %v1242
      %1244 = vmatmul.bf16.gmra.mxu0 %v656
      %v1245 = vpop.f32.mrf.mxu0
      %v1246 = vadd.f32 %v1217, %v1245
      %v1247 = vpop.f32.mrf.mxu0
      %v1248 = vadd.f32 %v1219, %v1247
      %1249 = vmatmul.bf16.gmra.mxu0 %v665
      %v1250 = vpop.f32.mrf.mxu0
      %v1251 = vadd.f32 %v1222, %v1250
      %v1252 = vpop.f32.mrf.mxu0
      %v1253 = vadd.f32 %v1224, %v1252
      %1254 = vdwg.mxu0
      %1255 = vmatpush.bf16.msra.mxu0 %v1034
      %1256 = vmatpush.bf16.msra.mxu0 %v1033
      %1257 = vmatpush.bf16.msra.mxu0 %v1032
      %1258 = vmatpush.bf16.msra.mxu0 %v1031
      %1259 = vmatpush.bf16.msra.mxu0 %v1030
      %1260 = vmatpush.bf16.msra.mxu0 %v1029
      %1261 = vmatpush.bf16.msra.mxu0 %v1028
      %1262 = vmatpush.bf16.msra.mxu0 %v1027
      %1263 = vmatmul.bf16.gmra.mxu0 %v639
      %v1264 = vpop.f32.mrf.mxu0
      %v1265 = vadd.f32 %v1236, %v1264
      %v1266 = vpop.f32.mrf.mxu0
      %v1267 = vadd.f32 %v1238, %v1266
      %1268 = vmatmul.bf16.gmra.mxu0 %v648
      %v1269 = vpop.f32.mrf.mxu0
      %v1270 = vadd.f32 %v1241, %v1269
      %v1271 = vpop.f32.mrf.mxu0
      %v1272 = vadd.f32 %v1243, %v1271
      %1273 = vmatmul.bf16.gmra.mxu0 %v657
      %v1274 = vpop.f32.mrf.mxu0
      %v1275 = vadd.f32 %v1246, %v1274
      %v1276 = vpop.f32.mrf.mxu0
      %v1277 = vadd.f32 %v1248, %v1276
      %1278 = vmatmul.bf16.gmra.mxu0 %v666
      %v1279 = vpop.f32.mrf.mxu0
      %v1280 = vadd.f32 %v1251, %v1279
      %v1281 = vpop.f32.mrf.mxu0
      %v1282 = vadd.f32 %v1253, %v1281
      %1283 = vdwg.mxu0
      %1284 = vmatpush.bf16.msra.mxu0 %v1042
      %1285 = vmatpush.bf16.msra.mxu0 %v1041
      %1286 = vmatpush.bf16.msra.mxu0 %v1040
      %1287 = vmatpush.bf16.msra.mxu0 %v1039
      %1288 = vmatpush.bf16.msra.mxu0 %v1038
      %1289 = vmatpush.bf16.msra.mxu0 %v1037
      %1290 = vmatpush.bf16.msra.mxu0 %v1036
      %1291 = vmatpush.bf16.msra.mxu0 %v1035
      %1292 = vmatmul.bf16.gmra.mxu0 %v640
      %v1293 = vpop.f32.mrf.mxu0
      %v1294 = vadd.f32 %v1265, %v1293
      %v1295 = vpop.f32.mrf.mxu0
      %v1296 = vadd.f32 %v1267, %v1295
      %1297 = vmatmul.bf16.gmra.mxu0 %v649
      %v1298 = vpop.f32.mrf.mxu0
      %v1299 = vadd.f32 %v1270, %v1298
      %v1300 = vpop.f32.mrf.mxu0
      %v1301 = vadd.f32 %v1272, %v1300
      %1302 = vmatmul.bf16.gmra.mxu0 %v658
      %v1303 = vpop.f32.mrf.mxu0
      %v1304 = vadd.f32 %v1275, %v1303
      %v1305 = vpop.f32.mrf.mxu0
      %v1306 = vadd.f32 %v1277, %v1305
      %1307 = vmatmul.bf16.gmra.mxu0 %v667
      %v1308 = vpop.f32.mrf.mxu0
      %v1309 = vadd.f32 %v1280, %v1308
      %v1310 = vpop.f32.mrf.mxu0
      %v1311 = vadd.f32 %v1282, %v1310
      %1312 = vdwg.mxu0
      %1313 = vmatpush.bf16.msra.mxu0 %v1050
      %1314 = vmatpush.bf16.msra.mxu0 %v1049
      %1315 = vmatpush.bf16.msra.mxu0 %v1048
      %1316 = vmatpush.bf16.msra.mxu0 %v1047
      %1317 = vmatpush.bf16.msra.mxu0 %v1046
      %1318 = vmatpush.bf16.msra.mxu0 %v1045
      %1319 = vmatpush.bf16.msra.mxu0 %v1044
      %1320 = vmatpush.bf16.msra.mxu0 %v1043
      %1321 = vmatmul.bf16.gmra.mxu0 %v641
      %v1322 = vpop.f32.mrf.mxu0
      %v1323 = vadd.f32 %v1294, %v1322
      %v1324 = vpop.f32.mrf.mxu0
      %v1325 = vadd.f32 %v1296, %v1324
      %1326 = vmatmul.bf16.gmra.mxu0 %v650
      %v1327 = vpop.f32.mrf.mxu0
      %v1328 = vadd.f32 %v1299, %v1327
      %v1329 = vpop.f32.mrf.mxu0
      %v1330 = vadd.f32 %v1301, %v1329
      %1331 = vmatmul.bf16.gmra.mxu0 %v659
      %v1332 = vpop.f32.mrf.mxu0
      %v1333 = vadd.f32 %v1304, %v1332
      %v1334 = vpop.f32.mrf.mxu0
      %v1335 = vadd.f32 %v1306, %v1334
      %1336 = vmatmul.bf16.gmra.mxu0 %v668
      %v1337 = vpop.f32.mrf.mxu0
      %v1338 = vadd.f32 %v1309, %v1337
      %v1339 = vpop.f32.mrf.mxu0
      %v1340 = vadd.f32 %v1311, %v1339
      %1341 = vdwg.mxu0
      %1342 = vmatpush.bf16.msra.mxu0 %v1058
      %1343 = vmatpush.bf16.msra.mxu0 %v1057
      %1344 = vmatpush.bf16.msra.mxu0 %v1056
      %1345 = vmatpush.bf16.msra.mxu0 %v1055
      %1346 = vmatpush.bf16.msra.mxu0 %v1054
      %1347 = vmatpush.bf16.msra.mxu0 %v1053
      %1348 = vmatpush.bf16.msra.mxu0 %v1052
      %1349 = vmatpush.bf16.msra.mxu0 %v1051
      %1350 = vmatmul.bf16.gmra.mxu0 %v642
      %v1351 = vpop.f32.mrf.mxu0
      %v1352 = vadd.f32 %v1323, %v1351
      %v1353 = vpop.f32.mrf.mxu0
      %v1354 = vadd.f32 %v1325, %v1353
      %1355 = vmatmul.bf16.gmra.mxu0 %v651
      %v1356 = vpop.f32.mrf.mxu0
      %v1357 = vadd.f32 %v1328, %v1356
      %v1358 = vpop.f32.mrf.mxu0
      %v1359 = vadd.f32 %v1330, %v1358
      %1360 = vmatmul.bf16.gmra.mxu0 %v660
      %v1361 = vpop.f32.mrf.mxu0
      %v1362 = vadd.f32 %v1333, %v1361
      %v1363 = vpop.f32.mrf.mxu0
      %v1364 = vadd.f32 %v1335, %v1363
      %1365 = vmatmul.bf16.gmra.mxu0 %v669
      %v1366 = vpop.f32.mrf.mxu0
      %v1367 = vadd.f32 %v1338, %v1366
      %v1368 = vpop.f32.mrf.mxu0
      %v1369 = vadd.f32 %v1340, %v1368
      %1370 = vdwg.mxu0
      %1371 = vmatpush.bf16.msra.mxu0 %v1066
      %1372 = vmatpush.bf16.msra.mxu0 %v1065
      %1373 = vmatpush.bf16.msra.mxu0 %v1064
      %1374 = vmatpush.bf16.msra.mxu0 %v1063
      %1375 = vmatpush.bf16.msra.mxu0 %v1062
      %1376 = vmatpush.bf16.msra.mxu0 %v1061
      %1377 = vmatpush.bf16.msra.mxu0 %v1060
      %1378 = vmatpush.bf16.msra.mxu0 %v1059
      %1379 = vmatmul.bf16.gmra.mxu0 %v643
      %v1380 = vpop.f32.mrf.mxu0
      %v1381 = vadd.f32 %v1352, %v1380
      %v1382 = vpop.f32.mrf.mxu0
      %v1383 = vadd.f32 %v1354, %v1382
      %1384 = vmatmul.bf16.gmra.mxu0 %v652
      %v1385 = vpop.f32.mrf.mxu0
      %v1386 = vadd.f32 %v1357, %v1385
      %v1387 = vpop.f32.mrf.mxu0
      %v1388 = vadd.f32 %v1359, %v1387
      %1389 = vmatmul.bf16.gmra.mxu0 %v661
      %v1390 = vpop.f32.mrf.mxu0
      %v1391 = vadd.f32 %v1362, %v1390
      %v1392 = vpop.f32.mrf.mxu0
      %v1393 = vadd.f32 %v1364, %v1392
      %1394 = vmatmul.bf16.gmra.mxu0 %v670
      %v1395 = vpop.f32.mrf.mxu0
      %v1396 = vadd.f32 %v1367, %v1395
      %v1397 = vpop.f32.mrf.mxu0
      %v1398 = vadd.f32 %v1369, %v1397
      %1399 = vdwg.mxu0
      %v1400 = vmax.f32 %v1381, 0.0
      %v1401 = vmax.f32 %v1383, 0.0
      %v1402 = vmax.f32 %v1386, 0.0
      %v1403 = vmax.f32 %v1388, 0.0
      %v1404 = vmax.f32 %v1391, 0.0
      %v1405 = vmax.f32 %v1393, 0.0
      %v1406 = vmax.f32 %v1396, 0.0
      %v1407 = vmax.f32 %v1398, 0.0
      %v1408 = vld [vmem:[%s322] sm:$0xff]
      %v1409 = vld [vmem:[%s322 + $0x8] sm:$0xff]
      %v1410 = vld [vmem:[%s322 + $0x10] sm:$0xff]
      %v1411 = vld [vmem:[%s322 + $0x18] sm:$0xff]
      %v1412 = vld [vmem:[%s322 + $0x20] sm:$0xff]
      %v1413 = vld [vmem:[%s322 + $0x28] sm:$0xff]
      %v1414 = vld [vmem:[%s322 + $0x30] sm:$0xff]
      %v1415 = vld [vmem:[%s322 + $0x38] sm:$0xff]
      %v1416 = vld [vmem:[%s322 + $0x40] sm:$0xff]
      %v1417 = vld [vmem:[%s322 + $0x48] sm:$0xff]
      %v1418 = vld [vmem:[%s322 + $0x50] sm:$0xff]
      %v1419 = vld [vmem:[%s322 + $0x58] sm:$0xff]
      %v1420 = vld [vmem:[%s322 + $0x60] sm:$0xff]
      %v1421 = vld [vmem:[%s322 + $0x68] sm:$0xff]
      %v1422 = vld [vmem:[%s322 + $0x70] sm:$0xff]
      %v1423 = vld [vmem:[%s322 + $0x78] sm:$0xff]
      %v1424 = vld [vmem:[%s4] sm:$0xf]
      %v1425 = vld [vmem:[%s4 + $0x4] sm:$0xf]
      %v1426 = vld [vmem:[%s4 + $0x8] sm:$0xf]
      %v1427 = vld [vmem:[%s4 + $0xc] sm:$0xf]
      %v1428 = vld [vmem:[%s4 + $0x10] sm:$0xf]
      %v1429 = vld [vmem:[%s4 + $0x14] sm:$0xf]
      %v1430 = vld [vmem:[%s4 + $0x18] sm:$0xf]
      %v1431 = vld [vmem:[%s4 + $0x1c] sm:$0xf]
      %v1432 = vld [vmem:[%s4 + $0x20] sm:$0xf]
      %v1433 = vld [vmem:[%s4 + $0x24] sm:$0xf]
      %v1434 = vld [vmem:[%s4 + $0x28] sm:$0xf]
      %v1435 = vld [vmem:[%s4 + $0x2c] sm:$0xf]
      %v1436 = vld [vmem:[%s4 + $0x30] sm:$0xf]
      %v1437 = vld [vmem:[%s4 + $0x34] sm:$0xf]
      %v1438 = vld [vmem:[%s4 + $0x38] sm:$0xf]
      %v1439 = vld [vmem:[%s4 + $0x3c] sm:$0xf]
      %v1440 = vld [vmem:[%s5] sm:$0x1]
      %v1442 = vperm.slane %v1440, 0
      %v1452 = vunpack.c.l.b16 %v1408
      %v1453 = vunpack.c.l.b16 %v1410
      %v1454 = vunpack.c.l.b16 %v1412
      %v1455 = vunpack.c.l.b16 %v1414
      %v1456 = vunpack.c.l.b16 %v1416
      %v1457 = vunpack.c.l.b16 %v1418
      %v1458 = vunpack.c.l.b16 %v1420
      %v1459 = vunpack.c.l.b16 %v1422
      %v1460 = vpack.c.b16 %v1453, %v1452
      %v1461 = vpack.c.b16 %v1455, %v1454
      %v1462 = vpack.c.b16 %v1457, %v1456
      %v1463 = vpack.c.b16 %v1459, %v1458
      %v1484 = vunpack.c.l.b16 %v1424
      %v1485 = vunpack.c.l.b16 %v1425
      %v1486 = vunpack.c.l.b16 %v1426
      %v1487 = vunpack.c.l.b16 %v1427
      %v1488 = vunpack.c.l.b16 %v1428
      %v1489 = vunpack.c.l.b16 %v1429
      %v1490 = vunpack.c.l.b16 %v1430
      %v1491 = vunpack.c.l.b16 %v1431
      %v1492 = vunpack.c.l.b16 %v1432
      %v1493 = vunpack.c.l.b16 %v1433
      %v1494 = vunpack.c.l.b16 %v1434
      %v1495 = vunpack.c.l.b16 %v1435
      %v1496 = vunpack.c.l.b16 %v1436
      %v1497 = vunpack.c.l.b16 %v1437
      %v1498 = vunpack.c.l.b16 %v1438
      %v1499 = vunpack.c.l.b16 %v1439
      %v1500 = vpack.c.b16 %v1485, %v1484
      %v1501 = vpack.c.b16 %v1487, %v1486
      %v1502 = vpack.c.b16 %v1489, %v1488
      %v1503 = vpack.c.b16 %v1491, %v1490
      %v1504 = vpack.c.b16 %v1493, %v1492
      %v1505 = vpack.c.b16 %v1495, %v1494
      %v1506 = vpack.c.b16 %v1497, %v1496
      %v1507 = vpack.c.b16 %v1499, %v1498
      %1516 = vmatpush.bf16.msra.mxu0 %v1507
      %1517 = vmatpush.bf16.msra.mxu0 %v1506
      %1518 = vmatpush.bf16.msra.mxu0 %v1505
      %1519 = vmatpush.bf16.msra.mxu0 %v1504
      %1520 = vmatpush.bf16.msra.mxu0 %v1503
      %1521 = vmatpush.bf16.msra.mxu0 %v1502
      %1522 = vmatpush.bf16.msra.mxu0 %v1501
      %1523 = vmatpush.bf16.msra.mxu0 %v1500
      %1524 = vmatmul.bf16.gmra.mxu0 %v1460
      %v1525 = vpop.f32.mrf.mxu0
      %v1526 = vadd.f32 %v1442, %v1525
      %v1527 = vpop.f32.mrf.mxu0
      %v1528 = vadd.f32 %v1442, %v1527
      %1529 = vmatmul.bf16.gmra.mxu0 %v1461
      %v1530 = vpop.f32.mrf.mxu0
      %v1531 = vadd.f32 %v1442, %v1530
      %v1532 = vpop.f32.mrf.mxu0
      %v1533 = vadd.f32 %v1442, %v1532
      %1534 = vmatmul.bf16.gmra.mxu0 %v1462
      %v1535 = vpop.f32.mrf.mxu0
      %v1536 = vadd.f32 %v1442, %v1535
      %v1537 = vpop.f32.mrf.mxu0
      %v1538 = vadd.f32 %v1442, %v1537
      %1539 = vmatmul.bf16.gmra.mxu0 %v1463
      %v1540 = vpop.f32.mrf.mxu0
      %v1541 = vadd.f32 %v1442, %v1540
      %v1542 = vpop.f32.mrf.mxu0
      %v1543 = vadd.f32 %v1442, %v1542
      %1544 = vdwg.mxu0
      %v1545 = vmax.f32 %v1526, 0.0
      %v1546 = vmax.f32 %v1528, 0.0
      %v1547 = vmax.f32 %v1531, 0.0
      %v1548 = vmax.f32 %v1533, 0.0
      %v1549 = vmax.f32 %v1536, 0.0
      %v1550 = vmax.f32 %v1538, 0.0
      %v1551 = vmax.f32 %v1541, 0.0
      %v1552 = vmax.f32 %v1543, 0.0
      %v1553 = vadd.f32 %v1400, %v1545
      %v1554 = vadd.f32 %v1401, %v1546
      %v1555 = vadd.f32 %v1402, %v1547
      %v1556 = vadd.f32 %v1403, %v1548
      %v1557 = vadd.f32 %v1404, %v1549
      %v1558 = vadd.f32 %v1405, %v1550
      %v1559 = vadd.f32 %v1406, %v1551
      %v1560 = vadd.f32 %v1407, %v1552
      %v1561 = vunpack.c.h.b16 %v1408
      %v1562 = vunpack.c.h.b16 %v1410
      %v1563 = vunpack.c.h.b16 %v1412
      %v1564 = vunpack.c.h.b16 %v1414
      %v1565 = vunpack.c.h.b16 %v1416
      %v1566 = vunpack.c.h.b16 %v1418
      %v1567 = vunpack.c.h.b16 %v1420
      %v1568 = vunpack.c.h.b16 %v1422
      %v1569 = vpack.c.b16 %v1562, %v1561
      %v1570 = vpack.c.b16 %v1564, %v1563
      %v1571 = vpack.c.b16 %v1566, %v1565
      %v1572 = vpack.c.b16 %v1568, %v1567
      %1577 = vmatpush.bf16.msra.mxu0 %v1507
      %1578 = vmatpush.bf16.msra.mxu0 %v1506
      %1579 = vmatpush.bf16.msra.mxu0 %v1505
      %1580 = vmatpush.bf16.msra.mxu0 %v1504
      %1581 = vmatpush.bf16.msra.mxu0 %v1503
      %1582 = vmatpush.bf16.msra.mxu0 %v1502
      %1583 = vmatpush.bf16.msra.mxu0 %v1501
      %1584 = vmatpush.bf16.msra.mxu0 %v1500
      %1585 = vmatmul.bf16.gmra.mxu0 %v1569
      %v1586 = vpop.f32.mrf.mxu0
      %v1587 = vadd.f32 %v1442, %v1586
      %v1588 = vpop.f32.mrf.mxu0
      %v1589 = vadd.f32 %v1442, %v1588
      %1590 = vmatmul.bf16.gmra.mxu0 %v1570
      %v1591 = vpop.f32.mrf.mxu0
      %v1592 = vadd.f32 %v1442, %v1591
      %v1593 = vpop.f32.mrf.mxu0
      %v1594 = vadd.f32 %v1442, %v1593
      %1595 = vmatmul.bf16.gmra.mxu0 %v1571
      %v1596 = vpop.f32.mrf.mxu0
      %v1597 = vadd.f32 %v1442, %v1596
      %v1598 = vpop.f32.mrf.mxu0
      %v1599 = vadd.f32 %v1442, %v1598
      %1600 = vmatmul.bf16.gmra.mxu0 %v1572
      %v1601 = vpop.f32.mrf.mxu0
      %v1602 = vadd.f32 %v1442, %v1601
      %v1603 = vpop.f32.mrf.mxu0
      %v1604 = vadd.f32 %v1442, %v1603
      %1605 = vdwg.mxu0
      %v1606 = vmax.f32 %v1587, 0.0
      %v1607 = vmax.f32 %v1589, 0.0
      %v1608 = vmax.f32 %v1592, 0.0
      %v1609 = vmax.f32 %v1594, 0.0
      %v1610 = vmax.f32 %v1597, 0.0
      %v1611 = vmax.f32 %v1599, 0.0
      %v1612 = vmax.f32 %v1602, 0.0
      %v1613 = vmax.f32 %v1604, 0.0
      %v1614 = vadd.f32 %v1400, %v1606
      %v1615 = vadd.f32 %v1401, %v1607
      %v1616 = vadd.f32 %v1402, %v1608
      %v1617 = vadd.f32 %v1403, %v1609
      %v1618 = vadd.f32 %v1404, %v1610
      %v1619 = vadd.f32 %v1405, %v1611
      %v1620 = vadd.f32 %v1406, %v1612
      %v1621 = vadd.f32 %v1407, %v1613
      %v1630 = vunpack.c.l.b16 %v1409
      %v1631 = vunpack.c.l.b16 %v1411
      %v1632 = vunpack.c.l.b16 %v1413
      %v1633 = vunpack.c.l.b16 %v1415
      %v1634 = vunpack.c.l.b16 %v1417
      %v1635 = vunpack.c.l.b16 %v1419
      %v1636 = vunpack.c.l.b16 %v1421
      %v1637 = vunpack.c.l.b16 %v1423
      %v1638 = vpack.c.b16 %v1631, %v1630
      %v1639 = vpack.c.b16 %v1633, %v1632
      %v1640 = vpack.c.b16 %v1635, %v1634
      %v1641 = vpack.c.b16 %v1637, %v1636
      %1646 = vmatpush.bf16.msra.mxu0 %v1507
      %1647 = vmatpush.bf16.msra.mxu0 %v1506
      %1648 = vmatpush.bf16.msra.mxu0 %v1505
      %1649 = vmatpush.bf16.msra.mxu0 %v1504
      %1650 = vmatpush.bf16.msra.mxu0 %v1503
      %1651 = vmatpush.bf16.msra.mxu0 %v1502
      %1652 = vmatpush.bf16.msra.mxu0 %v1501
      %1653 = vmatpush.bf16.msra.mxu0 %v1500
      %1654 = vmatmul.bf16.gmra.mxu0 %v1638
      %v1655 = vpop.f32.mrf.mxu0
      %v1656 = vadd.f32 %v1442, %v1655
      %v1657 = vpop.f32.mrf.mxu0
      %v1658 = vadd.f32 %v1442, %v1657
      %1659 = vmatmul.bf16.gmra.mxu0 %v1639
      %v1660 = vpop.f32.mrf.mxu0
      %v1661 = vadd.f32 %v1442, %v1660
      %v1662 = vpop.f32.mrf.mxu0
      %v1663 = vadd.f32 %v1442, %v1662
      %1664 = vmatmul.bf16.gmra.mxu0 %v1640
      %v1665 = vpop.f32.mrf.mxu0
      %v1666 = vadd.f32 %v1442, %v1665
      %v1667 = vpop.f32.mrf.mxu0
      %v1668 = vadd.f32 %v1442, %v1667
      %1669 = vmatmul.bf16.gmra.mxu0 %v1641
      %v1670 = vpop.f32.mrf.mxu0
      %v1671 = vadd.f32 %v1442, %v1670
      %v1672 = vpop.f32.mrf.mxu0
      %v1673 = vadd.f32 %v1442, %v1672
      %1674 = vdwg.mxu0
      %v1675 = vmax.f32 %v1656, 0.0
      %v1676 = vmax.f32 %v1658, 0.0
      %v1677 = vmax.f32 %v1661, 0.0
      %v1678 = vmax.f32 %v1663, 0.0
      %v1679 = vmax.f32 %v1666, 0.0
      %v1680 = vmax.f32 %v1668, 0.0
      %v1681 = vmax.f32 %v1671, 0.0
      %v1682 = vmax.f32 %v1673, 0.0
      %v1683 = vadd.f32 %v1400, %v1675
      %v1684 = vadd.f32 %v1401, %v1676
      %v1685 = vadd.f32 %v1402, %v1677
      %v1686 = vadd.f32 %v1403, %v1678
      %v1687 = vadd.f32 %v1404, %v1679
      %v1688 = vadd.f32 %v1405, %v1680
      %v1689 = vadd.f32 %v1406, %v1681
      %v1690 = vadd.f32 %v1407, %v1682
      %v1691 = vunpack.c.h.b16 %v1409
      %v1692 = vunpack.c.h.b16 %v1411
      %v1693 = vunpack.c.h.b16 %v1413
      %v1694 = vunpack.c.h.b16 %v1415
      %v1695 = vunpack.c.h.b16 %v1417
      %v1696 = vunpack.c.h.b16 %v1419
      %v1697 = vunpack.c.h.b16 %v1421
      %v1698 = vunpack.c.h.b16 %v1423
      %v1699 = vpack.c.b16 %v1692, %v1691
      %v1700 = vpack.c.b16 %v1694, %v1693
      %v1701 = vpack.c.b16 %v1696, %v1695
      %v1702 = vpack.c.b16 %v1698, %v1697
      %1707 = vmatpush.bf16.msra.mxu0 %v1507
      %1708 = vmatpush.bf16.msra.mxu0 %v1506
      %1709 = vmatpush.bf16.msra.mxu0 %v1505
      %1710 = vmatpush.bf16.msra.mxu0 %v1504
      %1711 = vmatpush.bf16.msra.mxu0 %v1503
      %1712 = vmatpush.bf16.msra.mxu0 %v1502
      %1713 = vmatpush.bf16.msra.mxu0 %v1501
      %1714 = vmatpush.bf16.msra.mxu0 %v1500
      %1715 = vmatmul.bf16.gmra.mxu0 %v1699
      %v1716 = vpop.f32.mrf.mxu0
      %v1717 = vadd.f32 %v1442, %v1716
      %v1718 = vpop.f32.mrf.mxu0
      %v1719 = vadd.f32 %v1442, %v1718
      %1720 = vmatmul.bf16.gmra.mxu0 %v1700
      %v1721 = vpop.f32.mrf.mxu0
      %v1722 = vadd.f32 %v1442, %v1721
      %v1723 = vpop.f32.mrf.mxu0
      %v1724 = vadd.f32 %v1442, %v1723
      %1725 = vmatmul.bf16.gmra.mxu0 %v1701
      %v1726 = vpop.f32.mrf.mxu0
      %v1727 = vadd.f32 %v1442, %v1726
      %v1728 = vpop.f32.mrf.mxu0
      %v1729 = vadd.f32 %v1442, %v1728
      %1730 = vmatmul.bf16.gmra.mxu0 %v1702
      %v1731 = vpop.f32.mrf.mxu0
      %v1732 = vadd.f32 %v1442, %v1731
      %v1733 = vpop.f32.mrf.mxu0
      %v1734 = vadd.f32 %v1442, %v1733
      %1735 = vdwg.mxu0
      %v1736 = vmax.f32 %v1717, 0.0
      %v1737 = vmax.f32 %v1719, 0.0
      %v1738 = vmax.f32 %v1722, 0.0
      %v1739 = vmax.f32 %v1724, 0.0
      %v1740 = vmax.f32 %v1727, 0.0
      %v1741 = vmax.f32 %v1729, 0.0
      %v1742 = vmax.f32 %v1732, 0.0
      %v1743 = vmax.f32 %v1734, 0.0
      %v1744 = vadd.f32 %v1400, %v1736
      %v1745 = vadd.f32 %v1401, %v1737
      %v1746 = vadd.f32 %v1402, %v1738
      %v1747 = vadd.f32 %v1403, %v1739
      %v1748 = vadd.f32 %v1404, %v1740
      %v1749 = vadd.f32 %v1405, %v1741
      %v1750 = vadd.f32 %v1406, %v1742
      %v1751 = vadd.f32 %v1407, %v1743
      %1752 = vst [vmem:[%s333] sm:$0xff] %v1553
      %1753 = vst [vmem:[%s333 + $0x8] sm:$0xff] %v1614
      %1754 = vst [vmem:[%s333 + $0x10] sm:$0xff] %v1683
      %1755 = vst [vmem:[%s333 + $0x18] sm:$0xff] %v1744
      %1756 = vst [vmem:[%s333 + $0x20] sm:$0xff] %v1554
      %1757 = vst [vmem:[%s333 + $0x28] sm:$0xff] %v1615
      %1758 = vst [vmem:[%s333 + $0x30] sm:$0xff] %v1684
      %1759 = vst [vmem:[%s333 + $0x38] sm:$0xff] %v1745
      %1760 = vst [vmem:[%s333 + $0x40] sm:$0xff] %v1555
      %1761 = vst [vmem:[%s333 + $0x48] sm:$0xff] %v1616
      %1762 = vst [vmem:[%s333 + $0x50] sm:$0xff] %v1685
      %1763 = vst [vmem:[%s333 + $0x58] sm:$0xff] %v1746
      %1764 = vst [vmem:[%s333 + $0x60] sm:$0xff] %v1556
      %1765 = vst [vmem:[%s333 + $0x68] sm:$0xff] %v1617
      %1766 = vst [vmem:[%s333 + $0x70] sm:$0xff] %v1686
      %1767 = vst [vmem:[%s333 + $0x78] sm:$0xff] %v1747
      %1768 = vst [vmem:[%s333 + $0x80] sm:$0xff] %v1557
      %1769 = vst [vmem:[%s333 + $0x88] sm:$0xff] %v1618
      %1770 = vst [vmem:[%s333 + $0x90] sm:$0xff] %v1687
      %1771 = vst [vmem:[%s333 + $0x98] sm:$0xff] %v1748
      %1772 = vst [vmem:[%s333 + $0xa0] sm:$0xff] %v1558
      %1773 = vst [vmem:[%s333 + $0xa8] sm:$0xff] %v1619
      %1774 = vst [vmem:[%s333 + $0xb0] sm:$0xff] %v1688
      %1775 = vst [vmem:[%s333 + $0xb8] sm:$0xff] %v1749
      %1776 = vst [vmem:[%s333 + $0xc0] sm:$0xff] %v1559
      %1777 = vst [vmem:[%s333 + $0xc8] sm:$0xff] %v1620
      %1778 = vst [vmem:[%s333 + $0xd0] sm:$0xff] %v1689
      %1779 = vst [vmem:[%s333 + $0xd8] sm:$0xff] %v1750
      %1780 = vst [vmem:[%s333 + $0xe0] sm:$0xff] %v1560
      %1781 = vst [vmem:[%s333 + $0xe8] sm:$0xff] %v1621
      %1782 = vst [vmem:[%s333 + $0xf0] sm:$0xff] %v1690
      %1783 = vst [vmem:[%s333 + $0xf8] sm:$0xff] %v1751
      %s1784 = smul.u32 8, %s22
      %p1785 = scmp.lt.s32.totalorder %s21, 1
      %s1786 = scalar_select %p1785, %s21, 1
      %p1787 = scmp.lt.s32.totalorder %s1784, 7
      %s1788 = scalar_select %p1787, %s1784, 7
      %s1789 = smul.addr %s1788, 4
      %s1790 = smul.addr %s1786, 32
      %s1791 = sadd.s32 %s1789, %s1790
      %s1792 = smul.addr %s1791, 8
      %s1793 = scalar_lea.vmem %s6, %s1792
      // Predicated region
      $region45: #{fatnet_forward.24} parent=43 // pred_check
        %p1794 = pneg %p189
      $region46: #{fatnet_forward.24} parent=43 // pred_check_branch
        %1796 = sbr.rel (%p1794) target = $region48
      $region47: #{fatnet_forward.24} parent=43 // pred_region
        %s1797 = smul.u32 8, %s22
      $region48: #{fatnet_forward.24} parent=43 // pred_fallthru
        _
    $region44: #{fatnet_forward.24} parent=5 // pred_fallthru
      _
    %p1798 = scmp.le.s32.totalorder 2, %s12
    // Predicated region
    $region49: #{fatnet_forward.24} parent=5 // pred_check
      %p1799 = pneg %p1798
    $region50: #{fatnet_forward.24} parent=5 // pred_check_branch
      %1801 = sbr.rel (%p1799) target = $region52
    $region51: #{fatnet_forward.24} parent=5 // pred_region
      %s1802 = ssub.s32 %s12, 2
      // Predicated region
      $region53: #{fatnet_forward.24} parent=51 // pred_check
        %p1803 = pneg %p195
      $region54: #{fatnet_forward.24} parent=51 // pred_check_branch
        %1805 = sbr.rel (%p1803) target = $region56
      $region55: #{fatnet_forward.24} parent=51 // pred_region
        %s1806 = smul.u32 8, %s24
        %p1807 = scmp.lt.s32.totalorder %s23, 1
        %s1808 = scalar_select %p1807, %s23, 1
        %p1809 = scmp.lt.s32.totalorder %s1806, 7
        %s1810 = scalar_select %p1809, %s1806, 7
        %s1811 = smul.addr %s1810, 4
        %s1812 = smul.addr %s1808, 32
        %s1813 = sadd.s32 %s1811, %s1812
        %s1814 = smul.addr %s1813, 8
        %s1815 = scalar_lea.vmem %s6, %s1814
      $region56: #{fatnet_forward.24} parent=51 // pred_fallthru
        _
    $region52: #{fatnet_forward.24} parent=5 // pred_fallthru
      _
  $region6: #{fatnet_forward.24} parent=0 // loop_footer
    %s16 = sadd.s32 1, %s12
  $region7: #{fatnet_forward.24} parent=0 // loop_footer_branch
    %11 = sbr.rel target = $region3
  $region8: #{fatnet_forward.24} parent=0 // loop_exit
    _

</llo_original>
